<compile_context>
chip_gen: v6e
topology: v6e:2x2x1
jax: 0.10.0
libtpu: 0.0.40
codegen_flags: <defaults>
</compile_context>

<pallas_src>
import jax
import jax.numpy as jnp
from jax.experimental import pallas as pl
from jax.experimental.pallas import tpu as pltpu

EPS = 1e-5


def bn_add_relu_conv_kernel(x_ref, r_ref, wt_ref, gamma_ref, beta_ref, o_ref):
    """x_ref, r_ref: (C, P) f32 ; wt_ref: (C_in, C_out) bf16 ; gamma/beta: (C, 1) f32.

    o_ref: (P, C_out) f32, lane-dense along C_out.

    NOTE: BN statistics are taken over axis 1 of the current block.  This is
    correct only because the single block covers all N*H*W positions
    (grid=(1,)).  If P is ever tiled (e.g. large spatial extents / v7x VMEM),
    statistics must be computed in a separate pass or carried across steps.
    """
    x = x_ref[...]                                     # (C, P) f32
    r = r_ref[...]

    # ---- single-pass BN statistics over the spatial axis (lane reduction) ----
    inv_p = jnp.float32(1.0 / x.shape[1])
    s1 = jnp.sum(x, axis=1, keepdims=True)             # (C, 1)
    s2 = jnp.sum(x * x, axis=1, keepdims=True)         # (C, 1)
    mean = s1 * inv_p
    var = s2 * inv_p - mean * mean                     # biased variance (PyTorch fwd)

    scale = gamma_ref[...] * jax.lax.rsqrt(var + EPS)  # (C, 1)
    shift = beta_ref[...] - mean * scale               # (C, 1)

    # ---- BN + residual add + ReLU (VPU, channels-major layout) ----
    y = jnp.maximum(x * scale + shift + r, 0.0)        # (C, P) f32

    # ---- one in-kernel XLU transpose + bf16 cast, then MXU matmul ----
    y_t = jnp.transpose(y, (1, 0)).astype(jnp.bfloat16)        # (P, C_in) bf16
    o_ref[...] = jnp.dot(y_t, wt_ref[...],
                         preferred_element_type=jnp.float32)   # (P, C_out) f32


@jax.jit
def forward(x170, x179, conv_w, gamma, beta):
    """x170, x179: (N, C, H, W) f32.  conv_w: (C_out, C_in, 1, 1).  Returns NCHW f32."""
    N, C, H, W = x170.shape
    C_out = conv_w.shape[0]
    P = N * H * W

    # Channels-major, spatially-flattened views of the inputs.
    # For N == 1 this is a pure reshape (no transpose HLO / data movement).
    if N == 1:
        x_cp = x170.reshape(C, P)
        r_cp = x179.reshape(C, P)
    else:
        x_cp = jnp.transpose(x170, (1, 0, 2, 3)).reshape(C, P)
        r_cp = jnp.transpose(x179, (1, 0, 2, 3)).reshape(C, P)

    # Weight: (C_out, C_in, 1, 1) -> (C_in, C_out), cast to bf16 once in the
    # wrapper (halves the dominant weight DMA; MXU runs at native bf16 rate
    # while the matmul accumulates in f32).
    wt = conv_w.reshape(C_out, C).T.astype(jnp.bfloat16)
    g = gamma.reshape(C, 1).astype(jnp.float32)
    b = beta.reshape(C, 1).astype(jnp.float32)

    cost = pl.CostEstimate(
        flops=2 * P * C * C_out,
        transcendentals=C,  # one rsqrt per channel
        bytes_accessed=(2 * P * C * 4) + (C * C_out * 2) + (P * C_out * 4) + (2 * C * 4),
    )

    out2d = pl.pallas_call(
        bn_add_relu_conv_kernel,
        out_shape=jax.ShapeDtypeStruct((P, C_out), jnp.float32),
        grid=(1,),
        in_specs=[
            pl.BlockSpec((C, P), lambda i: (0, 0)),
            pl.BlockSpec((C, P), lambda i: (0, 0)),
            pl.BlockSpec((C, C_out), lambda i: (0, 0)),
            pl.BlockSpec((C, 1), lambda i: (0, 0)),
            pl.BlockSpec((C, 1), lambda i: (0, 0)),
        ],
        out_specs=pl.BlockSpec((P, C_out), lambda i: (0, 0)),
        compiler_params=pltpu.CompilerParams(dimension_semantics=("arbitrary",)),
        cost_estimate=cost,
    )(x_cp, r_cp, wt, g, b)

    # Kernel output is kept lane-dense (P, C_out); one cheap wrapper transpose
    # back to NCHW.  (Emitting (C_out, P) from the kernel would force masked
    # 49/128-lane stores, which costs more than this transpose.)
    out_cp = out2d.T                                   # (C_out, P)
    if N == 1:
        return out_cp.reshape(1, C_out, H, W)
    return out_cp.reshape(C_out, N, H, W).transpose(1, 0, 2, 3)


def reference(x170, x179, conv_w, gamma, beta):
    """Pure-JAX reference matching PyTorch training-mode BN -> add -> ReLU -> 1x1 conv."""
    mean = jnp.mean(x170, axis=(0, 2, 3), keepdims=True)
    var = jnp.mean(jnp.square(x170 - mean), axis=(0, 2, 3), keepdims=True)  # biased
    xn = (x170 - mean) * jax.lax.rsqrt(var + EPS)
    xn = xn * gamma.reshape(1, -1, 1, 1) + beta.reshape(1, -1, 1, 1)
    y = jnp.maximum(xn + x179, 0.0)
    w2d = conv_w.reshape(conv_w.shape[0], conv_w.shape[1])
    return jnp.einsum("nchw,oc->nohw", y, w2d)


if __name__ == "__main__":
    # Shapes implied by the module: N=1, C=912, H=W=7 (already small).
    N, C, H, W = 1, 912, 7, 7

    key = jax.random.PRNGKey(0)
    k_x, k_r, k_w = jax.random.split(key, 3)

    x170 = jax.random.normal(k_x, (N, C, H, W), dtype=jnp.float32)
    x179 = jax.random.normal(k_r, (N, C, H, W), dtype=jnp.float32)

    # Deterministic synthetic parameter init (not a checkpoint load).
    conv_w = jax.random.normal(k_w, (C, C, 1, 1), dtype=jnp.float32) * (1.0 / jnp.sqrt(C))
    gamma = jnp.ones((C,), dtype=jnp.float32)   # BatchNorm2d affine weight init
    beta = jnp.zeros((C,), dtype=jnp.float32)   # BatchNorm2d affine bias init

    out = forward(x170, x179, conv_w, gamma, beta)
    jax.block_until_ready(out)
    assert out.shape == (N, C, H, W)

    # Loose tolerance: the matmul LHS/weight are bf16 (f32 accumulation).
    ref = reference(x170, x179, conv_w, gamma, beta)
    max_err = float(jnp.max(jnp.abs(out - ref)))
    ref_scale = float(jnp.max(jnp.abs(ref)))
    assert max_err <= 5e-2 * ref_scale + 1e-1, f"max abs error too large: {max_err}"

    print("KERNEL_OK")
</pallas_src>

<mosaic_0001>
module attributes {stable_mosaic.version = 11 : i64} {
  func.func @bn_add_relu_conv_kernel(%arg0: i32, %arg1: memref<912x49xf32, #tpu.memory_space<vmem>>, %arg2: memref<912x49xf32, #tpu.memory_space<vmem>>, %arg3: memref<912x912xbf16, #tpu.memory_space<vmem>>, %arg4: memref<912x1xf32, #tpu.memory_space<vmem>>, %arg5: memref<912x1xf32, #tpu.memory_space<vmem>>, %arg6: memref<49x912xf32, #tpu.memory_space<vmem>>) attributes {dimension_semantics = [#tpu.dimension_semantics<arbitrary>], iteration_bounds = array<i64: 1>, scalar_prefetch = 0 : i64, scratch_operands = 0 : i64, tpu.core_type = #tpu.core_type<tc>, window_params = [{pipeline_mode = #tpu.pipeline_mode<synchronous>, transform_indices = @transform_0, window_bounds = array<i64: 912, 49>}, {pipeline_mode = #tpu.pipeline_mode<synchronous>, transform_indices = @transform_1, window_bounds = array<i64: 912, 49>}, {pipeline_mode = #tpu.pipeline_mode<synchronous>, transform_indices = @transform_2, window_bounds = array<i64: 912, 912>}, {pipeline_mode = #tpu.pipeline_mode<synchronous>, transform_indices = @transform_3, window_bounds = array<i64: 912, 1>}, {pipeline_mode = #tpu.pipeline_mode<synchronous>, transform_indices = @transform_4, window_bounds = array<i64: 912, 1>}, {pipeline_mode = #tpu.pipeline_mode<synchronous>, transform_indices = @transform_5, window_bounds = array<i64: 49, 912>}]} {
    %c0 = arith.constant 0 : index
    %c0_0 = arith.constant 0 : index
    %0 = vector.load %arg1[%c0, %c0_0] : memref<912x49xf32, #tpu.memory_space<vmem>>, vector<912x49xf32>
    %c0_1 = arith.constant 0 : index
    %c0_2 = arith.constant 0 : index
    %1 = vector.load %arg2[%c0_1, %c0_2] : memref<912x49xf32, #tpu.memory_space<vmem>>, vector<912x49xf32>
    %cst = arith.constant dense<0.000000e+00> : vector<912xf32>
    %2 = vector.multi_reduction <add>, %0, %cst [1] : vector<912x49xf32> to vector<912xf32>
    %3 = vector.shape_cast %2 : vector<912xf32> to vector<912x1xf32>
    %4 = arith.mulf %0, %0 : vector<912x49xf32>
    %cst_3 = arith.constant dense<0.000000e+00> : vector<912xf32>
    %5 = vector.multi_reduction <add>, %4, %cst_3 [1] : vector<912x49xf32> to vector<912xf32>
    %6 = vector.shape_cast %5 : vector<912xf32> to vector<912x1xf32>
    %cst_4 = arith.constant 0.0204081628 : f32
    %7 = vector.broadcast %cst_4 : f32 to vector<912x1xf32>
    %8 = arith.mulf %3, %7 : vector<912x1xf32>
    %cst_5 = arith.constant 0.0204081628 : f32
    %9 = vector.broadcast %cst_5 : f32 to vector<912x1xf32>
    %10 = arith.mulf %6, %9 : vector<912x1xf32>
    %11 = arith.mulf %8, %8 : vector<912x1xf32>
    %12 = arith.subf %10, %11 : vector<912x1xf32>
    %c0_6 = arith.constant 0 : index
    %c0_7 = arith.constant 0 : index
    %13 = vector.load %arg4[%c0_6, %c0_7] : memref<912x1xf32, #tpu.memory_space<vmem>>, vector<912x1xf32>
    %cst_8 = arith.constant 9.99999974E-6 : f32
    %14 = vector.broadcast %cst_8 : f32 to vector<912x1xf32>
    %15 = arith.addf %12, %14 : vector<912x1xf32>
    %16 = math.rsqrt %15 : vector<912x1xf32>
    %17 = arith.mulf %13, %16 : vector<912x1xf32>
    %c0_9 = arith.constant 0 : index
    %c0_10 = arith.constant 0 : index
    %18 = vector.load %arg5[%c0_9, %c0_10] : memref<912x1xf32, #tpu.memory_space<vmem>>, vector<912x1xf32>
    %19 = arith.mulf %8, %17 : vector<912x1xf32>
    %20 = arith.subf %18, %19 : vector<912x1xf32>
    %21 = vector.broadcast %17 : vector<912x1xf32> to vector<912x49xf32>
    %22 = arith.mulf %0, %21 : vector<912x49xf32>
    %23 = vector.broadcast %20 : vector<912x1xf32> to vector<912x49xf32>
    %24 = arith.addf %22, %23 : vector<912x49xf32>
    %25 = arith.addf %24, %1 : vector<912x49xf32>
    %cst_11 = arith.constant 0.000000e+00 : f32
    %26 = vector.broadcast %cst_11 : f32 to vector<912x49xf32>
    %27 = arith.maximumf %25, %26 : vector<912x49xf32>
    %28 = tpu.transpose %27, [1, 0] : vector<912x49xf32> -> vector<49x912xf32>
    %29 = arith.truncf %28 : vector<49x912xf32> to vector<49x912xbf16>
    %c0_12 = arith.constant 0 : index
    %c0_13 = arith.constant 0 : index
    %30 = vector.load %arg3[%c0_12, %c0_13] : memref<912x912xbf16, #tpu.memory_space<vmem>>, vector<912x912xbf16>
    %cst_14 = arith.constant dense<0.000000e+00> : vector<49x912xf32>
    %31 = tpu.matmul %29, %30, %cst_14 {dimension_numbers = #tpu.dot_dimension_numbers<[1], [0], [0], [1], [0, 0, 1, 1], [], []>} : vector<49x912xbf16>, vector<912x912xbf16>, vector<49x912xf32> -> vector<49x912xf32>
    %c0_15 = arith.constant 0 : index
    %c0_16 = arith.constant 0 : index
    %32 = vector.load %arg6[%c0_15, %c0_16] : memref<49x912xf32, #tpu.memory_space<vmem>>, vector<49x912xf32>
    tpu.vector_store %arg6[%c0_15, %c0_16], %31 {strides = array<i32>} : memref<49x912xf32, #tpu.memory_space<vmem>>, vector<49x912xf32>,
    return
  }
  func.func @transform_0(%arg0: i32) -> (i32, i32) {
    %c0_i32 = arith.constant 0 : i32
    %c0_i32_0 = arith.constant 0 : i32
    %c0_i32_1 = arith.constant 0 : i32
    return %c0_i32, %c0_i32_0 : i32, i32
  }
  func.func @transform_1(%arg0: i32) -> (i32, i32) {
    %c0_i32 = arith.constant 0 : i32
    %c0_i32_0 = arith.constant 0 : i32
    %c0_i32_1 = arith.constant 0 : i32
    return %c0_i32, %c0_i32_0 : i32, i32
  }
  func.func @transform_2(%arg0: i32) -> (i32, i32) {
    %c0_i32 = arith.constant 0 : i32
    %c0_i32_0 = arith.constant 0 : i32
    %c0_i32_1 = arith.constant 0 : i32
    return %c0_i32, %c0_i32_0 : i32, i32
  }
  func.func @transform_3(%arg0: i32) -> (i32, i32) {
    %c0_i32 = arith.constant 0 : i32
    %c0_i32_0 = arith.constant 0 : i32
    %c0_i32_1 = arith.constant 0 : i32
    return %c0_i32, %c0_i32_0 : i32, i32
  }
  func.func @transform_4(%arg0: i32) -> (i32, i32) {
    %c0_i32 = arith.constant 0 : i32
    %c0_i32_0 = arith.constant 0 : i32
    %c0_i32_1 = arith.constant 0 : i32
    return %c0_i32, %c0_i32_0 : i32, i32
  }
  func.func @transform_5(%arg0: i32) -> (i32, i32) {
    %c0_i32 = arith.constant 0 : i32
    %c0_i32_0 = arith.constant 0 : i32
    %c0_i32_1 = arith.constant 0 : i32
    return %c0_i32, %c0_i32_0 : i32, i32
  }
}

</mosaic_0001>

<llo_original>
// kernel: forward.1
$region0: #{forward.1}
  #allocation0 [shape = 'u32[]', space=smem, size = 0x4, offset = 0x4, fixed_abs, tag = 'smem constant byte address 0x4 - core index']
  #allocation1 [shape = 'u32[144,128]{1,0:T(1,128)}', space=vmem, size = 0x12000, scoped, tag = 'internal scratch']
  %s0 = inlined_call_operand.vmem [shape: f32[912,49], index: 0, kind: input, shape index: {}]
  %s1 = inlined_call_operand.vmem [shape: f32[912,49], index: 1, kind: input, shape index: {}]
  %s2 = inlined_call_operand.vmem [shape: bf16[912,912], index: 2, kind: input, shape index: {}]
  %s3 = inlined_call_operand.vmem [shape: f32[912,1], index: 3, kind: input, shape index: {}]
  %s4 = inlined_call_operand.vmem [shape: f32[912,1], index: 4, kind: input, shape index: {}]
  %s5 = inlined_call_operand.vmem [shape: f32[49,912], index: 5, kind: output, shape index: {}]
  %s6 = sld [smem:[#allocation0]]
  $region30: #{forward.1} parent=0
    _
  %s8 = ssub.s32 1, %s6
  %s9 = scalar_select 0, %s8, %s6
  // Predicated region
  $region2: #{forward.1} parent=0 // pred_check
    _
  $region3: #{forward.1} parent=0 // pred_check_branch
    %11 = sbr.rel (0) target = $region5
  $region4: #{forward.1} parent=0 // pred_region
    _
  $region5: #{forward.1} parent=0 // pred_fallthru
    _
  // Predicated region
  $region6: #{forward.1} parent=0 // pred_check
    _
  $region7: #{forward.1} parent=0 // pred_check_branch
    %13 = sbr.rel (0) target = $region9
  $region8: #{forward.1} parent=0 // pred_region
    _
  $region9: #{forward.1} parent=0 // pred_fallthru
    _
  // Predicated region
  $region10: #{forward.1} parent=0 // pred_check
    _
  $region11: #{forward.1} parent=0 // pred_check_branch
    %15 = sbr.rel (0) target = $region13
  $region12: #{forward.1} parent=0 // pred_region
    _
  $region13: #{forward.1} parent=0 // pred_fallthru
    _
  // Predicated region
  $region14: #{forward.1} parent=0 // pred_check
    _
  $region15: #{forward.1} parent=0 // pred_check_branch
    %17 = sbr.rel (0) target = $region17
  $region16: #{forward.1} parent=0 // pred_region
    _
  $region17: #{forward.1} parent=0 // pred_fallthru
    _
  // Predicated region
  $region18: #{forward.1} parent=0 // pred_check
    _
  $region19: #{forward.1} parent=0 // pred_check_branch
    %19 = sbr.rel (0) target = $region21
  $region20: #{forward.1} parent=0 // pred_region
    _
  $region21: #{forward.1} parent=0 // pred_fallthru
    _
  %v21 = vld [vmem:[%s0] sm:$0xff]
  %v22 = vld [vmem:[%s0 + $0x8] sm:$0xff]
  %v23 = vld [vmem:[%s0 + $0x10] sm:$0xff]
  %v24 = vld [vmem:[%s0 + $0x18] sm:$0xff]
  %v25 = vld [vmem:[%s0 + $0x20] sm:$0xff]
  %v26 = vld [vmem:[%s0 + $0x28] sm:$0xff]
  %v27 = vld [vmem:[%s0 + $0x30] sm:$0xff]
  %v28 = vld [vmem:[%s0 + $0x38] sm:$0xff]
  %v29 = vld [vmem:[%s0 + $0x40] sm:$0xff]
  %v30 = vld [vmem:[%s0 + $0x48] sm:$0xff]
  %v31 = vld [vmem:[%s0 + $0x50] sm:$0xff]
  %v32 = vld [vmem:[%s0 + $0x58] sm:$0xff]
  %v33 = vld [vmem:[%s0 + $0x60] sm:$0xff]
  %v34 = vld [vmem:[%s0 + $0x68] sm:$0xff]
  %v35 = vld [vmem:[%s0 + $0x70] sm:$0xff]
  %v36 = vld [vmem:[%s0 + $0x78] sm:$0xff]
  %v37 = vld [vmem:[%s0 + $0x80] sm:$0xff]
  %v38 = vld [vmem:[%s0 + $0x88] sm:$0xff]
  %v39 = vld [vmem:[%s0 + $0x90] sm:$0xff]
  %v40 = vld [vmem:[%s0 + $0x98] sm:$0xff]
  %v41 = vld [vmem:[%s0 + $0xa0] sm:$0xff]
  %v42 = vld [vmem:[%s0 + $0xa8] sm:$0xff]
  %v43 = vld [vmem:[%s0 + $0xb0] sm:$0xff]
  %v44 = vld [vmem:[%s0 + $0xb8] sm:$0xff]
  %v45 = vld [vmem:[%s0 + $0xc0] sm:$0xff]
  %v46 = vld [vmem:[%s0 + $0xc8] sm:$0xff]
  %v47 = vld [vmem:[%s0 + $0xd0] sm:$0xff]
  %v48 = vld [vmem:[%s0 + $0xd8] sm:$0xff]
  %v49 = vld [vmem:[%s0 + $0xe0] sm:$0xff]
  %v50 = vld [vmem:[%s0 + $0xe8] sm:$0xff]
  %v51 = vld [vmem:[%s0 + $0xf0] sm:$0xff]
  %v52 = vld [vmem:[%s0 + $0xf8] sm:$0xff]
  %v53 = vld [vmem:[%s0 + $0x100] sm:$0xff]
  %v54 = vld [vmem:[%s0 + $0x108] sm:$0xff]
  %v55 = vld [vmem:[%s0 + $0x110] sm:$0xff]
  %v56 = vld [vmem:[%s0 + $0x118] sm:$0xff]
  %v57 = vld [vmem:[%s0 + $0x120] sm:$0xff]
  %v58 = vld [vmem:[%s0 + $0x128] sm:$0xff]
  %v59 = vld [vmem:[%s0 + $0x130] sm:$0xff]
  %v60 = vld [vmem:[%s0 + $0x138] sm:$0xff]
  %v61 = vld [vmem:[%s0 + $0x140] sm:$0xff]
  %v62 = vld [vmem:[%s0 + $0x148] sm:$0xff]
  %v63 = vld [vmem:[%s0 + $0x150] sm:$0xff]
  %v64 = vld [vmem:[%s0 + $0x158] sm:$0xff]
  %v65 = vld [vmem:[%s0 + $0x160] sm:$0xff]
  %v66 = vld [vmem:[%s0 + $0x168] sm:$0xff]
  %v67 = vld [vmem:[%s0 + $0x170] sm:$0xff]
  %v68 = vld [vmem:[%s0 + $0x178] sm:$0xff]
  %v69 = vld [vmem:[%s0 + $0x180] sm:$0xff]
  %v70 = vld [vmem:[%s0 + $0x188] sm:$0xff]
  %v71 = vld [vmem:[%s0 + $0x190] sm:$0xff]
  %v72 = vld [vmem:[%s0 + $0x198] sm:$0xff]
  %v73 = vld [vmem:[%s0 + $0x1a0] sm:$0xff]
  %v74 = vld [vmem:[%s0 + $0x1a8] sm:$0xff]
  %v75 = vld [vmem:[%s0 + $0x1b0] sm:$0xff]
  %v76 = vld [vmem:[%s0 + $0x1b8] sm:$0xff]
  %v77 = vld [vmem:[%s0 + $0x1c0] sm:$0xff]
  %v78 = vld [vmem:[%s0 + $0x1c8] sm:$0xff]
  %v79 = vld [vmem:[%s0 + $0x1d0] sm:$0xff]
  %v80 = vld [vmem:[%s0 + $0x1d8] sm:$0xff]
  %v81 = vld [vmem:[%s0 + $0x1e0] sm:$0xff]
  %v82 = vld [vmem:[%s0 + $0x1e8] sm:$0xff]
  %v83 = vld [vmem:[%s0 + $0x1f0] sm:$0xff]
  %v84 = vld [vmem:[%s0 + $0x1f8] sm:$0xff]
  %v85 = vld [vmem:[%s0 + $0x200] sm:$0xff]
  %v86 = vld [vmem:[%s0 + $0x208] sm:$0xff]
  %v87 = vld [vmem:[%s0 + $0x210] sm:$0xff]
  %v88 = vld [vmem:[%s0 + $0x218] sm:$0xff]
  %v89 = vld [vmem:[%s0 + $0x220] sm:$0xff]
  %v90 = vld [vmem:[%s0 + $0x228] sm:$0xff]
  %v91 = vld [vmem:[%s0 + $0x230] sm:$0xff]
  %v92 = vld [vmem:[%s0 + $0x238] sm:$0xff]
  %v93 = vld [vmem:[%s0 + $0x240] sm:$0xff]
  %v94 = vld [vmem:[%s0 + $0x248] sm:$0xff]
  %v95 = vld [vmem:[%s0 + $0x250] sm:$0xff]
  %v96 = vld [vmem:[%s0 + $0x258] sm:$0xff]
  %v97 = vld [vmem:[%s0 + $0x260] sm:$0xff]
  %v98 = vld [vmem:[%s0 + $0x268] sm:$0xff]
  %v99 = vld [vmem:[%s0 + $0x270] sm:$0xff]
  %v100 = vld [vmem:[%s0 + $0x278] sm:$0xff]
  %v101 = vld [vmem:[%s0 + $0x280] sm:$0xff]
  %v102 = vld [vmem:[%s0 + $0x288] sm:$0xff]
  %v103 = vld [vmem:[%s0 + $0x290] sm:$0xff]
  %v104 = vld [vmem:[%s0 + $0x298] sm:$0xff]
  %v105 = vld [vmem:[%s0 + $0x2a0] sm:$0xff]
  %v106 = vld [vmem:[%s0 + $0x2a8] sm:$0xff]
  %v107 = vld [vmem:[%s0 + $0x2b0] sm:$0xff]
  %v108 = vld [vmem:[%s0 + $0x2b8] sm:$0xff]
  %v109 = vld [vmem:[%s0 + $0x2c0] sm:$0xff]
  %v110 = vld [vmem:[%s0 + $0x2c8] sm:$0xff]
  %v111 = vld [vmem:[%s0 + $0x2d0] sm:$0xff]
  %v112 = vld [vmem:[%s0 + $0x2d8] sm:$0xff]
  %v113 = vld [vmem:[%s0 + $0x2e0] sm:$0xff]
  %v114 = vld [vmem:[%s0 + $0x2e8] sm:$0xff]
  %v115 = vld [vmem:[%s0 + $0x2f0] sm:$0xff]
  %v116 = vld [vmem:[%s0 + $0x2f8] sm:$0xff]
  %v117 = vld [vmem:[%s0 + $0x300] sm:$0xff]
  %v118 = vld [vmem:[%s0 + $0x308] sm:$0xff]
  %v119 = vld [vmem:[%s0 + $0x310] sm:$0xff]
  %v120 = vld [vmem:[%s0 + $0x318] sm:$0xff]
  %v121 = vld [vmem:[%s0 + $0x320] sm:$0xff]
  %v122 = vld [vmem:[%s0 + $0x328] sm:$0xff]
  %v123 = vld [vmem:[%s0 + $0x330] sm:$0xff]
  %v124 = vld [vmem:[%s0 + $0x338] sm:$0xff]
  %v125 = vld [vmem:[%s0 + $0x340] sm:$0xff]
  %v126 = vld [vmem:[%s0 + $0x348] sm:$0xff]
  %v127 = vld [vmem:[%s0 + $0x350] sm:$0xff]
  %v128 = vld [vmem:[%s0 + $0x358] sm:$0xff]
  %v129 = vld [vmem:[%s0 + $0x360] sm:$0xff]
  %v130 = vld [vmem:[%s0 + $0x368] sm:$0xff]
  %v131 = vld [vmem:[%s0 + $0x370] sm:$0xff]
  %v132 = vld [vmem:[%s0 + $0x378] sm:$0xff]
  %v133 = vld [vmem:[%s0 + $0x380] sm:$0xff]
  %v134 = vld [vmem:[%s0 + $0x388] sm:$0xff]
  %v135 = vld [vmem:[%s1] sm:$0xff]
  %v136 = vld [vmem:[%s1 + $0x8] sm:$0xff]
  %v137 = vld [vmem:[%s1 + $0x10] sm:$0xff]
  %v138 = vld [vmem:[%s1 + $0x18] sm:$0xff]
  %v139 = vld [vmem:[%s1 + $0x20] sm:$0xff]
  %v140 = vld [vmem:[%s1 + $0x28] sm:$0xff]
  %v141 = vld [vmem:[%s1 + $0x30] sm:$0xff]
  %v142 = vld [vmem:[%s1 + $0x38] sm:$0xff]
  %v143 = vld [vmem:[%s1 + $0x40] sm:$0xff]
  %v144 = vld [vmem:[%s1 + $0x48] sm:$0xff]
  %v145 = vld [vmem:[%s1 + $0x50] sm:$0xff]
  %v146 = vld [vmem:[%s1 + $0x58] sm:$0xff]
  %v147 = vld [vmem:[%s1 + $0x60] sm:$0xff]
  %v148 = vld [vmem:[%s1 + $0x68] sm:$0xff]
  %v149 = vld [vmem:[%s1 + $0x70] sm:$0xff]
  %v150 = vld [vmem:[%s1 + $0x78] sm:$0xff]
  %v151 = vld [vmem:[%s1 + $0x80] sm:$0xff]
  %v152 = vld [vmem:[%s1 + $0x88] sm:$0xff]
  %v153 = vld [vmem:[%s1 + $0x90] sm:$0xff]
  %v154 = vld [vmem:[%s1 + $0x98] sm:$0xff]
  %v155 = vld [vmem:[%s1 + $0xa0] sm:$0xff]
  %v156 = vld [vmem:[%s1 + $0xa8] sm:$0xff]
  %v157 = vld [vmem:[%s1 + $0xb0] sm:$0xff]
  %v158 = vld [vmem:[%s1 + $0xb8] sm:$0xff]
  %v159 = vld [vmem:[%s1 + $0xc0] sm:$0xff]
  %v160 = vld [vmem:[%s1 + $0xc8] sm:$0xff]
  %v161 = vld [vmem:[%s1 + $0xd0] sm:$0xff]
  %v162 = vld [vmem:[%s1 + $0xd8] sm:$0xff]
  %v163 = vld [vmem:[%s1 + $0xe0] sm:$0xff]
  %v164 = vld [vmem:[%s1 + $0xe8] sm:$0xff]
  %v165 = vld [vmem:[%s1 + $0xf0] sm:$0xff]
  %v166 = vld [vmem:[%s1 + $0xf8] sm:$0xff]
  %v167 = vld [vmem:[%s1 + $0x100] sm:$0xff]
  %v168 = vld [vmem:[%s1 + $0x108] sm:$0xff]
  %v169 = vld [vmem:[%s1 + $0x110] sm:$0xff]
  %v170 = vld [vmem:[%s1 + $0x118] sm:$0xff]
  %v171 = vld [vmem:[%s1 + $0x120] sm:$0xff]
  %v172 = vld [vmem:[%s1 + $0x128] sm:$0xff]
  %v173 = vld [vmem:[%s1 + $0x130] sm:$0xff]
  %v174 = vld [vmem:[%s1 + $0x138] sm:$0xff]
  %v175 = vld [vmem:[%s1 + $0x140] sm:$0xff]
  %v176 = vld [vmem:[%s1 + $0x148] sm:$0xff]
  %v177 = vld [vmem:[%s1 + $0x150] sm:$0xff]
  %v178 = vld [vmem:[%s1 + $0x158] sm:$0xff]
  %v179 = vld [vmem:[%s1 + $0x160] sm:$0xff]
  %v180 = vld [vmem:[%s1 + $0x168] sm:$0xff]
  %v181 = vld [vmem:[%s1 + $0x170] sm:$0xff]
  %v182 = vld [vmem:[%s1 + $0x178] sm:$0xff]
  %v183 = vld [vmem:[%s1 + $0x180] sm:$0xff]
  %v184 = vld [vmem:[%s1 + $0x188] sm:$0xff]
  %v185 = vld [vmem:[%s1 + $0x190] sm:$0xff]
  %v186 = vld [vmem:[%s1 + $0x198] sm:$0xff]
  %v187 = vld [vmem:[%s1 + $0x1a0] sm:$0xff]
  %v188 = vld [vmem:[%s1 + $0x1a8] sm:$0xff]
  %v189 = vld [vmem:[%s1 + $0x1b0] sm:$0xff]
  %v190 = vld [vmem:[%s1 + $0x1b8] sm:$0xff]
  %v191 = vld [vmem:[%s1 + $0x1c0] sm:$0xff]
  %v192 = vld [vmem:[%s1 + $0x1c8] sm:$0xff]
  %v193 = vld [vmem:[%s1 + $0x1d0] sm:$0xff]
  %v194 = vld [vmem:[%s1 + $0x1d8] sm:$0xff]
  %v195 = vld [vmem:[%s1 + $0x1e0] sm:$0xff]
  %v196 = vld [vmem:[%s1 + $0x1e8] sm:$0xff]
  %v197 = vld [vmem:[%s1 + $0x1f0] sm:$0xff]
  %v198 = vld [vmem:[%s1 + $0x1f8] sm:$0xff]
  %v199 = vld [vmem:[%s1 + $0x200] sm:$0xff]
  %v200 = vld [vmem:[%s1 + $0x208] sm:$0xff]
  %v201 = vld [vmem:[%s1 + $0x210] sm:$0xff]
  %v202 = vld [vmem:[%s1 + $0x218] sm:$0xff]
  %v203 = vld [vmem:[%s1 + $0x220] sm:$0xff]
  %v204 = vld [vmem:[%s1 + $0x228] sm:$0xff]
  %v205 = vld [vmem:[%s1 + $0x230] sm:$0xff]
  %v206 = vld [vmem:[%s1 + $0x238] sm:$0xff]
  %v207 = vld [vmem:[%s1 + $0x240] sm:$0xff]
  %v208 = vld [vmem:[%s1 + $0x248] sm:$0xff]
  %v209 = vld [vmem:[%s1 + $0x250] sm:$0xff]
  %v210 = vld [vmem:[%s1 + $0x258] sm:$0xff]
  %v211 = vld [vmem:[%s1 + $0x260] sm:$0xff]
  %v212 = vld [vmem:[%s1 + $0x268] sm:$0xff]
  %v213 = vld [vmem:[%s1 + $0x270] sm:$0xff]
  %v214 = vld [vmem:[%s1 + $0x278] sm:$0xff]
  %v215 = vld [vmem:[%s1 + $0x280] sm:$0xff]
  %v216 = vld [vmem:[%s1 + $0x288] sm:$0xff]
  %v217 = vld [vmem:[%s1 + $0x290] sm:$0xff]
  %v218 = vld [vmem:[%s1 + $0x298] sm:$0xff]
  %v219 = vld [vmem:[%s1 + $0x2a0] sm:$0xff]
  %v220 = vld [vmem:[%s1 + $0x2a8] sm:$0xff]
  %v221 = vld [vmem:[%s1 + $0x2b0] sm:$0xff]
  %v222 = vld [vmem:[%s1 + $0x2b8] sm:$0xff]
  %v223 = vld [vmem:[%s1 + $0x2c0] sm:$0xff]
  %v224 = vld [vmem:[%s1 + $0x2c8] sm:$0xff]
  %v225 = vld [vmem:[%s1 + $0x2d0] sm:$0xff]
  %v226 = vld [vmem:[%s1 + $0x2d8] sm:$0xff]
  %v227 = vld [vmem:[%s1 + $0x2e0] sm:$0xff]
  %v228 = vld [vmem:[%s1 + $0x2e8] sm:$0xff]
  %v229 = vld [vmem:[%s1 + $0x2f0] sm:$0xff]
  %v230 = vld [vmem:[%s1 + $0x2f8] sm:$0xff]
  %v231 = vld [vmem:[%s1 + $0x300] sm:$0xff]
  %v232 = vld [vmem:[%s1 + $0x308] sm:$0xff]
  %v233 = vld [vmem:[%s1 + $0x310] sm:$0xff]
  %v234 = vld [vmem:[%s1 + $0x318] sm:$0xff]
  %v235 = vld [vmem:[%s1 + $0x320] sm:$0xff]
  %v236 = vld [vmem:[%s1 + $0x328] sm:$0xff]
  %v237 = vld [vmem:[%s1 + $0x330] sm:$0xff]
  %v238 = vld [vmem:[%s1 + $0x338] sm:$0xff]
  %v239 = vld [vmem:[%s1 + $0x340] sm:$0xff]
  %v240 = vld [vmem:[%s1 + $0x348] sm:$0xff]
  %v241 = vld [vmem:[%s1 + $0x350] sm:$0xff]
  %v242 = vld [vmem:[%s1 + $0x358] sm:$0xff]
  %v243 = vld [vmem:[%s1 + $0x360] sm:$0xff]
  %v244 = vld [vmem:[%s1 + $0x368] sm:$0xff]
  %v245 = vld [vmem:[%s1 + $0x370] sm:$0xff]
  %v246 = vld [vmem:[%s1 + $0x378] sm:$0xff]
  %v247 = vld [vmem:[%s1 + $0x380] sm:$0xff]
  %v248 = vld [vmem:[%s1 + $0x388] sm:$0xff]
  %vm249 = vcmask 400384
  %v250 = vsel %vm249, %v21, 0.0
  %251 = vadd.xlane.f32.xlu0 %v250
  %v252 = vpop.xlane.xlu0 %251
  %v253 = vsel %vm249, %v22, 0.0
  %254 = vadd.xlane.f32.xlu0 %v253
  %v255 = vpop.xlane.xlu0 %254
  %v256 = vsel %vm249, %v23, 0.0
  %257 = vadd.xlane.f32.xlu0 %v256
  %v258 = vpop.xlane.xlu0 %257
  %v259 = vsel %vm249, %v24, 0.0
  %260 = vadd.xlane.f32.xlu0 %v259
  %v261 = vpop.xlane.xlu0 %260
  %v262 = vsel %vm249, %v25, 0.0
  %263 = vadd.xlane.f32.xlu0 %v262
  %v264 = vpop.xlane.xlu0 %263
  %v265 = vsel %vm249, %v26, 0.0
  %266 = vadd.xlane.f32.xlu0 %v265
  %v267 = vpop.xlane.xlu0 %266
  %v268 = vsel %vm249, %v27, 0.0
  %269 = vadd.xlane.f32.xlu0 %v268
  %v270 = vpop.xlane.xlu0 %269
  %v271 = vsel %vm249, %v28, 0.0
  %272 = vadd.xlane.f32.xlu0 %v271
  %v273 = vpop.xlane.xlu0 %272
  %v274 = vsel %vm249, %v29, 0.0
  %275 = vadd.xlane.f32.xlu0 %v274
  %v276 = vpop.xlane.xlu0 %275
  %v277 = vsel %vm249, %v30, 0.0
  %278 = vadd.xlane.f32.xlu0 %v277
  %v279 = vpop.xlane.xlu0 %278
  %v280 = vsel %vm249, %v31, 0.0
  %281 = vadd.xlane.f32.xlu0 %v280
  %v282 = vpop.xlane.xlu0 %281
  %v283 = vsel %vm249, %v32, 0.0
  %284 = vadd.xlane.f32.xlu0 %v283
  %v285 = vpop.xlane.xlu0 %284
  %v286 = vsel %vm249, %v33, 0.0
  %287 = vadd.xlane.f32.xlu0 %v286
  %v288 = vpop.xlane.xlu0 %287
  %v289 = vsel %vm249, %v34, 0.0
  %290 = vadd.xlane.f32.xlu0 %v289
  %v291 = vpop.xlane.xlu0 %290
  %v292 = vsel %vm249, %v35, 0.0
  %293 = vadd.xlane.f32.xlu0 %v292
  %v294 = vpop.xlane.xlu0 %293
  %v295 = vsel %vm249, %v36, 0.0
  %296 = vadd.xlane.f32.xlu0 %v295
  %v297 = vpop.xlane.xlu0 %296
  %v298 = vsel %vm249, %v37, 0.0
  %299 = vadd.xlane.f32.xlu0 %v298
  %v300 = vpop.xlane.xlu0 %299
  %v301 = vsel %vm249, %v38, 0.0
  %302 = vadd.xlane.f32.xlu0 %v301
  %v303 = vpop.xlane.xlu0 %302
  %v304 = vsel %vm249, %v39, 0.0
  %305 = vadd.xlane.f32.xlu0 %v304
  %v306 = vpop.xlane.xlu0 %305
  %v307 = vsel %vm249, %v40, 0.0
  %308 = vadd.xlane.f32.xlu0 %v307
  %v309 = vpop.xlane.xlu0 %308
  %v310 = vsel %vm249, %v41, 0.0
  %311 = vadd.xlane.f32.xlu0 %v310
  %v312 = vpop.xlane.xlu0 %311
  %v313 = vsel %vm249, %v42, 0.0
  %314 = vadd.xlane.f32.xlu0 %v313
  %v315 = vpop.xlane.xlu0 %314
  %v316 = vsel %vm249, %v43, 0.0
  %317 = vadd.xlane.f32.xlu0 %v316
  %v318 = vpop.xlane.xlu0 %317
  %v319 = vsel %vm249, %v44, 0.0
  %320 = vadd.xlane.f32.xlu0 %v319
  %v321 = vpop.xlane.xlu0 %320
  %v322 = vsel %vm249, %v45, 0.0
  %323 = vadd.xlane.f32.xlu0 %v322
  %v324 = vpop.xlane.xlu0 %323
  %v325 = vsel %vm249, %v46, 0.0
  %326 = vadd.xlane.f32.xlu0 %v325
  %v327 = vpop.xlane.xlu0 %326
  %v328 = vsel %vm249, %v47, 0.0
  %329 = vadd.xlane.f32.xlu0 %v328
  %v330 = vpop.xlane.xlu0 %329
  %v331 = vsel %vm249, %v48, 0.0
  %332 = vadd.xlane.f32.xlu0 %v331
  %v333 = vpop.xlane.xlu0 %332
  %v334 = vsel %vm249, %v49, 0.0
  %335 = vadd.xlane.f32.xlu0 %v334
  %v336 = vpop.xlane.xlu0 %335
  %v337 = vsel %vm249, %v50, 0.0
  %338 = vadd.xlane.f32.xlu0 %v337
  %v339 = vpop.xlane.xlu0 %338
  %v340 = vsel %vm249, %v51, 0.0
  %341 = vadd.xlane.f32.xlu0 %v340
  %v342 = vpop.xlane.xlu0 %341
  %v343 = vsel %vm249, %v52, 0.0
  %344 = vadd.xlane.f32.xlu0 %v343
  %v345 = vpop.xlane.xlu0 %344
  %v346 = vsel %vm249, %v53, 0.0
  %347 = vadd.xlane.f32.xlu0 %v346
  %v348 = vpop.xlane.xlu0 %347
  %v349 = vsel %vm249, %v54, 0.0
  %350 = vadd.xlane.f32.xlu0 %v349
  %v351 = vpop.xlane.xlu0 %350
  %v352 = vsel %vm249, %v55, 0.0
  %353 = vadd.xlane.f32.xlu0 %v352
  %v354 = vpop.xlane.xlu0 %353
  %v355 = vsel %vm249, %v56, 0.0
  %356 = vadd.xlane.f32.xlu0 %v355
  %v357 = vpop.xlane.xlu0 %356
  %v358 = vsel %vm249, %v57, 0.0
  %359 = vadd.xlane.f32.xlu0 %v358
  %v360 = vpop.xlane.xlu0 %359
  %v361 = vsel %vm249, %v58, 0.0
  %362 = vadd.xlane.f32.xlu0 %v361
  %v363 = vpop.xlane.xlu0 %362
  %v364 = vsel %vm249, %v59, 0.0
  %365 = vadd.xlane.f32.xlu0 %v364
  %v366 = vpop.xlane.xlu0 %365
  %v367 = vsel %vm249, %v60, 0.0
  %368 = vadd.xlane.f32.xlu0 %v367
  %v369 = vpop.xlane.xlu0 %368
  %v370 = vsel %vm249, %v61, 0.0
  %371 = vadd.xlane.f32.xlu0 %v370
  %v372 = vpop.xlane.xlu0 %371
  %v373 = vsel %vm249, %v62, 0.0
  %374 = vadd.xlane.f32.xlu0 %v373
  %v375 = vpop.xlane.xlu0 %374
  %v376 = vsel %vm249, %v63, 0.0
  %377 = vadd.xlane.f32.xlu0 %v376
  %v378 = vpop.xlane.xlu0 %377
  %v379 = vsel %vm249, %v64, 0.0
  %380 = vadd.xlane.f32.xlu0 %v379
  %v381 = vpop.xlane.xlu0 %380
  %v382 = vsel %vm249, %v65, 0.0
  %383 = vadd.xlane.f32.xlu0 %v382
  %v384 = vpop.xlane.xlu0 %383
  %v385 = vsel %vm249, %v66, 0.0
  %386 = vadd.xlane.f32.xlu0 %v385
  %v387 = vpop.xlane.xlu0 %386
  %v388 = vsel %vm249, %v67, 0.0
  %389 = vadd.xlane.f32.xlu0 %v388
  %v390 = vpop.xlane.xlu0 %389
  %v391 = vsel %vm249, %v68, 0.0
  %392 = vadd.xlane.f32.xlu0 %v391
  %v393 = vpop.xlane.xlu0 %392
  %v394 = vsel %vm249, %v69, 0.0
  %395 = vadd.xlane.f32.xlu0 %v394
  %v396 = vpop.xlane.xlu0 %395
  %v397 = vsel %vm249, %v70, 0.0
  %398 = vadd.xlane.f32.xlu0 %v397
  %v399 = vpop.xlane.xlu0 %398
  %v400 = vsel %vm249, %v71, 0.0
  %401 = vadd.xlane.f32.xlu0 %v400
  %v402 = vpop.xlane.xlu0 %401
  %v403 = vsel %vm249, %v72, 0.0
  %404 = vadd.xlane.f32.xlu0 %v403
  %v405 = vpop.xlane.xlu0 %404
  %v406 = vsel %vm249, %v73, 0.0
  %407 = vadd.xlane.f32.xlu0 %v406
  %v408 = vpop.xlane.xlu0 %407
  %v409 = vsel %vm249, %v74, 0.0
  %410 = vadd.xlane.f32.xlu0 %v409
  %v411 = vpop.xlane.xlu0 %410
  %v412 = vsel %vm249, %v75, 0.0
  %413 = vadd.xlane.f32.xlu0 %v412
  %v414 = vpop.xlane.xlu0 %413
  %v415 = vsel %vm249, %v76, 0.0
  %416 = vadd.xlane.f32.xlu0 %v415
  %v417 = vpop.xlane.xlu0 %416
  %v418 = vsel %vm249, %v77, 0.0
  %419 = vadd.xlane.f32.xlu0 %v418
  %v420 = vpop.xlane.xlu0 %419
  %v421 = vsel %vm249, %v78, 0.0
  %422 = vadd.xlane.f32.xlu0 %v421
  %v423 = vpop.xlane.xlu0 %422
  %v424 = vsel %vm249, %v79, 0.0
  %425 = vadd.xlane.f32.xlu0 %v424
  %v426 = vpop.xlane.xlu0 %425
  %v427 = vsel %vm249, %v80, 0.0
  %428 = vadd.xlane.f32.xlu0 %v427
  %v429 = vpop.xlane.xlu0 %428
  %v430 = vsel %vm249, %v81, 0.0
  %431 = vadd.xlane.f32.xlu0 %v430
  %v432 = vpop.xlane.xlu0 %431
  %v433 = vsel %vm249, %v82, 0.0
  %434 = vadd.xlane.f32.xlu0 %v433
  %v435 = vpop.xlane.xlu0 %434
  %v436 = vsel %vm249, %v83, 0.0
  %437 = vadd.xlane.f32.xlu0 %v436
  %v438 = vpop.xlane.xlu0 %437
  %v439 = vsel %vm249, %v84, 0.0
  %440 = vadd.xlane.f32.xlu0 %v439
  %v441 = vpop.xlane.xlu0 %440
  %v442 = vsel %vm249, %v85, 0.0
  %443 = vadd.xlane.f32.xlu0 %v442
  %v444 = vpop.xlane.xlu0 %443
  %v445 = vsel %vm249, %v86, 0.0
  %446 = vadd.xlane.f32.xlu0 %v445
  %v447 = vpop.xlane.xlu0 %446
  %v448 = vsel %vm249, %v87, 0.0
  %449 = vadd.xlane.f32.xlu0 %v448
  %v450 = vpop.xlane.xlu0 %449
  %v451 = vsel %vm249, %v88, 0.0
  %452 = vadd.xlane.f32.xlu0 %v451
  %v453 = vpop.xlane.xlu0 %452
  %v454 = vsel %vm249, %v89, 0.0
  %455 = vadd.xlane.f32.xlu0 %v454
  %v456 = vpop.xlane.xlu0 %455
  %v457 = vsel %vm249, %v90, 0.0
  %458 = vadd.xlane.f32.xlu0 %v457
  %v459 = vpop.xlane.xlu0 %458
  %v460 = vsel %vm249, %v91, 0.0
  %461 = vadd.xlane.f32.xlu0 %v460
  %v462 = vpop.xlane.xlu0 %461
  %v463 = vsel %vm249, %v92, 0.0
  %464 = vadd.xlane.f32.xlu0 %v463
  %v465 = vpop.xlane.xlu0 %464
  %v466 = vsel %vm249, %v93, 0.0
  %467 = vadd.xlane.f32.xlu0 %v466
  %v468 = vpop.xlane.xlu0 %467
  %v469 = vsel %vm249, %v94, 0.0
  %470 = vadd.xlane.f32.xlu0 %v469
  %v471 = vpop.xlane.xlu0 %470
  %v472 = vsel %vm249, %v95, 0.0
  %473 = vadd.xlane.f32.xlu0 %v472
  %v474 = vpop.xlane.xlu0 %473
  %v475 = vsel %vm249, %v96, 0.0
  %476 = vadd.xlane.f32.xlu0 %v475
  %v477 = vpop.xlane.xlu0 %476
  %v478 = vsel %vm249, %v97, 0.0
  %479 = vadd.xlane.f32.xlu0 %v478
  %v480 = vpop.xlane.xlu0 %479
  %v481 = vsel %vm249, %v98, 0.0
  %482 = vadd.xlane.f32.xlu0 %v481
  %v483 = vpop.xlane.xlu0 %482
  %v484 = vsel %vm249, %v99, 0.0
  %485 = vadd.xlane.f32.xlu0 %v484
  %v486 = vpop.xlane.xlu0 %485
  %v487 = vsel %vm249, %v100, 0.0
  %488 = vadd.xlane.f32.xlu0 %v487
  %v489 = vpop.xlane.xlu0 %488
  %v490 = vsel %vm249, %v101, 0.0
  %491 = vadd.xlane.f32.xlu0 %v490
  %v492 = vpop.xlane.xlu0 %491
  %v493 = vsel %vm249, %v102, 0.0
  %494 = vadd.xlane.f32.xlu0 %v493
  %v495 = vpop.xlane.xlu0 %494
  %v496 = vsel %vm249, %v103, 0.0
  %497 = vadd.xlane.f32.xlu0 %v496
  %v498 = vpop.xlane.xlu0 %497
  %v499 = vsel %vm249, %v104, 0.0
  %500 = vadd.xlane.f32.xlu0 %v499
  %v501 = vpop.xlane.xlu0 %500
  %v502 = vsel %vm249, %v105, 0.0
  %503 = vadd.xlane.f32.xlu0 %v502
  %v504 = vpop.xlane.xlu0 %503
  %v505 = vsel %vm249, %v106, 0.0
  %506 = vadd.xlane.f32.xlu0 %v505
  %v507 = vpop.xlane.xlu0 %506
  %v508 = vsel %vm249, %v107, 0.0
  %509 = vadd.xlane.f32.xlu0 %v508
  %v510 = vpop.xlane.xlu0 %509
  %v511 = vsel %vm249, %v108, 0.0
  %512 = vadd.xlane.f32.xlu0 %v511
  %v513 = vpop.xlane.xlu0 %512
  %v514 = vsel %vm249, %v109, 0.0
  %515 = vadd.xlane.f32.xlu0 %v514
  %v516 = vpop.xlane.xlu0 %515
  %v517 = vsel %vm249, %v110, 0.0
  %518 = vadd.xlane.f32.xlu0 %v517
  %v519 = vpop.xlane.xlu0 %518
  %v520 = vsel %vm249, %v111, 0.0
  %521 = vadd.xlane.f32.xlu0 %v520
  %v522 = vpop.xlane.xlu0 %521
  %v523 = vsel %vm249, %v112, 0.0
  %524 = vadd.xlane.f32.xlu0 %v523
  %v525 = vpop.xlane.xlu0 %524
  %v526 = vsel %vm249, %v113, 0.0
  %527 = vadd.xlane.f32.xlu0 %v526
  %v528 = vpop.xlane.xlu0 %527
  %v529 = vsel %vm249, %v114, 0.0
  %530 = vadd.xlane.f32.xlu0 %v529
  %v531 = vpop.xlane.xlu0 %530
  %v532 = vsel %vm249, %v115, 0.0
  %533 = vadd.xlane.f32.xlu0 %v532
  %v534 = vpop.xlane.xlu0 %533
  %v535 = vsel %vm249, %v116, 0.0
  %536 = vadd.xlane.f32.xlu0 %v535
  %v537 = vpop.xlane.xlu0 %536
  %v538 = vsel %vm249, %v117, 0.0
  %539 = vadd.xlane.f32.xlu0 %v538
  %v540 = vpop.xlane.xlu0 %539
  %v541 = vsel %vm249, %v118, 0.0
  %542 = vadd.xlane.f32.xlu0 %v541
  %v543 = vpop.xlane.xlu0 %542
  %v544 = vsel %vm249, %v119, 0.0
  %545 = vadd.xlane.f32.xlu0 %v544
  %v546 = vpop.xlane.xlu0 %545
  %v547 = vsel %vm249, %v120, 0.0
  %548 = vadd.xlane.f32.xlu0 %v547
  %v549 = vpop.xlane.xlu0 %548
  %v550 = vsel %vm249, %v121, 0.0
  %551 = vadd.xlane.f32.xlu0 %v550
  %v552 = vpop.xlane.xlu0 %551
  %v553 = vsel %vm249, %v122, 0.0
  %554 = vadd.xlane.f32.xlu0 %v553
  %v555 = vpop.xlane.xlu0 %554
  %v556 = vsel %vm249, %v123, 0.0
  %557 = vadd.xlane.f32.xlu0 %v556
  %v558 = vpop.xlane.xlu0 %557
  %v559 = vsel %vm249, %v124, 0.0
  %560 = vadd.xlane.f32.xlu0 %v559
  %v561 = vpop.xlane.xlu0 %560
  %v562 = vsel %vm249, %v125, 0.0
  %563 = vadd.xlane.f32.xlu0 %v562
  %v564 = vpop.xlane.xlu0 %563
  %v565 = vsel %vm249, %v126, 0.0
  %566 = vadd.xlane.f32.xlu0 %v565
  %v567 = vpop.xlane.xlu0 %566
  %v568 = vsel %vm249, %v127, 0.0
  %569 = vadd.xlane.f32.xlu0 %v568
  %v570 = vpop.xlane.xlu0 %569
  %v571 = vsel %vm249, %v128, 0.0
  %572 = vadd.xlane.f32.xlu0 %v571
  %v573 = vpop.xlane.xlu0 %572
  %v574 = vsel %vm249, %v129, 0.0
  %575 = vadd.xlane.f32.xlu0 %v574
  %v576 = vpop.xlane.xlu0 %575
  %v577 = vsel %vm249, %v130, 0.0
  %578 = vadd.xlane.f32.xlu0 %v577
  %v579 = vpop.xlane.xlu0 %578
  %v580 = vsel %vm249, %v131, 0.0
  %581 = vadd.xlane.f32.xlu0 %v580
  %v582 = vpop.xlane.xlu0 %581
  %v583 = vsel %vm249, %v132, 0.0
  %584 = vadd.xlane.f32.xlu0 %v583
  %v585 = vpop.xlane.xlu0 %584
  %v586 = vsel %vm249, %v133, 0.0
  %587 = vadd.xlane.f32.xlu0 %v586
  %v588 = vpop.xlane.xlu0 %587
  %v589 = vsel %vm249, %v134, 0.0
  %590 = vadd.xlane.f32.xlu0 %v589
  %v591 = vpop.xlane.xlu0 %590
  %v592 = vmul.f32 %v21, %v21
  %v593 = vmul.f32 %v22, %v22
  %v594 = vmul.f32 %v23, %v23
  %v595 = vmul.f32 %v24, %v24
  %v596 = vmul.f32 %v25, %v25
  %v597 = vmul.f32 %v26, %v26
  %v598 = vmul.f32 %v27, %v27
  %v599 = vmul.f32 %v28, %v28
  %v600 = vmul.f32 %v29, %v29
  %v601 = vmul.f32 %v30, %v30
  %v602 = vmul.f32 %v31, %v31
  %v603 = vmul.f32 %v32, %v32
  %v604 = vmul.f32 %v33, %v33
  %v605 = vmul.f32 %v34, %v34
  %v606 = vmul.f32 %v35, %v35
  %v607 = vmul.f32 %v36, %v36
  %v608 = vmul.f32 %v37, %v37
  %v609 = vmul.f32 %v38, %v38
  %v610 = vmul.f32 %v39, %v39
  %v611 = vmul.f32 %v40, %v40
  %v612 = vmul.f32 %v41, %v41
  %v613 = vmul.f32 %v42, %v42
  %v614 = vmul.f32 %v43, %v43
  %v615 = vmul.f32 %v44, %v44
  %v616 = vmul.f32 %v45, %v45
  %v617 = vmul.f32 %v46, %v46
  %v618 = vmul.f32 %v47, %v47
  %v619 = vmul.f32 %v48, %v48
  %v620 = vmul.f32 %v49, %v49
  %v621 = vmul.f32 %v50, %v50
  %v622 = vmul.f32 %v51, %v51
  %v623 = vmul.f32 %v52, %v52
  %v624 = vmul.f32 %v53, %v53
  %v625 = vmul.f32 %v54, %v54
  %v626 = vmul.f32 %v55, %v55
  %v627 = vmul.f32 %v56, %v56
  %v628 = vmul.f32 %v57, %v57
  %v629 = vmul.f32 %v58, %v58
  %v630 = vmul.f32 %v59, %v59
  %v631 = vmul.f32 %v60, %v60
  %v632 = vmul.f32 %v61, %v61
  %v633 = vmul.f32 %v62, %v62
  %v634 = vmul.f32 %v63, %v63
  %v635 = vmul.f32 %v64, %v64
  %v636 = vmul.f32 %v65, %v65
  %v637 = vmul.f32 %v66, %v66
  %v638 = vmul.f32 %v67, %v67
  %v639 = vmul.f32 %v68, %v68
  %v640 = vmul.f32 %v69, %v69
  %v641 = vmul.f32 %v70, %v70
  %v642 = vmul.f32 %v71, %v71
  %v643 = vmul.f32 %v72, %v72
  %v644 = vmul.f32 %v73, %v73
  %v645 = vmul.f32 %v74, %v74
  %v646 = vmul.f32 %v75, %v75
  %v647 = vmul.f32 %v76, %v76
  %v648 = vmul.f32 %v77, %v77
  %v649 = vmul.f32 %v78, %v78
  %v650 = vmul.f32 %v79, %v79
  %v651 = vmul.f32 %v80, %v80
  %v652 = vmul.f32 %v81, %v81
  %v653 = vmul.f32 %v82, %v82
  %v654 = vmul.f32 %v83, %v83
  %v655 = vmul.f32 %v84, %v84
  %v656 = vmul.f32 %v85, %v85
  %v657 = vmul.f32 %v86, %v86
  %v658 = vmul.f32 %v87, %v87
  %v659 = vmul.f32 %v88, %v88
  %v660 = vmul.f32 %v89, %v89
  %v661 = vmul.f32 %v90, %v90
  %v662 = vmul.f32 %v91, %v91
  %v663 = vmul.f32 %v92, %v92
  %v664 = vmul.f32 %v93, %v93
  %v665 = vmul.f32 %v94, %v94
  %v666 = vmul.f32 %v95, %v95
  %v667 = vmul.f32 %v96, %v96
  %v668 = vmul.f32 %v97, %v97
  %v669 = vmul.f32 %v98, %v98
  %v670 = vmul.f32 %v99, %v99
  %v671 = vmul.f32 %v100, %v100
  %v672 = vmul.f32 %v101, %v101
  %v673 = vmul.f32 %v102, %v102
  %v674 = vmul.f32 %v103, %v103
  %v675 = vmul.f32 %v104, %v104
  %v676 = vmul.f32 %v105, %v105
  %v677 = vmul.f32 %v106, %v106
  %v678 = vmul.f32 %v107, %v107
  %v679 = vmul.f32 %v108, %v108
  %v680 = vmul.f32 %v109, %v109
  %v681 = vmul.f32 %v110, %v110
  %v682 = vmul.f32 %v111, %v111
  %v683 = vmul.f32 %v112, %v112
  %v684 = vmul.f32 %v113, %v113
  %v685 = vmul.f32 %v114, %v114
  %v686 = vmul.f32 %v115, %v115
  %v687 = vmul.f32 %v116, %v116
  %v688 = vmul.f32 %v117, %v117
  %v689 = vmul.f32 %v118, %v118
  %v690 = vmul.f32 %v119, %v119
  %v691 = vmul.f32 %v120, %v120
  %v692 = vmul.f32 %v121, %v121
  %v693 = vmul.f32 %v122, %v122
  %v694 = vmul.f32 %v123, %v123
  %v695 = vmul.f32 %v124, %v124
  %v696 = vmul.f32 %v125, %v125
  %v697 = vmul.f32 %v126, %v126
  %v698 = vmul.f32 %v127, %v127
  %v699 = vmul.f32 %v128, %v128
  %v700 = vmul.f32 %v129, %v129
  %v701 = vmul.f32 %v130, %v130
  %v702 = vmul.f32 %v131, %v131
  %v703 = vmul.f32 %v132, %v132
  %v704 = vmul.f32 %v133, %v133
  %v705 = vmul.f32 %v134, %v134
  %v706 = vsel %vm249, %v592, 0.0
  %707 = vadd.xlane.f32.xlu0 %v706
  %v708 = vpop.xlane.xlu0 %707
  %v709 = vsel %vm249, %v593, 0.0
  %710 = vadd.xlane.f32.xlu0 %v709
  %v711 = vpop.xlane.xlu0 %710
  %v712 = vsel %vm249, %v594, 0.0
  %713 = vadd.xlane.f32.xlu0 %v712
  %v714 = vpop.xlane.xlu0 %713
  %v715 = vsel %vm249, %v595, 0.0
  %716 = vadd.xlane.f32.xlu0 %v715
  %v717 = vpop.xlane.xlu0 %716
  %v718 = vsel %vm249, %v596, 0.0
  %719 = vadd.xlane.f32.xlu0 %v718
  %v720 = vpop.xlane.xlu0 %719
  %v721 = vsel %vm249, %v597, 0.0
  %722 = vadd.xlane.f32.xlu0 %v721
  %v723 = vpop.xlane.xlu0 %722
  %v724 = vsel %vm249, %v598, 0.0
  %725 = vadd.xlane.f32.xlu0 %v724
  %v726 = vpop.xlane.xlu0 %725
  %v727 = vsel %vm249, %v599, 0.0
  %728 = vadd.xlane.f32.xlu0 %v727
  %v729 = vpop.xlane.xlu0 %728
  %v730 = vsel %vm249, %v600, 0.0
  %731 = vadd.xlane.f32.xlu0 %v730
  %v732 = vpop.xlane.xlu0 %731
  %v733 = vsel %vm249, %v601, 0.0
  %734 = vadd.xlane.f32.xlu0 %v733
  %v735 = vpop.xlane.xlu0 %734
  %v736 = vsel %vm249, %v602, 0.0
  %737 = vadd.xlane.f32.xlu0 %v736
  %v738 = vpop.xlane.xlu0 %737
  %v739 = vsel %vm249, %v603, 0.0
  %740 = vadd.xlane.f32.xlu0 %v739
  %v741 = vpop.xlane.xlu0 %740
  %v742 = vsel %vm249, %v604, 0.0
  %743 = vadd.xlane.f32.xlu0 %v742
  %v744 = vpop.xlane.xlu0 %743
  %v745 = vsel %vm249, %v605, 0.0
  %746 = vadd.xlane.f32.xlu0 %v745
  %v747 = vpop.xlane.xlu0 %746
  %v748 = vsel %vm249, %v606, 0.0
  %749 = vadd.xlane.f32.xlu0 %v748
  %v750 = vpop.xlane.xlu0 %749
  %v751 = vsel %vm249, %v607, 0.0
  %752 = vadd.xlane.f32.xlu0 %v751
  %v753 = vpop.xlane.xlu0 %752
  %v754 = vsel %vm249, %v608, 0.0
  %755 = vadd.xlane.f32.xlu0 %v754
  %v756 = vpop.xlane.xlu0 %755
  %v757 = vsel %vm249, %v609, 0.0
  %758 = vadd.xlane.f32.xlu0 %v757
  %v759 = vpop.xlane.xlu0 %758
  %v760 = vsel %vm249, %v610, 0.0
  %761 = vadd.xlane.f32.xlu0 %v760
  %v762 = vpop.xlane.xlu0 %761
  %v763 = vsel %vm249, %v611, 0.0
  %764 = vadd.xlane.f32.xlu0 %v763
  %v765 = vpop.xlane.xlu0 %764
  %v766 = vsel %vm249, %v612, 0.0
  %767 = vadd.xlane.f32.xlu0 %v766
  %v768 = vpop.xlane.xlu0 %767
  %v769 = vsel %vm249, %v613, 0.0
  %770 = vadd.xlane.f32.xlu0 %v769
  %v771 = vpop.xlane.xlu0 %770
  %v772 = vsel %vm249, %v614, 0.0
  %773 = vadd.xlane.f32.xlu0 %v772
  %v774 = vpop.xlane.xlu0 %773
  %v775 = vsel %vm249, %v615, 0.0
  %776 = vadd.xlane.f32.xlu0 %v775
  %v777 = vpop.xlane.xlu0 %776
  %v778 = vsel %vm249, %v616, 0.0
  %779 = vadd.xlane.f32.xlu0 %v778
  %v780 = vpop.xlane.xlu0 %779
  %v781 = vsel %vm249, %v617, 0.0
  %782 = vadd.xlane.f32.xlu0 %v781
  %v783 = vpop.xlane.xlu0 %782
  %v784 = vsel %vm249, %v618, 0.0
  %785 = vadd.xlane.f32.xlu0 %v784
  %v786 = vpop.xlane.xlu0 %785
  %v787 = vsel %vm249, %v619, 0.0
  %788 = vadd.xlane.f32.xlu0 %v787
  %v789 = vpop.xlane.xlu0 %788
  %v790 = vsel %vm249, %v620, 0.0
  %791 = vadd.xlane.f32.xlu0 %v790
  %v792 = vpop.xlane.xlu0 %791
  %v793 = vsel %vm249, %v621, 0.0
  %794 = vadd.xlane.f32.xlu0 %v793
  %v795 = vpop.xlane.xlu0 %794
  %v796 = vsel %vm249, %v622, 0.0
  %797 = vadd.xlane.f32.xlu0 %v796
  %v798 = vpop.xlane.xlu0 %797
  %v799 = vsel %vm249, %v623, 0.0
  %800 = vadd.xlane.f32.xlu0 %v799
  %v801 = vpop.xlane.xlu0 %800
  %v802 = vsel %vm249, %v624, 0.0
  %803 = vadd.xlane.f32.xlu0 %v802
  %v804 = vpop.xlane.xlu0 %803
  %v805 = vsel %vm249, %v625, 0.0
  %806 = vadd.xlane.f32.xlu0 %v805
  %v807 = vpop.xlane.xlu0 %806
  %v808 = vsel %vm249, %v626, 0.0
  %809 = vadd.xlane.f32.xlu0 %v808
  %v810 = vpop.xlane.xlu0 %809
  %v811 = vsel %vm249, %v627, 0.0
  %812 = vadd.xlane.f32.xlu0 %v811
  %v813 = vpop.xlane.xlu0 %812
  %v814 = vsel %vm249, %v628, 0.0
  %815 = vadd.xlane.f32.xlu0 %v814
  %v816 = vpop.xlane.xlu0 %815
  %v817 = vsel %vm249, %v629, 0.0
  %818 = vadd.xlane.f32.xlu0 %v817
  %v819 = vpop.xlane.xlu0 %818
  %v820 = vsel %vm249, %v630, 0.0
  %821 = vadd.xlane.f32.xlu0 %v820
  %v822 = vpop.xlane.xlu0 %821
  %v823 = vsel %vm249, %v631, 0.0
  %824 = vadd.xlane.f32.xlu0 %v823
  %v825 = vpop.xlane.xlu0 %824
  %v826 = vsel %vm249, %v632, 0.0
  %827 = vadd.xlane.f32.xlu0 %v826
  %v828 = vpop.xlane.xlu0 %827
  %v829 = vsel %vm249, %v633, 0.0
  %830 = vadd.xlane.f32.xlu0 %v829
  %v831 = vpop.xlane.xlu0 %830
  %v832 = vsel %vm249, %v634, 0.0
  %833 = vadd.xlane.f32.xlu0 %v832
  %v834 = vpop.xlane.xlu0 %833
  %v835 = vsel %vm249, %v635, 0.0
  %836 = vadd.xlane.f32.xlu0 %v835
  %v837 = vpop.xlane.xlu0 %836
  %v838 = vsel %vm249, %v636, 0.0
  %839 = vadd.xlane.f32.xlu0 %v838
  %v840 = vpop.xlane.xlu0 %839
  %v841 = vsel %vm249, %v637, 0.0
  %842 = vadd.xlane.f32.xlu0 %v841
  %v843 = vpop.xlane.xlu0 %842
  %v844 = vsel %vm249, %v638, 0.0
  %845 = vadd.xlane.f32.xlu0 %v844
  %v846 = vpop.xlane.xlu0 %845
  %v847 = vsel %vm249, %v639, 0.0
  %848 = vadd.xlane.f32.xlu0 %v847
  %v849 = vpop.xlane.xlu0 %848
  %v850 = vsel %vm249, %v640, 0.0
  %851 = vadd.xlane.f32.xlu0 %v850
  %v852 = vpop.xlane.xlu0 %851
  %v853 = vsel %vm249, %v641, 0.0
  %854 = vadd.xlane.f32.xlu0 %v853
  %v855 = vpop.xlane.xlu0 %854
  %v856 = vsel %vm249, %v642, 0.0
  %857 = vadd.xlane.f32.xlu0 %v856
  %v858 = vpop.xlane.xlu0 %857
  %v859 = vsel %vm249, %v643, 0.0
  %860 = vadd.xlane.f32.xlu0 %v859
  %v861 = vpop.xlane.xlu0 %860
  %v862 = vsel %vm249, %v644, 0.0
  %863 = vadd.xlane.f32.xlu0 %v862
  %v864 = vpop.xlane.xlu0 %863
  %v865 = vsel %vm249, %v645, 0.0
  %866 = vadd.xlane.f32.xlu0 %v865
  %v867 = vpop.xlane.xlu0 %866
  %v868 = vsel %vm249, %v646, 0.0
  %869 = vadd.xlane.f32.xlu0 %v868
  %v870 = vpop.xlane.xlu0 %869
  %v871 = vsel %vm249, %v647, 0.0
  %872 = vadd.xlane.f32.xlu0 %v871
  %v873 = vpop.xlane.xlu0 %872
  %v874 = vsel %vm249, %v648, 0.0
  %875 = vadd.xlane.f32.xlu0 %v874
  %v876 = vpop.xlane.xlu0 %875
  %v877 = vsel %vm249, %v649, 0.0
  %878 = vadd.xlane.f32.xlu0 %v877
  %v879 = vpop.xlane.xlu0 %878
  %v880 = vsel %vm249, %v650, 0.0
  %881 = vadd.xlane.f32.xlu0 %v880
  %v882 = vpop.xlane.xlu0 %881
  %v883 = vsel %vm249, %v651, 0.0
  %884 = vadd.xlane.f32.xlu0 %v883
  %v885 = vpop.xlane.xlu0 %884
  %v886 = vsel %vm249, %v652, 0.0
  %887 = vadd.xlane.f32.xlu0 %v886
  %v888 = vpop.xlane.xlu0 %887
  %v889 = vsel %vm249, %v653, 0.0
  %890 = vadd.xlane.f32.xlu0 %v889
  %v891 = vpop.xlane.xlu0 %890
  %v892 = vsel %vm249, %v654, 0.0
  %893 = vadd.xlane.f32.xlu0 %v892
  %v894 = vpop.xlane.xlu0 %893
  %v895 = vsel %vm249, %v655, 0.0
  %896 = vadd.xlane.f32.xlu0 %v895
  %v897 = vpop.xlane.xlu0 %896
  %v898 = vsel %vm249, %v656, 0.0
  %899 = vadd.xlane.f32.xlu0 %v898
  %v900 = vpop.xlane.xlu0 %899
  %v901 = vsel %vm249, %v657, 0.0
  %902 = vadd.xlane.f32.xlu0 %v901
  %v903 = vpop.xlane.xlu0 %902
  %v904 = vsel %vm249, %v658, 0.0
  %905 = vadd.xlane.f32.xlu0 %v904
  %v906 = vpop.xlane.xlu0 %905
  %v907 = vsel %vm249, %v659, 0.0
  %908 = vadd.xlane.f32.xlu0 %v907
  %v909 = vpop.xlane.xlu0 %908
  %v910 = vsel %vm249, %v660, 0.0
  %911 = vadd.xlane.f32.xlu0 %v910
  %v912 = vpop.xlane.xlu0 %911
  %v913 = vsel %vm249, %v661, 0.0
  %914 = vadd.xlane.f32.xlu0 %v913
  %v915 = vpop.xlane.xlu0 %914
  %v916 = vsel %vm249, %v662, 0.0
  %917 = vadd.xlane.f32.xlu0 %v916
  %v918 = vpop.xlane.xlu0 %917
  %v919 = vsel %vm249, %v663, 0.0
  %920 = vadd.xlane.f32.xlu0 %v919
  %v921 = vpop.xlane.xlu0 %920
  %v922 = vsel %vm249, %v664, 0.0
  %923 = vadd.xlane.f32.xlu0 %v922
  %v924 = vpop.xlane.xlu0 %923
  %v925 = vsel %vm249, %v665, 0.0
  %926 = vadd.xlane.f32.xlu0 %v925
  %v927 = vpop.xlane.xlu0 %926
  %v928 = vsel %vm249, %v666, 0.0
  %929 = vadd.xlane.f32.xlu0 %v928
  %v930 = vpop.xlane.xlu0 %929
  %v931 = vsel %vm249, %v667, 0.0
  %932 = vadd.xlane.f32.xlu0 %v931
  %v933 = vpop.xlane.xlu0 %932
  %v934 = vsel %vm249, %v668, 0.0
  %935 = vadd.xlane.f32.xlu0 %v934
  %v936 = vpop.xlane.xlu0 %935
  %v937 = vsel %vm249, %v669, 0.0
  %938 = vadd.xlane.f32.xlu0 %v937
  %v939 = vpop.xlane.xlu0 %938
  %v940 = vsel %vm249, %v670, 0.0
  %941 = vadd.xlane.f32.xlu0 %v940
  %v942 = vpop.xlane.xlu0 %941
  %v943 = vsel %vm249, %v671, 0.0
  %944 = vadd.xlane.f32.xlu0 %v943
  %v945 = vpop.xlane.xlu0 %944
  %v946 = vsel %vm249, %v672, 0.0
  %947 = vadd.xlane.f32.xlu0 %v946
  %v948 = vpop.xlane.xlu0 %947
  %v949 = vsel %vm249, %v673, 0.0
  %950 = vadd.xlane.f32.xlu0 %v949
  %v951 = vpop.xlane.xlu0 %950
  %v952 = vsel %vm249, %v674, 0.0
  %953 = vadd.xlane.f32.xlu0 %v952
  %v954 = vpop.xlane.xlu0 %953
  %v955 = vsel %vm249, %v675, 0.0
  %956 = vadd.xlane.f32.xlu0 %v955
  %v957 = vpop.xlane.xlu0 %956
  %v958 = vsel %vm249, %v676, 0.0
  %959 = vadd.xlane.f32.xlu0 %v958
  %v960 = vpop.xlane.xlu0 %959
  %v961 = vsel %vm249, %v677, 0.0
  %962 = vadd.xlane.f32.xlu0 %v961
  %v963 = vpop.xlane.xlu0 %962
  %v964 = vsel %vm249, %v678, 0.0
  %965 = vadd.xlane.f32.xlu0 %v964
  %v966 = vpop.xlane.xlu0 %965
  %v967 = vsel %vm249, %v679, 0.0
  %968 = vadd.xlane.f32.xlu0 %v967
  %v969 = vpop.xlane.xlu0 %968
  %v970 = vsel %vm249, %v680, 0.0
  %971 = vadd.xlane.f32.xlu0 %v970
  %v972 = vpop.xlane.xlu0 %971
  %v973 = vsel %vm249, %v681, 0.0
  %974 = vadd.xlane.f32.xlu0 %v973
  %v975 = vpop.xlane.xlu0 %974
  %v976 = vsel %vm249, %v682, 0.0
  %977 = vadd.xlane.f32.xlu0 %v976
  %v978 = vpop.xlane.xlu0 %977
  %v979 = vsel %vm249, %v683, 0.0
  %980 = vadd.xlane.f32.xlu0 %v979
  %v981 = vpop.xlane.xlu0 %980
  %v982 = vsel %vm249, %v684, 0.0
  %983 = vadd.xlane.f32.xlu0 %v982
  %v984 = vpop.xlane.xlu0 %983
  %v985 = vsel %vm249, %v685, 0.0
  %986 = vadd.xlane.f32.xlu0 %v985
  %v987 = vpop.xlane.xlu0 %986
  %v988 = vsel %vm249, %v686, 0.0
  %989 = vadd.xlane.f32.xlu0 %v988
  %v990 = vpop.xlane.xlu0 %989
  %v991 = vsel %vm249, %v687, 0.0
  %992 = vadd.xlane.f32.xlu0 %v991
  %v993 = vpop.xlane.xlu0 %992
  %v994 = vsel %vm249, %v688, 0.0
  %995 = vadd.xlane.f32.xlu0 %v994
  %v996 = vpop.xlane.xlu0 %995
  %v997 = vsel %vm249, %v689, 0.0
  %998 = vadd.xlane.f32.xlu0 %v997
  %v999 = vpop.xlane.xlu0 %998
  %v1000 = vsel %vm249, %v690, 0.0
  %1001 = vadd.xlane.f32.xlu0 %v1000
  %v1002 = vpop.xlane.xlu0 %1001
  %v1003 = vsel %vm249, %v691, 0.0
  %1004 = vadd.xlane.f32.xlu0 %v1003
  %v1005 = vpop.xlane.xlu0 %1004
  %v1006 = vsel %vm249, %v692, 0.0
  %1007 = vadd.xlane.f32.xlu0 %v1006
  %v1008 = vpop.xlane.xlu0 %1007
  %v1009 = vsel %vm249, %v693, 0.0
  %1010 = vadd.xlane.f32.xlu0 %v1009
  %v1011 = vpop.xlane.xlu0 %1010
  %v1012 = vsel %vm249, %v694, 0.0
  %1013 = vadd.xlane.f32.xlu0 %v1012
  %v1014 = vpop.xlane.xlu0 %1013
  %v1015 = vsel %vm249, %v695, 0.0
  %1016 = vadd.xlane.f32.xlu0 %v1015
  %v1017 = vpop.xlane.xlu0 %1016
  %v1018 = vsel %vm249, %v696, 0.0
  %1019 = vadd.xlane.f32.xlu0 %v1018
  %v1020 = vpop.xlane.xlu0 %1019
  %v1021 = vsel %vm249, %v697, 0.0
  %1022 = vadd.xlane.f32.xlu0 %v1021
  %v1023 = vpop.xlane.xlu0 %1022
  %v1024 = vsel %vm249, %v698, 0.0
  %1025 = vadd.xlane.f32.xlu0 %v1024
  %v1026 = vpop.xlane.xlu0 %1025
  %v1027 = vsel %vm249, %v699, 0.0
  %1028 = vadd.xlane.f32.xlu0 %v1027
  %v1029 = vpop.xlane.xlu0 %1028
  %v1030 = vsel %vm249, %v700, 0.0
  %1031 = vadd.xlane.f32.xlu0 %v1030
  %v1032 = vpop.xlane.xlu0 %1031
  %v1033 = vsel %vm249, %v701, 0.0
  %1034 = vadd.xlane.f32.xlu0 %v1033
  %v1035 = vpop.xlane.xlu0 %1034
  %v1036 = vsel %vm249, %v702, 0.0
  %1037 = vadd.xlane.f32.xlu0 %v1036
  %v1038 = vpop.xlane.xlu0 %1037
  %v1039 = vsel %vm249, %v703, 0.0
  %1040 = vadd.xlane.f32.xlu0 %v1039
  %v1041 = vpop.xlane.xlu0 %1040
  %v1042 = vsel %vm249, %v704, 0.0
  %1043 = vadd.xlane.f32.xlu0 %v1042
  %v1044 = vpop.xlane.xlu0 %1043
  %v1045 = vsel %vm249, %v705, 0.0
  %1046 = vadd.xlane.f32.xlu0 %v1045
  %v1047 = vpop.xlane.xlu0 %1046
  %v1048 = vmul.f32 %v252, 0.020408163
  %v1049 = vmul.f32 %v255, 0.020408163
  %v1050 = vmul.f32 %v258, 0.020408163
  %v1051 = vmul.f32 %v261, 0.020408163
  %v1052 = vmul.f32 %v264, 0.020408163
  %v1053 = vmul.f32 %v267, 0.020408163
  %v1054 = vmul.f32 %v270, 0.020408163
  %v1055 = vmul.f32 %v273, 0.020408163
  %v1056 = vmul.f32 %v276, 0.020408163
  %v1057 = vmul.f32 %v279, 0.020408163
  %v1058 = vmul.f32 %v282, 0.020408163
  %v1059 = vmul.f32 %v285, 0.020408163
  %v1060 = vmul.f32 %v288, 0.020408163
  %v1061 = vmul.f32 %v291, 0.020408163
  %v1062 = vmul.f32 %v294, 0.020408163
  %v1063 = vmul.f32 %v297, 0.020408163
  %v1064 = vmul.f32 %v300, 0.020408163
  %v1065 = vmul.f32 %v303, 0.020408163
  %v1066 = vmul.f32 %v306, 0.020408163
  %v1067 = vmul.f32 %v309, 0.020408163
  %v1068 = vmul.f32 %v312, 0.020408163
  %v1069 = vmul.f32 %v315, 0.020408163
  %v1070 = vmul.f32 %v318, 0.020408163
  %v1071 = vmul.f32 %v321, 0.020408163
  %v1072 = vmul.f32 %v324, 0.020408163
  %v1073 = vmul.f32 %v327, 0.020408163
  %v1074 = vmul.f32 %v330, 0.020408163
  %v1075 = vmul.f32 %v333, 0.020408163
  %v1076 = vmul.f32 %v336, 0.020408163
  %v1077 = vmul.f32 %v339, 0.020408163
  %v1078 = vmul.f32 %v342, 0.020408163
  %v1079 = vmul.f32 %v345, 0.020408163
  %v1080 = vmul.f32 %v348, 0.020408163
  %v1081 = vmul.f32 %v351, 0.020408163
  %v1082 = vmul.f32 %v354, 0.020408163
  %v1083 = vmul.f32 %v357, 0.020408163
  %v1084 = vmul.f32 %v360, 0.020408163
  %v1085 = vmul.f32 %v363, 0.020408163
  %v1086 = vmul.f32 %v366, 0.020408163
  %v1087 = vmul.f32 %v369, 0.020408163
  %v1088 = vmul.f32 %v372, 0.020408163
  %v1089 = vmul.f32 %v375, 0.020408163
  %v1090 = vmul.f32 %v378, 0.020408163
  %v1091 = vmul.f32 %v381, 0.020408163
  %v1092 = vmul.f32 %v384, 0.020408163
  %v1093 = vmul.f32 %v387, 0.020408163
  %v1094 = vmul.f32 %v390, 0.020408163
  %v1095 = vmul.f32 %v393, 0.020408163
  %v1096 = vmul.f32 %v396, 0.020408163
  %v1097 = vmul.f32 %v399, 0.020408163
  %v1098 = vmul.f32 %v402, 0.020408163
  %v1099 = vmul.f32 %v405, 0.020408163
  %v1100 = vmul.f32 %v408, 0.020408163
  %v1101 = vmul.f32 %v411, 0.020408163
  %v1102 = vmul.f32 %v414, 0.020408163
  %v1103 = vmul.f32 %v417, 0.020408163
  %v1104 = vmul.f32 %v420, 0.020408163
  %v1105 = vmul.f32 %v423, 0.020408163
  %v1106 = vmul.f32 %v426, 0.020408163
  %v1107 = vmul.f32 %v429, 0.020408163
  %v1108 = vmul.f32 %v432, 0.020408163
  %v1109 = vmul.f32 %v435, 0.020408163
  %v1110 = vmul.f32 %v438, 0.020408163
  %v1111 = vmul.f32 %v441, 0.020408163
  %v1112 = vmul.f32 %v444, 0.020408163
  %v1113 = vmul.f32 %v447, 0.020408163
  %v1114 = vmul.f32 %v450, 0.020408163
  %v1115 = vmul.f32 %v453, 0.020408163
  %v1116 = vmul.f32 %v456, 0.020408163
  %v1117 = vmul.f32 %v459, 0.020408163
  %v1118 = vmul.f32 %v462, 0.020408163
  %v1119 = vmul.f32 %v465, 0.020408163
  %v1120 = vmul.f32 %v468, 0.020408163
  %v1121 = vmul.f32 %v471, 0.020408163
  %v1122 = vmul.f32 %v474, 0.020408163
  %v1123 = vmul.f32 %v477, 0.020408163
  %v1124 = vmul.f32 %v480, 0.020408163
  %v1125 = vmul.f32 %v483, 0.020408163
  %v1126 = vmul.f32 %v486, 0.020408163
  %v1127 = vmul.f32 %v489, 0.020408163
  %v1128 = vmul.f32 %v492, 0.020408163
  %v1129 = vmul.f32 %v495, 0.020408163
  %v1130 = vmul.f32 %v498, 0.020408163
  %v1131 = vmul.f32 %v501, 0.020408163
  %v1132 = vmul.f32 %v504, 0.020408163
  %v1133 = vmul.f32 %v507, 0.020408163
  %v1134 = vmul.f32 %v510, 0.020408163
  %v1135 = vmul.f32 %v513, 0.020408163
  %v1136 = vmul.f32 %v516, 0.020408163
  %v1137 = vmul.f32 %v519, 0.020408163
  %v1138 = vmul.f32 %v522, 0.020408163
  %v1139 = vmul.f32 %v525, 0.020408163
  %v1140 = vmul.f32 %v528, 0.020408163
  %v1141 = vmul.f32 %v531, 0.020408163
  %v1142 = vmul.f32 %v534, 0.020408163
  %v1143 = vmul.f32 %v537, 0.020408163
  %v1144 = vmul.f32 %v540, 0.020408163
  %v1145 = vmul.f32 %v543, 0.020408163
  %v1146 = vmul.f32 %v546, 0.020408163
  %v1147 = vmul.f32 %v549, 0.020408163
  %v1148 = vmul.f32 %v552, 0.020408163
  %v1149 = vmul.f32 %v555, 0.020408163
  %v1150 = vmul.f32 %v558, 0.020408163
  %v1151 = vmul.f32 %v561, 0.020408163
  %v1152 = vmul.f32 %v564, 0.020408163
  %v1153 = vmul.f32 %v567, 0.020408163
  %v1154 = vmul.f32 %v570, 0.020408163
  %v1155 = vmul.f32 %v573, 0.020408163
  %v1156 = vmul.f32 %v576, 0.020408163
  %v1157 = vmul.f32 %v579, 0.020408163
  %v1158 = vmul.f32 %v582, 0.020408163
  %v1159 = vmul.f32 %v585, 0.020408163
  %v1160 = vmul.f32 %v588, 0.020408163
  %v1161 = vmul.f32 %v591, 0.020408163
  %v1162 = vmul.f32 %v708, 0.020408163
  %v1163 = vmul.f32 %v711, 0.020408163
  %v1164 = vmul.f32 %v714, 0.020408163
  %v1165 = vmul.f32 %v717, 0.020408163
  %v1166 = vmul.f32 %v720, 0.020408163
  %v1167 = vmul.f32 %v723, 0.020408163
  %v1168 = vmul.f32 %v726, 0.020408163
  %v1169 = vmul.f32 %v729, 0.020408163
  %v1170 = vmul.f32 %v732, 0.020408163
  %v1171 = vmul.f32 %v735, 0.020408163
  %v1172 = vmul.f32 %v738, 0.020408163
  %v1173 = vmul.f32 %v741, 0.020408163
  %v1174 = vmul.f32 %v744, 0.020408163
  %v1175 = vmul.f32 %v747, 0.020408163
  %v1176 = vmul.f32 %v750, 0.020408163
  %v1177 = vmul.f32 %v753, 0.020408163
  %v1178 = vmul.f32 %v756, 0.020408163
  %v1179 = vmul.f32 %v759, 0.020408163
  %v1180 = vmul.f32 %v762, 0.020408163
  %v1181 = vmul.f32 %v765, 0.020408163
  %v1182 = vmul.f32 %v768, 0.020408163
  %v1183 = vmul.f32 %v771, 0.020408163
  %v1184 = vmul.f32 %v774, 0.020408163
  %v1185 = vmul.f32 %v777, 0.020408163
  %v1186 = vmul.f32 %v780, 0.020408163
  %v1187 = vmul.f32 %v783, 0.020408163
  %v1188 = vmul.f32 %v786, 0.020408163
  %v1189 = vmul.f32 %v789, 0.020408163
  %v1190 = vmul.f32 %v792, 0.020408163
  %v1191 = vmul.f32 %v795, 0.020408163
  %v1192 = vmul.f32 %v798, 0.020408163
  %v1193 = vmul.f32 %v801, 0.020408163
  %v1194 = vmul.f32 %v804, 0.020408163
  %v1195 = vmul.f32 %v807, 0.020408163
  %v1196 = vmul.f32 %v810, 0.020408163
  %v1197 = vmul.f32 %v813, 0.020408163
  %v1198 = vmul.f32 %v816, 0.020408163
  %v1199 = vmul.f32 %v819, 0.020408163
  %v1200 = vmul.f32 %v822, 0.020408163
  %v1201 = vmul.f32 %v825, 0.020408163
  %v1202 = vmul.f32 %v828, 0.020408163
  %v1203 = vmul.f32 %v831, 0.020408163
  %v1204 = vmul.f32 %v834, 0.020408163
  %v1205 = vmul.f32 %v837, 0.020408163
  %v1206 = vmul.f32 %v840, 0.020408163
  %v1207 = vmul.f32 %v843, 0.020408163
  %v1208 = vmul.f32 %v846, 0.020408163
  %v1209 = vmul.f32 %v849, 0.020408163
  %v1210 = vmul.f32 %v852, 0.020408163
  %v1211 = vmul.f32 %v855, 0.020408163
  %v1212 = vmul.f32 %v858, 0.020408163
  %v1213 = vmul.f32 %v861, 0.020408163
  %v1214 = vmul.f32 %v864, 0.020408163
  %v1215 = vmul.f32 %v867, 0.020408163
  %v1216 = vmul.f32 %v870, 0.020408163
  %v1217 = vmul.f32 %v873, 0.020408163
  %v1218 = vmul.f32 %v876, 0.020408163
  %v1219 = vmul.f32 %v879, 0.020408163
  %v1220 = vmul.f32 %v882, 0.020408163
  %v1221 = vmul.f32 %v885, 0.020408163
  %v1222 = vmul.f32 %v888, 0.020408163
  %v1223 = vmul.f32 %v891, 0.020408163
  %v1224 = vmul.f32 %v894, 0.020408163
  %v1225 = vmul.f32 %v897, 0.020408163
  %v1226 = vmul.f32 %v900, 0.020408163
  %v1227 = vmul.f32 %v903, 0.020408163
  %v1228 = vmul.f32 %v906, 0.020408163
  %v1229 = vmul.f32 %v909, 0.020408163
  %v1230 = vmul.f32 %v912, 0.020408163
  %v1231 = vmul.f32 %v915, 0.020408163
  %v1232 = vmul.f32 %v918, 0.020408163
  %v1233 = vmul.f32 %v921, 0.020408163
  %v1234 = vmul.f32 %v924, 0.020408163
  %v1235 = vmul.f32 %v927, 0.020408163
  %v1236 = vmul.f32 %v930, 0.020408163
  %v1237 = vmul.f32 %v933, 0.020408163
  %v1238 = vmul.f32 %v936, 0.020408163
  %v1239 = vmul.f32 %v939, 0.020408163
  %v1240 = vmul.f32 %v942, 0.020408163
  %v1241 = vmul.f32 %v945, 0.020408163
  %v1242 = vmul.f32 %v948, 0.020408163
  %v1243 = vmul.f32 %v951, 0.020408163
  %v1244 = vmul.f32 %v954, 0.020408163
  %v1245 = vmul.f32 %v957, 0.020408163
  %v1246 = vmul.f32 %v960, 0.020408163
  %v1247 = vmul.f32 %v963, 0.020408163
  %v1248 = vmul.f32 %v966, 0.020408163
  %v1249 = vmul.f32 %v969, 0.020408163
  %v1250 = vmul.f32 %v972, 0.020408163
  %v1251 = vmul.f32 %v975, 0.020408163
  %v1252 = vmul.f32 %v978, 0.020408163
  %v1253 = vmul.f32 %v981, 0.020408163
  %v1254 = vmul.f32 %v984, 0.020408163
  %v1255 = vmul.f32 %v987, 0.020408163
  %v1256 = vmul.f32 %v990, 0.020408163
  %v1257 = vmul.f32 %v993, 0.020408163
  %v1258 = vmul.f32 %v996, 0.020408163
  %v1259 = vmul.f32 %v999, 0.020408163
  %v1260 = vmul.f32 %v1002, 0.020408163
  %v1261 = vmul.f32 %v1005, 0.020408163
  %v1262 = vmul.f32 %v1008, 0.020408163
  %v1263 = vmul.f32 %v1011, 0.020408163
  %v1264 = vmul.f32 %v1014, 0.020408163
  %v1265 = vmul.f32 %v1017, 0.020408163
  %v1266 = vmul.f32 %v1020, 0.020408163
  %v1267 = vmul.f32 %v1023, 0.020408163
  %v1268 = vmul.f32 %v1026, 0.020408163
  %v1269 = vmul.f32 %v1029, 0.020408163
  %v1270 = vmul.f32 %v1032, 0.020408163
  %v1271 = vmul.f32 %v1035, 0.020408163
  %v1272 = vmul.f32 %v1038, 0.020408163
  %v1273 = vmul.f32 %v1041, 0.020408163
  %v1274 = vmul.f32 %v1044, 0.020408163
  %v1275 = vmul.f32 %v1047, 0.020408163
  %v1276 = vmul.f32 %v1048, %v1048
  %v1277 = vmul.f32 %v1049, %v1049
  %v1278 = vmul.f32 %v1050, %v1050
  %v1279 = vmul.f32 %v1051, %v1051
  %v1280 = vmul.f32 %v1052, %v1052
  %v1281 = vmul.f32 %v1053, %v1053
  %v1282 = vmul.f32 %v1054, %v1054
  %v1283 = vmul.f32 %v1055, %v1055
  %v1284 = vmul.f32 %v1056, %v1056
  %v1285 = vmul.f32 %v1057, %v1057
  %v1286 = vmul.f32 %v1058, %v1058
  %v1287 = vmul.f32 %v1059, %v1059
  %v1288 = vmul.f32 %v1060, %v1060
  %v1289 = vmul.f32 %v1061, %v1061
  %v1290 = vmul.f32 %v1062, %v1062
  %v1291 = vmul.f32 %v1063, %v1063
  %v1292 = vmul.f32 %v1064, %v1064
  %v1293 = vmul.f32 %v1065, %v1065
  %v1294 = vmul.f32 %v1066, %v1066
  %v1295 = vmul.f32 %v1067, %v1067
  %v1296 = vmul.f32 %v1068, %v1068
  %v1297 = vmul.f32 %v1069, %v1069
  %v1298 = vmul.f32 %v1070, %v1070
  %v1299 = vmul.f32 %v1071, %v1071
  %v1300 = vmul.f32 %v1072, %v1072
  %v1301 = vmul.f32 %v1073, %v1073
  %v1302 = vmul.f32 %v1074, %v1074
  %v1303 = vmul.f32 %v1075, %v1075
  %v1304 = vmul.f32 %v1076, %v1076
  %v1305 = vmul.f32 %v1077, %v1077
  %v1306 = vmul.f32 %v1078, %v1078
  %v1307 = vmul.f32 %v1079, %v1079
  %v1308 = vmul.f32 %v1080, %v1080
  %v1309 = vmul.f32 %v1081, %v1081
  %v1310 = vmul.f32 %v1082, %v1082
  %v1311 = vmul.f32 %v1083, %v1083
  %v1312 = vmul.f32 %v1084, %v1084
  %v1313 = vmul.f32 %v1085, %v1085
  %v1314 = vmul.f32 %v1086, %v1086
  %v1315 = vmul.f32 %v1087, %v1087
  %v1316 = vmul.f32 %v1088, %v1088
  %v1317 = vmul.f32 %v1089, %v1089
  %v1318 = vmul.f32 %v1090, %v1090
  %v1319 = vmul.f32 %v1091, %v1091
  %v1320 = vmul.f32 %v1092, %v1092
  %v1321 = vmul.f32 %v1093, %v1093
  %v1322 = vmul.f32 %v1094, %v1094
  %v1323 = vmul.f32 %v1095, %v1095
  %v1324 = vmul.f32 %v1096, %v1096
  %v1325 = vmul.f32 %v1097, %v1097
  %v1326 = vmul.f32 %v1098, %v1098
  %v1327 = vmul.f32 %v1099, %v1099
  %v1328 = vmul.f32 %v1100, %v1100
  %v1329 = vmul.f32 %v1101, %v1101
  %v1330 = vmul.f32 %v1102, %v1102
  %v1331 = vmul.f32 %v1103, %v1103
  %v1332 = vmul.f32 %v1104, %v1104
  %v1333 = vmul.f32 %v1105, %v1105
  %v1334 = vmul.f32 %v1106, %v1106
  %v1335 = vmul.f32 %v1107, %v1107
  %v1336 = vmul.f32 %v1108, %v1108
  %v1337 = vmul.f32 %v1109, %v1109
  %v1338 = vmul.f32 %v1110, %v1110
  %v1339 = vmul.f32 %v1111, %v1111
  %v1340 = vmul.f32 %v1112, %v1112
  %v1341 = vmul.f32 %v1113, %v1113
  %v1342 = vmul.f32 %v1114, %v1114
  %v1343 = vmul.f32 %v1115, %v1115
  %v1344 = vmul.f32 %v1116, %v1116
  %v1345 = vmul.f32 %v1117, %v1117
  %v1346 = vmul.f32 %v1118, %v1118
  %v1347 = vmul.f32 %v1119, %v1119
  %v1348 = vmul.f32 %v1120, %v1120
  %v1349 = vmul.f32 %v1121, %v1121
  %v1350 = vmul.f32 %v1122, %v1122
  %v1351 = vmul.f32 %v1123, %v1123
  %v1352 = vmul.f32 %v1124, %v1124
  %v1353 = vmul.f32 %v1125, %v1125
  %v1354 = vmul.f32 %v1126, %v1126
  %v1355 = vmul.f32 %v1127, %v1127
  %v1356 = vmul.f32 %v1128, %v1128
  %v1357 = vmul.f32 %v1129, %v1129
  %v1358 = vmul.f32 %v1130, %v1130
  %v1359 = vmul.f32 %v1131, %v1131
  %v1360 = vmul.f32 %v1132, %v1132
  %v1361 = vmul.f32 %v1133, %v1133
  %v1362 = vmul.f32 %v1134, %v1134
  %v1363 = vmul.f32 %v1135, %v1135
  %v1364 = vmul.f32 %v1136, %v1136
  %v1365 = vmul.f32 %v1137, %v1137
  %v1366 = vmul.f32 %v1138, %v1138
  %v1367 = vmul.f32 %v1139, %v1139
  %v1368 = vmul.f32 %v1140, %v1140
  %v1369 = vmul.f32 %v1141, %v1141
  %v1370 = vmul.f32 %v1142, %v1142
  %v1371 = vmul.f32 %v1143, %v1143
  %v1372 = vmul.f32 %v1144, %v1144
  %v1373 = vmul.f32 %v1145, %v1145
  %v1374 = vmul.f32 %v1146, %v1146
  %v1375 = vmul.f32 %v1147, %v1147
  %v1376 = vmul.f32 %v1148, %v1148
  %v1377 = vmul.f32 %v1149, %v1149
  %v1378 = vmul.f32 %v1150, %v1150
  %v1379 = vmul.f32 %v1151, %v1151
  %v1380 = vmul.f32 %v1152, %v1152
  %v1381 = vmul.f32 %v1153, %v1153
  %v1382 = vmul.f32 %v1154, %v1154
  %v1383 = vmul.f32 %v1155, %v1155
  %v1384 = vmul.f32 %v1156, %v1156
  %v1385 = vmul.f32 %v1157, %v1157
  %v1386 = vmul.f32 %v1158, %v1158
  %v1387 = vmul.f32 %v1159, %v1159
  %v1388 = vmul.f32 %v1160, %v1160
  %v1389 = vmul.f32 %v1161, %v1161
  %v1390 = vsub.f32 %v1162, %v1276
  %v1391 = vsub.f32 %v1163, %v1277
  %v1392 = vsub.f32 %v1164, %v1278
  %v1393 = vsub.f32 %v1165, %v1279
  %v1394 = vsub.f32 %v1166, %v1280
  %v1395 = vsub.f32 %v1167, %v1281
  %v1396 = vsub.f32 %v1168, %v1282
  %v1397 = vsub.f32 %v1169, %v1283
  %v1398 = vsub.f32 %v1170, %v1284
  %v1399 = vsub.f32 %v1171, %v1285
  %v1400 = vsub.f32 %v1172, %v1286
  %v1401 = vsub.f32 %v1173, %v1287
  %v1402 = vsub.f32 %v1174, %v1288
  %v1403 = vsub.f32 %v1175, %v1289
  %v1404 = vsub.f32 %v1176, %v1290
  %v1405 = vsub.f32 %v1177, %v1291
  %v1406 = vsub.f32 %v1178, %v1292
  %v1407 = vsub.f32 %v1179, %v1293
  %v1408 = vsub.f32 %v1180, %v1294
  %v1409 = vsub.f32 %v1181, %v1295
  %v1410 = vsub.f32 %v1182, %v1296
  %v1411 = vsub.f32 %v1183, %v1297
  %v1412 = vsub.f32 %v1184, %v1298
  %v1413 = vsub.f32 %v1185, %v1299
  %v1414 = vsub.f32 %v1186, %v1300
  %v1415 = vsub.f32 %v1187, %v1301
  %v1416 = vsub.f32 %v1188, %v1302
  %v1417 = vsub.f32 %v1189, %v1303
  %v1418 = vsub.f32 %v1190, %v1304
  %v1419 = vsub.f32 %v1191, %v1305
  %v1420 = vsub.f32 %v1192, %v1306
  %v1421 = vsub.f32 %v1193, %v1307
  %v1422 = vsub.f32 %v1194, %v1308
  %v1423 = vsub.f32 %v1195, %v1309
  %v1424 = vsub.f32 %v1196, %v1310
  %v1425 = vsub.f32 %v1197, %v1311
  %v1426 = vsub.f32 %v1198, %v1312
  %v1427 = vsub.f32 %v1199, %v1313
  %v1428 = vsub.f32 %v1200, %v1314
  %v1429 = vsub.f32 %v1201, %v1315
  %v1430 = vsub.f32 %v1202, %v1316
  %v1431 = vsub.f32 %v1203, %v1317
  %v1432 = vsub.f32 %v1204, %v1318
  %v1433 = vsub.f32 %v1205, %v1319
  %v1434 = vsub.f32 %v1206, %v1320
  %v1435 = vsub.f32 %v1207, %v1321
  %v1436 = vsub.f32 %v1208, %v1322
  %v1437 = vsub.f32 %v1209, %v1323
  %v1438 = vsub.f32 %v1210, %v1324
  %v1439 = vsub.f32 %v1211, %v1325
  %v1440 = vsub.f32 %v1212, %v1326
  %v1441 = vsub.f32 %v1213, %v1327
  %v1442 = vsub.f32 %v1214, %v1328
  %v1443 = vsub.f32 %v1215, %v1329
  %v1444 = vsub.f32 %v1216, %v1330
  %v1445 = vsub.f32 %v1217, %v1331
  %v1446 = vsub.f32 %v1218, %v1332
  %v1447 = vsub.f32 %v1219, %v1333
  %v1448 = vsub.f32 %v1220, %v1334
  %v1449 = vsub.f32 %v1221, %v1335
  %v1450 = vsub.f32 %v1222, %v1336
  %v1451 = vsub.f32 %v1223, %v1337
  %v1452 = vsub.f32 %v1224, %v1338
  %v1453 = vsub.f32 %v1225, %v1339
  %v1454 = vsub.f32 %v1226, %v1340
  %v1455 = vsub.f32 %v1227, %v1341
  %v1456 = vsub.f32 %v1228, %v1342
  %v1457 = vsub.f32 %v1229, %v1343
  %v1458 = vsub.f32 %v1230, %v1344
  %v1459 = vsub.f32 %v1231, %v1345
  %v1460 = vsub.f32 %v1232, %v1346
  %v1461 = vsub.f32 %v1233, %v1347
  %v1462 = vsub.f32 %v1234, %v1348
  %v1463 = vsub.f32 %v1235, %v1349
  %v1464 = vsub.f32 %v1236, %v1350
  %v1465 = vsub.f32 %v1237, %v1351
  %v1466 = vsub.f32 %v1238, %v1352
  %v1467 = vsub.f32 %v1239, %v1353
  %v1468 = vsub.f32 %v1240, %v1354
  %v1469 = vsub.f32 %v1241, %v1355
  %v1470 = vsub.f32 %v1242, %v1356
  %v1471 = vsub.f32 %v1243, %v1357
  %v1472 = vsub.f32 %v1244, %v1358
  %v1473 = vsub.f32 %v1245, %v1359
  %v1474 = vsub.f32 %v1246, %v1360
  %v1475 = vsub.f32 %v1247, %v1361
  %v1476 = vsub.f32 %v1248, %v1362
  %v1477 = vsub.f32 %v1249, %v1363
  %v1478 = vsub.f32 %v1250, %v1364
  %v1479 = vsub.f32 %v1251, %v1365
  %v1480 = vsub.f32 %v1252, %v1366
  %v1481 = vsub.f32 %v1253, %v1367
  %v1482 = vsub.f32 %v1254, %v1368
  %v1483 = vsub.f32 %v1255, %v1369
  %v1484 = vsub.f32 %v1256, %v1370
  %v1485 = vsub.f32 %v1257, %v1371
  %v1486 = vsub.f32 %v1258, %v1372
  %v1487 = vsub.f32 %v1259, %v1373
  %v1488 = vsub.f32 %v1260, %v1374
  %v1489 = vsub.f32 %v1261, %v1375
  %v1490 = vsub.f32 %v1262, %v1376
  %v1491 = vsub.f32 %v1263, %v1377
  %v1492 = vsub.f32 %v1264, %v1378
  %v1493 = vsub.f32 %v1265, %v1379
  %v1494 = vsub.f32 %v1266, %v1380
  %v1495 = vsub.f32 %v1267, %v1381
  %v1496 = vsub.f32 %v1268, %v1382
  %v1497 = vsub.f32 %v1269, %v1383
  %v1498 = vsub.f32 %v1270, %v1384
  %v1499 = vsub.f32 %v1271, %v1385
  %v1500 = vsub.f32 %v1272, %v1386
  %v1501 = vsub.f32 %v1273, %v1387
  %v1502 = vsub.f32 %v1274, %v1388
  %v1503 = vsub.f32 %v1275, %v1389
  %v1504 = vld [vmem:[%s3] sm:$0xff]
  %v1505 = vld [vmem:[%s3 + $0x8] sm:$0xff]
  %v1506 = vld [vmem:[%s3 + $0x10] sm:$0xff]
  %v1507 = vld [vmem:[%s3 + $0x18] sm:$0xff]
  %v1508 = vld [vmem:[%s3 + $0x20] sm:$0xff]
  %v1509 = vld [vmem:[%s3 + $0x28] sm:$0xff]
  %v1510 = vld [vmem:[%s3 + $0x30] sm:$0xff]
  %v1511 = vld [vmem:[%s3 + $0x38] sm:$0xff]
  %v1512 = vld [vmem:[%s3 + $0x40] sm:$0xff]
  %v1513 = vld [vmem:[%s3 + $0x48] sm:$0xff]
  %v1514 = vld [vmem:[%s3 + $0x50] sm:$0xff]
  %v1515 = vld [vmem:[%s3 + $0x58] sm:$0xff]
  %v1516 = vld [vmem:[%s3 + $0x60] sm:$0xff]
  %v1517 = vld [vmem:[%s3 + $0x68] sm:$0xff]
  %v1518 = vld [vmem:[%s3 + $0x70] sm:$0xff]
  %v1519 = vld [vmem:[%s3 + $0x78] sm:$0xff]
  %v1520 = vld [vmem:[%s3 + $0x80] sm:$0xff]
  %v1521 = vld [vmem:[%s3 + $0x88] sm:$0xff]
  %v1522 = vld [vmem:[%s3 + $0x90] sm:$0xff]
  %v1523 = vld [vmem:[%s3 + $0x98] sm:$0xff]
  %v1524 = vld [vmem:[%s3 + $0xa0] sm:$0xff]
  %v1525 = vld [vmem:[%s3 + $0xa8] sm:$0xff]
  %v1526 = vld [vmem:[%s3 + $0xb0] sm:$0xff]
  %v1527 = vld [vmem:[%s3 + $0xb8] sm:$0xff]
  %v1528 = vld [vmem:[%s3 + $0xc0] sm:$0xff]
  %v1529 = vld [vmem:[%s3 + $0xc8] sm:$0xff]
  %v1530 = vld [vmem:[%s3 + $0xd0] sm:$0xff]
  %v1531 = vld [vmem:[%s3 + $0xd8] sm:$0xff]
  %v1532 = vld [vmem:[%s3 + $0xe0] sm:$0xff]
  %v1533 = vld [vmem:[%s3 + $0xe8] sm:$0xff]
  %v1534 = vld [vmem:[%s3 + $0xf0] sm:$0xff]
  %v1535 = vld [vmem:[%s3 + $0xf8] sm:$0xff]
  %v1536 = vld [vmem:[%s3 + $0x100] sm:$0xff]
  %v1537 = vld [vmem:[%s3 + $0x108] sm:$0xff]
  %v1538 = vld [vmem:[%s3 + $0x110] sm:$0xff]
  %v1539 = vld [vmem:[%s3 + $0x118] sm:$0xff]
  %v1540 = vld [vmem:[%s3 + $0x120] sm:$0xff]
  %v1541 = vld [vmem:[%s3 + $0x128] sm:$0xff]
  %v1542 = vld [vmem:[%s3 + $0x130] sm:$0xff]
  %v1543 = vld [vmem:[%s3 + $0x138] sm:$0xff]
  %v1544 = vld [vmem:[%s3 + $0x140] sm:$0xff]
  %v1545 = vld [vmem:[%s3 + $0x148] sm:$0xff]
  %v1546 = vld [vmem:[%s3 + $0x150] sm:$0xff]
  %v1547 = vld [vmem:[%s3 + $0x158] sm:$0xff]
  %v1548 = vld [vmem:[%s3 + $0x160] sm:$0xff]
  %v1549 = vld [vmem:[%s3 + $0x168] sm:$0xff]
  %v1550 = vld [vmem:[%s3 + $0x170] sm:$0xff]
  %v1551 = vld [vmem:[%s3 + $0x178] sm:$0xff]
  %v1552 = vld [vmem:[%s3 + $0x180] sm:$0xff]
  %v1553 = vld [vmem:[%s3 + $0x188] sm:$0xff]
  %v1554 = vld [vmem:[%s3 + $0x190] sm:$0xff]
  %v1555 = vld [vmem:[%s3 + $0x198] sm:$0xff]
  %v1556 = vld [vmem:[%s3 + $0x1a0] sm:$0xff]
  %v1557 = vld [vmem:[%s3 + $0x1a8] sm:$0xff]
  %v1558 = vld [vmem:[%s3 + $0x1b0] sm:$0xff]
  %v1559 = vld [vmem:[%s3 + $0x1b8] sm:$0xff]
  %v1560 = vld [vmem:[%s3 + $0x1c0] sm:$0xff]
  %v1561 = vld [vmem:[%s3 + $0x1c8] sm:$0xff]
  %v1562 = vld [vmem:[%s3 + $0x1d0] sm:$0xff]
  %v1563 = vld [vmem:[%s3 + $0x1d8] sm:$0xff]
  %v1564 = vld [vmem:[%s3 + $0x1e0] sm:$0xff]
  %v1565 = vld [vmem:[%s3 + $0x1e8] sm:$0xff]
  %v1566 = vld [vmem:[%s3 + $0x1f0] sm:$0xff]
  %v1567 = vld [vmem:[%s3 + $0x1f8] sm:$0xff]
  %v1568 = vld [vmem:[%s3 + $0x200] sm:$0xff]
  %v1569 = vld [vmem:[%s3 + $0x208] sm:$0xff]
  %v1570 = vld [vmem:[%s3 + $0x210] sm:$0xff]
  %v1571 = vld [vmem:[%s3 + $0x218] sm:$0xff]
  %v1572 = vld [vmem:[%s3 + $0x220] sm:$0xff]
  %v1573 = vld [vmem:[%s3 + $0x228] sm:$0xff]
  %v1574 = vld [vmem:[%s3 + $0x230] sm:$0xff]
  %v1575 = vld [vmem:[%s3 + $0x238] sm:$0xff]
  %v1576 = vld [vmem:[%s3 + $0x240] sm:$0xff]
  %v1577 = vld [vmem:[%s3 + $0x248] sm:$0xff]
  %v1578 = vld [vmem:[%s3 + $0x250] sm:$0xff]
  %v1579 = vld [vmem:[%s3 + $0x258] sm:$0xff]
  %v1580 = vld [vmem:[%s3 + $0x260] sm:$0xff]
  %v1581 = vld [vmem:[%s3 + $0x268] sm:$0xff]
  %v1582 = vld [vmem:[%s3 + $0x270] sm:$0xff]
  %v1583 = vld [vmem:[%s3 + $0x278] sm:$0xff]
  %v1584 = vld [vmem:[%s3 + $0x280] sm:$0xff]
  %v1585 = vld [vmem:[%s3 + $0x288] sm:$0xff]
  %v1586 = vld [vmem:[%s3 + $0x290] sm:$0xff]
  %v1587 = vld [vmem:[%s3 + $0x298] sm:$0xff]
  %v1588 = vld [vmem:[%s3 + $0x2a0] sm:$0xff]
  %v1589 = vld [vmem:[%s3 + $0x2a8] sm:$0xff]
  %v1590 = vld [vmem:[%s3 + $0x2b0] sm:$0xff]
  %v1591 = vld [vmem:[%s3 + $0x2b8] sm:$0xff]
  %v1592 = vld [vmem:[%s3 + $0x2c0] sm:$0xff]
  %v1593 = vld [vmem:[%s3 + $0x2c8] sm:$0xff]
  %v1594 = vld [vmem:[%s3 + $0x2d0] sm:$0xff]
  %v1595 = vld [vmem:[%s3 + $0x2d8] sm:$0xff]
  %v1596 = vld [vmem:[%s3 + $0x2e0] sm:$0xff]
  %v1597 = vld [vmem:[%s3 + $0x2e8] sm:$0xff]
  %v1598 = vld [vmem:[%s3 + $0x2f0] sm:$0xff]
  %v1599 = vld [vmem:[%s3 + $0x2f8] sm:$0xff]
  %v1600 = vld [vmem:[%s3 + $0x300] sm:$0xff]
  %v1601 = vld [vmem:[%s3 + $0x308] sm:$0xff]
  %v1602 = vld [vmem:[%s3 + $0x310] sm:$0xff]
  %v1603 = vld [vmem:[%s3 + $0x318] sm:$0xff]
  %v1604 = vld [vmem:[%s3 + $0x320] sm:$0xff]
  %v1605 = vld [vmem:[%s3 + $0x328] sm:$0xff]
  %v1606 = vld [vmem:[%s3 + $0x330] sm:$0xff]
  %v1607 = vld [vmem:[%s3 + $0x338] sm:$0xff]
  %v1608 = vld [vmem:[%s3 + $0x340] sm:$0xff]
  %v1609 = vld [vmem:[%s3 + $0x348] sm:$0xff]
  %v1610 = vld [vmem:[%s3 + $0x350] sm:$0xff]
  %v1611 = vld [vmem:[%s3 + $0x358] sm:$0xff]
  %v1612 = vld [vmem:[%s3 + $0x360] sm:$0xff]
  %v1613 = vld [vmem:[%s3 + $0x368] sm:$0xff]
  %v1614 = vld [vmem:[%s3 + $0x370] sm:$0xff]
  %v1615 = vld [vmem:[%s3 + $0x378] sm:$0xff]
  %v1616 = vld [vmem:[%s3 + $0x380] sm:$0xff]
  %v1617 = vld [vmem:[%s3 + $0x388] sm:$0xff]
  %v1618 = vadd.f32 %v1390, 1e-05
  %v1619 = vadd.f32 %v1391, 1e-05
  %v1620 = vadd.f32 %v1392, 1e-05
  %v1621 = vadd.f32 %v1393, 1e-05
  %v1622 = vadd.f32 %v1394, 1e-05
  %v1623 = vadd.f32 %v1395, 1e-05
  %v1624 = vadd.f32 %v1396, 1e-05
  %v1625 = vadd.f32 %v1397, 1e-05
  %v1626 = vadd.f32 %v1398, 1e-05
  %v1627 = vadd.f32 %v1399, 1e-05
  %v1628 = vadd.f32 %v1400, 1e-05
  %v1629 = vadd.f32 %v1401, 1e-05
  %v1630 = vadd.f32 %v1402, 1e-05
  %v1631 = vadd.f32 %v1403, 1e-05
  %v1632 = vadd.f32 %v1404, 1e-05
  %v1633 = vadd.f32 %v1405, 1e-05
  %v1634 = vadd.f32 %v1406, 1e-05
  %v1635 = vadd.f32 %v1407, 1e-05
  %v1636 = vadd.f32 %v1408, 1e-05
  %v1637 = vadd.f32 %v1409, 1e-05
  %v1638 = vadd.f32 %v1410, 1e-05
  %v1639 = vadd.f32 %v1411, 1e-05
  %v1640 = vadd.f32 %v1412, 1e-05
  %v1641 = vadd.f32 %v1413, 1e-05
  %v1642 = vadd.f32 %v1414, 1e-05
  %v1643 = vadd.f32 %v1415, 1e-05
  %v1644 = vadd.f32 %v1416, 1e-05
  %v1645 = vadd.f32 %v1417, 1e-05
  %v1646 = vadd.f32 %v1418, 1e-05
  %v1647 = vadd.f32 %v1419, 1e-05
  %v1648 = vadd.f32 %v1420, 1e-05
  %v1649 = vadd.f32 %v1421, 1e-05
  %v1650 = vadd.f32 %v1422, 1e-05
  %v1651 = vadd.f32 %v1423, 1e-05
  %v1652 = vadd.f32 %v1424, 1e-05
  %v1653 = vadd.f32 %v1425, 1e-05
  %v1654 = vadd.f32 %v1426, 1e-05
  %v1655 = vadd.f32 %v1427, 1e-05
  %v1656 = vadd.f32 %v1428, 1e-05
  %v1657 = vadd.f32 %v1429, 1e-05
  %v1658 = vadd.f32 %v1430, 1e-05
  %v1659 = vadd.f32 %v1431, 1e-05
  %v1660 = vadd.f32 %v1432, 1e-05
  %v1661 = vadd.f32 %v1433, 1e-05
  %v1662 = vadd.f32 %v1434, 1e-05
  %v1663 = vadd.f32 %v1435, 1e-05
  %v1664 = vadd.f32 %v1436, 1e-05
  %v1665 = vadd.f32 %v1437, 1e-05
  %v1666 = vadd.f32 %v1438, 1e-05
  %v1667 = vadd.f32 %v1439, 1e-05
  %v1668 = vadd.f32 %v1440, 1e-05
  %v1669 = vadd.f32 %v1441, 1e-05
  %v1670 = vadd.f32 %v1442, 1e-05
  %v1671 = vadd.f32 %v1443, 1e-05
  %v1672 = vadd.f32 %v1444, 1e-05
  %v1673 = vadd.f32 %v1445, 1e-05
  %v1674 = vadd.f32 %v1446, 1e-05
  %v1675 = vadd.f32 %v1447, 1e-05
  %v1676 = vadd.f32 %v1448, 1e-05
  %v1677 = vadd.f32 %v1449, 1e-05
  %v1678 = vadd.f32 %v1450, 1e-05
  %v1679 = vadd.f32 %v1451, 1e-05
  %v1680 = vadd.f32 %v1452, 1e-05
  %v1681 = vadd.f32 %v1453, 1e-05
  %v1682 = vadd.f32 %v1454, 1e-05
  %v1683 = vadd.f32 %v1455, 1e-05
  %v1684 = vadd.f32 %v1456, 1e-05
  %v1685 = vadd.f32 %v1457, 1e-05
  %v1686 = vadd.f32 %v1458, 1e-05
  %v1687 = vadd.f32 %v1459, 1e-05
  %v1688 = vadd.f32 %v1460, 1e-05
  %v1689 = vadd.f32 %v1461, 1e-05
  %v1690 = vadd.f32 %v1462, 1e-05
  %v1691 = vadd.f32 %v1463, 1e-05
  %v1692 = vadd.f32 %v1464, 1e-05
  %v1693 = vadd.f32 %v1465, 1e-05
  %v1694 = vadd.f32 %v1466, 1e-05
  %v1695 = vadd.f32 %v1467, 1e-05
  %v1696 = vadd.f32 %v1468, 1e-05
  %v1697 = vadd.f32 %v1469, 1e-05
  %v1698 = vadd.f32 %v1470, 1e-05
  %v1699 = vadd.f32 %v1471, 1e-05
  %v1700 = vadd.f32 %v1472, 1e-05
  %v1701 = vadd.f32 %v1473, 1e-05
  %v1702 = vadd.f32 %v1474, 1e-05
  %v1703 = vadd.f32 %v1475, 1e-05
  %v1704 = vadd.f32 %v1476, 1e-05
  %v1705 = vadd.f32 %v1477, 1e-05
  %v1706 = vadd.f32 %v1478, 1e-05
  %v1707 = vadd.f32 %v1479, 1e-05
  %v1708 = vadd.f32 %v1480, 1e-05
  %v1709 = vadd.f32 %v1481, 1e-05
  %v1710 = vadd.f32 %v1482, 1e-05
  %v1711 = vadd.f32 %v1483, 1e-05
  %v1712 = vadd.f32 %v1484, 1e-05
  %v1713 = vadd.f32 %v1485, 1e-05
  %v1714 = vadd.f32 %v1486, 1e-05
  %v1715 = vadd.f32 %v1487, 1e-05
  %v1716 = vadd.f32 %v1488, 1e-05
  %v1717 = vadd.f32 %v1489, 1e-05
  %v1718 = vadd.f32 %v1490, 1e-05
  %v1719 = vadd.f32 %v1491, 1e-05
  %v1720 = vadd.f32 %v1492, 1e-05
  %v1721 = vadd.f32 %v1493, 1e-05
  %v1722 = vadd.f32 %v1494, 1e-05
  %v1723 = vadd.f32 %v1495, 1e-05
  %v1724 = vadd.f32 %v1496, 1e-05
  %v1725 = vadd.f32 %v1497, 1e-05
  %v1726 = vadd.f32 %v1498, 1e-05
  %v1727 = vadd.f32 %v1499, 1e-05
  %v1728 = vadd.f32 %v1500, 1e-05
  %v1729 = vadd.f32 %v1501, 1e-05
  %v1730 = vadd.f32 %v1502, 1e-05
  %v1731 = vadd.f32 %v1503, 1e-05
  %v1732 = vrsqrt.pop %v1618
  %v1733 = vrsqrt.pop %v1619
  %v1734 = vrsqrt.pop %v1620
  %v1735 = vrsqrt.pop %v1621
  %v1736 = vrsqrt.pop %v1622
  %v1737 = vrsqrt.pop %v1623
  %v1738 = vrsqrt.pop %v1624
  %v1739 = vrsqrt.pop %v1625
  %v1740 = vrsqrt.pop %v1626
  %v1741 = vrsqrt.pop %v1627
  %v1742 = vrsqrt.pop %v1628
  %v1743 = vrsqrt.pop %v1629
  %v1744 = vrsqrt.pop %v1630
  %v1745 = vrsqrt.pop %v1631
  %v1746 = vrsqrt.pop %v1632
  %v1747 = vrsqrt.pop %v1633
  %v1748 = vrsqrt.pop %v1634
  %v1749 = vrsqrt.pop %v1635
  %v1750 = vrsqrt.pop %v1636
  %v1751 = vrsqrt.pop %v1637
  %v1752 = vrsqrt.pop %v1638
  %v1753 = vrsqrt.pop %v1639
  %v1754 = vrsqrt.pop %v1640
  %v1755 = vrsqrt.pop %v1641
  %v1756 = vrsqrt.pop %v1642
  %v1757 = vrsqrt.pop %v1643
  %v1758 = vrsqrt.pop %v1644
  %v1759 = vrsqrt.pop %v1645
  %v1760 = vrsqrt.pop %v1646
  %v1761 = vrsqrt.pop %v1647
  %v1762 = vrsqrt.pop %v1648
  %v1763 = vrsqrt.pop %v1649
  %v1764 = vrsqrt.pop %v1650
  %v1765 = vrsqrt.pop %v1651
  %v1766 = vrsqrt.pop %v1652
  %v1767 = vrsqrt.pop %v1653
  %v1768 = vrsqrt.pop %v1654
  %v1769 = vrsqrt.pop %v1655
  %v1770 = vrsqrt.pop %v1656
  %v1771 = vrsqrt.pop %v1657
  %v1772 = vrsqrt.pop %v1658
  %v1773 = vrsqrt.pop %v1659
  %v1774 = vrsqrt.pop %v1660
  %v1775 = vrsqrt.pop %v1661
  %v1776 = vrsqrt.pop %v1662
  %v1777 = vrsqrt.pop %v1663
  %v1778 = vrsqrt.pop %v1664
  %v1779 = vrsqrt.pop %v1665
  %v1780 = vrsqrt.pop %v1666
  %v1781 = vrsqrt.pop %v1667
  %v1782 = vrsqrt.pop %v1668
  %v1783 = vrsqrt.pop %v1669
  %v1784 = vrsqrt.pop %v1670
  %v1785 = vrsqrt.pop %v1671
  %v1786 = vrsqrt.pop %v1672
  %v1787 = vrsqrt.pop %v1673
  %v1788 = vrsqrt.pop %v1674
  %v1789 = vrsqrt.pop %v1675
  %v1790 = vrsqrt.pop %v1676
  %v1791 = vrsqrt.pop %v1677
  %v1792 = vrsqrt.pop %v1678
  %v1793 = vrsqrt.pop %v1679
  %v1794 = vrsqrt.pop %v1680
  %v1795 = vrsqrt.pop %v1681
  %v1796 = vrsqrt.pop %v1682
  %v1797 = vrsqrt.pop %v1683
  %v1798 = vrsqrt.pop %v1684
  %v1799 = vrsqrt.pop %v1685
  %v1800 = vrsqrt.pop %v1686
  %v1801 = vrsqrt.pop %v1687
  %v1802 = vrsqrt.pop %v1688
  %v1803 = vrsqrt.pop %v1689
  %v1804 = vrsqrt.pop %v1690
  %v1805 = vrsqrt.pop %v1691
  %v1806 = vrsqrt.pop %v1692
  %v1807 = vrsqrt.pop %v1693
  %v1808 = vrsqrt.pop %v1694
  %v1809 = vrsqrt.pop %v1695
  %v1810 = vrsqrt.pop %v1696
  %v1811 = vrsqrt.pop %v1697
  %v1812 = vrsqrt.pop %v1698
  %v1813 = vrsqrt.pop %v1699
  %v1814 = vrsqrt.pop %v1700
  %v1815 = vrsqrt.pop %v1701
  %v1816 = vrsqrt.pop %v1702
  %v1817 = vrsqrt.pop %v1703
  %v1818 = vrsqrt.pop %v1704
  %v1819 = vrsqrt.pop %v1705
  %v1820 = vrsqrt.pop %v1706
  %v1821 = vrsqrt.pop %v1707
  %v1822 = vrsqrt.pop %v1708
  %v1823 = vrsqrt.pop %v1709
  %v1824 = vrsqrt.pop %v1710
  %v1825 = vrsqrt.pop %v1711
  %v1826 = vrsqrt.pop %v1712
  %v1827 = vrsqrt.pop %v1713
  %v1828 = vrsqrt.pop %v1714
  %v1829 = vrsqrt.pop %v1715
  %v1830 = vrsqrt.pop %v1716
  %v1831 = vrsqrt.pop %v1717
  %v1832 = vrsqrt.pop %v1718
  %v1833 = vrsqrt.pop %v1719
  %v1834 = vrsqrt.pop %v1720
  %v1835 = vrsqrt.pop %v1721
  %v1836 = vrsqrt.pop %v1722
  %v1837 = vrsqrt.pop %v1723
  %v1838 = vrsqrt.pop %v1724
  %v1839 = vrsqrt.pop %v1725
  %v1840 = vrsqrt.pop %v1726
  %v1841 = vrsqrt.pop %v1727
  %v1842 = vrsqrt.pop %v1728
  %v1843 = vrsqrt.pop %v1729
  %v1844 = vrsqrt.pop %v1730
  %v1845 = vrsqrt.pop %v1731
  %v1846 = vmul.f32 %v1504, %v1732
  %v1847 = vmul.f32 %v1505, %v1733
  %v1848 = vmul.f32 %v1506, %v1734
  %v1849 = vmul.f32 %v1507, %v1735
  %v1850 = vmul.f32 %v1508, %v1736
  %v1851 = vmul.f32 %v1509, %v1737
  %v1852 = vmul.f32 %v1510, %v1738
  %v1853 = vmul.f32 %v1511, %v1739
  %v1854 = vmul.f32 %v1512, %v1740
  %v1855 = vmul.f32 %v1513, %v1741
  %v1856 = vmul.f32 %v1514, %v1742
  %v1857 = vmul.f32 %v1515, %v1743
  %v1858 = vmul.f32 %v1516, %v1744
  %v1859 = vmul.f32 %v1517, %v1745
  %v1860 = vmul.f32 %v1518, %v1746
  %v1861 = vmul.f32 %v1519, %v1747
  %v1862 = vmul.f32 %v1520, %v1748
  %v1863 = vmul.f32 %v1521, %v1749
  %v1864 = vmul.f32 %v1522, %v1750
  %v1865 = vmul.f32 %v1523, %v1751
  %v1866 = vmul.f32 %v1524, %v1752
  %v1867 = vmul.f32 %v1525, %v1753
  %v1868 = vmul.f32 %v1526, %v1754
  %v1869 = vmul.f32 %v1527, %v1755
  %v1870 = vmul.f32 %v1528, %v1756
  %v1871 = vmul.f32 %v1529, %v1757
  %v1872 = vmul.f32 %v1530, %v1758
  %v1873 = vmul.f32 %v1531, %v1759
  %v1874 = vmul.f32 %v1532, %v1760
  %v1875 = vmul.f32 %v1533, %v1761
  %v1876 = vmul.f32 %v1534, %v1762
  %v1877 = vmul.f32 %v1535, %v1763
  %v1878 = vmul.f32 %v1536, %v1764
  %v1879 = vmul.f32 %v1537, %v1765
  %v1880 = vmul.f32 %v1538, %v1766
  %v1881 = vmul.f32 %v1539, %v1767
  %v1882 = vmul.f32 %v1540, %v1768
  %v1883 = vmul.f32 %v1541, %v1769
  %v1884 = vmul.f32 %v1542, %v1770
  %v1885 = vmul.f32 %v1543, %v1771
  %v1886 = vmul.f32 %v1544, %v1772
  %v1887 = vmul.f32 %v1545, %v1773
  %v1888 = vmul.f32 %v1546, %v1774
  %v1889 = vmul.f32 %v1547, %v1775
  %v1890 = vmul.f32 %v1548, %v1776
  %v1891 = vmul.f32 %v1549, %v1777
  %v1892 = vmul.f32 %v1550, %v1778
  %v1893 = vmul.f32 %v1551, %v1779
  %v1894 = vmul.f32 %v1552, %v1780
  %v1895 = vmul.f32 %v1553, %v1781
  %v1896 = vmul.f32 %v1554, %v1782
  %v1897 = vmul.f32 %v1555, %v1783
  %v1898 = vmul.f32 %v1556, %v1784
  %v1899 = vmul.f32 %v1557, %v1785
  %v1900 = vmul.f32 %v1558, %v1786
  %v1901 = vmul.f32 %v1559, %v1787
  %v1902 = vmul.f32 %v1560, %v1788
  %v1903 = vmul.f32 %v1561, %v1789
  %v1904 = vmul.f32 %v1562, %v1790
  %v1905 = vmul.f32 %v1563, %v1791
  %v1906 = vmul.f32 %v1564, %v1792
  %v1907 = vmul.f32 %v1565, %v1793
  %v1908 = vmul.f32 %v1566, %v1794
  %v1909 = vmul.f32 %v1567, %v1795
  %v1910 = vmul.f32 %v1568, %v1796
  %v1911 = vmul.f32 %v1569, %v1797
  %v1912 = vmul.f32 %v1570, %v1798
  %v1913 = vmul.f32 %v1571, %v1799
  %v1914 = vmul.f32 %v1572, %v1800
  %v1915 = vmul.f32 %v1573, %v1801
  %v1916 = vmul.f32 %v1574, %v1802
  %v1917 = vmul.f32 %v1575, %v1803
  %v1918 = vmul.f32 %v1576, %v1804
  %v1919 = vmul.f32 %v1577, %v1805
  %v1920 = vmul.f32 %v1578, %v1806
  %v1921 = vmul.f32 %v1579, %v1807
  %v1922 = vmul.f32 %v1580, %v1808
  %v1923 = vmul.f32 %v1581, %v1809
  %v1924 = vmul.f32 %v1582, %v1810
  %v1925 = vmul.f32 %v1583, %v1811
  %v1926 = vmul.f32 %v1584, %v1812
  %v1927 = vmul.f32 %v1585, %v1813
  %v1928 = vmul.f32 %v1586, %v1814
  %v1929 = vmul.f32 %v1587, %v1815
  %v1930 = vmul.f32 %v1588, %v1816
  %v1931 = vmul.f32 %v1589, %v1817
  %v1932 = vmul.f32 %v1590, %v1818
  %v1933 = vmul.f32 %v1591, %v1819
  %v1934 = vmul.f32 %v1592, %v1820
  %v1935 = vmul.f32 %v1593, %v1821
  %v1936 = vmul.f32 %v1594, %v1822
  %v1937 = vmul.f32 %v1595, %v1823
  %v1938 = vmul.f32 %v1596, %v1824
  %v1939 = vmul.f32 %v1597, %v1825
  %v1940 = vmul.f32 %v1598, %v1826
  %v1941 = vmul.f32 %v1599, %v1827
  %v1942 = vmul.f32 %v1600, %v1828
  %v1943 = vmul.f32 %v1601, %v1829
  %v1944 = vmul.f32 %v1602, %v1830
  %v1945 = vmul.f32 %v1603, %v1831
  %v1946 = vmul.f32 %v1604, %v1832
  %v1947 = vmul.f32 %v1605, %v1833
  %v1948 = vmul.f32 %v1606, %v1834
  %v1949 = vmul.f32 %v1607, %v1835
  %v1950 = vmul.f32 %v1608, %v1836
  %v1951 = vmul.f32 %v1609, %v1837
  %v1952 = vmul.f32 %v1610, %v1838
  %v1953 = vmul.f32 %v1611, %v1839
  %v1954 = vmul.f32 %v1612, %v1840
  %v1955 = vmul.f32 %v1613, %v1841
  %v1956 = vmul.f32 %v1614, %v1842
  %v1957 = vmul.f32 %v1615, %v1843
  %v1958 = vmul.f32 %v1616, %v1844
  %v1959 = vmul.f32 %v1617, %v1845
  %v1960 = vld [vmem:[%s4] sm:$0xff]
  %v1961 = vld [vmem:[%s4 + $0x8] sm:$0xff]
  %v1962 = vld [vmem:[%s4 + $0x10] sm:$0xff]
  %v1963 = vld [vmem:[%s4 + $0x18] sm:$0xff]
  %v1964 = vld [vmem:[%s4 + $0x20] sm:$0xff]
  %v1965 = vld [vmem:[%s4 + $0x28] sm:$0xff]
  %v1966 = vld [vmem:[%s4 + $0x30] sm:$0xff]
  %v1967 = vld [vmem:[%s4 + $0x38] sm:$0xff]
  %v1968 = vld [vmem:[%s4 + $0x40] sm:$0xff]
  %v1969 = vld [vmem:[%s4 + $0x48] sm:$0xff]
  %v1970 = vld [vmem:[%s4 + $0x50] sm:$0xff]
  %v1971 = vld [vmem:[%s4 + $0x58] sm:$0xff]
  %v1972 = vld [vmem:[%s4 + $0x60] sm:$0xff]
  %v1973 = vld [vmem:[%s4 + $0x68] sm:$0xff]
  %v1974 = vld [vmem:[%s4 + $0x70] sm:$0xff]
  %v1975 = vld [vmem:[%s4 + $0x78] sm:$0xff]
  %v1976 = vld [vmem:[%s4 + $0x80] sm:$0xff]
  %v1977 = vld [vmem:[%s4 + $0x88] sm:$0xff]
  %v1978 = vld [vmem:[%s4 + $0x90] sm:$0xff]
  %v1979 = vld [vmem:[%s4 + $0x98] sm:$0xff]
  %v1980 = vld [vmem:[%s4 + $0xa0] sm:$0xff]
  %v1981 = vld [vmem:[%s4 + $0xa8] sm:$0xff]
  %v1982 = vld [vmem:[%s4 + $0xb0] sm:$0xff]
  %v1983 = vld [vmem:[%s4 + $0xb8] sm:$0xff]
  %v1984 = vld [vmem:[%s4 + $0xc0] sm:$0xff]
  %v1985 = vld [vmem:[%s4 + $0xc8] sm:$0xff]
  %v1986 = vld [vmem:[%s4 + $0xd0] sm:$0xff]
  %v1987 = vld [vmem:[%s4 + $0xd8] sm:$0xff]
  %v1988 = vld [vmem:[%s4 + $0xe0] sm:$0xff]
  %v1989 = vld [vmem:[%s4 + $0xe8] sm:$0xff]
  %v1990 = vld [vmem:[%s4 + $0xf0] sm:$0xff]
  %v1991 = vld [vmem:[%s4 + $0xf8] sm:$0xff]
  %v1992 = vld [vmem:[%s4 + $0x100] sm:$0xff]
  %v1993 = vld [vmem:[%s4 + $0x108] sm:$0xff]
  %v1994 = vld [vmem:[%s4 + $0x110] sm:$0xff]
  %v1995 = vld [vmem:[%s4 + $0x118] sm:$0xff]
  %v1996 = vld [vmem:[%s4 + $0x120] sm:$0xff]
  %v1997 = vld [vmem:[%s4 + $0x128] sm:$0xff]
  %v1998 = vld [vmem:[%s4 + $0x130] sm:$0xff]
  %v1999 = vld [vmem:[%s4 + $0x138] sm:$0xff]
  %v2000 = vld [vmem:[%s4 + $0x140] sm:$0xff]
  %v2001 = vld [vmem:[%s4 + $0x148] sm:$0xff]
  %v2002 = vld [vmem:[%s4 + $0x150] sm:$0xff]
  %v2003 = vld [vmem:[%s4 + $0x158] sm:$0xff]
  %v2004 = vld [vmem:[%s4 + $0x160] sm:$0xff]
  %v2005 = vld [vmem:[%s4 + $0x168] sm:$0xff]
  %v2006 = vld [vmem:[%s4 + $0x170] sm:$0xff]
  %v2007 = vld [vmem:[%s4 + $0x178] sm:$0xff]
  %v2008 = vld [vmem:[%s4 + $0x180] sm:$0xff]
  %v2009 = vld [vmem:[%s4 + $0x188] sm:$0xff]
  %v2010 = vld [vmem:[%s4 + $0x190] sm:$0xff]
  %v2011 = vld [vmem:[%s4 + $0x198] sm:$0xff]
  %v2012 = vld [vmem:[%s4 + $0x1a0] sm:$0xff]
  %v2013 = vld [vmem:[%s4 + $0x1a8] sm:$0xff]
  %v2014 = vld [vmem:[%s4 + $0x1b0] sm:$0xff]
  %v2015 = vld [vmem:[%s4 + $0x1b8] sm:$0xff]
  %v2016 = vld [vmem:[%s4 + $0x1c0] sm:$0xff]
  %v2017 = vld [vmem:[%s4 + $0x1c8] sm:$0xff]
  %v2018 = vld [vmem:[%s4 + $0x1d0] sm:$0xff]
  %v2019 = vld [vmem:[%s4 + $0x1d8] sm:$0xff]
  %v2020 = vld [vmem:[%s4 + $0x1e0] sm:$0xff]
  %v2021 = vld [vmem:[%s4 + $0x1e8] sm:$0xff]
  %v2022 = vld [vmem:[%s4 + $0x1f0] sm:$0xff]
  %v2023 = vld [vmem:[%s4 + $0x1f8] sm:$0xff]
  %v2024 = vld [vmem:[%s4 + $0x200] sm:$0xff]
  %v2025 = vld [vmem:[%s4 + $0x208] sm:$0xff]
  %v2026 = vld [vmem:[%s4 + $0x210] sm:$0xff]
  %v2027 = vld [vmem:[%s4 + $0x218] sm:$0xff]
  %v2028 = vld [vmem:[%s4 + $0x220] sm:$0xff]
  %v2029 = vld [vmem:[%s4 + $0x228] sm:$0xff]
  %v2030 = vld [vmem:[%s4 + $0x230] sm:$0xff]
  %v2031 = vld [vmem:[%s4 + $0x238] sm:$0xff]
  %v2032 = vld [vmem:[%s4 + $0x240] sm:$0xff]
  %v2033 = vld [vmem:[%s4 + $0x248] sm:$0xff]
  %v2034 = vld [vmem:[%s4 + $0x250] sm:$0xff]
  %v2035 = vld [vmem:[%s4 + $0x258] sm:$0xff]
  %v2036 = vld [vmem:[%s4 + $0x260] sm:$0xff]
  %v2037 = vld [vmem:[%s4 + $0x268] sm:$0xff]
  %v2038 = vld [vmem:[%s4 + $0x270] sm:$0xff]
  %v2039 = vld [vmem:[%s4 + $0x278] sm:$0xff]
  %v2040 = vld [vmem:[%s4 + $0x280] sm:$0xff]
  %v2041 = vld [vmem:[%s4 + $0x288] sm:$0xff]
  %v2042 = vld [vmem:[%s4 + $0x290] sm:$0xff]
  %v2043 = vld [vmem:[%s4 + $0x298] sm:$0xff]
  %v2044 = vld [vmem:[%s4 + $0x2a0] sm:$0xff]
  %v2045 = vld [vmem:[%s4 + $0x2a8] sm:$0xff]
  %v2046 = vld [vmem:[%s4 + $0x2b0] sm:$0xff]
  %v2047 = vld [vmem:[%s4 + $0x2b8] sm:$0xff]
  %v2048 = vld [vmem:[%s4 + $0x2c0] sm:$0xff]
  %v2049 = vld [vmem:[%s4 + $0x2c8] sm:$0xff]
  %v2050 = vld [vmem:[%s4 + $0x2d0] sm:$0xff]
  %v2051 = vld [vmem:[%s4 + $0x2d8] sm:$0xff]
  %v2052 = vld [vmem:[%s4 + $0x2e0] sm:$0xff]
  %v2053 = vld [vmem:[%s4 + $0x2e8] sm:$0xff]
  %v2054 = vld [vmem:[%s4 + $0x2f0] sm:$0xff]
  %v2055 = vld [vmem:[%s4 + $0x2f8] sm:$0xff]
  %v2056 = vld [vmem:[%s4 + $0x300] sm:$0xff]
  %v2057 = vld [vmem:[%s4 + $0x308] sm:$0xff]
  %v2058 = vld [vmem:[%s4 + $0x310] sm:$0xff]
  %v2059 = vld [vmem:[%s4 + $0x318] sm:$0xff]
  %v2060 = vld [vmem:[%s4 + $0x320] sm:$0xff]
  %v2061 = vld [vmem:[%s4 + $0x328] sm:$0xff]
  %v2062 = vld [vmem:[%s4 + $0x330] sm:$0xff]
  %v2063 = vld [vmem:[%s4 + $0x338] sm:$0xff]
  %v2064 = vld [vmem:[%s4 + $0x340] sm:$0xff]
  %v2065 = vld [vmem:[%s4 + $0x348] sm:$0xff]
  %v2066 = vld [vmem:[%s4 + $0x350] sm:$0xff]
  %v2067 = vld [vmem:[%s4 + $0x358] sm:$0xff]
  %v2068 = vld [vmem:[%s4 + $0x360] sm:$0xff]
  %v2069 = vld [vmem:[%s4 + $0x368] sm:$0xff]
  %v2070 = vld [vmem:[%s4 + $0x370] sm:$0xff]
  %v2071 = vld [vmem:[%s4 + $0x378] sm:$0xff]
  %v2072 = vld [vmem:[%s4 + $0x380] sm:$0xff]
  %v2073 = vld [vmem:[%s4 + $0x388] sm:$0xff]
  %v2074 = vmul.f32 %v1048, %v1846
  %v2075 = vmul.f32 %v1049, %v1847
  %v2076 = vmul.f32 %v1050, %v1848
  %v2077 = vmul.f32 %v1051, %v1849
  %v2078 = vmul.f32 %v1052, %v1850
  %v2079 = vmul.f32 %v1053, %v1851
  %v2080 = vmul.f32 %v1054, %v1852
  %v2081 = vmul.f32 %v1055, %v1853
  %v2082 = vmul.f32 %v1056, %v1854
  %v2083 = vmul.f32 %v1057, %v1855
  %v2084 = vmul.f32 %v1058, %v1856
  %v2085 = vmul.f32 %v1059, %v1857
  %v2086 = vmul.f32 %v1060, %v1858
  %v2087 = vmul.f32 %v1061, %v1859
  %v2088 = vmul.f32 %v1062, %v1860
  %v2089 = vmul.f32 %v1063, %v1861
  %v2090 = vmul.f32 %v1064, %v1862
  %v2091 = vmul.f32 %v1065, %v1863
  %v2092 = vmul.f32 %v1066, %v1864
  %v2093 = vmul.f32 %v1067, %v1865
  %v2094 = vmul.f32 %v1068, %v1866
  %v2095 = vmul.f32 %v1069, %v1867
  %v2096 = vmul.f32 %v1070, %v1868
  %v2097 = vmul.f32 %v1071, %v1869
  %v2098 = vmul.f32 %v1072, %v1870
  %v2099 = vmul.f32 %v1073, %v1871
  %v2100 = vmul.f32 %v1074, %v1872
  %v2101 = vmul.f32 %v1075, %v1873
  %v2102 = vmul.f32 %v1076, %v1874
  %v2103 = vmul.f32 %v1077, %v1875
  %v2104 = vmul.f32 %v1078, %v1876
  %v2105 = vmul.f32 %v1079, %v1877
  %v2106 = vmul.f32 %v1080, %v1878
  %v2107 = vmul.f32 %v1081, %v1879
  %v2108 = vmul.f32 %v1082, %v1880
  %v2109 = vmul.f32 %v1083, %v1881
  %v2110 = vmul.f32 %v1084, %v1882
  %v2111 = vmul.f32 %v1085, %v1883
  %v2112 = vmul.f32 %v1086, %v1884
  %v2113 = vmul.f32 %v1087, %v1885
  %v2114 = vmul.f32 %v1088, %v1886
  %v2115 = vmul.f32 %v1089, %v1887
  %v2116 = vmul.f32 %v1090, %v1888
  %v2117 = vmul.f32 %v1091, %v1889
  %v2118 = vmul.f32 %v1092, %v1890
  %v2119 = vmul.f32 %v1093, %v1891
  %v2120 = vmul.f32 %v1094, %v1892
  %v2121 = vmul.f32 %v1095, %v1893
  %v2122 = vmul.f32 %v1096, %v1894
  %v2123 = vmul.f32 %v1097, %v1895
  %v2124 = vmul.f32 %v1098, %v1896
  %v2125 = vmul.f32 %v1099, %v1897
  %v2126 = vmul.f32 %v1100, %v1898
  %v2127 = vmul.f32 %v1101, %v1899
  %v2128 = vmul.f32 %v1102, %v1900
  %v2129 = vmul.f32 %v1103, %v1901
  %v2130 = vmul.f32 %v1104, %v1902
  %v2131 = vmul.f32 %v1105, %v1903
  %v2132 = vmul.f32 %v1106, %v1904
  %v2133 = vmul.f32 %v1107, %v1905
  %v2134 = vmul.f32 %v1108, %v1906
  %v2135 = vmul.f32 %v1109, %v1907
  %v2136 = vmul.f32 %v1110, %v1908
  %v2137 = vmul.f32 %v1111, %v1909
  %v2138 = vmul.f32 %v1112, %v1910
  %v2139 = vmul.f32 %v1113, %v1911
  %v2140 = vmul.f32 %v1114, %v1912
  %v2141 = vmul.f32 %v1115, %v1913
  %v2142 = vmul.f32 %v1116, %v1914
  %v2143 = vmul.f32 %v1117, %v1915
  %v2144 = vmul.f32 %v1118, %v1916
  %v2145 = vmul.f32 %v1119, %v1917
  %v2146 = vmul.f32 %v1120, %v1918
  %v2147 = vmul.f32 %v1121, %v1919
  %v2148 = vmul.f32 %v1122, %v1920
  %v2149 = vmul.f32 %v1123, %v1921
  %v2150 = vmul.f32 %v1124, %v1922
  %v2151 = vmul.f32 %v1125, %v1923
  %v2152 = vmul.f32 %v1126, %v1924
  %v2153 = vmul.f32 %v1127, %v1925
  %v2154 = vmul.f32 %v1128, %v1926
  %v2155 = vmul.f32 %v1129, %v1927
  %v2156 = vmul.f32 %v1130, %v1928
  %v2157 = vmul.f32 %v1131, %v1929
  %v2158 = vmul.f32 %v1132, %v1930
  %v2159 = vmul.f32 %v1133, %v1931
  %v2160 = vmul.f32 %v1134, %v1932
  %v2161 = vmul.f32 %v1135, %v1933
  %v2162 = vmul.f32 %v1136, %v1934
  %v2163 = vmul.f32 %v1137, %v1935
  %v2164 = vmul.f32 %v1138, %v1936
  %v2165 = vmul.f32 %v1139, %v1937
  %v2166 = vmul.f32 %v1140, %v1938
  %v2167 = vmul.f32 %v1141, %v1939
  %v2168 = vmul.f32 %v1142, %v1940
  %v2169 = vmul.f32 %v1143, %v1941
  %v2170 = vmul.f32 %v1144, %v1942
  %v2171 = vmul.f32 %v1145, %v1943
  %v2172 = vmul.f32 %v1146, %v1944
  %v2173 = vmul.f32 %v1147, %v1945
  %v2174 = vmul.f32 %v1148, %v1946
  %v2175 = vmul.f32 %v1149, %v1947
  %v2176 = vmul.f32 %v1150, %v1948
  %v2177 = vmul.f32 %v1151, %v1949
  %v2178 = vmul.f32 %v1152, %v1950
  %v2179 = vmul.f32 %v1153, %v1951
  %v2180 = vmul.f32 %v1154, %v1952
  %v2181 = vmul.f32 %v1155, %v1953
  %v2182 = vmul.f32 %v1156, %v1954
  %v2183 = vmul.f32 %v1157, %v1955
  %v2184 = vmul.f32 %v1158, %v1956
  %v2185 = vmul.f32 %v1159, %v1957
  %v2186 = vmul.f32 %v1160, %v1958
  %v2187 = vmul.f32 %v1161, %v1959
  %v2188 = vsub.f32 %v1960, %v2074
  %v2189 = vsub.f32 %v1961, %v2075
  %v2190 = vsub.f32 %v1962, %v2076
  %v2191 = vsub.f32 %v1963, %v2077
  %v2192 = vsub.f32 %v1964, %v2078
  %v2193 = vsub.f32 %v1965, %v2079
  %v2194 = vsub.f32 %v1966, %v2080
  %v2195 = vsub.f32 %v1967, %v2081
  %v2196 = vsub.f32 %v1968, %v2082
  %v2197 = vsub.f32 %v1969, %v2083
  %v2198 = vsub.f32 %v1970, %v2084
  %v2199 = vsub.f32 %v1971, %v2085
  %v2200 = vsub.f32 %v1972, %v2086
  %v2201 = vsub.f32 %v1973, %v2087
  %v2202 = vsub.f32 %v1974, %v2088
  %v2203 = vsub.f32 %v1975, %v2089
  %v2204 = vsub.f32 %v1976, %v2090
  %v2205 = vsub.f32 %v1977, %v2091
  %v2206 = vsub.f32 %v1978, %v2092
  %v2207 = vsub.f32 %v1979, %v2093
  %v2208 = vsub.f32 %v1980, %v2094
  %v2209 = vsub.f32 %v1981, %v2095
  %v2210 = vsub.f32 %v1982, %v2096
  %v2211 = vsub.f32 %v1983, %v2097
  %v2212 = vsub.f32 %v1984, %v2098
  %v2213 = vsub.f32 %v1985, %v2099
  %v2214 = vsub.f32 %v1986, %v2100
  %v2215 = vsub.f32 %v1987, %v2101
  %v2216 = vsub.f32 %v1988, %v2102
  %v2217 = vsub.f32 %v1989, %v2103
  %v2218 = vsub.f32 %v1990, %v2104
  %v2219 = vsub.f32 %v1991, %v2105
  %v2220 = vsub.f32 %v1992, %v2106
  %v2221 = vsub.f32 %v1993, %v2107
  %v2222 = vsub.f32 %v1994, %v2108
  %v2223 = vsub.f32 %v1995, %v2109
  %v2224 = vsub.f32 %v1996, %v2110
  %v2225 = vsub.f32 %v1997, %v2111
  %v2226 = vsub.f32 %v1998, %v2112
  %v2227 = vsub.f32 %v1999, %v2113
  %v2228 = vsub.f32 %v2000, %v2114
  %v2229 = vsub.f32 %v2001, %v2115
  %v2230 = vsub.f32 %v2002, %v2116
  %v2231 = vsub.f32 %v2003, %v2117
  %v2232 = vsub.f32 %v2004, %v2118
  %v2233 = vsub.f32 %v2005, %v2119
  %v2234 = vsub.f32 %v2006, %v2120
  %v2235 = vsub.f32 %v2007, %v2121
  %v2236 = vsub.f32 %v2008, %v2122
  %v2237 = vsub.f32 %v2009, %v2123
  %v2238 = vsub.f32 %v2010, %v2124
  %v2239 = vsub.f32 %v2011, %v2125
  %v2240 = vsub.f32 %v2012, %v2126
  %v2241 = vsub.f32 %v2013, %v2127
  %v2242 = vsub.f32 %v2014, %v2128
  %v2243 = vsub.f32 %v2015, %v2129
  %v2244 = vsub.f32 %v2016, %v2130
  %v2245 = vsub.f32 %v2017, %v2131
  %v2246 = vsub.f32 %v2018, %v2132
  %v2247 = vsub.f32 %v2019, %v2133
  %v2248 = vsub.f32 %v2020, %v2134
  %v2249 = vsub.f32 %v2021, %v2135
  %v2250 = vsub.f32 %v2022, %v2136
  %v2251 = vsub.f32 %v2023, %v2137
  %v2252 = vsub.f32 %v2024, %v2138
  %v2253 = vsub.f32 %v2025, %v2139
  %v2254 = vsub.f32 %v2026, %v2140
  %v2255 = vsub.f32 %v2027, %v2141
  %v2256 = vsub.f32 %v2028, %v2142
  %v2257 = vsub.f32 %v2029, %v2143
  %v2258 = vsub.f32 %v2030, %v2144
  %v2259 = vsub.f32 %v2031, %v2145
  %v2260 = vsub.f32 %v2032, %v2146
  %v2261 = vsub.f32 %v2033, %v2147
  %v2262 = vsub.f32 %v2034, %v2148
  %v2263 = vsub.f32 %v2035, %v2149
  %v2264 = vsub.f32 %v2036, %v2150
  %v2265 = vsub.f32 %v2037, %v2151
  %v2266 = vsub.f32 %v2038, %v2152
  %v2267 = vsub.f32 %v2039, %v2153
  %v2268 = vsub.f32 %v2040, %v2154
  %v2269 = vsub.f32 %v2041, %v2155
  %v2270 = vsub.f32 %v2042, %v2156
  %v2271 = vsub.f32 %v2043, %v2157
  %v2272 = vsub.f32 %v2044, %v2158
  %v2273 = vsub.f32 %v2045, %v2159
  %v2274 = vsub.f32 %v2046, %v2160
  %v2275 = vsub.f32 %v2047, %v2161
  %v2276 = vsub.f32 %v2048, %v2162
  %v2277 = vsub.f32 %v2049, %v2163
  %v2278 = vsub.f32 %v2050, %v2164
  %v2279 = vsub.f32 %v2051, %v2165
  %v2280 = vsub.f32 %v2052, %v2166
  %v2281 = vsub.f32 %v2053, %v2167
  %v2282 = vsub.f32 %v2054, %v2168
  %v2283 = vsub.f32 %v2055, %v2169
  %v2284 = vsub.f32 %v2056, %v2170
  %v2285 = vsub.f32 %v2057, %v2171
  %v2286 = vsub.f32 %v2058, %v2172
  %v2287 = vsub.f32 %v2059, %v2173
  %v2288 = vsub.f32 %v2060, %v2174
  %v2289 = vsub.f32 %v2061, %v2175
  %v2290 = vsub.f32 %v2062, %v2176
  %v2291 = vsub.f32 %v2063, %v2177
  %v2292 = vsub.f32 %v2064, %v2178
  %v2293 = vsub.f32 %v2065, %v2179
  %v2294 = vsub.f32 %v2066, %v2180
  %v2295 = vsub.f32 %v2067, %v2181
  %v2296 = vsub.f32 %v2068, %v2182
  %v2297 = vsub.f32 %v2069, %v2183
  %v2298 = vsub.f32 %v2070, %v2184
  %v2299 = vsub.f32 %v2071, %v2185
  %v2300 = vsub.f32 %v2072, %v2186
  %v2301 = vsub.f32 %v2073, %v2187
  %2303 = vset.pattern.permute.xlu0 0
  %2304 = vperm.xlu0 %2303, %v1846
  %v2305 = vpop.permute.xlu0 %2304
  %2308 = vset.pattern.permute.xlu0 0
  %2309 = vperm.xlu0 %2308, %v1847
  %v2310 = vpop.permute.xlu0 %2309
  %2313 = vset.pattern.permute.xlu0 0
  %2314 = vperm.xlu0 %2313, %v1848
  %v2315 = vpop.permute.xlu0 %2314
  %2318 = vset.pattern.permute.xlu0 0
  %2319 = vperm.xlu0 %2318, %v1849
  %v2320 = vpop.permute.xlu0 %2319
  %2323 = vset.pattern.permute.xlu0 0
  %2324 = vperm.xlu0 %2323, %v1850
  %v2325 = vpop.permute.xlu0 %2324
  %2328 = vset.pattern.permute.xlu0 0
  %2329 = vperm.xlu0 %2328, %v1851
  %v2330 = vpop.permute.xlu0 %2329
  %2333 = vset.pattern.permute.xlu0 0
  %2334 = vperm.xlu0 %2333, %v1852
  %v2335 = vpop.permute.xlu0 %2334
  %2338 = vset.pattern.permute.xlu0 0
  %2339 = vperm.xlu0 %2338, %v1853
  %v2340 = vpop.permute.xlu0 %2339
  %2343 = vset.pattern.permute.xlu0 0
  %2344 = vperm.xlu0 %2343, %v1854
  %v2345 = vpop.permute.xlu0 %2344
  %2348 = vset.pattern.permute.xlu0 0
  %2349 = vperm.xlu0 %2348, %v1855
  %v2350 = vpop.permute.xlu0 %2349
  %2353 = vset.pattern.permute.xlu0 0
  %2354 = vperm.xlu0 %2353, %v1856
  %v2355 = vpop.permute.xlu0 %2354
  %2358 = vset.pattern.permute.xlu0 0
  %2359 = vperm.xlu0 %2358, %v1857
  %v2360 = vpop.permute.xlu0 %2359
  %2363 = vset.pattern.permute.xlu0 0
  %2364 = vperm.xlu0 %2363, %v1858
  %v2365 = vpop.permute.xlu0 %2364
  %2368 = vset.pattern.permute.xlu0 0
  %2369 = vperm.xlu0 %2368, %v1859
  %v2370 = vpop.permute.xlu0 %2369
  %2373 = vset.pattern.permute.xlu0 0
  %2374 = vperm.xlu0 %2373, %v1860
  %v2375 = vpop.permute.xlu0 %2374
  %2378 = vset.pattern.permute.xlu0 0
  %2379 = vperm.xlu0 %2378, %v1861
  %v2380 = vpop.permute.xlu0 %2379
  %2383 = vset.pattern.permute.xlu0 0
  %2384 = vperm.xlu0 %2383, %v1862
  %v2385 = vpop.permute.xlu0 %2384
  %2388 = vset.pattern.permute.xlu0 0
  %2389 = vperm.xlu0 %2388, %v1863
  %v2390 = vpop.permute.xlu0 %2389
  %2393 = vset.pattern.permute.xlu0 0
  %2394 = vperm.xlu0 %2393, %v1864
  %v2395 = vpop.permute.xlu0 %2394
  %2398 = vset.pattern.permute.xlu0 0
  %2399 = vperm.xlu0 %2398, %v1865
  %v2400 = vpop.permute.xlu0 %2399
  %2403 = vset.pattern.permute.xlu0 0
  %2404 = vperm.xlu0 %2403, %v1866
  %v2405 = vpop.permute.xlu0 %2404
  %2408 = vset.pattern.permute.xlu0 0
  %2409 = vperm.xlu0 %2408, %v1867
  %v2410 = vpop.permute.xlu0 %2409
  %2413 = vset.pattern.permute.xlu0 0
  %2414 = vperm.xlu0 %2413, %v1868
  %v2415 = vpop.permute.xlu0 %2414
  %2418 = vset.pattern.permute.xlu0 0
  %2419 = vperm.xlu0 %2418, %v1869
  %v2420 = vpop.permute.xlu0 %2419
  %2423 = vset.pattern.permute.xlu0 0
  %2424 = vperm.xlu0 %2423, %v1870
  %v2425 = vpop.permute.xlu0 %2424
  %2428 = vset.pattern.permute.xlu0 0
  %2429 = vperm.xlu0 %2428, %v1871
  %v2430 = vpop.permute.xlu0 %2429
  %2433 = vset.pattern.permute.xlu0 0
  %2434 = vperm.xlu0 %2433, %v1872
  %v2435 = vpop.permute.xlu0 %2434
  %2438 = vset.pattern.permute.xlu0 0
  %2439 = vperm.xlu0 %2438, %v1873
  %v2440 = vpop.permute.xlu0 %2439
  %2443 = vset.pattern.permute.xlu0 0
  %2444 = vperm.xlu0 %2443, %v1874
  %v2445 = vpop.permute.xlu0 %2444
  %2448 = vset.pattern.permute.xlu0 0
  %2449 = vperm.xlu0 %2448, %v1875
  %v2450 = vpop.permute.xlu0 %2449
  %2453 = vset.pattern.permute.xlu0 0
  %2454 = vperm.xlu0 %2453, %v1876
  %v2455 = vpop.permute.xlu0 %2454
  %2458 = vset.pattern.permute.xlu0 0
  %2459 = vperm.xlu0 %2458, %v1877
  %v2460 = vpop.permute.xlu0 %2459
  %2463 = vset.pattern.permute.xlu0 0
  %2464 = vperm.xlu0 %2463, %v1878
  %v2465 = vpop.permute.xlu0 %2464
  %2468 = vset.pattern.permute.xlu0 0
  %2469 = vperm.xlu0 %2468, %v1879
  %v2470 = vpop.permute.xlu0 %2469
  %2473 = vset.pattern.permute.xlu0 0
  %2474 = vperm.xlu0 %2473, %v1880
  %v2475 = vpop.permute.xlu0 %2474
  %2478 = vset.pattern.permute.xlu0 0
  %2479 = vperm.xlu0 %2478, %v1881
  %v2480 = vpop.permute.xlu0 %2479
  %2483 = vset.pattern.permute.xlu0 0
  %2484 = vperm.xlu0 %2483, %v1882
  %v2485 = vpop.permute.xlu0 %2484
  %2488 = vset.pattern.permute.xlu0 0
  %2489 = vperm.xlu0 %2488, %v1883
  %v2490 = vpop.permute.xlu0 %2489
  %2493 = vset.pattern.permute.xlu0 0
  %2494 = vperm.xlu0 %2493, %v1884
  %v2495 = vpop.permute.xlu0 %2494
  %2498 = vset.pattern.permute.xlu0 0
  %2499 = vperm.xlu0 %2498, %v1885
  %v2500 = vpop.permute.xlu0 %2499
  %2503 = vset.pattern.permute.xlu0 0
  %2504 = vperm.xlu0 %2503, %v1886
  %v2505 = vpop.permute.xlu0 %2504
  %2508 = vset.pattern.permute.xlu0 0
  %2509 = vperm.xlu0 %2508, %v1887
  %v2510 = vpop.permute.xlu0 %2509
  %2513 = vset.pattern.permute.xlu0 0
  %2514 = vperm.xlu0 %2513, %v1888
  %v2515 = vpop.permute.xlu0 %2514
  %2518 = vset.pattern.permute.xlu0 0
  %2519 = vperm.xlu0 %2518, %v1889
  %v2520 = vpop.permute.xlu0 %2519
  %2523 = vset.pattern.permute.xlu0 0
  %2524 = vperm.xlu0 %2523, %v1890
  %v2525 = vpop.permute.xlu0 %2524
  %2528 = vset.pattern.permute.xlu0 0
  %2529 = vperm.xlu0 %2528, %v1891
  %v2530 = vpop.permute.xlu0 %2529
  %2533 = vset.pattern.permute.xlu0 0
  %2534 = vperm.xlu0 %2533, %v1892
  %v2535 = vpop.permute.xlu0 %2534
  %2538 = vset.pattern.permute.xlu0 0
  %2539 = vperm.xlu0 %2538, %v1893
  %v2540 = vpop.permute.xlu0 %2539
  %2543 = vset.pattern.permute.xlu0 0
  %2544 = vperm.xlu0 %2543, %v1894
  %v2545 = vpop.permute.xlu0 %2544
  %2548 = vset.pattern.permute.xlu0 0
  %2549 = vperm.xlu0 %2548, %v1895
  %v2550 = vpop.permute.xlu0 %2549
  %2553 = vset.pattern.permute.xlu0 0
  %2554 = vperm.xlu0 %2553, %v1896
  %v2555 = vpop.permute.xlu0 %2554
  %2558 = vset.pattern.permute.xlu0 0
  %2559 = vperm.xlu0 %2558, %v1897
  %v2560 = vpop.permute.xlu0 %2559
  %2563 = vset.pattern.permute.xlu0 0
  %2564 = vperm.xlu0 %2563, %v1898
  %v2565 = vpop.permute.xlu0 %2564
  %2568 = vset.pattern.permute.xlu0 0
  %2569 = vperm.xlu0 %2568, %v1899
  %v2570 = vpop.permute.xlu0 %2569
  %2573 = vset.pattern.permute.xlu0 0
  %2574 = vperm.xlu0 %2573, %v1900
  %v2575 = vpop.permute.xlu0 %2574
  %2578 = vset.pattern.permute.xlu0 0
  %2579 = vperm.xlu0 %2578, %v1901
  %v2580 = vpop.permute.xlu0 %2579
  %2583 = vset.pattern.permute.xlu0 0
  %2584 = vperm.xlu0 %2583, %v1902
  %v2585 = vpop.permute.xlu0 %2584
  %2588 = vset.pattern.permute.xlu0 0
  %2589 = vperm.xlu0 %2588, %v1903
  %v2590 = vpop.permute.xlu0 %2589
  %2593 = vset.pattern.permute.xlu0 0
  %2594 = vperm.xlu0 %2593, %v1904
  %v2595 = vpop.permute.xlu0 %2594
  %2598 = vset.pattern.permute.xlu0 0
  %2599 = vperm.xlu0 %2598, %v1905
  %v2600 = vpop.permute.xlu0 %2599
  %2603 = vset.pattern.permute.xlu0 0
  %2604 = vperm.xlu0 %2603, %v1906
  %v2605 = vpop.permute.xlu0 %2604
  %2608 = vset.pattern.permute.xlu0 0
  %2609 = vperm.xlu0 %2608, %v1907
  %v2610 = vpop.permute.xlu0 %2609
  %2613 = vset.pattern.permute.xlu0 0
  %2614 = vperm.xlu0 %2613, %v1908
  %v2615 = vpop.permute.xlu0 %2614
  %2618 = vset.pattern.permute.xlu0 0
  %2619 = vperm.xlu0 %2618, %v1909
  %v2620 = vpop.permute.xlu0 %2619
  %2623 = vset.pattern.permute.xlu0 0
  %2624 = vperm.xlu0 %2623, %v1910
  %v2625 = vpop.permute.xlu0 %2624
  %2628 = vset.pattern.permute.xlu0 0
  %2629 = vperm.xlu0 %2628, %v1911
  %v2630 = vpop.permute.xlu0 %2629
  %2633 = vset.pattern.permute.xlu0 0
  %2634 = vperm.xlu0 %2633, %v1912
  %v2635 = vpop.permute.xlu0 %2634
  %2638 = vset.pattern.permute.xlu0 0
  %2639 = vperm.xlu0 %2638, %v1913
  %v2640 = vpop.permute.xlu0 %2639
  %2643 = vset.pattern.permute.xlu0 0
  %2644 = vperm.xlu0 %2643, %v1914
  %v2645 = vpop.permute.xlu0 %2644
  %2648 = vset.pattern.permute.xlu0 0
  %2649 = vperm.xlu0 %2648, %v1915
  %v2650 = vpop.permute.xlu0 %2649
  %2653 = vset.pattern.permute.xlu0 0
  %2654 = vperm.xlu0 %2653, %v1916
  %v2655 = vpop.permute.xlu0 %2654
  %2658 = vset.pattern.permute.xlu0 0
  %2659 = vperm.xlu0 %2658, %v1917
  %v2660 = vpop.permute.xlu0 %2659
  %2663 = vset.pattern.permute.xlu0 0
  %2664 = vperm.xlu0 %2663, %v1918
  %v2665 = vpop.permute.xlu0 %2664
  %2668 = vset.pattern.permute.xlu0 0
  %2669 = vperm.xlu0 %2668, %v1919
  %v2670 = vpop.permute.xlu0 %2669
  %2673 = vset.pattern.permute.xlu0 0
  %2674 = vperm.xlu0 %2673, %v1920
  %v2675 = vpop.permute.xlu0 %2674
  %2678 = vset.pattern.permute.xlu0 0
  %2679 = vperm.xlu0 %2678, %v1921
  %v2680 = vpop.permute.xlu0 %2679
  %2683 = vset.pattern.permute.xlu0 0
  %2684 = vperm.xlu0 %2683, %v1922
  %v2685 = vpop.permute.xlu0 %2684
  %2688 = vset.pattern.permute.xlu0 0
  %2689 = vperm.xlu0 %2688, %v1923
  %v2690 = vpop.permute.xlu0 %2689
  %2693 = vset.pattern.permute.xlu0 0
  %2694 = vperm.xlu0 %2693, %v1924
  %v2695 = vpop.permute.xlu0 %2694
  %2698 = vset.pattern.permute.xlu0 0
  %2699 = vperm.xlu0 %2698, %v1925
  %v2700 = vpop.permute.xlu0 %2699
  %2703 = vset.pattern.permute.xlu0 0
  %2704 = vperm.xlu0 %2703, %v1926
  %v2705 = vpop.permute.xlu0 %2704
  %2708 = vset.pattern.permute.xlu0 0
  %2709 = vperm.xlu0 %2708, %v1927
  %v2710 = vpop.permute.xlu0 %2709
  %2713 = vset.pattern.permute.xlu0 0
  %2714 = vperm.xlu0 %2713, %v1928
  %v2715 = vpop.permute.xlu0 %2714
  %2718 = vset.pattern.permute.xlu0 0
  %2719 = vperm.xlu0 %2718, %v1929
  %v2720 = vpop.permute.xlu0 %2719
  %2723 = vset.pattern.permute.xlu0 0
  %2724 = vperm.xlu0 %2723, %v1930
  %v2725 = vpop.permute.xlu0 %2724
  %2728 = vset.pattern.permute.xlu0 0
  %2729 = vperm.xlu0 %2728, %v1931
  %v2730 = vpop.permute.xlu0 %2729
  %2733 = vset.pattern.permute.xlu0 0
  %2734 = vperm.xlu0 %2733, %v1932
  %v2735 = vpop.permute.xlu0 %2734
  %2738 = vset.pattern.permute.xlu0 0
  %2739 = vperm.xlu0 %2738, %v1933
  %v2740 = vpop.permute.xlu0 %2739
  %2743 = vset.pattern.permute.xlu0 0
  %2744 = vperm.xlu0 %2743, %v1934
  %v2745 = vpop.permute.xlu0 %2744
  %2748 = vset.pattern.permute.xlu0 0
  %2749 = vperm.xlu0 %2748, %v1935
  %v2750 = vpop.permute.xlu0 %2749
  %2753 = vset.pattern.permute.xlu0 0
  %2754 = vperm.xlu0 %2753, %v1936
  %v2755 = vpop.permute.xlu0 %2754
  %2758 = vset.pattern.permute.xlu0 0
  %2759 = vperm.xlu0 %2758, %v1937
  %v2760 = vpop.permute.xlu0 %2759
  %2763 = vset.pattern.permute.xlu0 0
  %2764 = vperm.xlu0 %2763, %v1938
  %v2765 = vpop.permute.xlu0 %2764
  %2768 = vset.pattern.permute.xlu0 0
  %2769 = vperm.xlu0 %2768, %v1939
  %v2770 = vpop.permute.xlu0 %2769
  %2773 = vset.pattern.permute.xlu0 0
  %2774 = vperm.xlu0 %2773, %v1940
  %v2775 = vpop.permute.xlu0 %2774
  %2778 = vset.pattern.permute.xlu0 0
  %2779 = vperm.xlu0 %2778, %v1941
  %v2780 = vpop.permute.xlu0 %2779
  %2783 = vset.pattern.permute.xlu0 0
  %2784 = vperm.xlu0 %2783, %v1942
  %v2785 = vpop.permute.xlu0 %2784
  %2788 = vset.pattern.permute.xlu0 0
  %2789 = vperm.xlu0 %2788, %v1943
  %v2790 = vpop.permute.xlu0 %2789
  %2793 = vset.pattern.permute.xlu0 0
  %2794 = vperm.xlu0 %2793, %v1944
  %v2795 = vpop.permute.xlu0 %2794
  %2798 = vset.pattern.permute.xlu0 0
  %2799 = vperm.xlu0 %2798, %v1945
  %v2800 = vpop.permute.xlu0 %2799
  %2803 = vset.pattern.permute.xlu0 0
  %2804 = vperm.xlu0 %2803, %v1946
  %v2805 = vpop.permute.xlu0 %2804
  %2808 = vset.pattern.permute.xlu0 0
  %2809 = vperm.xlu0 %2808, %v1947
  %v2810 = vpop.permute.xlu0 %2809
  %2813 = vset.pattern.permute.xlu0 0
  %2814 = vperm.xlu0 %2813, %v1948
  %v2815 = vpop.permute.xlu0 %2814
  %2818 = vset.pattern.permute.xlu0 0
  %2819 = vperm.xlu0 %2818, %v1949
  %v2820 = vpop.permute.xlu0 %2819
  %2823 = vset.pattern.permute.xlu0 0
  %2824 = vperm.xlu0 %2823, %v1950
  %v2825 = vpop.permute.xlu0 %2824
  %2828 = vset.pattern.permute.xlu0 0
  %2829 = vperm.xlu0 %2828, %v1951
  %v2830 = vpop.permute.xlu0 %2829
  %2833 = vset.pattern.permute.xlu0 0
  %2834 = vperm.xlu0 %2833, %v1952
  %v2835 = vpop.permute.xlu0 %2834
  %2838 = vset.pattern.permute.xlu0 0
  %2839 = vperm.xlu0 %2838, %v1953
  %v2840 = vpop.permute.xlu0 %2839
  %2843 = vset.pattern.permute.xlu0 0
  %2844 = vperm.xlu0 %2843, %v1954
  %v2845 = vpop.permute.xlu0 %2844
  %2848 = vset.pattern.permute.xlu0 0
  %2849 = vperm.xlu0 %2848, %v1955
  %v2850 = vpop.permute.xlu0 %2849
  %2853 = vset.pattern.permute.xlu0 0
  %2854 = vperm.xlu0 %2853, %v1956
  %v2855 = vpop.permute.xlu0 %2854
  %2858 = vset.pattern.permute.xlu0 0
  %2859 = vperm.xlu0 %2858, %v1957
  %v2860 = vpop.permute.xlu0 %2859
  %2863 = vset.pattern.permute.xlu0 0
  %2864 = vperm.xlu0 %2863, %v1958
  %v2865 = vpop.permute.xlu0 %2864
  %2868 = vset.pattern.permute.xlu0 0
  %2869 = vperm.xlu0 %2868, %v1959
  %v2870 = vpop.permute.xlu0 %2869
  %v2872 = vmul.f32 %v21, %v2305
  %v2873 = vmul.f32 %v22, %v2310
  %v2874 = vmul.f32 %v23, %v2315
  %v2875 = vmul.f32 %v24, %v2320
  %v2876 = vmul.f32 %v25, %v2325
  %v2877 = vmul.f32 %v26, %v2330
  %v2878 = vmul.f32 %v27, %v2335
  %v2879 = vmul.f32 %v28, %v2340
  %v2880 = vmul.f32 %v29, %v2345
  %v2881 = vmul.f32 %v30, %v2350
  %v2882 = vmul.f32 %v31, %v2355
  %v2883 = vmul.f32 %v32, %v2360
  %v2884 = vmul.f32 %v33, %v2365
  %v2885 = vmul.f32 %v34, %v2370
  %v2886 = vmul.f32 %v35, %v2375
  %v2887 = vmul.f32 %v36, %v2380
  %v2888 = vmul.f32 %v37, %v2385
  %v2889 = vmul.f32 %v38, %v2390
  %v2890 = vmul.f32 %v39, %v2395
  %v2891 = vmul.f32 %v40, %v2400
  %v2892 = vmul.f32 %v41, %v2405
  %v2893 = vmul.f32 %v42, %v2410
  %v2894 = vmul.f32 %v43, %v2415
  %v2895 = vmul.f32 %v44, %v2420
  %v2896 = vmul.f32 %v45, %v2425
  %v2897 = vmul.f32 %v46, %v2430
  %v2898 = vmul.f32 %v47, %v2435
  %v2899 = vmul.f32 %v48, %v2440
  %v2900 = vmul.f32 %v49, %v2445
  %v2901 = vmul.f32 %v50, %v2450
  %v2902 = vmul.f32 %v51, %v2455
  %v2903 = vmul.f32 %v52, %v2460
  %v2904 = vmul.f32 %v53, %v2465
  %v2905 = vmul.f32 %v54, %v2470
  %v2906 = vmul.f32 %v55, %v2475
  %v2907 = vmul.f32 %v56, %v2480
  %v2908 = vmul.f32 %v57, %v2485
  %v2909 = vmul.f32 %v58, %v2490
  %v2910 = vmul.f32 %v59, %v2495
  %v2911 = vmul.f32 %v60, %v2500
  %v2912 = vmul.f32 %v61, %v2505
  %v2913 = vmul.f32 %v62, %v2510
  %v2914 = vmul.f32 %v63, %v2515
  %v2915 = vmul.f32 %v64, %v2520
  %v2916 = vmul.f32 %v65, %v2525
  %v2917 = vmul.f32 %v66, %v2530
  %v2918 = vmul.f32 %v67, %v2535
  %v2919 = vmul.f32 %v68, %v2540
  %v2920 = vmul.f32 %v69, %v2545
  %v2921 = vmul.f32 %v70, %v2550
  %v2922 = vmul.f32 %v71, %v2555
  %v2923 = vmul.f32 %v72, %v2560
  %v2924 = vmul.f32 %v73, %v2565
  %v2925 = vmul.f32 %v74, %v2570
  %v2926 = vmul.f32 %v75, %v2575
  %v2927 = vmul.f32 %v76, %v2580
  %v2928 = vmul.f32 %v77, %v2585
  %v2929 = vmul.f32 %v78, %v2590
  %v2930 = vmul.f32 %v79, %v2595
  %v2931 = vmul.f32 %v80, %v2600
  %v2932 = vmul.f32 %v81, %v2605
  %v2933 = vmul.f32 %v82, %v2610
  %v2934 = vmul.f32 %v83, %v2615
  %v2935 = vmul.f32 %v84, %v2620
  %v2936 = vmul.f32 %v85, %v2625
  %v2937 = vmul.f32 %v86, %v2630
  %v2938 = vmul.f32 %v87, %v2635
  %v2939 = vmul.f32 %v88, %v2640
  %v2940 = vmul.f32 %v89, %v2645
  %v2941 = vmul.f32 %v90, %v2650
  %v2942 = vmul.f32 %v91, %v2655
  %v2943 = vmul.f32 %v92, %v2660
  %v2944 = vmul.f32 %v93, %v2665
  %v2945 = vmul.f32 %v94, %v2670
  %v2946 = vmul.f32 %v95, %v2675
  %v2947 = vmul.f32 %v96, %v2680
  %v2948 = vmul.f32 %v97, %v2685
  %v2949 = vmul.f32 %v98, %v2690
  %v2950 = vmul.f32 %v99, %v2695
  %v2951 = vmul.f32 %v100, %v2700
  %v2952 = vmul.f32 %v101, %v2705
  %v2953 = vmul.f32 %v102, %v2710
  %v2954 = vmul.f32 %v103, %v2715
  %v2955 = vmul.f32 %v104, %v2720
  %v2956 = vmul.f32 %v105, %v2725
  %v2957 = vmul.f32 %v106, %v2730
  %v2958 = vmul.f32 %v107, %v2735
  %v2959 = vmul.f32 %v108, %v2740
  %v2960 = vmul.f32 %v109, %v2745
  %v2961 = vmul.f32 %v110, %v2750
  %v2962 = vmul.f32 %v111, %v2755
  %v2963 = vmul.f32 %v112, %v2760
  %v2964 = vmul.f32 %v113, %v2765
  %v2965 = vmul.f32 %v114, %v2770
  %v2966 = vmul.f32 %v115, %v2775
  %v2967 = vmul.f32 %v116, %v2780
  %v2968 = vmul.f32 %v117, %v2785
  %v2969 = vmul.f32 %v118, %v2790
  %v2970 = vmul.f32 %v119, %v2795
  %v2971 = vmul.f32 %v120, %v2800
  %v2972 = vmul.f32 %v121, %v2805
  %v2973 = vmul.f32 %v122, %v2810
  %v2974 = vmul.f32 %v123, %v2815
  %v2975 = vmul.f32 %v124, %v2820
  %v2976 = vmul.f32 %v125, %v2825
  %v2977 = vmul.f32 %v126, %v2830
  %v2978 = vmul.f32 %v127, %v2835
  %v2979 = vmul.f32 %v128, %v2840
  %v2980 = vmul.f32 %v129, %v2845
  %v2981 = vmul.f32 %v130, %v2850
  %v2982 = vmul.f32 %v131, %v2855
  %v2983 = vmul.f32 %v132, %v2860
  %v2984 = vmul.f32 %v133, %v2865
  %v2985 = vmul.f32 %v134, %v2870
  %2987 = vset.pattern.permute.xlu0 0
  %2988 = vperm.xlu0 %2987, %v2188
  %v2989 = vpop.permute.xlu0 %2988
  %2992 = vset.pattern.permute.xlu0 0
  %2993 = vperm.xlu0 %2992, %v2189
  %v2994 = vpop.permute.xlu0 %2993
  %2997 = vset.pattern.permute.xlu0 0
  %2998 = vperm.xlu0 %2997, %v2190
  %v2999 = vpop.permute.xlu0 %2998
  %3002 = vset.pattern.permute.xlu0 0
  %3003 = vperm.xlu0 %3002, %v2191
  %v3004 = vpop.permute.xlu0 %3003
  %3007 = vset.pattern.permute.xlu0 0
  %3008 = vperm.xlu0 %3007, %v2192
  %v3009 = vpop.permute.xlu0 %3008
  %3012 = vset.pattern.permute.xlu0 0
  %3013 = vperm.xlu0 %3012, %v2193
  %v3014 = vpop.permute.xlu0 %3013
  %3017 = vset.pattern.permute.xlu0 0
  %3018 = vperm.xlu0 %3017, %v2194
  %v3019 = vpop.permute.xlu0 %3018
  %3022 = vset.pattern.permute.xlu0 0
  %3023 = vperm.xlu0 %3022, %v2195
  %v3024 = vpop.permute.xlu0 %3023
  %3027 = vset.pattern.permute.xlu0 0
  %3028 = vperm.xlu0 %3027, %v2196
  %v3029 = vpop.permute.xlu0 %3028
  %3032 = vset.pattern.permute.xlu0 0
  %3033 = vperm.xlu0 %3032, %v2197
  %v3034 = vpop.permute.xlu0 %3033
  %3037 = vset.pattern.permute.xlu0 0
  %3038 = vperm.xlu0 %3037, %v2198
  %v3039 = vpop.permute.xlu0 %3038
  %3042 = vset.pattern.permute.xlu0 0
  %3043 = vperm.xlu0 %3042, %v2199
  %v3044 = vpop.permute.xlu0 %3043
  %3047 = vset.pattern.permute.xlu0 0
  %3048 = vperm.xlu0 %3047, %v2200
  %v3049 = vpop.permute.xlu0 %3048
  %3052 = vset.pattern.permute.xlu0 0
  %3053 = vperm.xlu0 %3052, %v2201
  %v3054 = vpop.permute.xlu0 %3053
  %3057 = vset.pattern.permute.xlu0 0
  %3058 = vperm.xlu0 %3057, %v2202
  %v3059 = vpop.permute.xlu0 %3058
  %3062 = vset.pattern.permute.xlu0 0
  %3063 = vperm.xlu0 %3062, %v2203
  %v3064 = vpop.permute.xlu0 %3063
  %3067 = vset.pattern.permute.xlu0 0
  %3068 = vperm.xlu0 %3067, %v2204
  %v3069 = vpop.permute.xlu0 %3068
  %3072 = vset.pattern.permute.xlu0 0
  %3073 = vperm.xlu0 %3072, %v2205
  %v3074 = vpop.permute.xlu0 %3073
  %3077 = vset.pattern.permute.xlu0 0
  %3078 = vperm.xlu0 %3077, %v2206
  %v3079 = vpop.permute.xlu0 %3078
  %3082 = vset.pattern.permute.xlu0 0
  %3083 = vperm.xlu0 %3082, %v2207
  %v3084 = vpop.permute.xlu0 %3083
  %3087 = vset.pattern.permute.xlu0 0
  %3088 = vperm.xlu0 %3087, %v2208
  %v3089 = vpop.permute.xlu0 %3088
  %3092 = vset.pattern.permute.xlu0 0
  %3093 = vperm.xlu0 %3092, %v2209
  %v3094 = vpop.permute.xlu0 %3093
  %3097 = vset.pattern.permute.xlu0 0
  %3098 = vperm.xlu0 %3097, %v2210
  %v3099 = vpop.permute.xlu0 %3098
  %3102 = vset.pattern.permute.xlu0 0
  %3103 = vperm.xlu0 %3102, %v2211
  %v3104 = vpop.permute.xlu0 %3103
  %3107 = vset.pattern.permute.xlu0 0
  %3108 = vperm.xlu0 %3107, %v2212
  %v3109 = vpop.permute.xlu0 %3108
  %3112 = vset.pattern.permute.xlu0 0
  %3113 = vperm.xlu0 %3112, %v2213
  %v3114 = vpop.permute.xlu0 %3113
  %3117 = vset.pattern.permute.xlu0 0
  %3118 = vperm.xlu0 %3117, %v2214
  %v3119 = vpop.permute.xlu0 %3118
  %3122 = vset.pattern.permute.xlu0 0
  %3123 = vperm.xlu0 %3122, %v2215
  %v3124 = vpop.permute.xlu0 %3123
  %3127 = vset.pattern.permute.xlu0 0
  %3128 = vperm.xlu0 %3127, %v2216
  %v3129 = vpop.permute.xlu0 %3128
  %3132 = vset.pattern.permute.xlu0 0
  %3133 = vperm.xlu0 %3132, %v2217
  %v3134 = vpop.permute.xlu0 %3133
  %3137 = vset.pattern.permute.xlu0 0
  %3138 = vperm.xlu0 %3137, %v2218
  %v3139 = vpop.permute.xlu0 %3138
  %3142 = vset.pattern.permute.xlu0 0
  %3143 = vperm.xlu0 %3142, %v2219
  %v3144 = vpop.permute.xlu0 %3143
  %3147 = vset.pattern.permute.xlu0 0
  %3148 = vperm.xlu0 %3147, %v2220
  %v3149 = vpop.permute.xlu0 %3148
  %3152 = vset.pattern.permute.xlu0 0
  %3153 = vperm.xlu0 %3152, %v2221
  %v3154 = vpop.permute.xlu0 %3153
  %3157 = vset.pattern.permute.xlu0 0
  %3158 = vperm.xlu0 %3157, %v2222
  %v3159 = vpop.permute.xlu0 %3158
  %3162 = vset.pattern.permute.xlu0 0
  %3163 = vperm.xlu0 %3162, %v2223
  %v3164 = vpop.permute.xlu0 %3163
  %3167 = vset.pattern.permute.xlu0 0
  %3168 = vperm.xlu0 %3167, %v2224
  %v3169 = vpop.permute.xlu0 %3168
  %3172 = vset.pattern.permute.xlu0 0
  %3173 = vperm.xlu0 %3172, %v2225
  %v3174 = vpop.permute.xlu0 %3173
  %3177 = vset.pattern.permute.xlu0 0
  %3178 = vperm.xlu0 %3177, %v2226
  %v3179 = vpop.permute.xlu0 %3178
  %3182 = vset.pattern.permute.xlu0 0
  %3183 = vperm.xlu0 %3182, %v2227
  %v3184 = vpop.permute.xlu0 %3183
  %3187 = vset.pattern.permute.xlu0 0
  %3188 = vperm.xlu0 %3187, %v2228
  %v3189 = vpop.permute.xlu0 %3188
  %3192 = vset.pattern.permute.xlu0 0
  %3193 = vperm.xlu0 %3192, %v2229
  %v3194 = vpop.permute.xlu0 %3193
  %3197 = vset.pattern.permute.xlu0 0
  %3198 = vperm.xlu0 %3197, %v2230
  %v3199 = vpop.permute.xlu0 %3198
  %3202 = vset.pattern.permute.xlu0 0
  %3203 = vperm.xlu0 %3202, %v2231
  %v3204 = vpop.permute.xlu0 %3203
  %3207 = vset.pattern.permute.xlu0 0
  %3208 = vperm.xlu0 %3207, %v2232
  %v3209 = vpop.permute.xlu0 %3208
  %3212 = vset.pattern.permute.xlu0 0
  %3213 = vperm.xlu0 %3212, %v2233
  %v3214 = vpop.permute.xlu0 %3213
  %3217 = vset.pattern.permute.xlu0 0
  %3218 = vperm.xlu0 %3217, %v2234
  %v3219 = vpop.permute.xlu0 %3218
  %3222 = vset.pattern.permute.xlu0 0
  %3223 = vperm.xlu0 %3222, %v2235
  %v3224 = vpop.permute.xlu0 %3223
  %3227 = vset.pattern.permute.xlu0 0
  %3228 = vperm.xlu0 %3227, %v2236
  %v3229 = vpop.permute.xlu0 %3228
  %3232 = vset.pattern.permute.xlu0 0
  %3233 = vperm.xlu0 %3232, %v2237
  %v3234 = vpop.permute.xlu0 %3233
  %3237 = vset.pattern.permute.xlu0 0
  %3238 = vperm.xlu0 %3237, %v2238
  %v3239 = vpop.permute.xlu0 %3238
  %3242 = vset.pattern.permute.xlu0 0
  %3243 = vperm.xlu0 %3242, %v2239
  %v3244 = vpop.permute.xlu0 %3243
  %3247 = vset.pattern.permute.xlu0 0
  %3248 = vperm.xlu0 %3247, %v2240
  %v3249 = vpop.permute.xlu0 %3248
  %3252 = vset.pattern.permute.xlu0 0
  %3253 = vperm.xlu0 %3252, %v2241
  %v3254 = vpop.permute.xlu0 %3253
  %3257 = vset.pattern.permute.xlu0 0
  %3258 = vperm.xlu0 %3257, %v2242
  %v3259 = vpop.permute.xlu0 %3258
  %3262 = vset.pattern.permute.xlu0 0
  %3263 = vperm.xlu0 %3262, %v2243
  %v3264 = vpop.permute.xlu0 %3263
  %3267 = vset.pattern.permute.xlu0 0
  %3268 = vperm.xlu0 %3267, %v2244
  %v3269 = vpop.permute.xlu0 %3268
  %3272 = vset.pattern.permute.xlu0 0
  %3273 = vperm.xlu0 %3272, %v2245
  %v3274 = vpop.permute.xlu0 %3273
  %3277 = vset.pattern.permute.xlu0 0
  %3278 = vperm.xlu0 %3277, %v2246
  %v3279 = vpop.permute.xlu0 %3278
  %3282 = vset.pattern.permute.xlu0 0
  %3283 = vperm.xlu0 %3282, %v2247
  %v3284 = vpop.permute.xlu0 %3283
  %3287 = vset.pattern.permute.xlu0 0
  %3288 = vperm.xlu0 %3287, %v2248
  %v3289 = vpop.permute.xlu0 %3288
  %3292 = vset.pattern.permute.xlu0 0
  %3293 = vperm.xlu0 %3292, %v2249
  %v3294 = vpop.permute.xlu0 %3293
  %3297 = vset.pattern.permute.xlu0 0
  %3298 = vperm.xlu0 %3297, %v2250
  %v3299 = vpop.permute.xlu0 %3298
  %3302 = vset.pattern.permute.xlu0 0
  %3303 = vperm.xlu0 %3302, %v2251
  %v3304 = vpop.permute.xlu0 %3303
  %3307 = vset.pattern.permute.xlu0 0
  %3308 = vperm.xlu0 %3307, %v2252
  %v3309 = vpop.permute.xlu0 %3308
  %3312 = vset.pattern.permute.xlu0 0
  %3313 = vperm.xlu0 %3312, %v2253
  %v3314 = vpop.permute.xlu0 %3313
  %3317 = vset.pattern.permute.xlu0 0
  %3318 = vperm.xlu0 %3317, %v2254
  %v3319 = vpop.permute.xlu0 %3318
  %3322 = vset.pattern.permute.xlu0 0
  %3323 = vperm.xlu0 %3322, %v2255
  %v3324 = vpop.permute.xlu0 %3323
  %3327 = vset.pattern.permute.xlu0 0
  %3328 = vperm.xlu0 %3327, %v2256
  %v3329 = vpop.permute.xlu0 %3328
  %3332 = vset.pattern.permute.xlu0 0
  %3333 = vperm.xlu0 %3332, %v2257
  %v3334 = vpop.permute.xlu0 %3333
  %3337 = vset.pattern.permute.xlu0 0
  %3338 = vperm.xlu0 %3337, %v2258
  %v3339 = vpop.permute.xlu0 %3338
  %3342 = vset.pattern.permute.xlu0 0
  %3343 = vperm.xlu0 %3342, %v2259
  %v3344 = vpop.permute.xlu0 %3343
  %3347 = vset.pattern.permute.xlu0 0
  %3348 = vperm.xlu0 %3347, %v2260
  %v3349 = vpop.permute.xlu0 %3348
  %3352 = vset.pattern.permute.xlu0 0
  %3353 = vperm.xlu0 %3352, %v2261
  %v3354 = vpop.permute.xlu0 %3353
  %3357 = vset.pattern.permute.xlu0 0
  %3358 = vperm.xlu0 %3357, %v2262
  %v3359 = vpop.permute.xlu0 %3358
  %3362 = vset.pattern.permute.xlu0 0
  %3363 = vperm.xlu0 %3362, %v2263
  %v3364 = vpop.permute.xlu0 %3363
  %3367 = vset.pattern.permute.xlu0 0
  %3368 = vperm.xlu0 %3367, %v2264
  %v3369 = vpop.permute.xlu0 %3368
  %3372 = vset.pattern.permute.xlu0 0
  %3373 = vperm.xlu0 %3372, %v2265
  %v3374 = vpop.permute.xlu0 %3373
  %3377 = vset.pattern.permute.xlu0 0
  %3378 = vperm.xlu0 %3377, %v2266
  %v3379 = vpop.permute.xlu0 %3378
  %3382 = vset.pattern.permute.xlu0 0
  %3383 = vperm.xlu0 %3382, %v2267
  %v3384 = vpop.permute.xlu0 %3383
  %3387 = vset.pattern.permute.xlu0 0
  %3388 = vperm.xlu0 %3387, %v2268
  %v3389 = vpop.permute.xlu0 %3388
  %3392 = vset.pattern.permute.xlu0 0
  %3393 = vperm.xlu0 %3392, %v2269
  %v3394 = vpop.permute.xlu0 %3393
  %3397 = vset.pattern.permute.xlu0 0
  %3398 = vperm.xlu0 %3397, %v2270
  %v3399 = vpop.permute.xlu0 %3398
  %3402 = vset.pattern.permute.xlu0 0
  %3403 = vperm.xlu0 %3402, %v2271
  %v3404 = vpop.permute.xlu0 %3403
  %3407 = vset.pattern.permute.xlu0 0
  %3408 = vperm.xlu0 %3407, %v2272
  %v3409 = vpop.permute.xlu0 %3408
  %3412 = vset.pattern.permute.xlu0 0
  %3413 = vperm.xlu0 %3412, %v2273
  %v3414 = vpop.permute.xlu0 %3413
  %3417 = vset.pattern.permute.xlu0 0
  %3418 = vperm.xlu0 %3417, %v2274
  %v3419 = vpop.permute.xlu0 %3418
  %3422 = vset.pattern.permute.xlu0 0
  %3423 = vperm.xlu0 %3422, %v2275
  %v3424 = vpop.permute.xlu0 %3423
  %3427 = vset.pattern.permute.xlu0 0
  %3428 = vperm.xlu0 %3427, %v2276
  %v3429 = vpop.permute.xlu0 %3428
  %3432 = vset.pattern.permute.xlu0 0
  %3433 = vperm.xlu0 %3432, %v2277
  %v3434 = vpop.permute.xlu0 %3433
  %3437 = vset.pattern.permute.xlu0 0
  %3438 = vperm.xlu0 %3437, %v2278
  %v3439 = vpop.permute.xlu0 %3438
  %3442 = vset.pattern.permute.xlu0 0
  %3443 = vperm.xlu0 %3442, %v2279
  %v3444 = vpop.permute.xlu0 %3443
  %3447 = vset.pattern.permute.xlu0 0
  %3448 = vperm.xlu0 %3447, %v2280
  %v3449 = vpop.permute.xlu0 %3448
  %3452 = vset.pattern.permute.xlu0 0
  %3453 = vperm.xlu0 %3452, %v2281
  %v3454 = vpop.permute.xlu0 %3453
  %3457 = vset.pattern.permute.xlu0 0
  %3458 = vperm.xlu0 %3457, %v2282
  %v3459 = vpop.permute.xlu0 %3458
  %3462 = vset.pattern.permute.xlu0 0
  %3463 = vperm.xlu0 %3462, %v2283
  %v3464 = vpop.permute.xlu0 %3463
  %3467 = vset.pattern.permute.xlu0 0
  %3468 = vperm.xlu0 %3467, %v2284
  %v3469 = vpop.permute.xlu0 %3468
  %3472 = vset.pattern.permute.xlu0 0
  %3473 = vperm.xlu0 %3472, %v2285
  %v3474 = vpop.permute.xlu0 %3473
  %3477 = vset.pattern.permute.xlu0 0
  %3478 = vperm.xlu0 %3477, %v2286
  %v3479 = vpop.permute.xlu0 %3478
  %3482 = vset.pattern.permute.xlu0 0
  %3483 = vperm.xlu0 %3482, %v2287
  %v3484 = vpop.permute.xlu0 %3483
  %3487 = vset.pattern.permute.xlu0 0
  %3488 = vperm.xlu0 %3487, %v2288
  %v3489 = vpop.permute.xlu0 %3488
  %3492 = vset.pattern.permute.xlu0 0
  %3493 = vperm.xlu0 %3492, %v2289
  %v3494 = vpop.permute.xlu0 %3493
  %3497 = vset.pattern.permute.xlu0 0
  %3498 = vperm.xlu0 %3497, %v2290
  %v3499 = vpop.permute.xlu0 %3498
  %3502 = vset.pattern.permute.xlu0 0
  %3503 = vperm.xlu0 %3502, %v2291
  %v3504 = vpop.permute.xlu0 %3503
  %3507 = vset.pattern.permute.xlu0 0
  %3508 = vperm.xlu0 %3507, %v2292
  %v3509 = vpop.permute.xlu0 %3508
  %3512 = vset.pattern.permute.xlu0 0
  %3513 = vperm.xlu0 %3512, %v2293
  %v3514 = vpop.permute.xlu0 %3513
  %3517 = vset.pattern.permute.xlu0 0
  %3518 = vperm.xlu0 %3517, %v2294
  %v3519 = vpop.permute.xlu0 %3518
  %3522 = vset.pattern.permute.xlu0 0
  %3523 = vperm.xlu0 %3522, %v2295
  %v3524 = vpop.permute.xlu0 %3523
  %3527 = vset.pattern.permute.xlu0 0
  %3528 = vperm.xlu0 %3527, %v2296
  %v3529 = vpop.permute.xlu0 %3528
  %3532 = vset.pattern.permute.xlu0 0
  %3533 = vperm.xlu0 %3532, %v2297
  %v3534 = vpop.permute.xlu0 %3533
  %3537 = vset.pattern.permute.xlu0 0
  %3538 = vperm.xlu0 %3537, %v2298
  %v3539 = vpop.permute.xlu0 %3538
  %3542 = vset.pattern.permute.xlu0 0
  %3543 = vperm.xlu0 %3542, %v2299
  %v3544 = vpop.permute.xlu0 %3543
  %3547 = vset.pattern.permute.xlu0 0
  %3548 = vperm.xlu0 %3547, %v2300
  %v3549 = vpop.permute.xlu0 %3548
  %3552 = vset.pattern.permute.xlu0 0
  %3553 = vperm.xlu0 %3552, %v2301
  %v3554 = vpop.permute.xlu0 %3553
  %v3556 = vadd.f32 %v2872, %v2989
  %v3557 = vadd.f32 %v2873, %v2994
  %v3558 = vadd.f32 %v2874, %v2999
  %v3559 = vadd.f32 %v2875, %v3004
  %v3560 = vadd.f32 %v2876, %v3009
  %v3561 = vadd.f32 %v2877, %v3014
  %v3562 = vadd.f32 %v2878, %v3019
  %v3563 = vadd.f32 %v2879, %v3024
  %v3564 = vadd.f32 %v2880, %v3029
  %v3565 = vadd.f32 %v2881, %v3034
  %v3566 = vadd.f32 %v2882, %v3039
  %v3567 = vadd.f32 %v2883, %v3044
  %v3568 = vadd.f32 %v2884, %v3049
  %v3569 = vadd.f32 %v2885, %v3054
  %v3570 = vadd.f32 %v2886, %v3059
  %v3571 = vadd.f32 %v2887, %v3064
  %v3572 = vadd.f32 %v2888, %v3069
  %v3573 = vadd.f32 %v2889, %v3074
  %v3574 = vadd.f32 %v2890, %v3079
  %v3575 = vadd.f32 %v2891, %v3084
  %v3576 = vadd.f32 %v2892, %v3089
  %v3577 = vadd.f32 %v2893, %v3094
  %v3578 = vadd.f32 %v2894, %v3099
  %v3579 = vadd.f32 %v2895, %v3104
  %v3580 = vadd.f32 %v2896, %v3109
  %v3581 = vadd.f32 %v2897, %v3114
  %v3582 = vadd.f32 %v2898, %v3119
  %v3583 = vadd.f32 %v2899, %v3124
  %v3584 = vadd.f32 %v2900, %v3129
  %v3585 = vadd.f32 %v2901, %v3134
  %v3586 = vadd.f32 %v2902, %v3139
  %v3587 = vadd.f32 %v2903, %v3144
  %v3588 = vadd.f32 %v2904, %v3149
  %v3589 = vadd.f32 %v2905, %v3154
  %v3590 = vadd.f32 %v2906, %v3159
  %v3591 = vadd.f32 %v2907, %v3164
  %v3592 = vadd.f32 %v2908, %v3169
  %v3593 = vadd.f32 %v2909, %v3174
  %v3594 = vadd.f32 %v2910, %v3179
  %v3595 = vadd.f32 %v2911, %v3184
  %v3596 = vadd.f32 %v2912, %v3189
  %v3597 = vadd.f32 %v2913, %v3194
  %v3598 = vadd.f32 %v2914, %v3199
  %v3599 = vadd.f32 %v2915, %v3204
  %v3600 = vadd.f32 %v2916, %v3209
  %v3601 = vadd.f32 %v2917, %v3214
  %v3602 = vadd.f32 %v2918, %v3219
  %v3603 = vadd.f32 %v2919, %v3224
  %v3604 = vadd.f32 %v2920, %v3229
  %v3605 = vadd.f32 %v2921, %v3234
  %v3606 = vadd.f32 %v2922, %v3239
  %v3607 = vadd.f32 %v2923, %v3244
  %v3608 = vadd.f32 %v2924, %v3249
  %v3609 = vadd.f32 %v2925, %v3254
  %v3610 = vadd.f32 %v2926, %v3259
  %v3611 = vadd.f32 %v2927, %v3264
  %v3612 = vadd.f32 %v2928, %v3269
  %v3613 = vadd.f32 %v2929, %v3274
  %v3614 = vadd.f32 %v2930, %v3279
  %v3615 = vadd.f32 %v2931, %v3284
  %v3616 = vadd.f32 %v2932, %v3289
  %v3617 = vadd.f32 %v2933, %v3294
  %v3618 = vadd.f32 %v2934, %v3299
  %v3619 = vadd.f32 %v2935, %v3304
  %v3620 = vadd.f32 %v2936, %v3309
  %v3621 = vadd.f32 %v2937, %v3314
  %v3622 = vadd.f32 %v2938, %v3319
  %v3623 = vadd.f32 %v2939, %v3324
  %v3624 = vadd.f32 %v2940, %v3329
  %v3625 = vadd.f32 %v2941, %v3334
  %v3626 = vadd.f32 %v2942, %v3339
  %v3627 = vadd.f32 %v2943, %v3344
  %v3628 = vadd.f32 %v2944, %v3349
  %v3629 = vadd.f32 %v2945, %v3354
  %v3630 = vadd.f32 %v2946, %v3359
  %v3631 = vadd.f32 %v2947, %v3364
  %v3632 = vadd.f32 %v2948, %v3369
  %v3633 = vadd.f32 %v2949, %v3374
  %v3634 = vadd.f32 %v2950, %v3379
  %v3635 = vadd.f32 %v2951, %v3384
  %v3636 = vadd.f32 %v2952, %v3389
  %v3637 = vadd.f32 %v2953, %v3394
  %v3638 = vadd.f32 %v2954, %v3399
  %v3639 = vadd.f32 %v2955, %v3404
  %v3640 = vadd.f32 %v2956, %v3409
  %v3641 = vadd.f32 %v2957, %v3414
  %v3642 = vadd.f32 %v2958, %v3419
  %v3643 = vadd.f32 %v2959, %v3424
  %v3644 = vadd.f32 %v2960, %v3429
  %v3645 = vadd.f32 %v2961, %v3434
  %v3646 = vadd.f32 %v2962, %v3439
  %v3647 = vadd.f32 %v2963, %v3444
  %v3648 = vadd.f32 %v2964, %v3449
  %v3649 = vadd.f32 %v2965, %v3454
  %v3650 = vadd.f32 %v2966, %v3459
  %v3651 = vadd.f32 %v2967, %v3464
  %v3652 = vadd.f32 %v2968, %v3469
  %v3653 = vadd.f32 %v2969, %v3474
  %v3654 = vadd.f32 %v2970, %v3479
  %v3655 = vadd.f32 %v2971, %v3484
  %v3656 = vadd.f32 %v2972, %v3489
  %v3657 = vadd.f32 %v2973, %v3494
  %v3658 = vadd.f32 %v2974, %v3499
  %v3659 = vadd.f32 %v2975, %v3504
  %v3660 = vadd.f32 %v2976, %v3509
  %v3661 = vadd.f32 %v2977, %v3514
  %v3662 = vadd.f32 %v2978, %v3519
  %v3663 = vadd.f32 %v2979, %v3524
  %v3664 = vadd.f32 %v2980, %v3529
  %v3665 = vadd.f32 %v2981, %v3534
  %v3666 = vadd.f32 %v2982, %v3539
  %v3667 = vadd.f32 %v2983, %v3544
  %v3668 = vadd.f32 %v2984, %v3549
  %v3669 = vadd.f32 %v2985, %v3554
  %v3670 = vadd.f32 %v3556, %v135
  %v3671 = vadd.f32 %v3557, %v136
  %v3672 = vadd.f32 %v3558, %v137
  %v3673 = vadd.f32 %v3559, %v138
  %v3674 = vadd.f32 %v3560, %v139
  %v3675 = vadd.f32 %v3561, %v140
  %v3676 = vadd.f32 %v3562, %v141
  %v3677 = vadd.f32 %v3563, %v142
  %v3678 = vadd.f32 %v3564, %v143
  %v3679 = vadd.f32 %v3565, %v144
  %v3680 = vadd.f32 %v3566, %v145
  %v3681 = vadd.f32 %v3567, %v146
  %v3682 = vadd.f32 %v3568, %v147
  %v3683 = vadd.f32 %v3569, %v148
  %v3684 = vadd.f32 %v3570, %v149
  %v3685 = vadd.f32 %v3571, %v150
  %v3686 = vadd.f32 %v3572, %v151
  %v3687 = vadd.f32 %v3573, %v152
  %v3688 = vadd.f32 %v3574, %v153
  %v3689 = vadd.f32 %v3575, %v154
  %v3690 = vadd.f32 %v3576, %v155
  %v3691 = vadd.f32 %v3577, %v156
  %v3692 = vadd.f32 %v3578, %v157
  %v3693 = vadd.f32 %v3579, %v158
  %v3694 = vadd.f32 %v3580, %v159
  %v3695 = vadd.f32 %v3581, %v160
  %v3696 = vadd.f32 %v3582, %v161
  %v3697 = vadd.f32 %v3583, %v162
  %v3698 = vadd.f32 %v3584, %v163
  %v3699 = vadd.f32 %v3585, %v164
  %v3700 = vadd.f32 %v3586, %v165
  %v3701 = vadd.f32 %v3587, %v166
  %v3702 = vadd.f32 %v3588, %v167
  %v3703 = vadd.f32 %v3589, %v168
  %v3704 = vadd.f32 %v3590, %v169
  %v3705 = vadd.f32 %v3591, %v170
  %v3706 = vadd.f32 %v3592, %v171
  %v3707 = vadd.f32 %v3593, %v172
  %v3708 = vadd.f32 %v3594, %v173
  %v3709 = vadd.f32 %v3595, %v174
  %v3710 = vadd.f32 %v3596, %v175
  %v3711 = vadd.f32 %v3597, %v176
  %v3712 = vadd.f32 %v3598, %v177
  %v3713 = vadd.f32 %v3599, %v178
  %v3714 = vadd.f32 %v3600, %v179
  %v3715 = vadd.f32 %v3601, %v180
  %v3716 = vadd.f32 %v3602, %v181
  %v3717 = vadd.f32 %v3603, %v182
  %v3718 = vadd.f32 %v3604, %v183
  %v3719 = vadd.f32 %v3605, %v184
  %v3720 = vadd.f32 %v3606, %v185
  %v3721 = vadd.f32 %v3607, %v186
  %v3722 = vadd.f32 %v3608, %v187
  %v3723 = vadd.f32 %v3609, %v188
  %v3724 = vadd.f32 %v3610, %v189
  %v3725 = vadd.f32 %v3611, %v190
  %v3726 = vadd.f32 %v3612, %v191
  %v3727 = vadd.f32 %v3613, %v192
  %v3728 = vadd.f32 %v3614, %v193
  %v3729 = vadd.f32 %v3615, %v194
  %v3730 = vadd.f32 %v3616, %v195
  %v3731 = vadd.f32 %v3617, %v196
  %v3732 = vadd.f32 %v3618, %v197
  %v3733 = vadd.f32 %v3619, %v198
  %v3734 = vadd.f32 %v3620, %v199
  %v3735 = vadd.f32 %v3621, %v200
  %v3736 = vadd.f32 %v3622, %v201
  %v3737 = vadd.f32 %v3623, %v202
  %v3738 = vadd.f32 %v3624, %v203
  %v3739 = vadd.f32 %v3625, %v204
  %v3740 = vadd.f32 %v3626, %v205
  %v3741 = vadd.f32 %v3627, %v206
  %v3742 = vadd.f32 %v3628, %v207
  %v3743 = vadd.f32 %v3629, %v208
  %v3744 = vadd.f32 %v3630, %v209
  %v3745 = vadd.f32 %v3631, %v210
  %v3746 = vadd.f32 %v3632, %v211
  %v3747 = vadd.f32 %v3633, %v212
  %v3748 = vadd.f32 %v3634, %v213
  %v3749 = vadd.f32 %v3635, %v214
  %v3750 = vadd.f32 %v3636, %v215
  %v3751 = vadd.f32 %v3637, %v216
  %v3752 = vadd.f32 %v3638, %v217
  %v3753 = vadd.f32 %v3639, %v218
  %v3754 = vadd.f32 %v3640, %v219
  %v3755 = vadd.f32 %v3641, %v220
  %v3756 = vadd.f32 %v3642, %v221
  %v3757 = vadd.f32 %v3643, %v222
  %v3758 = vadd.f32 %v3644, %v223
  %v3759 = vadd.f32 %v3645, %v224
  %v3760 = vadd.f32 %v3646, %v225
  %v3761 = vadd.f32 %v3647, %v226
  %v3762 = vadd.f32 %v3648, %v227
  %v3763 = vadd.f32 %v3649, %v228
  %v3764 = vadd.f32 %v3650, %v229
  %v3765 = vadd.f32 %v3651, %v230
  %v3766 = vadd.f32 %v3652, %v231
  %v3767 = vadd.f32 %v3653, %v232
  %v3768 = vadd.f32 %v3654, %v233
  %v3769 = vadd.f32 %v3655, %v234
  %v3770 = vadd.f32 %v3656, %v235
  %v3771 = vadd.f32 %v3657, %v236
  %v3772 = vadd.f32 %v3658, %v237
  %v3773 = vadd.f32 %v3659, %v238
  %v3774 = vadd.f32 %v3660, %v239
  %v3775 = vadd.f32 %v3661, %v240
  %v3776 = vadd.f32 %v3662, %v241
  %v3777 = vadd.f32 %v3663, %v242
  %v3778 = vadd.f32 %v3664, %v243
  %v3779 = vadd.f32 %v3665, %v244
  %v3780 = vadd.f32 %v3666, %v245
  %v3781 = vadd.f32 %v3667, %v246
  %v3782 = vadd.f32 %v3668, %v247
  %v3783 = vadd.f32 %v3669, %v248
  %v3784 = vmax.f32 %v3670, 0.0
  %v3785 = vmax.f32 %v3671, 0.0
  %v3786 = vmax.f32 %v3672, 0.0
  %v3787 = vmax.f32 %v3673, 0.0
  %v3788 = vmax.f32 %v3674, 0.0
  %v3789 = vmax.f32 %v3675, 0.0
  %v3790 = vmax.f32 %v3676, 0.0
  %v3791 = vmax.f32 %v3677, 0.0
  %v3792 = vmax.f32 %v3678, 0.0
  %v3793 = vmax.f32 %v3679, 0.0
  %v3794 = vmax.f32 %v3680, 0.0
  %v3795 = vmax.f32 %v3681, 0.0
  %v3796 = vmax.f32 %v3682, 0.0
  %v3797 = vmax.f32 %v3683, 0.0
  %v3798 = vmax.f32 %v3684, 0.0
  %v3799 = vmax.f32 %v3685, 0.0
  %v3800 = vmax.f32 %v3686, 0.0
  %v3801 = vmax.f32 %v3687, 0.0
  %v3802 = vmax.f32 %v3688, 0.0
  %v3803 = vmax.f32 %v3689, 0.0
  %v3804 = vmax.f32 %v3690, 0.0
  %v3805 = vmax.f32 %v3691, 0.0
  %v3806 = vmax.f32 %v3692, 0.0
  %v3807 = vmax.f32 %v3693, 0.0
  %v3808 = vmax.f32 %v3694, 0.0
  %v3809 = vmax.f32 %v3695, 0.0
  %v3810 = vmax.f32 %v3696, 0.0
  %v3811 = vmax.f32 %v3697, 0.0
  %v3812 = vmax.f32 %v3698, 0.0
  %v3813 = vmax.f32 %v3699, 0.0
  %v3814 = vmax.f32 %v3700, 0.0
  %v3815 = vmax.f32 %v3701, 0.0
  %v3816 = vmax.f32 %v3702, 0.0
  %v3817 = vmax.f32 %v3703, 0.0
  %v3818 = vmax.f32 %v3704, 0.0
  %v3819 = vmax.f32 %v3705, 0.0
  %v3820 = vmax.f32 %v3706, 0.0
  %v3821 = vmax.f32 %v3707, 0.0
  %v3822 = vmax.f32 %v3708, 0.0
  %v3823 = vmax.f32 %v3709, 0.0
  %v3824 = vmax.f32 %v3710, 0.0
  %v3825 = vmax.f32 %v3711, 0.0
  %v3826 = vmax.f32 %v3712, 0.0
  %v3827 = vmax.f32 %v3713, 0.0
  %v3828 = vmax.f32 %v3714, 0.0
  %v3829 = vmax.f32 %v3715, 0.0
  %v3830 = vmax.f32 %v3716, 0.0
  %v3831 = vmax.f32 %v3717, 0.0
  %v3832 = vmax.f32 %v3718, 0.0
  %v3833 = vmax.f32 %v3719, 0.0
  %v3834 = vmax.f32 %v3720, 0.0
  %v3835 = vmax.f32 %v3721, 0.0
  %v3836 = vmax.f32 %v3722, 0.0
  %v3837 = vmax.f32 %v3723, 0.0
  %v3838 = vmax.f32 %v3724, 0.0
  %v3839 = vmax.f32 %v3725, 0.0
  %v3840 = vmax.f32 %v3726, 0.0
  %v3841 = vmax.f32 %v3727, 0.0
  %v3842 = vmax.f32 %v3728, 0.0
  %v3843 = vmax.f32 %v3729, 0.0
  %v3844 = vmax.f32 %v3730, 0.0
  %v3845 = vmax.f32 %v3731, 0.0
  %v3846 = vmax.f32 %v3732, 0.0
  %v3847 = vmax.f32 %v3733, 0.0
  %v3848 = vmax.f32 %v3734, 0.0
  %v3849 = vmax.f32 %v3735, 0.0
  %v3850 = vmax.f32 %v3736, 0.0
  %v3851 = vmax.f32 %v3737, 0.0
  %v3852 = vmax.f32 %v3738, 0.0
  %v3853 = vmax.f32 %v3739, 0.0
  %v3854 = vmax.f32 %v3740, 0.0
  %v3855 = vmax.f32 %v3741, 0.0
  %v3856 = vmax.f32 %v3742, 0.0
  %v3857 = vmax.f32 %v3743, 0.0
  %v3858 = vmax.f32 %v3744, 0.0
  %v3859 = vmax.f32 %v3745, 0.0
  %v3860 = vmax.f32 %v3746, 0.0
  %v3861 = vmax.f32 %v3747, 0.0
  %v3862 = vmax.f32 %v3748, 0.0
  %v3863 = vmax.f32 %v3749, 0.0
  %v3864 = vmax.f32 %v3750, 0.0
  %v3865 = vmax.f32 %v3751, 0.0
  %v3866 = vmax.f32 %v3752, 0.0
  %v3867 = vmax.f32 %v3753, 0.0
  %v3868 = vmax.f32 %v3754, 0.0
  %v3869 = vmax.f32 %v3755, 0.0
  %v3870 = vmax.f32 %v3756, 0.0
  %v3871 = vmax.f32 %v3757, 0.0
  %v3872 = vmax.f32 %v3758, 0.0
  %v3873 = vmax.f32 %v3759, 0.0
  %v3874 = vmax.f32 %v3760, 0.0
  %v3875 = vmax.f32 %v3761, 0.0
  %v3876 = vmax.f32 %v3762, 0.0
  %v3877 = vmax.f32 %v3763, 0.0
  %v3878 = vmax.f32 %v3764, 0.0
  %v3879 = vmax.f32 %v3765, 0.0
  %v3880 = vmax.f32 %v3766, 0.0
  %v3881 = vmax.f32 %v3767, 0.0
  %v3882 = vmax.f32 %v3768, 0.0
  %v3883 = vmax.f32 %v3769, 0.0
  %v3884 = vmax.f32 %v3770, 0.0
  %v3885 = vmax.f32 %v3771, 0.0
  %v3886 = vmax.f32 %v3772, 0.0
  %v3887 = vmax.f32 %v3773, 0.0
  %v3888 = vmax.f32 %v3774, 0.0
  %v3889 = vmax.f32 %v3775, 0.0
  %v3890 = vmax.f32 %v3776, 0.0
  %v3891 = vmax.f32 %v3777, 0.0
  %v3892 = vmax.f32 %v3778, 0.0
  %v3893 = vmax.f32 %v3779, 0.0
  %v3894 = vmax.f32 %v3780, 0.0
  %v3895 = vmax.f32 %v3781, 0.0
  %v3896 = vmax.f32 %v3782, 0.0
  %v3897 = vmax.f32 %v3783, 0.0
  %3898 = vxpose.xlu0.b32.start [1/16] %v3784, 128
  %3899 = vxpose.xlu0.b32.cont [2/16] %v3785, 128
  %3900 = vxpose.xlu0.b32.cont [3/16] %v3786, 128
  %3901 = vxpose.xlu0.b32.cont [4/16] %v3787, 128
  %3902 = vxpose.xlu0.b32.cont [5/16] %v3788, 128
  %3903 = vxpose.xlu0.b32.cont [6/16] %v3789, 128
  %3904 = vxpose.xlu0.b32.cont [7/16] %v3790, 128
  %3905 = vxpose.xlu0.b32.cont [8/16] %v3791, 128
  %3906 = vxpose.xlu0.b32.cont [9/16] %v3792, 128
  %3907 = vxpose.xlu0.b32.cont [10/16] %v3793, 128
  %3908 = vxpose.xlu0.b32.cont [11/16] %v3794, 128
  %3909 = vxpose.xlu0.b32.cont [12/16] %v3795, 128
  %3910 = vxpose.xlu0.b32.cont [13/16] %v3796, 128
  %3911 = vxpose.xlu0.b32.cont [14/16] %v3797, 128
  %3912 = vxpose.xlu0.b32.cont [15/16] %v3798, 128
  %3913 = vxpose.xlu0.b32.end [16/16] %v3799, 128
  %v3914 = vpop.trf.xlu0
  %v3915 = vpop.trf.xlu0
  %v3916 = vpop.trf.xlu0
  %v3917 = vpop.trf.xlu0
  %v3918 = vpop.trf.xlu0
  %v3919 = vpop.trf.xlu0
  %v3920 = vpop.trf.xlu0
  %v3921 = vpop.trf.xlu0
  %v3922 = vpop.trf.xlu0
  %v3923 = vpop.trf.xlu0
  %v3924 = vpop.trf.xlu0
  %v3925 = vpop.trf.xlu0
  %v3926 = vpop.trf.xlu0
  %v3927 = vpop.trf.xlu0
  %v3928 = vpop.trf.xlu0
  %v3929 = vpop.trf.xlu0
  %3930 = vxpose.xlu0.b32.start [1/16] %v3800, 128
  %3931 = vxpose.xlu0.b32.cont [2/16] %v3801, 128
  %3932 = vxpose.xlu0.b32.cont [3/16] %v3802, 128
  %3933 = vxpose.xlu0.b32.cont [4/16] %v3803, 128
  %3934 = vxpose.xlu0.b32.cont [5/16] %v3804, 128
  %3935 = vxpose.xlu0.b32.cont [6/16] %v3805, 128
  %3936 = vxpose.xlu0.b32.cont [7/16] %v3806, 128
  %3937 = vxpose.xlu0.b32.cont [8/16] %v3807, 128
  %3938 = vxpose.xlu0.b32.cont [9/16] %v3808, 128
  %3939 = vxpose.xlu0.b32.cont [10/16] %v3809, 128
  %3940 = vxpose.xlu0.b32.cont [11/16] %v3810, 128
  %3941 = vxpose.xlu0.b32.cont [12/16] %v3811, 128
  %3942 = vxpose.xlu0.b32.cont [13/16] %v3812, 128
  %3943 = vxpose.xlu0.b32.cont [14/16] %v3813, 128
  %3944 = vxpose.xlu0.b32.cont [15/16] %v3814, 128
  %3945 = vxpose.xlu0.b32.end [16/16] %v3815, 128
  %v3946 = vpop.trf.xlu0
  %v3947 = vpop.trf.xlu0
  %v3948 = vpop.trf.xlu0
  %v3949 = vpop.trf.xlu0
  %v3950 = vpop.trf.xlu0
  %v3951 = vpop.trf.xlu0
  %v3952 = vpop.trf.xlu0
  %v3953 = vpop.trf.xlu0
  %v3954 = vpop.trf.xlu0
  %v3955 = vpop.trf.xlu0
  %v3956 = vpop.trf.xlu0
  %v3957 = vpop.trf.xlu0
  %v3958 = vpop.trf.xlu0
  %v3959 = vpop.trf.xlu0
  %v3960 = vpop.trf.xlu0
  %v3961 = vpop.trf.xlu0
  %3962 = vxpose.xlu0.b32.start [1/16] %v3816, 128
  %3963 = vxpose.xlu0.b32.cont [2/16] %v3817, 128
  %3964 = vxpose.xlu0.b32.cont [3/16] %v3818, 128
  %3965 = vxpose.xlu0.b32.cont [4/16] %v3819, 128
  %3966 = vxpose.xlu0.b32.cont [5/16] %v3820, 128
  %3967 = vxpose.xlu0.b32.cont [6/16] %v3821, 128
  %3968 = vxpose.xlu0.b32.cont [7/16] %v3822, 128
  %3969 = vxpose.xlu0.b32.cont [8/16] %v3823, 128
  %3970 = vxpose.xlu0.b32.cont [9/16] %v3824, 128
  %3971 = vxpose.xlu0.b32.cont [10/16] %v3825, 128
  %3972 = vxpose.xlu0.b32.cont [11/16] %v3826, 128
  %3973 = vxpose.xlu0.b32.cont [12/16] %v3827, 128
  %3974 = vxpose.xlu0.b32.cont [13/16] %v3828, 128
  %3975 = vxpose.xlu0.b32.cont [14/16] %v3829, 128
  %3976 = vxpose.xlu0.b32.cont [15/16] %v3830, 128
  %3977 = vxpose.xlu0.b32.end [16/16] %v3831, 128
  %v3978 = vpop.trf.xlu0
  %v3979 = vpop.trf.xlu0
  %v3980 = vpop.trf.xlu0
  %v3981 = vpop.trf.xlu0
  %v3982 = vpop.trf.xlu0
  %v3983 = vpop.trf.xlu0
  %v3984 = vpop.trf.xlu0
  %v3985 = vpop.trf.xlu0
  %v3986 = vpop.trf.xlu0
  %v3987 = vpop.trf.xlu0
  %v3988 = vpop.trf.xlu0
  %v3989 = vpop.trf.xlu0
  %v3990 = vpop.trf.xlu0
  %v3991 = vpop.trf.xlu0
  %v3992 = vpop.trf.xlu0
  %v3993 = vpop.trf.xlu0
  %3994 = vxpose.xlu0.b32.start [1/16] %v3832, 128
  %3995 = vxpose.xlu0.b32.cont [2/16] %v3833, 128
  %3996 = vxpose.xlu0.b32.cont [3/16] %v3834, 128
  %3997 = vxpose.xlu0.b32.cont [4/16] %v3835, 128
  %3998 = vxpose.xlu0.b32.cont [5/16] %v3836, 128
  %3999 = vxpose.xlu0.b32.cont [6/16] %v3837, 128
  %4000 = vxpose.xlu0.b32.cont [7/16] %v3838, 128
  %4001 = vxpose.xlu0.b32.cont [8/16] %v3839, 128
  %4002 = vxpose.xlu0.b32.cont [9/16] %v3840, 128
  %4003 = vxpose.xlu0.b32.cont [10/16] %v3841, 128
  %4004 = vxpose.xlu0.b32.cont [11/16] %v3842, 128
  %4005 = vxpose.xlu0.b32.cont [12/16] %v3843, 128
  %4006 = vxpose.xlu0.b32.cont [13/16] %v3844, 128
  %4007 = vxpose.xlu0.b32.cont [14/16] %v3845, 128
  %4008 = vxpose.xlu0.b32.cont [15/16] %v3846, 128
  %4009 = vxpose.xlu0.b32.end [16/16] %v3847, 128
  %v4010 = vpop.trf.xlu0
  %v4011 = vpop.trf.xlu0
  %v4012 = vpop.trf.xlu0
  %v4013 = vpop.trf.xlu0
  %v4014 = vpop.trf.xlu0
  %v4015 = vpop.trf.xlu0
  %v4016 = vpop.trf.xlu0
  %v4017 = vpop.trf.xlu0
  %v4018 = vpop.trf.xlu0
  %v4019 = vpop.trf.xlu0
  %v4020 = vpop.trf.xlu0
  %v4021 = vpop.trf.xlu0
  %v4022 = vpop.trf.xlu0
  %v4023 = vpop.trf.xlu0
  %v4024 = vpop.trf.xlu0
  %v4025 = vpop.trf.xlu0
  %4026 = vxpose.xlu0.b32.start [1/16] %v3848, 128
  %4027 = vxpose.xlu0.b32.cont [2/16] %v3849, 128
  %4028 = vxpose.xlu0.b32.cont [3/16] %v3850, 128
  %4029 = vxpose.xlu0.b32.cont [4/16] %v3851, 128
  %4030 = vxpose.xlu0.b32.cont [5/16] %v3852, 128
  %4031 = vxpose.xlu0.b32.cont [6/16] %v3853, 128
  %4032 = vxpose.xlu0.b32.cont [7/16] %v3854, 128
  %4033 = vxpose.xlu0.b32.cont [8/16] %v3855, 128
  %4034 = vxpose.xlu0.b32.cont [9/16] %v3856, 128
  %4035 = vxpose.xlu0.b32.cont [10/16] %v3857, 128
  %4036 = vxpose.xlu0.b32.cont [11/16] %v3858, 128
  %4037 = vxpose.xlu0.b32.cont [12/16] %v3859, 128
  %4038 = vxpose.xlu0.b32.cont [13/16] %v3860, 128
  %4039 = vxpose.xlu0.b32.cont [14/16] %v3861, 128
  %4040 = vxpose.xlu0.b32.cont [15/16] %v3862, 128
  %4041 = vxpose.xlu0.b32.end [16/16] %v3863, 128
  %v4042 = vpop.trf.xlu0
  %v4043 = vpop.trf.xlu0
  %v4044 = vpop.trf.xlu0
  %v4045 = vpop.trf.xlu0
  %v4046 = vpop.trf.xlu0
  %v4047 = vpop.trf.xlu0
  %v4048 = vpop.trf.xlu0
  %v4049 = vpop.trf.xlu0
  %v4050 = vpop.trf.xlu0
  %v4051 = vpop.trf.xlu0
  %v4052 = vpop.trf.xlu0
  %v4053 = vpop.trf.xlu0
  %v4054 = vpop.trf.xlu0
  %v4055 = vpop.trf.xlu0
  %v4056 = vpop.trf.xlu0
  %v4057 = vpop.trf.xlu0
  %4058 = vxpose.xlu0.b32.start [1/16] %v3864, 128
  %4059 = vxpose.xlu0.b32.cont [2/16] %v3865, 128
  %4060 = vxpose.xlu0.b32.cont [3/16] %v3866, 128
  %4061 = vxpose.xlu0.b32.cont [4/16] %v3867, 128
  %4062 = vxpose.xlu0.b32.cont [5/16] %v3868, 128
  %4063 = vxpose.xlu0.b32.cont [6/16] %v3869, 128
  %4064 = vxpose.xlu0.b32.cont [7/16] %v3870, 128
  %4065 = vxpose.xlu0.b32.cont [8/16] %v3871, 128
  %4066 = vxpose.xlu0.b32.cont [9/16] %v3872, 128
  %4067 = vxpose.xlu0.b32.cont [10/16] %v3873, 128
  %4068 = vxpose.xlu0.b32.cont [11/16] %v3874, 128
  %4069 = vxpose.xlu0.b32.cont [12/16] %v3875, 128
  %4070 = vxpose.xlu0.b32.cont [13/16] %v3876, 128
  %4071 = vxpose.xlu0.b32.cont [14/16] %v3877, 128
  %4072 = vxpose.xlu0.b32.cont [15/16] %v3878, 128
  %4073 = vxpose.xlu0.b32.end [16/16] %v3879, 128
  %v4074 = vpop.trf.xlu0
  %v4075 = vpop.trf.xlu0
  %v4076 = vpop.trf.xlu0
  %v4077 = vpop.trf.xlu0
  %v4078 = vpop.trf.xlu0
  %v4079 = vpop.trf.xlu0
  %v4080 = vpop.trf.xlu0
  %v4081 = vpop.trf.xlu0
  %v4082 = vpop.trf.xlu0
  %v4083 = vpop.trf.xlu0
  %v4084 = vpop.trf.xlu0
  %v4085 = vpop.trf.xlu0
  %v4086 = vpop.trf.xlu0
  %v4087 = vpop.trf.xlu0
  %v4088 = vpop.trf.xlu0
  %v4089 = vpop.trf.xlu0
  %4090 = vxpose.xlu0.b32.start [1/16] %v3880, 128
  %4091 = vxpose.xlu0.b32.cont [2/16] %v3881, 128
  %4092 = vxpose.xlu0.b32.cont [3/16] %v3882, 128
  %4093 = vxpose.xlu0.b32.cont [4/16] %v3883, 128
  %4094 = vxpose.xlu0.b32.cont [5/16] %v3884, 128
  %4095 = vxpose.xlu0.b32.cont [6/16] %v3885, 128
  %4096 = vxpose.xlu0.b32.cont [7/16] %v3886, 128
  %4097 = vxpose.xlu0.b32.cont [8/16] %v3887, 128
  %4098 = vxpose.xlu0.b32.cont [9/16] %v3888, 128
  %4099 = vxpose.xlu0.b32.cont [10/16] %v3889, 128
  %4100 = vxpose.xlu0.b32.cont [11/16] %v3890, 128
  %4101 = vxpose.xlu0.b32.cont [12/16] %v3891, 128
  %4102 = vxpose.xlu0.b32.cont [13/16] %v3892, 128
  %4103 = vxpose.xlu0.b32.cont [14/16] %v3893, 128
  %4104 = vxpose.xlu0.b32.cont [15/16] %v3894, 128
  %4105 = vxpose.xlu0.b32.end [16/16] %v3895, 128
  %v4106 = vpop.trf.xlu0
  %v4107 = vpop.trf.xlu0
  %v4108 = vpop.trf.xlu0
  %v4109 = vpop.trf.xlu0
  %v4110 = vpop.trf.xlu0
  %v4111 = vpop.trf.xlu0
  %v4112 = vpop.trf.xlu0
  %v4113 = vpop.trf.xlu0
  %v4114 = vpop.trf.xlu0
  %v4115 = vpop.trf.xlu0
  %v4116 = vpop.trf.xlu0
  %v4117 = vpop.trf.xlu0
  %v4118 = vpop.trf.xlu0
  %v4119 = vpop.trf.xlu0
  %v4120 = vpop.trf.xlu0
  %v4121 = vpop.trf.xlu0
  %4122 = vxpose.xlu0.b32.start [1/16] %v3896, 128
  %4123 = vxpose.xlu0.b32.cont [2/16] %v3897, 128
  %4124 = vxpose.xlu0.b32.cont [3/16] 0.0, 128
  %4125 = vxpose.xlu0.b32.cont [4/16] 0.0, 128
  %4126 = vxpose.xlu0.b32.cont [5/16] 0.0, 128
  %4127 = vxpose.xlu0.b32.cont [6/16] 0.0, 128
  %4128 = vxpose.xlu0.b32.cont [7/16] 0.0, 128
  %4129 = vxpose.xlu0.b32.cont [8/16] 0.0, 128
  %4130 = vxpose.xlu0.b32.cont [9/16] 0.0, 128
  %4131 = vxpose.xlu0.b32.cont [10/16] 0.0, 128
  %4132 = vxpose.xlu0.b32.cont [11/16] 0.0, 128
  %4133 = vxpose.xlu0.b32.cont [12/16] 0.0, 128
  %4134 = vxpose.xlu0.b32.cont [13/16] 0.0, 128
  %4135 = vxpose.xlu0.b32.cont [14/16] 0.0, 128
  %4136 = vxpose.xlu0.b32.cont [15/16] 0.0, 128
  %4137 = vxpose.xlu0.b32.end [16/16] 0.0, 128
  %v4138 = vpop.trf.xlu0
  %v4139 = vpop.trf.xlu0
  %v4140 = vpop.trf.xlu0
  %v4141 = vpop.trf.xlu0
  %v4142 = vpop.trf.xlu0
  %v4143 = vpop.trf.xlu0
  %v4144 = vpop.trf.xlu0
  %v4145 = vpop.trf.xlu0
  %v4146 = vpop.trf.xlu0
  %v4147 = vpop.trf.xlu0
  %v4148 = vpop.trf.xlu0
  %v4149 = vpop.trf.xlu0
  %v4150 = vpop.trf.xlu0
  %v4151 = vpop.trf.xlu0
  %v4152 = vpop.trf.xlu0
  %v4153 = vpop.trf.xlu0
  %v4154 = vpack.c.bf16 %v3915, %v3914
  %v4155 = vpack.c.bf16 %v3947, %v3946
  %v4156 = vpack.c.bf16 %v3979, %v3978
  %v4157 = vpack.c.bf16 %v4011, %v4010
  %v4158 = vpack.c.bf16 %v4043, %v4042
  %v4159 = vpack.c.bf16 %v4075, %v4074
  %v4160 = vpack.c.bf16 %v4107, %v4106
  %v4161 = vpack.c.bf16 %v4139, %v4138
  %v4162 = vpack.c.bf16 %v3917, %v3916
  %v4163 = vpack.c.bf16 %v3949, %v3948
  %v4164 = vpack.c.bf16 %v3981, %v3980
  %v4165 = vpack.c.bf16 %v4013, %v4012
  %v4166 = vpack.c.bf16 %v4045, %v4044
  %v4167 = vpack.c.bf16 %v4077, %v4076
  %v4168 = vpack.c.bf16 %v4109, %v4108
  %v4169 = vpack.c.bf16 %v4141, %v4140
  %v4170 = vpack.c.bf16 %v3919, %v3918
  %v4171 = vpack.c.bf16 %v3951, %v3950
  %v4172 = vpack.c.bf16 %v3983, %v3982
  %v4173 = vpack.c.bf16 %v4015, %v4014
  %v4174 = vpack.c.bf16 %v4047, %v4046
  %v4175 = vpack.c.bf16 %v4079, %v4078
  %v4176 = vpack.c.bf16 %v4111, %v4110
  %v4177 = vpack.c.bf16 %v4143, %v4142
  %v4178 = vpack.c.bf16 %v3920, %v3920
  %v4179 = vpack.c.bf16 %v3952, %v3952
  %v4180 = vpack.c.bf16 %v3984, %v3984
  %v4181 = vpack.c.bf16 %v4016, %v4016
  %v4182 = vpack.c.bf16 %v4048, %v4048
  %v4183 = vpack.c.bf16 %v4080, %v4080
  %v4184 = vpack.c.bf16 %v4112, %v4112
  %v4185 = vpack.c.bf16 %v4144, %v4144
  %v4186 = vld [vmem:[%s2] sm:$0xff]
  %v4187 = vld [vmem:[%s2 + $0x8] sm:$0xff]
  %v4188 = vld [vmem:[%s2 + $0x10] sm:$0xff]
  %v4189 = vld [vmem:[%s2 + $0x18] sm:$0xff]
  %v4190 = vld [vmem:[%s2 + $0x20] sm:$0xff]
  %v4191 = vld [vmem:[%s2 + $0x28] sm:$0xff]
  %v4192 = vld [vmem:[%s2 + $0x30] sm:$0xff]
  %v4193 = vld [vmem:[%s2 + $0x38] sm:$0xff]
  %v4194 = vld [vmem:[%s2 + $0x40] sm:$0xff]
  %v4195 = vld [vmem:[%s2 + $0x48] sm:$0xff]
  %v4196 = vld [vmem:[%s2 + $0x50] sm:$0xff]
  %v4197 = vld [vmem:[%s2 + $0x58] sm:$0xff]
  %v4198 = vld [vmem:[%s2 + $0x60] sm:$0xff]
  %v4199 = vld [vmem:[%s2 + $0x68] sm:$0xff]
  %v4200 = vld [vmem:[%s2 + $0x70] sm:$0xff]
  %v4201 = vld [vmem:[%s2 + $0x78] sm:$0xff]
  %v4202 = vld [vmem:[%s2 + $0x80] sm:$0xff]
  %v4203 = vld [vmem:[%s2 + $0x88] sm:$0xff]
  %v4204 = vld [vmem:[%s2 + $0x90] sm:$0xff]
  %v4205 = vld [vmem:[%s2 + $0x98] sm:$0xff]
  %v4206 = vld [vmem:[%s2 + $0xa0] sm:$0xff]
  %v4207 = vld [vmem:[%s2 + $0xa8] sm:$0xff]
  %v4208 = vld [vmem:[%s2 + $0xb0] sm:$0xff]
  %v4209 = vld [vmem:[%s2 + $0xb8] sm:$0xff]
  %v4210 = vld [vmem:[%s2 + $0xc0] sm:$0xff]
  %v4211 = vld [vmem:[%s2 + $0xc8] sm:$0xff]
  %v4212 = vld [vmem:[%s2 + $0xd0] sm:$0xff]
  %v4213 = vld [vmem:[%s2 + $0xd8] sm:$0xff]
  %v4214 = vld [vmem:[%s2 + $0xe0] sm:$0xff]
  %v4215 = vld [vmem:[%s2 + $0xe8] sm:$0xff]
  %v4216 = vld [vmem:[%s2 + $0xf0] sm:$0xff]
  %v4217 = vld [vmem:[%s2 + $0xf8] sm:$0xff]
  %v4218 = vld [vmem:[%s2 + $0x100] sm:$0xff]
  %v4219 = vld [vmem:[%s2 + $0x108] sm:$0xff]
  %v4220 = vld [vmem:[%s2 + $0x110] sm:$0xff]
  %v4221 = vld [vmem:[%s2 + $0x118] sm:$0xff]
  %v4222 = vld [vmem:[%s2 + $0x120] sm:$0xff]
  %v4223 = vld [vmem:[%s2 + $0x128] sm:$0xff]
  %v4224 = vld [vmem:[%s2 + $0x130] sm:$0xff]
  %v4225 = vld [vmem:[%s2 + $0x138] sm:$0xff]
  %v4226 = vld [vmem:[%s2 + $0x140] sm:$0xff]
  %v4227 = vld [vmem:[%s2 + $0x148] sm:$0xff]
  %v4228 = vld [vmem:[%s2 + $0x150] sm:$0xff]
  %v4229 = vld [vmem:[%s2 + $0x158] sm:$0xff]
  %v4230 = vld [vmem:[%s2 + $0x160] sm:$0xff]
  %v4231 = vld [vmem:[%s2 + $0x168] sm:$0xff]
  %v4232 = vld [vmem:[%s2 + $0x170] sm:$0xff]
  %v4233 = vld [vmem:[%s2 + $0x178] sm:$0xff]
  %v4234 = vld [vmem:[%s2 + $0x180] sm:$0xff]
  %v4235 = vld [vmem:[%s2 + $0x188] sm:$0xff]
  %v4236 = vld [vmem:[%s2 + $0x190] sm:$0xff]
  %v4237 = vld [vmem:[%s2 + $0x198] sm:$0xff]
  %v4238 = vld [vmem:[%s2 + $0x1a0] sm:$0xff]
  %v4239 = vld [vmem:[%s2 + $0x1a8] sm:$0xff]
  %v4240 = vld [vmem:[%s2 + $0x1b0] sm:$0xff]
  %v4241 = vld [vmem:[%s2 + $0x1b8] sm:$0xff]
  %v4242 = vld [vmem:[%s2 + $0x1c0] sm:$0xff]
  %v4243 = vld [vmem:[%s2 + $0x1c8] sm:$0xff]
  %v4244 = vld [vmem:[%s2 + $0x1d0] sm:$0xff]
  %v4245 = vld [vmem:[%s2 + $0x1d8] sm:$0xff]
  %v4246 = vld [vmem:[%s2 + $0x1e0] sm:$0xff]
  %v4247 = vld [vmem:[%s2 + $0x1e8] sm:$0xff]
  %v4248 = vld [vmem:[%s2 + $0x1f0] sm:$0xff]
  %v4249 = vld [vmem:[%s2 + $0x1f8] sm:$0xff]
  %v4250 = vld [vmem:[%s2 + $0x200] sm:$0xff]
  %v4251 = vld [vmem:[%s2 + $0x208] sm:$0xff]
  %v4252 = vld [vmem:[%s2 + $0x210] sm:$0xff]
  %v4253 = vld [vmem:[%s2 + $0x218] sm:$0xff]
  %v4254 = vld [vmem:[%s2 + $0x220] sm:$0xff]
  %v4255 = vld [vmem:[%s2 + $0x228] sm:$0xff]
  %v4256 = vld [vmem:[%s2 + $0x230] sm:$0xff]
  %v4257 = vld [vmem:[%s2 + $0x238] sm:$0xff]
  %v4258 = vld [vmem:[%s2 + $0x240] sm:$0xff]
  %v4259 = vld [vmem:[%s2 + $0x248] sm:$0xff]
  %v4260 = vld [vmem:[%s2 + $0x250] sm:$0xff]
  %v4261 = vld [vmem:[%s2 + $0x258] sm:$0xff]
  %v4262 = vld [vmem:[%s2 + $0x260] sm:$0xff]
  %v4263 = vld [vmem:[%s2 + $0x268] sm:$0xff]
  %v4264 = vld [vmem:[%s2 + $0x270] sm:$0xff]
  %v4265 = vld [vmem:[%s2 + $0x278] sm:$0xff]
  %v4266 = vld [vmem:[%s2 + $0x280] sm:$0xff]
  %v4267 = vld [vmem:[%s2 + $0x288] sm:$0xff]
  %v4268 = vld [vmem:[%s2 + $0x290] sm:$0xff]
  %v4269 = vld [vmem:[%s2 + $0x298] sm:$0xff]
  %v4270 = vld [vmem:[%s2 + $0x2a0] sm:$0xff]
  %v4271 = vld [vmem:[%s2 + $0x2a8] sm:$0xff]
  %v4272 = vld [vmem:[%s2 + $0x2b0] sm:$0xff]
  %v4273 = vld [vmem:[%s2 + $0x2b8] sm:$0xff]
  %v4274 = vld [vmem:[%s2 + $0x2c0] sm:$0xff]
  %v4275 = vld [vmem:[%s2 + $0x2c8] sm:$0xff]
  %v4276 = vld [vmem:[%s2 + $0x2d0] sm:$0xff]
  %v4277 = vld [vmem:[%s2 + $0x2d8] sm:$0xff]
  %v4278 = vld [vmem:[%s2 + $0x2e0] sm:$0xff]
  %v4279 = vld [vmem:[%s2 + $0x2e8] sm:$0xff]
  %v4280 = vld [vmem:[%s2 + $0x2f0] sm:$0xff]
  %v4281 = vld [vmem:[%s2 + $0x2f8] sm:$0xff]
  %v4282 = vld [vmem:[%s2 + $0x300] sm:$0xff]
  %v4283 = vld [vmem:[%s2 + $0x308] sm:$0xff]
  %v4284 = vld [vmem:[%s2 + $0x310] sm:$0xff]
  %v4285 = vld [vmem:[%s2 + $0x318] sm:$0xff]
  %v4286 = vld [vmem:[%s2 + $0x320] sm:$0xff]
  %v4287 = vld [vmem:[%s2 + $0x328] sm:$0xff]
  %v4288 = vld [vmem:[%s2 + $0x330] sm:$0xff]
  %v4289 = vld [vmem:[%s2 + $0x338] sm:$0xff]
  %v4290 = vld [vmem:[%s2 + $0x340] sm:$0xff]
  %v4291 = vld [vmem:[%s2 + $0x348] sm:$0xff]
  %v4292 = vld [vmem:[%s2 + $0x350] sm:$0xff]
  %v4293 = vld [vmem:[%s2 + $0x358] sm:$0xff]
  %v4294 = vld [vmem:[%s2 + $0x360] sm:$0xff]
  %v4295 = vld [vmem:[%s2 + $0x368] sm:$0xff]
  %v4296 = vld [vmem:[%s2 + $0x370] sm:$0xff]
  %v4297 = vld [vmem:[%s2 + $0x378] sm:$0xff]
  %v4298 = vld [vmem:[%s2 + $0x380] sm:$0xff]
  %v4299 = vld [vmem:[%s2 + $0x388] sm:$0xff]
  %v4300 = vld [vmem:[%s2 + $0x390] sm:$0xff]
  %v4301 = vld [vmem:[%s2 + $0x398] sm:$0xff]
  %v4302 = vld [vmem:[%s2 + $0x3a0] sm:$0xff]
  %v4303 = vld [vmem:[%s2 + $0x3a8] sm:$0xff]
  %v4304 = vld [vmem:[%s2 + $0x3b0] sm:$0xff]
  %v4305 = vld [vmem:[%s2 + $0x3b8] sm:$0xff]
  %v4306 = vld [vmem:[%s2 + $0x3c0] sm:$0xff]
  %v4307 = vld [vmem:[%s2 + $0x3c8] sm:$0xff]
  %v4308 = vld [vmem:[%s2 + $0x3d0] sm:$0xff]
  %v4309 = vld [vmem:[%s2 + $0x3d8] sm:$0xff]
  %v4310 = vld [vmem:[%s2 + $0x3e0] sm:$0xff]
  %v4311 = vld [vmem:[%s2 + $0x3e8] sm:$0xff]
  %v4312 = vld [vmem:[%s2 + $0x3f0] sm:$0xff]
  %v4313 = vld [vmem:[%s2 + $0x3f8] sm:$0xff]
  %v4314 = vld [vmem:[%s2 + $0x400] sm:$0xff]
  %v4315 = vld [vmem:[%s2 + $0x408] sm:$0xff]
  %v4316 = vld [vmem:[%s2 + $0x410] sm:$0xff]
  %v4317 = vld [vmem:[%s2 + $0x418] sm:$0xff]
  %v4318 = vld [vmem:[%s2 + $0x420] sm:$0xff]
  %v4319 = vld [vmem:[%s2 + $0x428] sm:$0xff]
  %v4320 = vld [vmem:[%s2 + $0x430] sm:$0xff]
  %v4321 = vld [vmem:[%s2 + $0x438] sm:$0xff]
  %v4322 = vld [vmem:[%s2 + $0x440] sm:$0xff]
  %v4323 = vld [vmem:[%s2 + $0x448] sm:$0xff]
  %v4324 = vld [vmem:[%s2 + $0x450] sm:$0xff]
  %v4325 = vld [vmem:[%s2 + $0x458] sm:$0xff]
  %v4326 = vld [vmem:[%s2 + $0x460] sm:$0xff]
  %v4327 = vld [vmem:[%s2 + $0x468] sm:$0xff]
  %v4328 = vld [vmem:[%s2 + $0x470] sm:$0xff]
  %v4329 = vld [vmem:[%s2 + $0x478] sm:$0xff]
  %v4330 = vld [vmem:[%s2 + $0x480] sm:$0xff]
  %v4331 = vld [vmem:[%s2 + $0x488] sm:$0xff]
  %v4332 = vld [vmem:[%s2 + $0x490] sm:$0xff]
  %v4333 = vld [vmem:[%s2 + $0x498] sm:$0xff]
  %v4334 = vld [vmem:[%s2 + $0x4a0] sm:$0xff]
  %v4335 = vld [vmem:[%s2 + $0x4a8] sm:$0xff]
  %v4336 = vld [vmem:[%s2 + $0x4b0] sm:$0xff]
  %v4337 = vld [vmem:[%s2 + $0x4b8] sm:$0xff]
  %v4338 = vld [vmem:[%s2 + $0x4c0] sm:$0xff]
  %v4339 = vld [vmem:[%s2 + $0x4c8] sm:$0xff]
  %v4340 = vld [vmem:[%s2 + $0x4d0] sm:$0xff]
  %v4341 = vld [vmem:[%s2 + $0x4d8] sm:$0xff]
  %v4342 = vld [vmem:[%s2 + $0x4e0] sm:$0xff]
  %v4343 = vld [vmem:[%s2 + $0x4e8] sm:$0xff]
  %v4344 = vld [vmem:[%s2 + $0x4f0] sm:$0xff]
  %v4345 = vld [vmem:[%s2 + $0x4f8] sm:$0xff]
  %v4346 = vld [vmem:[%s2 + $0x500] sm:$0xff]
  %v4347 = vld [vmem:[%s2 + $0x508] sm:$0xff]
  %v4348 = vld [vmem:[%s2 + $0x510] sm:$0xff]
  %v4349 = vld [vmem:[%s2 + $0x518] sm:$0xff]
  %v4350 = vld [vmem:[%s2 + $0x520] sm:$0xff]
  %v4351 = vld [vmem:[%s2 + $0x528] sm:$0xff]
  %v4352 = vld [vmem:[%s2 + $0x530] sm:$0xff]
  %v4353 = vld [vmem:[%s2 + $0x538] sm:$0xff]
  %v4354 = vld [vmem:[%s2 + $0x540] sm:$0xff]
  %v4355 = vld [vmem:[%s2 + $0x548] sm:$0xff]
  %v4356 = vld [vmem:[%s2 + $0x550] sm:$0xff]
  %v4357 = vld [vmem:[%s2 + $0x558] sm:$0xff]
  %v4358 = vld [vmem:[%s2 + $0x560] sm:$0xff]
  %v4359 = vld [vmem:[%s2 + $0x568] sm:$0xff]
  %v4360 = vld [vmem:[%s2 + $0x570] sm:$0xff]
  %v4361 = vld [vmem:[%s2 + $0x578] sm:$0xff]
  %v4362 = vld [vmem:[%s2 + $0x580] sm:$0xff]
  %v4363 = vld [vmem:[%s2 + $0x588] sm:$0xff]
  %v4364 = vld [vmem:[%s2 + $0x590] sm:$0xff]
  %v4365 = vld [vmem:[%s2 + $0x598] sm:$0xff]
  %v4366 = vld [vmem:[%s2 + $0x5a0] sm:$0xff]
  %v4367 = vld [vmem:[%s2 + $0x5a8] sm:$0xff]
  %v4368 = vld [vmem:[%s2 + $0x5b0] sm:$0xff]
  %v4369 = vld [vmem:[%s2 + $0x5b8] sm:$0xff]
  %v4370 = vld [vmem:[%s2 + $0x5c0] sm:$0xff]
  %v4371 = vld [vmem:[%s2 + $0x5c8] sm:$0xff]
  %v4372 = vld [vmem:[%s2 + $0x5d0] sm:$0xff]
  %v4373 = vld [vmem:[%s2 + $0x5d8] sm:$0xff]
  %v4374 = vld [vmem:[%s2 + $0x5e0] sm:$0xff]
  %v4375 = vld [vmem:[%s2 + $0x5e8] sm:$0xff]
  %v4376 = vld [vmem:[%s2 + $0x5f0] sm:$0xff]
  %v4377 = vld [vmem:[%s2 + $0x5f8] sm:$0xff]
  %v4378 = vld [vmem:[%s2 + $0x600] sm:$0xff]
  %v4379 = vld [vmem:[%s2 + $0x608] sm:$0xff]
  %v4380 = vld [vmem:[%s2 + $0x610] sm:$0xff]
  %v4381 = vld [vmem:[%s2 + $0x618] sm:$0xff]
  %v4382 = vld [vmem:[%s2 + $0x620] sm:$0xff]
  %v4383 = vld [vmem:[%s2 + $0x628] sm:$0xff]
  %v4384 = vld [vmem:[%s2 + $0x630] sm:$0xff]
  %v4385 = vld [vmem:[%s2 + $0x638] sm:$0xff]
  %v4386 = vld [vmem:[%s2 + $0x640] sm:$0xff]
  %v4387 = vld [vmem:[%s2 + $0x648] sm:$0xff]
  %v4388 = vld [vmem:[%s2 + $0x650] sm:$0xff]
  %v4389 = vld [vmem:[%s2 + $0x658] sm:$0xff]
  %v4390 = vld [vmem:[%s2 + $0x660] sm:$0xff]
  %v4391 = vld [vmem:[%s2 + $0x668] sm:$0xff]
  %v4392 = vld [vmem:[%s2 + $0x670] sm:$0xff]
  %v4393 = vld [vmem:[%s2 + $0x678] sm:$0xff]
  %v4394 = vld [vmem:[%s2 + $0x680] sm:$0xff]
  %v4395 = vld [vmem:[%s2 + $0x688] sm:$0xff]
  %v4396 = vld [vmem:[%s2 + $0x690] sm:$0xff]
  %v4397 = vld [vmem:[%s2 + $0x698] sm:$0xff]
  %v4398 = vld [vmem:[%s2 + $0x6a0] sm:$0xff]
  %v4399 = vld [vmem:[%s2 + $0x6a8] sm:$0xff]
  %v4400 = vld [vmem:[%s2 + $0x6b0] sm:$0xff]
  %v4401 = vld [vmem:[%s2 + $0x6b8] sm:$0xff]
  %v4402 = vld [vmem:[%s2 + $0x6c0] sm:$0xff]
  %v4403 = vld [vmem:[%s2 + $0x6c8] sm:$0xff]
  %v4404 = vld [vmem:[%s2 + $0x6d0] sm:$0xff]
  %v4405 = vld [vmem:[%s2 + $0x6d8] sm:$0xff]
  %v4406 = vld [vmem:[%s2 + $0x6e0] sm:$0xff]
  %v4407 = vld [vmem:[%s2 + $0x6e8] sm:$0xff]
  %v4408 = vld [vmem:[%s2 + $0x6f0] sm:$0xff]
  %v4409 = vld [vmem:[%s2 + $0x6f8] sm:$0xff]
  %v4410 = vld [vmem:[%s2 + $0x700] sm:$0xff]
  %v4411 = vld [vmem:[%s2 + $0x708] sm:$0xff]
  %v4412 = vld [vmem:[%s2 + $0x710] sm:$0xff]
  %v4413 = vld [vmem:[%s2 + $0x718] sm:$0xff]
  %v4414 = vld [vmem:[%s2 + $0x720] sm:$0xff]
  %v4415 = vld [vmem:[%s2 + $0x728] sm:$0xff]
  %v4416 = vld [vmem:[%s2 + $0x730] sm:$0xff]
  %v4417 = vld [vmem:[%s2 + $0x738] sm:$0xff]
  %v4418 = vld [vmem:[%s2 + $0x740] sm:$0xff]
  %v4419 = vld [vmem:[%s2 + $0x748] sm:$0xff]
  %v4420 = vld [vmem:[%s2 + $0x750] sm:$0xff]
  %v4421 = vld [vmem:[%s2 + $0x758] sm:$0xff]
  %v4422 = vld [vmem:[%s2 + $0x760] sm:$0xff]
  %v4423 = vld [vmem:[%s2 + $0x768] sm:$0xff]
  %v4424 = vld [vmem:[%s2 + $0x770] sm:$0xff]
  %v4425 = vld [vmem:[%s2 + $0x778] sm:$0xff]
  %v4426 = vld [vmem:[%s2 + $0x780] sm:$0xff]
  %v4427 = vld [vmem:[%s2 + $0x788] sm:$0xff]
  %v4428 = vld [vmem:[%s2 + $0x790] sm:$0xff]
  %v4429 = vld [vmem:[%s2 + $0x798] sm:$0xff]
  %v4430 = vld [vmem:[%s2 + $0x7a0] sm:$0xff]
  %v4431 = vld [vmem:[%s2 + $0x7a8] sm:$0xff]
  %v4432 = vld [vmem:[%s2 + $0x7b0] sm:$0xff]
  %v4433 = vld [vmem:[%s2 + $0x7b8] sm:$0xff]
  %v4434 = vld [vmem:[%s2 + $0x7c0] sm:$0xff]
  %v4435 = vld [vmem:[%s2 + $0x7c8] sm:$0xff]
  %v4436 = vld [vmem:[%s2 + $0x7d0] sm:$0xff]
  %v4437 = vld [vmem:[%s2 + $0x7d8] sm:$0xff]
  %v4438 = vld [vmem:[%s2 + $0x7e0] sm:$0xff]
  %v4439 = vld [vmem:[%s2 + $0x7e8] sm:$0xff]
  %v4440 = vld [vmem:[%s2 + $0x7f0] sm:$0xff]
  %v4441 = vld [vmem:[%s2 + $0x7f8] sm:$0xff]
  %v4442 = vld [vmem:[%s2 + $0x800] sm:$0xff]
  %v4443 = vld [vmem:[%s2 + $0x808] sm:$0xff]
  %v4444 = vld [vmem:[%s2 + $0x810] sm:$0xff]
  %v4445 = vld [vmem:[%s2 + $0x818] sm:$0xff]
  %v4446 = vld [vmem:[%s2 + $0x820] sm:$0xff]
  %v4447 = vld [vmem:[%s2 + $0x828] sm:$0xff]
  %v4448 = vld [vmem:[%s2 + $0x830] sm:$0xff]
  %v4449 = vld [vmem:[%s2 + $0x838] sm:$0xff]
  %v4450 = vld [vmem:[%s2 + $0x840] sm:$0xff]
  %v4451 = vld [vmem:[%s2 + $0x848] sm:$0xff]
  %v4452 = vld [vmem:[%s2 + $0x850] sm:$0xff]
  %v4453 = vld [vmem:[%s2 + $0x858] sm:$0xff]
  %v4454 = vld [vmem:[%s2 + $0x860] sm:$0xff]
  %v4455 = vld [vmem:[%s2 + $0x868] sm:$0xff]
  %v4456 = vld [vmem:[%s2 + $0x870] sm:$0xff]
  %v4457 = vld [vmem:[%s2 + $0x878] sm:$0xff]
  %v4458 = vld [vmem:[%s2 + $0x880] sm:$0xff]
  %v4459 = vld [vmem:[%s2 + $0x888] sm:$0xff]
  %v4460 = vld [vmem:[%s2 + $0x890] sm:$0xff]
  %v4461 = vld [vmem:[%s2 + $0x898] sm:$0xff]
  %v4462 = vld [vmem:[%s2 + $0x8a0] sm:$0xff]
  %v4463 = vld [vmem:[%s2 + $0x8a8] sm:$0xff]
  %v4464 = vld [vmem:[%s2 + $0x8b0] sm:$0xff]
  %v4465 = vld [vmem:[%s2 + $0x8b8] sm:$0xff]
  %v4466 = vld [vmem:[%s2 + $0x8c0] sm:$0xff]
  %v4467 = vld [vmem:[%s2 + $0x8c8] sm:$0xff]
  %v4468 = vld [vmem:[%s2 + $0x8d0] sm:$0xff]
  %v4469 = vld [vmem:[%s2 + $0x8d8] sm:$0xff]
  %v4470 = vld [vmem:[%s2 + $0x8e0] sm:$0xff]
  %v4471 = vld [vmem:[%s2 + $0x8e8] sm:$0xff]
  %v4472 = vld [vmem:[%s2 + $0x8f0] sm:$0xff]
  %v4473 = vld [vmem:[%s2 + $0x8f8] sm:$0xff]
  %v4474 = vld [vmem:[%s2 + $0x900] sm:$0xff]
  %v4475 = vld [vmem:[%s2 + $0x908] sm:$0xff]
  %v4476 = vld [vmem:[%s2 + $0x910] sm:$0xff]
  %v4477 = vld [vmem:[%s2 + $0x918] sm:$0xff]
  %v4478 = vld [vmem:[%s2 + $0x920] sm:$0xff]
  %v4479 = vld [vmem:[%s2 + $0x928] sm:$0xff]
  %v4480 = vld [vmem:[%s2 + $0x930] sm:$0xff]
  %v4481 = vld [vmem:[%s2 + $0x938] sm:$0xff]
  %v4482 = vld [vmem:[%s2 + $0x940] sm:$0xff]
  %v4483 = vld [vmem:[%s2 + $0x948] sm:$0xff]
  %v4484 = vld [vmem:[%s2 + $0x950] sm:$0xff]
  %v4485 = vld [vmem:[%s2 + $0x958] sm:$0xff]
  %v4486 = vld [vmem:[%s2 + $0x960] sm:$0xff]
  %v4487 = vld [vmem:[%s2 + $0x968] sm:$0xff]
  %v4488 = vld [vmem:[%s2 + $0x970] sm:$0xff]
  %v4489 = vld [vmem:[%s2 + $0x978] sm:$0xff]
  %v4490 = vld [vmem:[%s2 + $0x980] sm:$0xff]
  %v4491 = vld [vmem:[%s2 + $0x988] sm:$0xff]
  %v4492 = vld [vmem:[%s2 + $0x990] sm:$0xff]
  %v4493 = vld [vmem:[%s2 + $0x998] sm:$0xff]
  %v4494 = vld [vmem:[%s2 + $0x9a0] sm:$0xff]
  %v4495 = vld [vmem:[%s2 + $0x9a8] sm:$0xff]
  %v4496 = vld [vmem:[%s2 + $0x9b0] sm:$0xff]
  %v4497 = vld [vmem:[%s2 + $0x9b8] sm:$0xff]
  %v4498 = vld [vmem:[%s2 + $0x9c0] sm:$0xff]
  %v4499 = vld [vmem:[%s2 + $0x9c8] sm:$0xff]
  %v4500 = vld [vmem:[%s2 + $0x9d0] sm:$0xff]
  %v4501 = vld [vmem:[%s2 + $0x9d8] sm:$0xff]
  %v4502 = vld [vmem:[%s2 + $0x9e0] sm:$0xff]
  %v4503 = vld [vmem:[%s2 + $0x9e8] sm:$0xff]
  %v4504 = vld [vmem:[%s2 + $0x9f0] sm:$0xff]
  %v4505 = vld [vmem:[%s2 + $0x9f8] sm:$0xff]
  %v4506 = vld [vmem:[%s2 + $0xa00] sm:$0xff]
  %v4507 = vld [vmem:[%s2 + $0xa08] sm:$0xff]
  %v4508 = vld [vmem:[%s2 + $0xa10] sm:$0xff]
  %v4509 = vld [vmem:[%s2 + $0xa18] sm:$0xff]
  %v4510 = vld [vmem:[%s2 + $0xa20] sm:$0xff]
  %v4511 = vld [vmem:[%s2 + $0xa28] sm:$0xff]
  %v4512 = vld [vmem:[%s2 + $0xa30] sm:$0xff]
  %v4513 = vld [vmem:[%s2 + $0xa38] sm:$0xff]
  %v4514 = vld [vmem:[%s2 + $0xa40] sm:$0xff]
  %v4515 = vld [vmem:[%s2 + $0xa48] sm:$0xff]
  %v4516 = vld [vmem:[%s2 + $0xa50] sm:$0xff]
  %v4517 = vld [vmem:[%s2 + $0xa58] sm:$0xff]
  %v4518 = vld [vmem:[%s2 + $0xa60] sm:$0xff]
  %v4519 = vld [vmem:[%s2 + $0xa68] sm:$0xff]
  %v4520 = vld [vmem:[%s2 + $0xa70] sm:$0xff]
  %v4521 = vld [vmem:[%s2 + $0xa78] sm:$0xff]
  %v4522 = vld [vmem:[%s2 + $0xa80] sm:$0xff]
  %v4523 = vld [vmem:[%s2 + $0xa88] sm:$0xff]
  %v4524 = vld [vmem:[%s2 + $0xa90] sm:$0xff]
  %v4525 = vld [vmem:[%s2 + $0xa98] sm:$0xff]
  %v4526 = vld [vmem:[%s2 + $0xaa0] sm:$0xff]
  %v4527 = vld [vmem:[%s2 + $0xaa8] sm:$0xff]
  %v4528 = vld [vmem:[%s2 + $0xab0] sm:$0xff]
  %v4529 = vld [vmem:[%s2 + $0xab8] sm:$0xff]
  %v4530 = vld [vmem:[%s2 + $0xac0] sm:$0xff]
  %v4531 = vld [vmem:[%s2 + $0xac8] sm:$0xff]
  %v4532 = vld [vmem:[%s2 + $0xad0] sm:$0xff]
  %v4533 = vld [vmem:[%s2 + $0xad8] sm:$0xff]
  %v4534 = vld [vmem:[%s2 + $0xae0] sm:$0xff]
  %v4535 = vld [vmem:[%s2 + $0xae8] sm:$0xff]
  %v4536 = vld [vmem:[%s2 + $0xaf0] sm:$0xff]
  %v4537 = vld [vmem:[%s2 + $0xaf8] sm:$0xff]
  %v4538 = vld [vmem:[%s2 + $0xb00] sm:$0xff]
  %v4539 = vld [vmem:[%s2 + $0xb08] sm:$0xff]
  %v4540 = vld [vmem:[%s2 + $0xb10] sm:$0xff]
  %v4541 = vld [vmem:[%s2 + $0xb18] sm:$0xff]
  %v4542 = vld [vmem:[%s2 + $0xb20] sm:$0xff]
  %v4543 = vld [vmem:[%s2 + $0xb28] sm:$0xff]
  %v4544 = vld [vmem:[%s2 + $0xb30] sm:$0xff]
  %v4545 = vld [vmem:[%s2 + $0xb38] sm:$0xff]
  %v4546 = vld [vmem:[%s2 + $0xb40] sm:$0xff]
  %v4547 = vld [vmem:[%s2 + $0xb48] sm:$0xff]
  %v4548 = vld [vmem:[%s2 + $0xb50] sm:$0xff]
  %v4549 = vld [vmem:[%s2 + $0xb58] sm:$0xff]
  %v4550 = vld [vmem:[%s2 + $0xb60] sm:$0xff]
  %v4551 = vld [vmem:[%s2 + $0xb68] sm:$0xff]
  %v4552 = vld [vmem:[%s2 + $0xb70] sm:$0xff]
  %v4553 = vld [vmem:[%s2 + $0xb78] sm:$0xff]
  %v4554 = vld [vmem:[%s2 + $0xb80] sm:$0xff]
  %v4555 = vld [vmem:[%s2 + $0xb88] sm:$0xff]
  %v4556 = vld [vmem:[%s2 + $0xb90] sm:$0xff]
  %v4557 = vld [vmem:[%s2 + $0xb98] sm:$0xff]
  %v4558 = vld [vmem:[%s2 + $0xba0] sm:$0xff]
  %v4559 = vld [vmem:[%s2 + $0xba8] sm:$0xff]
  %v4560 = vld [vmem:[%s2 + $0xbb0] sm:$0xff]
  %v4561 = vld [vmem:[%s2 + $0xbb8] sm:$0xff]
  %v4562 = vld [vmem:[%s2 + $0xbc0] sm:$0xff]
  %v4563 = vld [vmem:[%s2 + $0xbc8] sm:$0xff]
  %v4564 = vld [vmem:[%s2 + $0xbd0] sm:$0xff]
  %v4565 = vld [vmem:[%s2 + $0xbd8] sm:$0xff]
  %v4566 = vld [vmem:[%s2 + $0xbe0] sm:$0xff]
  %v4567 = vld [vmem:[%s2 + $0xbe8] sm:$0xff]
  %v4568 = vld [vmem:[%s2 + $0xbf0] sm:$0xff]
  %v4569 = vld [vmem:[%s2 + $0xbf8] sm:$0xff]
  %v4570 = vld [vmem:[%s2 + $0xc00] sm:$0xff]
  %v4571 = vld [vmem:[%s2 + $0xc08] sm:$0xff]
  %v4572 = vld [vmem:[%s2 + $0xc10] sm:$0xff]
  %v4573 = vld [vmem:[%s2 + $0xc18] sm:$0xff]
  %v4574 = vld [vmem:[%s2 + $0xc20] sm:$0xff]
  %v4575 = vld [vmem:[%s2 + $0xc28] sm:$0xff]
  %v4576 = vld [vmem:[%s2 + $0xc30] sm:$0xff]
  %v4577 = vld [vmem:[%s2 + $0xc38] sm:$0xff]
  %v4578 = vld [vmem:[%s2 + $0xc40] sm:$0xff]
  %v4579 = vld [vmem:[%s2 + $0xc48] sm:$0xff]
  %v4580 = vld [vmem:[%s2 + $0xc50] sm:$0xff]
  %v4581 = vld [vmem:[%s2 + $0xc58] sm:$0xff]
  %v4582 = vld [vmem:[%s2 + $0xc60] sm:$0xff]
  %v4583 = vld [vmem:[%s2 + $0xc68] sm:$0xff]
  %v4584 = vld [vmem:[%s2 + $0xc70] sm:$0xff]
  %v4585 = vld [vmem:[%s2 + $0xc78] sm:$0xff]
  %v4586 = vld [vmem:[%s2 + $0xc80] sm:$0xff]
  %v4587 = vld [vmem:[%s2 + $0xc88] sm:$0xff]
  %v4588 = vld [vmem:[%s2 + $0xc90] sm:$0xff]
  %v4589 = vld [vmem:[%s2 + $0xc98] sm:$0xff]
  %v4590 = vld [vmem:[%s2 + $0xca0] sm:$0xff]
  %v4591 = vld [vmem:[%s2 + $0xca8] sm:$0xff]
  %v4592 = vld [vmem:[%s2 + $0xcb0] sm:$0xff]
  %v4593 = vld [vmem:[%s2 + $0xcb8] sm:$0xff]
  %v4594 = vld [vmem:[%s2 + $0xcc0] sm:$0xff]
  %v4595 = vld [vmem:[%s2 + $0xcc8] sm:$0xff]
  %v4596 = vld [vmem:[%s2 + $0xcd0] sm:$0xff]
  %v4597 = vld [vmem:[%s2 + $0xcd8] sm:$0xff]
  %v4598 = vld [vmem:[%s2 + $0xce0] sm:$0xff]
  %v4599 = vld [vmem:[%s2 + $0xce8] sm:$0xff]
  %v4600 = vld [vmem:[%s2 + $0xcf0] sm:$0xff]
  %v4601 = vld [vmem:[%s2 + $0xcf8] sm:$0xff]
  %v4602 = vld [vmem:[%s2 + $0xd00] sm:$0xff]
  %v4603 = vld [vmem:[%s2 + $0xd08] sm:$0xff]
  %v4604 = vld [vmem:[%s2 + $0xd10] sm:$0xff]
  %v4605 = vld [vmem:[%s2 + $0xd18] sm:$0xff]
  %v4606 = vld [vmem:[%s2 + $0xd20] sm:$0xff]
  %v4607 = vld [vmem:[%s2 + $0xd28] sm:$0xff]
  %v4608 = vld [vmem:[%s2 + $0xd30] sm:$0xff]
  %v4609 = vld [vmem:[%s2 + $0xd38] sm:$0xff]
  %v4610 = vld [vmem:[%s2 + $0xd40] sm:$0xff]
  %v4611 = vld [vmem:[%s2 + $0xd48] sm:$0xff]
  %v4612 = vld [vmem:[%s2 + $0xd50] sm:$0xff]
  %v4613 = vld [vmem:[%s2 + $0xd58] sm:$0xff]
  %v4614 = vld [vmem:[%s2 + $0xd60] sm:$0xff]
  %v4615 = vld [vmem:[%s2 + $0xd68] sm:$0xff]
  %v4616 = vld [vmem:[%s2 + $0xd70] sm:$0xff]
  %v4617 = vld [vmem:[%s2 + $0xd78] sm:$0xff]
  %v4618 = vld [vmem:[%s2 + $0xd80] sm:$0xff]
  %v4619 = vld [vmem:[%s2 + $0xd88] sm:$0xff]
  %v4620 = vld [vmem:[%s2 + $0xd90] sm:$0xff]
  %v4621 = vld [vmem:[%s2 + $0xd98] sm:$0xff]
  %v4622 = vld [vmem:[%s2 + $0xda0] sm:$0xff]
  %v4623 = vld [vmem:[%s2 + $0xda8] sm:$0xff]
  %v4624 = vld [vmem:[%s2 + $0xdb0] sm:$0xff]
  %v4625 = vld [vmem:[%s2 + $0xdb8] sm:$0xff]
  %v4626 = vld [vmem:[%s2 + $0xdc0] sm:$0xff]
  %v4627 = vld [vmem:[%s2 + $0xdc8] sm:$0xff]
  %v4628 = vld [vmem:[%s2 + $0xdd0] sm:$0xff]
  %v4629 = vld [vmem:[%s2 + $0xdd8] sm:$0xff]
  %v4630 = vld [vmem:[%s2 + $0xde0] sm:$0xff]
  %v4631 = vld [vmem:[%s2 + $0xde8] sm:$0xff]
  %v4632 = vld [vmem:[%s2 + $0xdf0] sm:$0xff]
  %v4633 = vld [vmem:[%s2 + $0xdf8] sm:$0xff]
  %v4634 = vld [vmem:[%s2 + $0xe00] sm:$0xff]
  %v4635 = vld [vmem:[%s2 + $0xe08] sm:$0xff]
  %v4636 = vld [vmem:[%s2 + $0xe10] sm:$0xff]
  %v4637 = vld [vmem:[%s2 + $0xe18] sm:$0xff]
  %v4638 = vld [vmem:[%s2 + $0xe20] sm:$0xff]
  %v4639 = vld [vmem:[%s2 + $0xe28] sm:$0xff]
  %v4640 = vld [vmem:[%s2 + $0xe30] sm:$0xff]
  %v4641 = vld [vmem:[%s2 + $0xe38] sm:$0xff]
  %v5098 = vunpack.c.l.b16 %v4186
  %v5099 = vunpack.c.h.b16 %v4186
  %v5100 = vunpack.c.l.b16 %v4187
  %v5101 = vunpack.c.h.b16 %v4187
  %v5102 = vunpack.c.l.b16 %v4188
  %v5103 = vunpack.c.h.b16 %v4188
  %v5104 = vunpack.c.l.b16 %v4189
  %v5105 = vunpack.c.h.b16 %v4189
  %v5106 = vunpack.c.l.b16 %v4190
  %v5107 = vunpack.c.h.b16 %v4190
  %v5108 = vunpack.c.l.b16 %v4191
  %v5109 = vunpack.c.h.b16 %v4191
  %v5110 = vunpack.c.l.b16 %v4192
  %v5111 = vunpack.c.h.b16 %v4192
  %v5112 = vunpack.c.l.b16 %v4193
  %v5113 = vunpack.c.h.b16 %v4193
  %v5114 = vunpack.c.l.b16 %v4194
  %v5115 = vunpack.c.h.b16 %v4194
  %v5116 = vunpack.c.l.b16 %v4195
  %v5117 = vunpack.c.h.b16 %v4195
  %v5118 = vunpack.c.l.b16 %v4196
  %v5119 = vunpack.c.h.b16 %v4196
  %v5120 = vunpack.c.l.b16 %v4197
  %v5121 = vunpack.c.h.b16 %v4197
  %v5122 = vunpack.c.l.b16 %v4198
  %v5123 = vunpack.c.h.b16 %v4198
  %v5124 = vunpack.c.l.b16 %v4199
  %v5125 = vunpack.c.h.b16 %v4199
  %v5126 = vunpack.c.l.b16 %v4200
  %v5127 = vunpack.c.h.b16 %v4200
  %v5128 = vunpack.c.l.b16 %v4201
  %v5129 = vunpack.c.h.b16 %v4201
  %v5130 = vunpack.c.l.b16 %v4202
  %v5131 = vunpack.c.h.b16 %v4202
  %v5132 = vunpack.c.l.b16 %v4203
  %v5133 = vunpack.c.h.b16 %v4203
  %v5134 = vunpack.c.l.b16 %v4204
  %v5135 = vunpack.c.h.b16 %v4204
  %v5136 = vunpack.c.l.b16 %v4205
  %v5137 = vunpack.c.h.b16 %v4205
  %v5138 = vunpack.c.l.b16 %v4206
  %v5139 = vunpack.c.h.b16 %v4206
  %v5140 = vunpack.c.l.b16 %v4207
  %v5141 = vunpack.c.h.b16 %v4207
  %v5142 = vunpack.c.l.b16 %v4208
  %v5143 = vunpack.c.h.b16 %v4208
  %v5144 = vunpack.c.l.b16 %v4209
  %v5145 = vunpack.c.h.b16 %v4209
  %v5146 = vunpack.c.l.b16 %v4210
  %v5147 = vunpack.c.h.b16 %v4210
  %v5148 = vunpack.c.l.b16 %v4211
  %v5149 = vunpack.c.h.b16 %v4211
  %v5150 = vunpack.c.l.b16 %v4212
  %v5151 = vunpack.c.h.b16 %v4212
  %v5152 = vunpack.c.l.b16 %v4213
  %v5153 = vunpack.c.h.b16 %v4213
  %v5154 = vunpack.c.l.b16 %v4214
  %v5155 = vunpack.c.h.b16 %v4214
  %v5156 = vunpack.c.l.b16 %v4215
  %v5157 = vunpack.c.h.b16 %v4215
  %v5158 = vunpack.c.l.b16 %v4216
  %v5159 = vunpack.c.h.b16 %v4216
  %v5160 = vunpack.c.l.b16 %v4217
  %v5161 = vunpack.c.h.b16 %v4217
  %v5162 = vunpack.c.l.b16 %v4218
  %v5163 = vunpack.c.h.b16 %v4218
  %v5164 = vunpack.c.l.b16 %v4219
  %v5165 = vunpack.c.h.b16 %v4219
  %v5166 = vunpack.c.l.b16 %v4220
  %v5167 = vunpack.c.h.b16 %v4220
  %v5168 = vunpack.c.l.b16 %v4221
  %v5169 = vunpack.c.h.b16 %v4221
  %v5170 = vunpack.c.l.b16 %v4222
  %v5171 = vunpack.c.h.b16 %v4222
  %v5172 = vunpack.c.l.b16 %v4223
  %v5173 = vunpack.c.h.b16 %v4223
  %v5174 = vunpack.c.l.b16 %v4224
  %v5175 = vunpack.c.h.b16 %v4224
  %v5176 = vunpack.c.l.b16 %v4225
  %v5177 = vunpack.c.h.b16 %v4225
  %v5178 = vunpack.c.l.b16 %v4226
  %v5179 = vunpack.c.h.b16 %v4226
  %v5180 = vunpack.c.l.b16 %v4227
  %v5181 = vunpack.c.h.b16 %v4227
  %v5182 = vunpack.c.l.b16 %v4228
  %v5183 = vunpack.c.h.b16 %v4228
  %v5184 = vunpack.c.l.b16 %v4229
  %v5185 = vunpack.c.h.b16 %v4229
  %v5186 = vunpack.c.l.b16 %v4230
  %v5187 = vunpack.c.h.b16 %v4230
  %v5188 = vunpack.c.l.b16 %v4231
  %v5189 = vunpack.c.h.b16 %v4231
  %v5190 = vunpack.c.l.b16 %v4232
  %v5191 = vunpack.c.h.b16 %v4232
  %v5192 = vunpack.c.l.b16 %v4233
  %v5193 = vunpack.c.h.b16 %v4233
  %v5194 = vunpack.c.l.b16 %v4234
  %v5195 = vunpack.c.h.b16 %v4234
  %v5196 = vunpack.c.l.b16 %v4235
  %v5197 = vunpack.c.h.b16 %v4235
  %v5198 = vunpack.c.l.b16 %v4236
  %v5199 = vunpack.c.h.b16 %v4236
  %v5200 = vunpack.c.l.b16 %v4237
  %v5201 = vunpack.c.h.b16 %v4237
  %v5202 = vunpack.c.l.b16 %v4238
  %v5203 = vunpack.c.h.b16 %v4238
  %v5204 = vunpack.c.l.b16 %v4239
  %v5205 = vunpack.c.h.b16 %v4239
  %v5206 = vunpack.c.l.b16 %v4240
  %v5207 = vunpack.c.h.b16 %v4240
  %v5208 = vunpack.c.l.b16 %v4241
  %v5209 = vunpack.c.h.b16 %v4241
  %v5210 = vunpack.c.l.b16 %v4242
  %v5211 = vunpack.c.h.b16 %v4242
  %v5212 = vunpack.c.l.b16 %v4243
  %v5213 = vunpack.c.h.b16 %v4243
  %v5214 = vunpack.c.l.b16 %v4244
  %v5215 = vunpack.c.h.b16 %v4244
  %v5216 = vunpack.c.l.b16 %v4245
  %v5217 = vunpack.c.h.b16 %v4245
  %v5218 = vunpack.c.l.b16 %v4246
  %v5219 = vunpack.c.h.b16 %v4246
  %v5220 = vunpack.c.l.b16 %v4247
  %v5221 = vunpack.c.h.b16 %v4247
  %v5222 = vunpack.c.l.b16 %v4248
  %v5223 = vunpack.c.h.b16 %v4248
  %v5224 = vunpack.c.l.b16 %v4249
  %v5225 = vunpack.c.h.b16 %v4249
  %v5226 = vunpack.c.l.b16 %v4250
  %v5227 = vunpack.c.h.b16 %v4250
  %v5228 = vunpack.c.l.b16 %v4251
  %v5229 = vunpack.c.h.b16 %v4251
  %v5230 = vunpack.c.l.b16 %v4252
  %v5231 = vunpack.c.h.b16 %v4252
  %v5232 = vunpack.c.l.b16 %v4253
  %v5233 = vunpack.c.h.b16 %v4253
  %v5234 = vunpack.c.l.b16 %v4254
  %v5235 = vunpack.c.h.b16 %v4254
  %v5236 = vunpack.c.l.b16 %v4255
  %v5237 = vunpack.c.h.b16 %v4255
  %v5238 = vunpack.c.l.b16 %v4256
  %v5239 = vunpack.c.h.b16 %v4256
  %v5240 = vunpack.c.l.b16 %v4257
  %v5241 = vunpack.c.h.b16 %v4257
  %v5242 = vunpack.c.l.b16 %v4258
  %v5243 = vunpack.c.h.b16 %v4258
  %v5244 = vunpack.c.l.b16 %v4259
  %v5245 = vunpack.c.h.b16 %v4259
  %v5246 = vunpack.c.l.b16 %v4260
  %v5247 = vunpack.c.h.b16 %v4260
  %v5248 = vunpack.c.l.b16 %v4261
  %v5249 = vunpack.c.h.b16 %v4261
  %v5250 = vunpack.c.l.b16 %v4262
  %v5251 = vunpack.c.h.b16 %v4262
  %v5252 = vunpack.c.l.b16 %v4263
  %v5253 = vunpack.c.h.b16 %v4263
  %v5254 = vunpack.c.l.b16 %v4264
  %v5255 = vunpack.c.h.b16 %v4264
  %v5256 = vunpack.c.l.b16 %v4265
  %v5257 = vunpack.c.h.b16 %v4265
  %v5258 = vunpack.c.l.b16 %v4266
  %v5259 = vunpack.c.h.b16 %v4266
  %v5260 = vunpack.c.l.b16 %v4267
  %v5261 = vunpack.c.h.b16 %v4267
  %v5262 = vunpack.c.l.b16 %v4268
  %v5263 = vunpack.c.h.b16 %v4268
  %v5264 = vunpack.c.l.b16 %v4269
  %v5265 = vunpack.c.h.b16 %v4269
  %v5266 = vunpack.c.l.b16 %v4270
  %v5267 = vunpack.c.h.b16 %v4270
  %v5268 = vunpack.c.l.b16 %v4271
  %v5269 = vunpack.c.h.b16 %v4271
  %v5270 = vunpack.c.l.b16 %v4272
  %v5271 = vunpack.c.h.b16 %v4272
  %v5272 = vunpack.c.l.b16 %v4273
  %v5273 = vunpack.c.h.b16 %v4273
  %v5274 = vunpack.c.l.b16 %v4274
  %v5275 = vunpack.c.h.b16 %v4274
  %v5276 = vunpack.c.l.b16 %v4275
  %v5277 = vunpack.c.h.b16 %v4275
  %v5278 = vunpack.c.l.b16 %v4276
  %v5279 = vunpack.c.h.b16 %v4276
  %v5280 = vunpack.c.l.b16 %v4277
  %v5281 = vunpack.c.h.b16 %v4277
  %v5282 = vunpack.c.l.b16 %v4278
  %v5283 = vunpack.c.h.b16 %v4278
  %v5284 = vunpack.c.l.b16 %v4279
  %v5285 = vunpack.c.h.b16 %v4279
  %v5286 = vunpack.c.l.b16 %v4280
  %v5287 = vunpack.c.h.b16 %v4280
  %v5288 = vunpack.c.l.b16 %v4281
  %v5289 = vunpack.c.h.b16 %v4281
  %v5290 = vunpack.c.l.b16 %v4282
  %v5291 = vunpack.c.h.b16 %v4282
  %v5292 = vunpack.c.l.b16 %v4283
  %v5293 = vunpack.c.h.b16 %v4283
  %v5294 = vunpack.c.l.b16 %v4284
  %v5295 = vunpack.c.h.b16 %v4284
  %v5296 = vunpack.c.l.b16 %v4285
  %v5297 = vunpack.c.h.b16 %v4285
  %v5298 = vunpack.c.l.b16 %v4286
  %v5299 = vunpack.c.h.b16 %v4286
  %v5300 = vunpack.c.l.b16 %v4287
  %v5301 = vunpack.c.h.b16 %v4287
  %v5302 = vunpack.c.l.b16 %v4288
  %v5303 = vunpack.c.h.b16 %v4288
  %v5304 = vunpack.c.l.b16 %v4289
  %v5305 = vunpack.c.h.b16 %v4289
  %v5306 = vunpack.c.l.b16 %v4290
  %v5307 = vunpack.c.h.b16 %v4290
  %v5308 = vunpack.c.l.b16 %v4291
  %v5309 = vunpack.c.h.b16 %v4291
  %v5310 = vunpack.c.l.b16 %v4292
  %v5311 = vunpack.c.h.b16 %v4292
  %v5312 = vunpack.c.l.b16 %v4293
  %v5313 = vunpack.c.h.b16 %v4293
  %v5314 = vunpack.c.l.b16 %v4294
  %v5315 = vunpack.c.h.b16 %v4294
  %v5316 = vunpack.c.l.b16 %v4295
  %v5317 = vunpack.c.h.b16 %v4295
  %v5318 = vunpack.c.l.b16 %v4296
  %v5319 = vunpack.c.h.b16 %v4296
  %v5320 = vunpack.c.l.b16 %v4297
  %v5321 = vunpack.c.h.b16 %v4297
  %v5322 = vunpack.c.l.b16 %v4298
  %v5323 = vunpack.c.h.b16 %v4298
  %v5324 = vunpack.c.l.b16 %v4299
  %v5325 = vunpack.c.h.b16 %v4299
  %v5326 = vunpack.c.l.b16 %v4300
  %v5327 = vunpack.c.h.b16 %v4300
  %v5328 = vunpack.c.l.b16 %v4301
  %v5329 = vunpack.c.h.b16 %v4301
  %v5330 = vunpack.c.l.b16 %v4302
  %v5331 = vunpack.c.h.b16 %v4302
  %v5332 = vunpack.c.l.b16 %v4303
  %v5333 = vunpack.c.h.b16 %v4303
  %v5334 = vunpack.c.l.b16 %v4304
  %v5335 = vunpack.c.h.b16 %v4304
  %v5336 = vunpack.c.l.b16 %v4305
  %v5337 = vunpack.c.h.b16 %v4305
  %v5338 = vunpack.c.l.b16 %v4306
  %v5339 = vunpack.c.h.b16 %v4306
  %v5340 = vunpack.c.l.b16 %v4307
  %v5341 = vunpack.c.h.b16 %v4307
  %v5342 = vunpack.c.l.b16 %v4308
  %v5343 = vunpack.c.h.b16 %v4308
  %v5344 = vunpack.c.l.b16 %v4309
  %v5345 = vunpack.c.h.b16 %v4309
  %v5346 = vunpack.c.l.b16 %v4310
  %v5347 = vunpack.c.h.b16 %v4310
  %v5348 = vunpack.c.l.b16 %v4311
  %v5349 = vunpack.c.h.b16 %v4311
  %v5350 = vunpack.c.l.b16 %v4312
  %v5351 = vunpack.c.h.b16 %v4312
  %v5352 = vunpack.c.l.b16 %v4313
  %v5353 = vunpack.c.h.b16 %v4313
  %v5354 = vunpack.c.l.b16 %v4314
  %v5355 = vunpack.c.h.b16 %v4314
  %v5356 = vunpack.c.l.b16 %v4315
  %v5357 = vunpack.c.h.b16 %v4315
  %v5358 = vunpack.c.l.b16 %v4316
  %v5359 = vunpack.c.h.b16 %v4316
  %v5360 = vunpack.c.l.b16 %v4317
  %v5361 = vunpack.c.h.b16 %v4317
  %v5362 = vunpack.c.l.b16 %v4318
  %v5363 = vunpack.c.h.b16 %v4318
  %v5364 = vunpack.c.l.b16 %v4319
  %v5365 = vunpack.c.h.b16 %v4319
  %v5366 = vunpack.c.l.b16 %v4320
  %v5367 = vunpack.c.h.b16 %v4320
  %v5368 = vunpack.c.l.b16 %v4321
  %v5369 = vunpack.c.h.b16 %v4321
  %v5370 = vunpack.c.l.b16 %v4322
  %v5371 = vunpack.c.h.b16 %v4322
  %v5372 = vunpack.c.l.b16 %v4323
  %v5373 = vunpack.c.h.b16 %v4323
  %v5374 = vunpack.c.l.b16 %v4324
  %v5375 = vunpack.c.h.b16 %v4324
  %v5376 = vunpack.c.l.b16 %v4325
  %v5377 = vunpack.c.h.b16 %v4325
  %v5378 = vunpack.c.l.b16 %v4326
  %v5379 = vunpack.c.h.b16 %v4326
  %v5380 = vunpack.c.l.b16 %v4327
  %v5381 = vunpack.c.h.b16 %v4327
  %v5382 = vunpack.c.l.b16 %v4328
  %v5383 = vunpack.c.h.b16 %v4328
  %v5384 = vunpack.c.l.b16 %v4329
  %v5385 = vunpack.c.h.b16 %v4329
  %v5386 = vunpack.c.l.b16 %v4330
  %v5387 = vunpack.c.h.b16 %v4330
  %v5388 = vunpack.c.l.b16 %v4331
  %v5389 = vunpack.c.h.b16 %v4331
  %v5390 = vunpack.c.l.b16 %v4332
  %v5391 = vunpack.c.h.b16 %v4332
  %v5392 = vunpack.c.l.b16 %v4333
  %v5393 = vunpack.c.h.b16 %v4333
  %v5394 = vunpack.c.l.b16 %v4334
  %v5395 = vunpack.c.h.b16 %v4334
  %v5396 = vunpack.c.l.b16 %v4335
  %v5397 = vunpack.c.h.b16 %v4335
  %v5398 = vunpack.c.l.b16 %v4336
  %v5399 = vunpack.c.h.b16 %v4336
  %v5400 = vunpack.c.l.b16 %v4337
  %v5401 = vunpack.c.h.b16 %v4337
  %v5402 = vunpack.c.l.b16 %v4338
  %v5403 = vunpack.c.h.b16 %v4338
  %v5404 = vunpack.c.l.b16 %v4339
  %v5405 = vunpack.c.h.b16 %v4339
  %v5406 = vunpack.c.l.b16 %v4340
  %v5407 = vunpack.c.h.b16 %v4340
  %v5408 = vunpack.c.l.b16 %v4341
  %v5409 = vunpack.c.h.b16 %v4341
  %v5410 = vunpack.c.l.b16 %v4342
  %v5411 = vunpack.c.h.b16 %v4342
  %v5412 = vunpack.c.l.b16 %v4343
  %v5413 = vunpack.c.h.b16 %v4343
  %v5414 = vunpack.c.l.b16 %v4344
  %v5415 = vunpack.c.h.b16 %v4344
  %v5416 = vunpack.c.l.b16 %v4345
  %v5417 = vunpack.c.h.b16 %v4345
  %v5418 = vunpack.c.l.b16 %v4346
  %v5419 = vunpack.c.h.b16 %v4346
  %v5420 = vunpack.c.l.b16 %v4347
  %v5421 = vunpack.c.h.b16 %v4347
  %v5422 = vunpack.c.l.b16 %v4348
  %v5423 = vunpack.c.h.b16 %v4348
  %v5424 = vunpack.c.l.b16 %v4349
  %v5425 = vunpack.c.h.b16 %v4349
  %v5426 = vunpack.c.l.b16 %v4350
  %v5427 = vunpack.c.h.b16 %v4350
  %v5428 = vunpack.c.l.b16 %v4351
  %v5429 = vunpack.c.h.b16 %v4351
  %v5430 = vunpack.c.l.b16 %v4352
  %v5431 = vunpack.c.h.b16 %v4352
  %v5432 = vunpack.c.l.b16 %v4353
  %v5433 = vunpack.c.h.b16 %v4353
  %v5434 = vunpack.c.l.b16 %v4354
  %v5435 = vunpack.c.h.b16 %v4354
  %v5436 = vunpack.c.l.b16 %v4355
  %v5437 = vunpack.c.h.b16 %v4355
  %v5438 = vunpack.c.l.b16 %v4356
  %v5439 = vunpack.c.h.b16 %v4356
  %v5440 = vunpack.c.l.b16 %v4357
  %v5441 = vunpack.c.h.b16 %v4357
  %v5442 = vunpack.c.l.b16 %v4358
  %v5443 = vunpack.c.h.b16 %v4358
  %v5444 = vunpack.c.l.b16 %v4359
  %v5445 = vunpack.c.h.b16 %v4359
  %v5446 = vunpack.c.l.b16 %v4360
  %v5447 = vunpack.c.h.b16 %v4360
  %v5448 = vunpack.c.l.b16 %v4361
  %v5449 = vunpack.c.h.b16 %v4361
  %v5450 = vunpack.c.l.b16 %v4362
  %v5451 = vunpack.c.h.b16 %v4362
  %v5452 = vunpack.c.l.b16 %v4363
  %v5453 = vunpack.c.h.b16 %v4363
  %v5454 = vunpack.c.l.b16 %v4364
  %v5455 = vunpack.c.h.b16 %v4364
  %v5456 = vunpack.c.l.b16 %v4365
  %v5457 = vunpack.c.h.b16 %v4365
  %v5458 = vunpack.c.l.b16 %v4366
  %v5459 = vunpack.c.h.b16 %v4366
  %v5460 = vunpack.c.l.b16 %v4367
  %v5461 = vunpack.c.h.b16 %v4367
  %v5462 = vunpack.c.l.b16 %v4368
  %v5463 = vunpack.c.h.b16 %v4368
  %v5464 = vunpack.c.l.b16 %v4369
  %v5465 = vunpack.c.h.b16 %v4369
  %v5466 = vunpack.c.l.b16 %v4370
  %v5467 = vunpack.c.h.b16 %v4370
  %v5468 = vunpack.c.l.b16 %v4371
  %v5469 = vunpack.c.h.b16 %v4371
  %v5470 = vunpack.c.l.b16 %v4372
  %v5471 = vunpack.c.h.b16 %v4372
  %v5472 = vunpack.c.l.b16 %v4373
  %v5473 = vunpack.c.h.b16 %v4373
  %v5474 = vunpack.c.l.b16 %v4374
  %v5475 = vunpack.c.h.b16 %v4374
  %v5476 = vunpack.c.l.b16 %v4375
  %v5477 = vunpack.c.h.b16 %v4375
  %v5478 = vunpack.c.l.b16 %v4376
  %v5479 = vunpack.c.h.b16 %v4376
  %v5480 = vunpack.c.l.b16 %v4377
  %v5481 = vunpack.c.h.b16 %v4377
  %v5482 = vunpack.c.l.b16 %v4378
  %v5483 = vunpack.c.h.b16 %v4378
  %v5484 = vunpack.c.l.b16 %v4379
  %v5485 = vunpack.c.h.b16 %v4379
  %v5486 = vunpack.c.l.b16 %v4380
  %v5487 = vunpack.c.h.b16 %v4380
  %v5488 = vunpack.c.l.b16 %v4381
  %v5489 = vunpack.c.h.b16 %v4381
  %v5490 = vunpack.c.l.b16 %v4382
  %v5491 = vunpack.c.h.b16 %v4382
  %v5492 = vunpack.c.l.b16 %v4383
  %v5493 = vunpack.c.h.b16 %v4383
  %v5494 = vunpack.c.l.b16 %v4384
  %v5495 = vunpack.c.h.b16 %v4384
  %v5496 = vunpack.c.l.b16 %v4385
  %v5497 = vunpack.c.h.b16 %v4385
  %v5498 = vunpack.c.l.b16 %v4386
  %v5499 = vunpack.c.h.b16 %v4386
  %v5500 = vunpack.c.l.b16 %v4387
  %v5501 = vunpack.c.h.b16 %v4387
  %v5502 = vunpack.c.l.b16 %v4388
  %v5503 = vunpack.c.h.b16 %v4388
  %v5504 = vunpack.c.l.b16 %v4389
  %v5505 = vunpack.c.h.b16 %v4389
  %v5506 = vunpack.c.l.b16 %v4390
  %v5507 = vunpack.c.h.b16 %v4390
  %v5508 = vunpack.c.l.b16 %v4391
  %v5509 = vunpack.c.h.b16 %v4391
  %v5510 = vunpack.c.l.b16 %v4392
  %v5511 = vunpack.c.h.b16 %v4392
  %v5512 = vunpack.c.l.b16 %v4393
  %v5513 = vunpack.c.h.b16 %v4393
  %v5514 = vunpack.c.l.b16 %v4394
  %v5515 = vunpack.c.h.b16 %v4394
  %v5516 = vunpack.c.l.b16 %v4395
  %v5517 = vunpack.c.h.b16 %v4395
  %v5518 = vunpack.c.l.b16 %v4396
  %v5519 = vunpack.c.h.b16 %v4396
  %v5520 = vunpack.c.l.b16 %v4397
  %v5521 = vunpack.c.h.b16 %v4397
  %v5522 = vunpack.c.l.b16 %v4398
  %v5523 = vunpack.c.h.b16 %v4398
  %v5524 = vunpack.c.l.b16 %v4399
  %v5525 = vunpack.c.h.b16 %v4399
  %v5526 = vunpack.c.l.b16 %v4400
  %v5527 = vunpack.c.h.b16 %v4400
  %v5528 = vunpack.c.l.b16 %v4401
  %v5529 = vunpack.c.h.b16 %v4401
  %v5530 = vunpack.c.l.b16 %v4402
  %v5531 = vunpack.c.h.b16 %v4402
  %v5532 = vunpack.c.l.b16 %v4403
  %v5533 = vunpack.c.h.b16 %v4403
  %v5534 = vunpack.c.l.b16 %v4404
  %v5535 = vunpack.c.h.b16 %v4404
  %v5536 = vunpack.c.l.b16 %v4405
  %v5537 = vunpack.c.h.b16 %v4405
  %v5538 = vunpack.c.l.b16 %v4406
  %v5539 = vunpack.c.h.b16 %v4406
  %v5540 = vunpack.c.l.b16 %v4407
  %v5541 = vunpack.c.h.b16 %v4407
  %v5542 = vunpack.c.l.b16 %v4408
  %v5543 = vunpack.c.h.b16 %v4408
  %v5544 = vunpack.c.l.b16 %v4409
  %v5545 = vunpack.c.h.b16 %v4409
  %v5546 = vunpack.c.l.b16 %v4410
  %v5547 = vunpack.c.h.b16 %v4410
  %v5548 = vunpack.c.l.b16 %v4411
  %v5549 = vunpack.c.h.b16 %v4411
  %v5550 = vunpack.c.l.b16 %v4412
  %v5551 = vunpack.c.h.b16 %v4412
  %v5552 = vunpack.c.l.b16 %v4413
  %v5553 = vunpack.c.h.b16 %v4413
  %v5554 = vunpack.c.l.b16 %v4414
  %v5555 = vunpack.c.h.b16 %v4414
  %v5556 = vunpack.c.l.b16 %v4415
  %v5557 = vunpack.c.h.b16 %v4415
  %v5558 = vunpack.c.l.b16 %v4416
  %v5559 = vunpack.c.h.b16 %v4416
  %v5560 = vunpack.c.l.b16 %v4417
  %v5561 = vunpack.c.h.b16 %v4417
  %v5562 = vunpack.c.l.b16 %v4418
  %v5563 = vunpack.c.h.b16 %v4418
  %v5564 = vunpack.c.l.b16 %v4419
  %v5565 = vunpack.c.h.b16 %v4419
  %v5566 = vunpack.c.l.b16 %v4420
  %v5567 = vunpack.c.h.b16 %v4420
  %v5568 = vunpack.c.l.b16 %v4421
  %v5569 = vunpack.c.h.b16 %v4421
  %v5570 = vunpack.c.l.b16 %v4422
  %v5571 = vunpack.c.h.b16 %v4422
  %v5572 = vunpack.c.l.b16 %v4423
  %v5573 = vunpack.c.h.b16 %v4423
  %v5574 = vunpack.c.l.b16 %v4424
  %v5575 = vunpack.c.h.b16 %v4424
  %v5576 = vunpack.c.l.b16 %v4425
  %v5577 = vunpack.c.h.b16 %v4425
  %v5578 = vunpack.c.l.b16 %v4426
  %v5579 = vunpack.c.h.b16 %v4426
  %v5580 = vunpack.c.l.b16 %v4427
  %v5581 = vunpack.c.h.b16 %v4427
  %v5582 = vunpack.c.l.b16 %v4428
  %v5583 = vunpack.c.h.b16 %v4428
  %v5584 = vunpack.c.l.b16 %v4429
  %v5585 = vunpack.c.h.b16 %v4429
  %v5586 = vunpack.c.l.b16 %v4430
  %v5587 = vunpack.c.h.b16 %v4430
  %v5588 = vunpack.c.l.b16 %v4431
  %v5589 = vunpack.c.h.b16 %v4431
  %v5590 = vunpack.c.l.b16 %v4432
  %v5591 = vunpack.c.h.b16 %v4432
  %v5592 = vunpack.c.l.b16 %v4433
  %v5593 = vunpack.c.h.b16 %v4433
  %v5594 = vunpack.c.l.b16 %v4434
  %v5595 = vunpack.c.h.b16 %v4434
  %v5596 = vunpack.c.l.b16 %v4435
  %v5597 = vunpack.c.h.b16 %v4435
  %v5598 = vunpack.c.l.b16 %v4436
  %v5599 = vunpack.c.h.b16 %v4436
  %v5600 = vunpack.c.l.b16 %v4437
  %v5601 = vunpack.c.h.b16 %v4437
  %v5602 = vunpack.c.l.b16 %v4438
  %v5603 = vunpack.c.h.b16 %v4438
  %v5604 = vunpack.c.l.b16 %v4439
  %v5605 = vunpack.c.h.b16 %v4439
  %v5606 = vunpack.c.l.b16 %v4440
  %v5607 = vunpack.c.h.b16 %v4440
  %v5608 = vunpack.c.l.b16 %v4441
  %v5609 = vunpack.c.h.b16 %v4441
  %v5610 = vunpack.c.l.b16 %v4442
  %v5611 = vunpack.c.h.b16 %v4442
  %v5612 = vunpack.c.l.b16 %v4443
  %v5613 = vunpack.c.h.b16 %v4443
  %v5614 = vunpack.c.l.b16 %v4444
  %v5615 = vunpack.c.h.b16 %v4444
  %v5616 = vunpack.c.l.b16 %v4445
  %v5617 = vunpack.c.h.b16 %v4445
  %v5618 = vunpack.c.l.b16 %v4446
  %v5619 = vunpack.c.h.b16 %v4446
  %v5620 = vunpack.c.l.b16 %v4447
  %v5621 = vunpack.c.h.b16 %v4447
  %v5622 = vunpack.c.l.b16 %v4448
  %v5623 = vunpack.c.h.b16 %v4448
  %v5624 = vunpack.c.l.b16 %v4449
  %v5625 = vunpack.c.h.b16 %v4449
  %v5626 = vunpack.c.l.b16 %v4450
  %v5627 = vunpack.c.h.b16 %v4450
  %v5628 = vunpack.c.l.b16 %v4451
  %v5629 = vunpack.c.h.b16 %v4451
  %v5630 = vunpack.c.l.b16 %v4452
  %v5631 = vunpack.c.h.b16 %v4452
  %v5632 = vunpack.c.l.b16 %v4453
  %v5633 = vunpack.c.h.b16 %v4453
  %v5634 = vunpack.c.l.b16 %v4454
  %v5635 = vunpack.c.h.b16 %v4454
  %v5636 = vunpack.c.l.b16 %v4455
  %v5637 = vunpack.c.h.b16 %v4455
  %v5638 = vunpack.c.l.b16 %v4456
  %v5639 = vunpack.c.h.b16 %v4456
  %v5640 = vunpack.c.l.b16 %v4457
  %v5641 = vunpack.c.h.b16 %v4457
  %v5642 = vunpack.c.l.b16 %v4458
  %v5643 = vunpack.c.h.b16 %v4458
  %v5644 = vunpack.c.l.b16 %v4459
  %v5645 = vunpack.c.h.b16 %v4459
  %v5646 = vunpack.c.l.b16 %v4460
  %v5647 = vunpack.c.h.b16 %v4460
  %v5648 = vunpack.c.l.b16 %v4461
  %v5649 = vunpack.c.h.b16 %v4461
  %v5650 = vunpack.c.l.b16 %v4462
  %v5651 = vunpack.c.h.b16 %v4462
  %v5652 = vunpack.c.l.b16 %v4463
  %v5653 = vunpack.c.h.b16 %v4463
  %v5654 = vunpack.c.l.b16 %v4464
  %v5655 = vunpack.c.h.b16 %v4464
  %v5656 = vunpack.c.l.b16 %v4465
  %v5657 = vunpack.c.h.b16 %v4465
  %v5658 = vunpack.c.l.b16 %v4466
  %v5659 = vunpack.c.h.b16 %v4466
  %v5660 = vunpack.c.l.b16 %v4467
  %v5661 = vunpack.c.h.b16 %v4467
  %v5662 = vunpack.c.l.b16 %v4468
  %v5663 = vunpack.c.h.b16 %v4468
  %v5664 = vunpack.c.l.b16 %v4469
  %v5665 = vunpack.c.h.b16 %v4469
  %v5666 = vunpack.c.l.b16 %v4470
  %v5667 = vunpack.c.h.b16 %v4470
  %v5668 = vunpack.c.l.b16 %v4471
  %v5669 = vunpack.c.h.b16 %v4471
  %v5670 = vunpack.c.l.b16 %v4472
  %v5671 = vunpack.c.h.b16 %v4472
  %v5672 = vunpack.c.l.b16 %v4473
  %v5673 = vunpack.c.h.b16 %v4473
  %v5674 = vunpack.c.l.b16 %v4474
  %v5675 = vunpack.c.h.b16 %v4474
  %v5676 = vunpack.c.l.b16 %v4475
  %v5677 = vunpack.c.h.b16 %v4475
  %v5678 = vunpack.c.l.b16 %v4476
  %v5679 = vunpack.c.h.b16 %v4476
  %v5680 = vunpack.c.l.b16 %v4477
  %v5681 = vunpack.c.h.b16 %v4477
  %v5682 = vunpack.c.l.b16 %v4478
  %v5683 = vunpack.c.h.b16 %v4478
  %v5684 = vunpack.c.l.b16 %v4479
  %v5685 = vunpack.c.h.b16 %v4479
  %v5686 = vunpack.c.l.b16 %v4480
  %v5687 = vunpack.c.h.b16 %v4480
  %v5688 = vunpack.c.l.b16 %v4481
  %v5689 = vunpack.c.h.b16 %v4481
  %v5690 = vunpack.c.l.b16 %v4482
  %v5691 = vunpack.c.h.b16 %v4482
  %v5692 = vunpack.c.l.b16 %v4483
  %v5693 = vunpack.c.h.b16 %v4483
  %v5694 = vunpack.c.l.b16 %v4484
  %v5695 = vunpack.c.h.b16 %v4484
  %v5696 = vunpack.c.l.b16 %v4485
  %v5697 = vunpack.c.h.b16 %v4485
  %v5698 = vunpack.c.l.b16 %v4486
  %v5699 = vunpack.c.h.b16 %v4486
  %v5700 = vunpack.c.l.b16 %v4487
  %v5701 = vunpack.c.h.b16 %v4487
  %v5702 = vunpack.c.l.b16 %v4488
  %v5703 = vunpack.c.h.b16 %v4488
  %v5704 = vunpack.c.l.b16 %v4489
  %v5705 = vunpack.c.h.b16 %v4489
  %v5706 = vunpack.c.l.b16 %v4490
  %v5707 = vunpack.c.h.b16 %v4490
  %v5708 = vunpack.c.l.b16 %v4491
  %v5709 = vunpack.c.h.b16 %v4491
  %v5710 = vunpack.c.l.b16 %v4492
  %v5711 = vunpack.c.h.b16 %v4492
  %v5712 = vunpack.c.l.b16 %v4493
  %v5713 = vunpack.c.h.b16 %v4493
  %v5714 = vunpack.c.l.b16 %v4494
  %v5715 = vunpack.c.h.b16 %v4494
  %v5716 = vunpack.c.l.b16 %v4495
  %v5717 = vunpack.c.h.b16 %v4495
  %v5718 = vunpack.c.l.b16 %v4496
  %v5719 = vunpack.c.h.b16 %v4496
  %v5720 = vunpack.c.l.b16 %v4497
  %v5721 = vunpack.c.h.b16 %v4497
  %v5722 = vunpack.c.l.b16 %v4498
  %v5723 = vunpack.c.h.b16 %v4498
  %v5724 = vunpack.c.l.b16 %v4499
  %v5725 = vunpack.c.h.b16 %v4499
  %v5726 = vunpack.c.l.b16 %v4500
  %v5727 = vunpack.c.h.b16 %v4500
  %v5728 = vunpack.c.l.b16 %v4501
  %v5729 = vunpack.c.h.b16 %v4501
  %v5730 = vunpack.c.l.b16 %v4502
  %v5731 = vunpack.c.h.b16 %v4502
  %v5732 = vunpack.c.l.b16 %v4503
  %v5733 = vunpack.c.h.b16 %v4503
  %v5734 = vunpack.c.l.b16 %v4504
  %v5735 = vunpack.c.h.b16 %v4504
  %v5736 = vunpack.c.l.b16 %v4505
  %v5737 = vunpack.c.h.b16 %v4505
  %v5738 = vunpack.c.l.b16 %v4506
  %v5739 = vunpack.c.h.b16 %v4506
  %v5740 = vunpack.c.l.b16 %v4507
  %v5741 = vunpack.c.h.b16 %v4507
  %v5742 = vunpack.c.l.b16 %v4508
  %v5743 = vunpack.c.h.b16 %v4508
  %v5744 = vunpack.c.l.b16 %v4509
  %v5745 = vunpack.c.h.b16 %v4509
  %v5746 = vunpack.c.l.b16 %v4510
  %v5747 = vunpack.c.h.b16 %v4510
  %v5748 = vunpack.c.l.b16 %v4511
  %v5749 = vunpack.c.h.b16 %v4511
  %v5750 = vunpack.c.l.b16 %v4512
  %v5751 = vunpack.c.h.b16 %v4512
  %v5752 = vunpack.c.l.b16 %v4513
  %v5753 = vunpack.c.h.b16 %v4513
  %v5754 = vunpack.c.l.b16 %v4514
  %v5755 = vunpack.c.h.b16 %v4514
  %v5756 = vunpack.c.l.b16 %v4515
  %v5757 = vunpack.c.h.b16 %v4515
  %v5758 = vunpack.c.l.b16 %v4516
  %v5759 = vunpack.c.h.b16 %v4516
  %v5760 = vunpack.c.l.b16 %v4517
  %v5761 = vunpack.c.h.b16 %v4517
  %v5762 = vunpack.c.l.b16 %v4518
  %v5763 = vunpack.c.h.b16 %v4518
  %v5764 = vunpack.c.l.b16 %v4519
  %v5765 = vunpack.c.h.b16 %v4519
  %v5766 = vunpack.c.l.b16 %v4520
  %v5767 = vunpack.c.h.b16 %v4520
  %v5768 = vunpack.c.l.b16 %v4521
  %v5769 = vunpack.c.h.b16 %v4521
  %v5770 = vunpack.c.l.b16 %v4522
  %v5771 = vunpack.c.h.b16 %v4522
  %v5772 = vunpack.c.l.b16 %v4523
  %v5773 = vunpack.c.h.b16 %v4523
  %v5774 = vunpack.c.l.b16 %v4524
  %v5775 = vunpack.c.h.b16 %v4524
  %v5776 = vunpack.c.l.b16 %v4525
  %v5777 = vunpack.c.h.b16 %v4525
  %v5778 = vunpack.c.l.b16 %v4526
  %v5779 = vunpack.c.h.b16 %v4526
  %v5780 = vunpack.c.l.b16 %v4527
  %v5781 = vunpack.c.h.b16 %v4527
  %v5782 = vunpack.c.l.b16 %v4528
  %v5783 = vunpack.c.h.b16 %v4528
  %v5784 = vunpack.c.l.b16 %v4529
  %v5785 = vunpack.c.h.b16 %v4529
  %v5786 = vunpack.c.l.b16 %v4530
  %v5787 = vunpack.c.h.b16 %v4530
  %v5788 = vunpack.c.l.b16 %v4531
  %v5789 = vunpack.c.h.b16 %v4531
  %v5790 = vunpack.c.l.b16 %v4532
  %v5791 = vunpack.c.h.b16 %v4532
  %v5792 = vunpack.c.l.b16 %v4533
  %v5793 = vunpack.c.h.b16 %v4533
  %v5794 = vunpack.c.l.b16 %v4534
  %v5795 = vunpack.c.h.b16 %v4534
  %v5796 = vunpack.c.l.b16 %v4535
  %v5797 = vunpack.c.h.b16 %v4535
  %v5798 = vunpack.c.l.b16 %v4536
  %v5799 = vunpack.c.h.b16 %v4536
  %v5800 = vunpack.c.l.b16 %v4537
  %v5801 = vunpack.c.h.b16 %v4537
  %v5802 = vunpack.c.l.b16 %v4538
  %v5803 = vunpack.c.h.b16 %v4538
  %v5804 = vunpack.c.l.b16 %v4539
  %v5805 = vunpack.c.h.b16 %v4539
  %v5806 = vunpack.c.l.b16 %v4540
  %v5807 = vunpack.c.h.b16 %v4540
  %v5808 = vunpack.c.l.b16 %v4541
  %v5809 = vunpack.c.h.b16 %v4541
  %v5810 = vunpack.c.l.b16 %v4542
  %v5811 = vunpack.c.h.b16 %v4542
  %v5812 = vunpack.c.l.b16 %v4543
  %v5813 = vunpack.c.h.b16 %v4543
  %v5814 = vunpack.c.l.b16 %v4544
  %v5815 = vunpack.c.h.b16 %v4544
  %v5816 = vunpack.c.l.b16 %v4545
  %v5817 = vunpack.c.h.b16 %v4545
  %v5818 = vunpack.c.l.b16 %v4546
  %v5819 = vunpack.c.h.b16 %v4546
  %v5820 = vunpack.c.l.b16 %v4547
  %v5821 = vunpack.c.h.b16 %v4547
  %v5822 = vunpack.c.l.b16 %v4548
  %v5823 = vunpack.c.h.b16 %v4548
  %v5824 = vunpack.c.l.b16 %v4549
  %v5825 = vunpack.c.h.b16 %v4549
  %v5826 = vunpack.c.l.b16 %v4550
  %v5827 = vunpack.c.h.b16 %v4550
  %v5828 = vunpack.c.l.b16 %v4551
  %v5829 = vunpack.c.h.b16 %v4551
  %v5830 = vunpack.c.l.b16 %v4552
  %v5831 = vunpack.c.h.b16 %v4552
  %v5832 = vunpack.c.l.b16 %v4553
  %v5833 = vunpack.c.h.b16 %v4553
  %v5834 = vunpack.c.l.b16 %v4554
  %v5835 = vunpack.c.h.b16 %v4554
  %v5836 = vunpack.c.l.b16 %v4555
  %v5837 = vunpack.c.h.b16 %v4555
  %v5838 = vunpack.c.l.b16 %v4556
  %v5839 = vunpack.c.h.b16 %v4556
  %v5840 = vunpack.c.l.b16 %v4557
  %v5841 = vunpack.c.h.b16 %v4557
  %v5842 = vunpack.c.l.b16 %v4558
  %v5843 = vunpack.c.h.b16 %v4558
  %v5844 = vunpack.c.l.b16 %v4559
  %v5845 = vunpack.c.h.b16 %v4559
  %v5846 = vunpack.c.l.b16 %v4560
  %v5847 = vunpack.c.h.b16 %v4560
  %v5848 = vunpack.c.l.b16 %v4561
  %v5849 = vunpack.c.h.b16 %v4561
  %v5850 = vunpack.c.l.b16 %v4562
  %v5851 = vunpack.c.h.b16 %v4562
  %v5852 = vunpack.c.l.b16 %v4563
  %v5853 = vunpack.c.h.b16 %v4563
  %v5854 = vunpack.c.l.b16 %v4564
  %v5855 = vunpack.c.h.b16 %v4564
  %v5856 = vunpack.c.l.b16 %v4565
  %v5857 = vunpack.c.h.b16 %v4565
  %v5858 = vunpack.c.l.b16 %v4566
  %v5859 = vunpack.c.h.b16 %v4566
  %v5860 = vunpack.c.l.b16 %v4567
  %v5861 = vunpack.c.h.b16 %v4567
  %v5862 = vunpack.c.l.b16 %v4568
  %v5863 = vunpack.c.h.b16 %v4568
  %v5864 = vunpack.c.l.b16 %v4569
  %v5865 = vunpack.c.h.b16 %v4569
  %v5866 = vunpack.c.l.b16 %v4570
  %v5867 = vunpack.c.h.b16 %v4570
  %v5868 = vunpack.c.l.b16 %v4571
  %v5869 = vunpack.c.h.b16 %v4571
  %v5870 = vunpack.c.l.b16 %v4572
  %v5871 = vunpack.c.h.b16 %v4572
  %v5872 = vunpack.c.l.b16 %v4573
  %v5873 = vunpack.c.h.b16 %v4573
  %v5874 = vunpack.c.l.b16 %v4574
  %v5875 = vunpack.c.h.b16 %v4574
  %v5876 = vunpack.c.l.b16 %v4575
  %v5877 = vunpack.c.h.b16 %v4575
  %v5878 = vunpack.c.l.b16 %v4576
  %v5879 = vunpack.c.h.b16 %v4576
  %v5880 = vunpack.c.l.b16 %v4577
  %v5881 = vunpack.c.h.b16 %v4577
  %v5882 = vunpack.c.l.b16 %v4578
  %v5883 = vunpack.c.h.b16 %v4578
  %v5884 = vunpack.c.l.b16 %v4579
  %v5885 = vunpack.c.h.b16 %v4579
  %v5886 = vunpack.c.l.b16 %v4580
  %v5887 = vunpack.c.h.b16 %v4580
  %v5888 = vunpack.c.l.b16 %v4581
  %v5889 = vunpack.c.h.b16 %v4581
  %v5890 = vunpack.c.l.b16 %v4582
  %v5891 = vunpack.c.h.b16 %v4582
  %v5892 = vunpack.c.l.b16 %v4583
  %v5893 = vunpack.c.h.b16 %v4583
  %v5894 = vunpack.c.l.b16 %v4584
  %v5895 = vunpack.c.h.b16 %v4584
  %v5896 = vunpack.c.l.b16 %v4585
  %v5897 = vunpack.c.h.b16 %v4585
  %v5898 = vunpack.c.l.b16 %v4586
  %v5899 = vunpack.c.h.b16 %v4586
  %v5900 = vunpack.c.l.b16 %v4587
  %v5901 = vunpack.c.h.b16 %v4587
  %v5902 = vunpack.c.l.b16 %v4588
  %v5903 = vunpack.c.h.b16 %v4588
  %v5904 = vunpack.c.l.b16 %v4589
  %v5905 = vunpack.c.h.b16 %v4589
  %v5906 = vunpack.c.l.b16 %v4590
  %v5907 = vunpack.c.h.b16 %v4590
  %v5908 = vunpack.c.l.b16 %v4591
  %v5909 = vunpack.c.h.b16 %v4591
  %v5910 = vunpack.c.l.b16 %v4592
  %v5911 = vunpack.c.h.b16 %v4592
  %v5912 = vunpack.c.l.b16 %v4593
  %v5913 = vunpack.c.h.b16 %v4593
  %v5914 = vunpack.c.l.b16 %v4594
  %v5915 = vunpack.c.h.b16 %v4594
  %v5916 = vunpack.c.l.b16 %v4595
  %v5917 = vunpack.c.h.b16 %v4595
  %v5918 = vunpack.c.l.b16 %v4596
  %v5919 = vunpack.c.h.b16 %v4596
  %v5920 = vunpack.c.l.b16 %v4597
  %v5921 = vunpack.c.h.b16 %v4597
  %v5922 = vunpack.c.l.b16 %v4598
  %v5923 = vunpack.c.h.b16 %v4598
  %v5924 = vunpack.c.l.b16 %v4599
  %v5925 = vunpack.c.h.b16 %v4599
  %v5926 = vunpack.c.l.b16 %v4600
  %v5927 = vunpack.c.h.b16 %v4600
  %v5928 = vunpack.c.l.b16 %v4601
  %v5929 = vunpack.c.h.b16 %v4601
  %v5930 = vunpack.c.l.b16 %v4602
  %v5931 = vunpack.c.h.b16 %v4602
  %v5932 = vunpack.c.l.b16 %v4603
  %v5933 = vunpack.c.h.b16 %v4603
  %v5934 = vunpack.c.l.b16 %v4604
  %v5935 = vunpack.c.h.b16 %v4604
  %v5936 = vunpack.c.l.b16 %v4605
  %v5937 = vunpack.c.h.b16 %v4605
  %v5938 = vunpack.c.l.b16 %v4606
  %v5939 = vunpack.c.h.b16 %v4606
  %v5940 = vunpack.c.l.b16 %v4607
  %v5941 = vunpack.c.h.b16 %v4607
  %v5942 = vunpack.c.l.b16 %v4608
  %v5943 = vunpack.c.h.b16 %v4608
  %v5944 = vunpack.c.l.b16 %v4609
  %v5945 = vunpack.c.h.b16 %v4609
  %v5946 = vunpack.c.l.b16 %v4610
  %v5947 = vunpack.c.h.b16 %v4610
  %v5948 = vunpack.c.l.b16 %v4611
  %v5949 = vunpack.c.h.b16 %v4611
  %v5950 = vunpack.c.l.b16 %v4612
  %v5951 = vunpack.c.h.b16 %v4612
  %v5952 = vunpack.c.l.b16 %v4613
  %v5953 = vunpack.c.h.b16 %v4613
  %v5954 = vunpack.c.l.b16 %v4614
  %v5955 = vunpack.c.h.b16 %v4614
  %v5956 = vunpack.c.l.b16 %v4615
  %v5957 = vunpack.c.h.b16 %v4615
  %v5958 = vunpack.c.l.b16 %v4616
  %v5959 = vunpack.c.h.b16 %v4616
  %v5960 = vunpack.c.l.b16 %v4617
  %v5961 = vunpack.c.h.b16 %v4617
  %v5962 = vunpack.c.l.b16 %v4618
  %v5963 = vunpack.c.h.b16 %v4618
  %v5964 = vunpack.c.l.b16 %v4619
  %v5965 = vunpack.c.h.b16 %v4619
  %v5966 = vunpack.c.l.b16 %v4620
  %v5967 = vunpack.c.h.b16 %v4620
  %v5968 = vunpack.c.l.b16 %v4621
  %v5969 = vunpack.c.h.b16 %v4621
  %v5970 = vunpack.c.l.b16 %v4622
  %v5971 = vunpack.c.h.b16 %v4622
  %v5972 = vunpack.c.l.b16 %v4623
  %v5973 = vunpack.c.h.b16 %v4623
  %v5974 = vunpack.c.l.b16 %v4624
  %v5975 = vunpack.c.h.b16 %v4624
  %v5976 = vunpack.c.l.b16 %v4625
  %v5977 = vunpack.c.h.b16 %v4625
  %v5978 = vunpack.c.l.b16 %v4626
  %v5979 = vunpack.c.h.b16 %v4626
  %v5980 = vunpack.c.l.b16 %v4627
  %v5981 = vunpack.c.h.b16 %v4627
  %v5982 = vunpack.c.l.b16 %v4628
  %v5983 = vunpack.c.h.b16 %v4628
  %v5984 = vunpack.c.l.b16 %v4629
  %v5985 = vunpack.c.h.b16 %v4629
  %v5986 = vunpack.c.l.b16 %v4630
  %v5987 = vunpack.c.h.b16 %v4630
  %v5988 = vunpack.c.l.b16 %v4631
  %v5989 = vunpack.c.h.b16 %v4631
  %v5990 = vunpack.c.l.b16 %v4632
  %v5991 = vunpack.c.h.b16 %v4632
  %v5992 = vunpack.c.l.b16 %v4633
  %v5993 = vunpack.c.h.b16 %v4633
  %v5994 = vunpack.c.l.b16 %v4634
  %v5995 = vunpack.c.h.b16 %v4634
  %v5996 = vunpack.c.l.b16 %v4635
  %v5997 = vunpack.c.h.b16 %v4635
  %v5998 = vunpack.c.l.b16 %v4636
  %v5999 = vunpack.c.h.b16 %v4636
  %v6000 = vunpack.c.l.b16 %v4637
  %v6001 = vunpack.c.h.b16 %v4637
  %v6002 = vunpack.c.l.b16 %v4638
  %v6003 = vunpack.c.h.b16 %v4638
  %v6004 = vunpack.c.l.b16 %v4639
  %v6005 = vunpack.c.h.b16 %v4639
  %v6006 = vunpack.c.l.b16 %v4640
  %v6007 = vunpack.c.h.b16 %v4640
  %v6008 = vunpack.c.l.b16 %v4641
  %v6009 = vunpack.c.h.b16 %v4641
  %v6010 = vpack.c.b16 %v5106, %v5098
  %v6011 = vpack.c.b16 %v5107, %v5099
  %v6012 = vpack.c.b16 %v5108, %v5100
  %v6013 = vpack.c.b16 %v5109, %v5101
  %v6014 = vpack.c.b16 %v5110, %v5102
  %v6015 = vpack.c.b16 %v5111, %v5103
  %v6016 = vpack.c.b16 %v5112, %v5104
  %v6017 = vpack.c.b16 %v5113, %v5105
  %v6018 = vpack.c.b16 %v5122, %v5114
  %v6019 = vpack.c.b16 %v5123, %v5115
  %v6020 = vpack.c.b16 %v5124, %v5116
  %v6021 = vpack.c.b16 %v5125, %v5117
  %v6022 = vpack.c.b16 %v5126, %v5118
  %v6023 = vpack.c.b16 %v5127, %v5119
  %v6024 = vpack.c.b16 %v5128, %v5120
  %v6025 = vpack.c.b16 %v5129, %v5121
  %v6026 = vpack.c.b16 %v5138, %v5130
  %v6027 = vpack.c.b16 %v5139, %v5131
  %v6028 = vpack.c.b16 %v5140, %v5132
  %v6029 = vpack.c.b16 %v5141, %v5133
  %v6030 = vpack.c.b16 %v5142, %v5134
  %v6031 = vpack.c.b16 %v5143, %v5135
  %v6032 = vpack.c.b16 %v5144, %v5136
  %v6033 = vpack.c.b16 %v5145, %v5137
  %v6034 = vpack.c.b16 %v5154, %v5146
  %v6035 = vpack.c.b16 %v5155, %v5147
  %v6036 = vpack.c.b16 %v5156, %v5148
  %v6037 = vpack.c.b16 %v5157, %v5149
  %v6038 = vpack.c.b16 %v5158, %v5150
  %v6039 = vpack.c.b16 %v5159, %v5151
  %v6040 = vpack.c.b16 %v5160, %v5152
  %v6041 = vpack.c.b16 %v5161, %v5153
  %v6042 = vpack.c.b16 %v5170, %v5162
  %v6043 = vpack.c.b16 %v5171, %v5163
  %v6044 = vpack.c.b16 %v5172, %v5164
  %v6045 = vpack.c.b16 %v5173, %v5165
  %v6046 = vpack.c.b16 %v5174, %v5166
  %v6047 = vpack.c.b16 %v5175, %v5167
  %v6048 = vpack.c.b16 %v5176, %v5168
  %v6049 = vpack.c.b16 %v5177, %v5169
  %v6050 = vpack.c.b16 %v5186, %v5178
  %v6051 = vpack.c.b16 %v5187, %v5179
  %v6052 = vpack.c.b16 %v5188, %v5180
  %v6053 = vpack.c.b16 %v5189, %v5181
  %v6054 = vpack.c.b16 %v5190, %v5182
  %v6055 = vpack.c.b16 %v5191, %v5183
  %v6056 = vpack.c.b16 %v5192, %v5184
  %v6057 = vpack.c.b16 %v5193, %v5185
  %v6058 = vpack.c.b16 %v5202, %v5194
  %v6059 = vpack.c.b16 %v5203, %v5195
  %v6060 = vpack.c.b16 %v5204, %v5196
  %v6061 = vpack.c.b16 %v5205, %v5197
  %v6062 = vpack.c.b16 %v5206, %v5198
  %v6063 = vpack.c.b16 %v5207, %v5199
  %v6064 = vpack.c.b16 %v5208, %v5200
  %v6065 = vpack.c.b16 %v5209, %v5201
  %v6066 = vpack.c.b16 %v5218, %v5210
  %v6067 = vpack.c.b16 %v5219, %v5211
  %v6068 = vpack.c.b16 %v5220, %v5212
  %v6069 = vpack.c.b16 %v5221, %v5213
  %v6070 = vpack.c.b16 %v5222, %v5214
  %v6071 = vpack.c.b16 %v5223, %v5215
  %v6072 = vpack.c.b16 %v5224, %v5216
  %v6073 = vpack.c.b16 %v5225, %v5217
  %v6074 = vpack.c.b16 %v5234, %v5226
  %v6075 = vpack.c.b16 %v5235, %v5227
  %v6076 = vpack.c.b16 %v5236, %v5228
  %v6077 = vpack.c.b16 %v5237, %v5229
  %v6078 = vpack.c.b16 %v5238, %v5230
  %v6079 = vpack.c.b16 %v5239, %v5231
  %v6080 = vpack.c.b16 %v5240, %v5232
  %v6081 = vpack.c.b16 %v5241, %v5233
  %v6082 = vpack.c.b16 %v5250, %v5242
  %v6083 = vpack.c.b16 %v5251, %v5243
  %v6084 = vpack.c.b16 %v5252, %v5244
  %v6085 = vpack.c.b16 %v5253, %v5245
  %v6086 = vpack.c.b16 %v5254, %v5246
  %v6087 = vpack.c.b16 %v5255, %v5247
  %v6088 = vpack.c.b16 %v5256, %v5248
  %v6089 = vpack.c.b16 %v5257, %v5249
  %v6090 = vpack.c.b16 %v5266, %v5258
  %v6091 = vpack.c.b16 %v5267, %v5259
  %v6092 = vpack.c.b16 %v5268, %v5260
  %v6093 = vpack.c.b16 %v5269, %v5261
  %v6094 = vpack.c.b16 %v5270, %v5262
  %v6095 = vpack.c.b16 %v5271, %v5263
  %v6096 = vpack.c.b16 %v5272, %v5264
  %v6097 = vpack.c.b16 %v5273, %v5265
  %v6098 = vpack.c.b16 %v5282, %v5274
  %v6099 = vpack.c.b16 %v5283, %v5275
  %v6100 = vpack.c.b16 %v5284, %v5276
  %v6101 = vpack.c.b16 %v5285, %v5277
  %v6102 = vpack.c.b16 %v5286, %v5278
  %v6103 = vpack.c.b16 %v5287, %v5279
  %v6104 = vpack.c.b16 %v5288, %v5280
  %v6105 = vpack.c.b16 %v5289, %v5281
  %v6106 = vpack.c.b16 %v5298, %v5290
  %v6107 = vpack.c.b16 %v5299, %v5291
  %v6108 = vpack.c.b16 %v5300, %v5292
  %v6109 = vpack.c.b16 %v5301, %v5293
  %v6110 = vpack.c.b16 %v5302, %v5294
  %v6111 = vpack.c.b16 %v5303, %v5295
  %v6112 = vpack.c.b16 %v5304, %v5296
  %v6113 = vpack.c.b16 %v5305, %v5297
  %v6114 = vpack.c.b16 %v5314, %v5306
  %v6115 = vpack.c.b16 %v5315, %v5307
  %v6116 = vpack.c.b16 %v5316, %v5308
  %v6117 = vpack.c.b16 %v5317, %v5309
  %v6118 = vpack.c.b16 %v5318, %v5310
  %v6119 = vpack.c.b16 %v5319, %v5311
  %v6120 = vpack.c.b16 %v5320, %v5312
  %v6121 = vpack.c.b16 %v5321, %v5313
  %v6122 = vpack.c.b16 %v5330, %v5322
  %v6123 = vpack.c.b16 %v5331, %v5323
  %v6124 = vpack.c.b16 %v5332, %v5324
  %v6125 = vpack.c.b16 %v5333, %v5325
  %v6126 = vpack.c.b16 %v5334, %v5326
  %v6127 = vpack.c.b16 %v5335, %v5327
  %v6128 = vpack.c.b16 %v5336, %v5328
  %v6129 = vpack.c.b16 %v5337, %v5329
  %v6130 = vpack.c.b16 %v5346, %v5338
  %v6131 = vpack.c.b16 %v5347, %v5339
  %v6132 = vpack.c.b16 %v5348, %v5340
  %v6133 = vpack.c.b16 %v5349, %v5341
  %v6134 = vpack.c.b16 %v5350, %v5342
  %v6135 = vpack.c.b16 %v5351, %v5343
  %v6136 = vpack.c.b16 %v5352, %v5344
  %v6137 = vpack.c.b16 %v5353, %v5345
  %v6138 = vpack.c.b16 %v5362, %v5354
  %v6139 = vpack.c.b16 %v5363, %v5355
  %v6140 = vpack.c.b16 %v5364, %v5356
  %v6141 = vpack.c.b16 %v5365, %v5357
  %v6142 = vpack.c.b16 %v5366, %v5358
  %v6143 = vpack.c.b16 %v5367, %v5359
  %v6144 = vpack.c.b16 %v5368, %v5360
  %v6145 = vpack.c.b16 %v5369, %v5361
  %v6146 = vpack.c.b16 %v5378, %v5370
  %v6147 = vpack.c.b16 %v5379, %v5371
  %v6148 = vpack.c.b16 %v5380, %v5372
  %v6149 = vpack.c.b16 %v5381, %v5373
  %v6150 = vpack.c.b16 %v5382, %v5374
  %v6151 = vpack.c.b16 %v5383, %v5375
  %v6152 = vpack.c.b16 %v5384, %v5376
  %v6153 = vpack.c.b16 %v5385, %v5377
  %v6154 = vpack.c.b16 %v5394, %v5386
  %v6155 = vpack.c.b16 %v5395, %v5387
  %v6156 = vpack.c.b16 %v5396, %v5388
  %v6157 = vpack.c.b16 %v5397, %v5389
  %v6158 = vpack.c.b16 %v5398, %v5390
  %v6159 = vpack.c.b16 %v5399, %v5391
  %v6160 = vpack.c.b16 %v5400, %v5392
  %v6161 = vpack.c.b16 %v5401, %v5393
  %v6162 = vpack.c.b16 %v5410, %v5402
  %v6163 = vpack.c.b16 %v5411, %v5403
  %v6164 = vpack.c.b16 %v5412, %v5404
  %v6165 = vpack.c.b16 %v5413, %v5405
  %v6166 = vpack.c.b16 %v5414, %v5406
  %v6167 = vpack.c.b16 %v5415, %v5407
  %v6168 = vpack.c.b16 %v5416, %v5408
  %v6169 = vpack.c.b16 %v5417, %v5409
  %v6170 = vpack.c.b16 %v5426, %v5418
  %v6171 = vpack.c.b16 %v5427, %v5419
  %v6172 = vpack.c.b16 %v5428, %v5420
  %v6173 = vpack.c.b16 %v5429, %v5421
  %v6174 = vpack.c.b16 %v5430, %v5422
  %v6175 = vpack.c.b16 %v5431, %v5423
  %v6176 = vpack.c.b16 %v5432, %v5424
  %v6177 = vpack.c.b16 %v5433, %v5425
  %v6178 = vpack.c.b16 %v5442, %v5434
  %v6179 = vpack.c.b16 %v5443, %v5435
  %v6180 = vpack.c.b16 %v5444, %v5436
  %v6181 = vpack.c.b16 %v5445, %v5437
  %v6182 = vpack.c.b16 %v5446, %v5438
  %v6183 = vpack.c.b16 %v5447, %v5439
  %v6184 = vpack.c.b16 %v5448, %v5440
  %v6185 = vpack.c.b16 %v5449, %v5441
  %v6186 = vpack.c.b16 %v5458, %v5450
  %v6187 = vpack.c.b16 %v5459, %v5451
  %v6188 = vpack.c.b16 %v5460, %v5452
  %v6189 = vpack.c.b16 %v5461, %v5453
  %v6190 = vpack.c.b16 %v5462, %v5454
  %v6191 = vpack.c.b16 %v5463, %v5455
  %v6192 = vpack.c.b16 %v5464, %v5456
  %v6193 = vpack.c.b16 %v5465, %v5457
  %v6194 = vpack.c.b16 %v5474, %v5466
  %v6195 = vpack.c.b16 %v5475, %v5467
  %v6196 = vpack.c.b16 %v5476, %v5468
  %v6197 = vpack.c.b16 %v5477, %v5469
  %v6198 = vpack.c.b16 %v5478, %v5470
  %v6199 = vpack.c.b16 %v5479, %v5471
  %v6200 = vpack.c.b16 %v5480, %v5472
  %v6201 = vpack.c.b16 %v5481, %v5473
  %v6202 = vpack.c.b16 %v5490, %v5482
  %v6203 = vpack.c.b16 %v5491, %v5483
  %v6204 = vpack.c.b16 %v5492, %v5484
  %v6205 = vpack.c.b16 %v5493, %v5485
  %v6206 = vpack.c.b16 %v5494, %v5486
  %v6207 = vpack.c.b16 %v5495, %v5487
  %v6208 = vpack.c.b16 %v5496, %v5488
  %v6209 = vpack.c.b16 %v5497, %v5489
  %v6210 = vpack.c.b16 %v5506, %v5498
  %v6211 = vpack.c.b16 %v5507, %v5499
  %v6212 = vpack.c.b16 %v5508, %v5500
  %v6213 = vpack.c.b16 %v5509, %v5501
  %v6214 = vpack.c.b16 %v5510, %v5502
  %v6215 = vpack.c.b16 %v5511, %v5503
  %v6216 = vpack.c.b16 %v5512, %v5504
  %v6217 = vpack.c.b16 %v5513, %v5505
  %v6218 = vpack.c.b16 %v5522, %v5514
  %v6219 = vpack.c.b16 %v5523, %v5515
  %v6220 = vpack.c.b16 %v5524, %v5516
  %v6221 = vpack.c.b16 %v5525, %v5517
  %v6222 = vpack.c.b16 %v5526, %v5518
  %v6223 = vpack.c.b16 %v5527, %v5519
  %v6224 = vpack.c.b16 %v5528, %v5520
  %v6225 = vpack.c.b16 %v5529, %v5521
  %v6226 = vpack.c.b16 %v5538, %v5530
  %v6227 = vpack.c.b16 %v5539, %v5531
  %v6228 = vpack.c.b16 %v5540, %v5532
  %v6229 = vpack.c.b16 %v5541, %v5533
  %v6230 = vpack.c.b16 %v5542, %v5534
  %v6231 = vpack.c.b16 %v5543, %v5535
  %v6232 = vpack.c.b16 %v5544, %v5536
  %v6233 = vpack.c.b16 %v5545, %v5537
  %v6234 = vpack.c.b16 %v5554, %v5546
  %v6235 = vpack.c.b16 %v5555, %v5547
  %v6236 = vpack.c.b16 %v5556, %v5548
  %v6237 = vpack.c.b16 %v5557, %v5549
  %v6238 = vpack.c.b16 %v5558, %v5550
  %v6239 = vpack.c.b16 %v5559, %v5551
  %v6240 = vpack.c.b16 %v5560, %v5552
  %v6241 = vpack.c.b16 %v5561, %v5553
  %v6242 = vpack.c.b16 %v5570, %v5562
  %v6243 = vpack.c.b16 %v5571, %v5563
  %v6244 = vpack.c.b16 %v5572, %v5564
  %v6245 = vpack.c.b16 %v5573, %v5565
  %v6246 = vpack.c.b16 %v5574, %v5566
  %v6247 = vpack.c.b16 %v5575, %v5567
  %v6248 = vpack.c.b16 %v5576, %v5568
  %v6249 = vpack.c.b16 %v5577, %v5569
  %v6250 = vpack.c.b16 %v5586, %v5578
  %v6251 = vpack.c.b16 %v5587, %v5579
  %v6252 = vpack.c.b16 %v5588, %v5580
  %v6253 = vpack.c.b16 %v5589, %v5581
  %v6254 = vpack.c.b16 %v5590, %v5582
  %v6255 = vpack.c.b16 %v5591, %v5583
  %v6256 = vpack.c.b16 %v5592, %v5584
  %v6257 = vpack.c.b16 %v5593, %v5585
  %v6258 = vpack.c.b16 %v5602, %v5594
  %v6259 = vpack.c.b16 %v5603, %v5595
  %v6260 = vpack.c.b16 %v5604, %v5596
  %v6261 = vpack.c.b16 %v5605, %v5597
  %v6262 = vpack.c.b16 %v5606, %v5598
  %v6263 = vpack.c.b16 %v5607, %v5599
  %v6264 = vpack.c.b16 %v5608, %v5600
  %v6265 = vpack.c.b16 %v5609, %v5601
  %v6266 = vpack.c.b16 %v5618, %v5610
  %v6267 = vpack.c.b16 %v5619, %v5611
  %v6268 = vpack.c.b16 %v5620, %v5612
  %v6269 = vpack.c.b16 %v5621, %v5613
  %v6270 = vpack.c.b16 %v5622, %v5614
  %v6271 = vpack.c.b16 %v5623, %v5615
  %v6272 = vpack.c.b16 %v5624, %v5616
  %v6273 = vpack.c.b16 %v5625, %v5617
  %v6274 = vpack.c.b16 %v5634, %v5626
  %v6275 = vpack.c.b16 %v5635, %v5627
  %v6276 = vpack.c.b16 %v5636, %v5628
  %v6277 = vpack.c.b16 %v5637, %v5629
  %v6278 = vpack.c.b16 %v5638, %v5630
  %v6279 = vpack.c.b16 %v5639, %v5631
  %v6280 = vpack.c.b16 %v5640, %v5632
  %v6281 = vpack.c.b16 %v5641, %v5633
  %v6282 = vpack.c.b16 %v5650, %v5642
  %v6283 = vpack.c.b16 %v5651, %v5643
  %v6284 = vpack.c.b16 %v5652, %v5644
  %v6285 = vpack.c.b16 %v5653, %v5645
  %v6286 = vpack.c.b16 %v5654, %v5646
  %v6287 = vpack.c.b16 %v5655, %v5647
  %v6288 = vpack.c.b16 %v5656, %v5648
  %v6289 = vpack.c.b16 %v5657, %v5649
  %v6290 = vpack.c.b16 %v5666, %v5658
  %v6291 = vpack.c.b16 %v5667, %v5659
  %v6292 = vpack.c.b16 %v5668, %v5660
  %v6293 = vpack.c.b16 %v5669, %v5661
  %v6294 = vpack.c.b16 %v5670, %v5662
  %v6295 = vpack.c.b16 %v5671, %v5663
  %v6296 = vpack.c.b16 %v5672, %v5664
  %v6297 = vpack.c.b16 %v5673, %v5665
  %v6298 = vpack.c.b16 %v5682, %v5674
  %v6299 = vpack.c.b16 %v5683, %v5675
  %v6300 = vpack.c.b16 %v5684, %v5676
  %v6301 = vpack.c.b16 %v5685, %v5677
  %v6302 = vpack.c.b16 %v5686, %v5678
  %v6303 = vpack.c.b16 %v5687, %v5679
  %v6304 = vpack.c.b16 %v5688, %v5680
  %v6305 = vpack.c.b16 %v5689, %v5681
  %v6306 = vpack.c.b16 %v5698, %v5690
  %v6307 = vpack.c.b16 %v5699, %v5691
  %v6308 = vpack.c.b16 %v5700, %v5692
  %v6309 = vpack.c.b16 %v5701, %v5693
  %v6310 = vpack.c.b16 %v5702, %v5694
  %v6311 = vpack.c.b16 %v5703, %v5695
  %v6312 = vpack.c.b16 %v5704, %v5696
  %v6313 = vpack.c.b16 %v5705, %v5697
  %v6314 = vpack.c.b16 %v5714, %v5706
  %v6315 = vpack.c.b16 %v5715, %v5707
  %v6316 = vpack.c.b16 %v5716, %v5708
  %v6317 = vpack.c.b16 %v5717, %v5709
  %v6318 = vpack.c.b16 %v5718, %v5710
  %v6319 = vpack.c.b16 %v5719, %v5711
  %v6320 = vpack.c.b16 %v5720, %v5712
  %v6321 = vpack.c.b16 %v5721, %v5713
  %v6322 = vpack.c.b16 %v5730, %v5722
  %v6323 = vpack.c.b16 %v5731, %v5723
  %v6324 = vpack.c.b16 %v5732, %v5724
  %v6325 = vpack.c.b16 %v5733, %v5725
  %v6326 = vpack.c.b16 %v5734, %v5726
  %v6327 = vpack.c.b16 %v5735, %v5727
  %v6328 = vpack.c.b16 %v5736, %v5728
  %v6329 = vpack.c.b16 %v5737, %v5729
  %v6330 = vpack.c.b16 %v5746, %v5738
  %v6331 = vpack.c.b16 %v5747, %v5739
  %v6332 = vpack.c.b16 %v5748, %v5740
  %v6333 = vpack.c.b16 %v5749, %v5741
  %v6334 = vpack.c.b16 %v5750, %v5742
  %v6335 = vpack.c.b16 %v5751, %v5743
  %v6336 = vpack.c.b16 %v5752, %v5744
  %v6337 = vpack.c.b16 %v5753, %v5745
  %v6338 = vpack.c.b16 %v5762, %v5754
  %v6339 = vpack.c.b16 %v5763, %v5755
  %v6340 = vpack.c.b16 %v5764, %v5756
  %v6341 = vpack.c.b16 %v5765, %v5757
  %v6342 = vpack.c.b16 %v5766, %v5758
  %v6343 = vpack.c.b16 %v5767, %v5759
  %v6344 = vpack.c.b16 %v5768, %v5760
  %v6345 = vpack.c.b16 %v5769, %v5761
  %v6346 = vpack.c.b16 %v5778, %v5770
  %v6347 = vpack.c.b16 %v5779, %v5771
  %v6348 = vpack.c.b16 %v5780, %v5772
  %v6349 = vpack.c.b16 %v5781, %v5773
  %v6350 = vpack.c.b16 %v5782, %v5774
  %v6351 = vpack.c.b16 %v5783, %v5775
  %v6352 = vpack.c.b16 %v5784, %v5776
  %v6353 = vpack.c.b16 %v5785, %v5777
  %v6354 = vpack.c.b16 %v5794, %v5786
  %v6355 = vpack.c.b16 %v5795, %v5787
  %v6356 = vpack.c.b16 %v5796, %v5788
  %v6357 = vpack.c.b16 %v5797, %v5789
  %v6358 = vpack.c.b16 %v5798, %v5790
  %v6359 = vpack.c.b16 %v5799, %v5791
  %v6360 = vpack.c.b16 %v5800, %v5792
  %v6361 = vpack.c.b16 %v5801, %v5793
  %v6362 = vpack.c.b16 %v5810, %v5802
  %v6363 = vpack.c.b16 %v5811, %v5803
  %v6364 = vpack.c.b16 %v5812, %v5804
  %v6365 = vpack.c.b16 %v5813, %v5805
  %v6366 = vpack.c.b16 %v5814, %v5806
  %v6367 = vpack.c.b16 %v5815, %v5807
  %v6368 = vpack.c.b16 %v5816, %v5808
  %v6369 = vpack.c.b16 %v5817, %v5809
  %v6370 = vpack.c.b16 %v5826, %v5818
  %v6371 = vpack.c.b16 %v5827, %v5819
  %v6372 = vpack.c.b16 %v5828, %v5820
  %v6373 = vpack.c.b16 %v5829, %v5821
  %v6374 = vpack.c.b16 %v5830, %v5822
  %v6375 = vpack.c.b16 %v5831, %v5823
  %v6376 = vpack.c.b16 %v5832, %v5824
  %v6377 = vpack.c.b16 %v5833, %v5825
  %v6378 = vpack.c.b16 %v5842, %v5834
  %v6379 = vpack.c.b16 %v5843, %v5835
  %v6380 = vpack.c.b16 %v5844, %v5836
  %v6381 = vpack.c.b16 %v5845, %v5837
  %v6382 = vpack.c.b16 %v5846, %v5838
  %v6383 = vpack.c.b16 %v5847, %v5839
  %v6384 = vpack.c.b16 %v5848, %v5840
  %v6385 = vpack.c.b16 %v5849, %v5841
  %v6386 = vpack.c.b16 %v5858, %v5850
  %v6387 = vpack.c.b16 %v5859, %v5851
  %v6388 = vpack.c.b16 %v5860, %v5852
  %v6389 = vpack.c.b16 %v5861, %v5853
  %v6390 = vpack.c.b16 %v5862, %v5854
  %v6391 = vpack.c.b16 %v5863, %v5855
  %v6392 = vpack.c.b16 %v5864, %v5856
  %v6393 = vpack.c.b16 %v5865, %v5857
  %v6394 = vpack.c.b16 %v5874, %v5866
  %v6395 = vpack.c.b16 %v5875, %v5867
  %v6396 = vpack.c.b16 %v5876, %v5868
  %v6397 = vpack.c.b16 %v5877, %v5869
  %v6398 = vpack.c.b16 %v5878, %v5870
  %v6399 = vpack.c.b16 %v5879, %v5871
  %v6400 = vpack.c.b16 %v5880, %v5872
  %v6401 = vpack.c.b16 %v5881, %v5873
  %v6402 = vpack.c.b16 %v5890, %v5882
  %v6403 = vpack.c.b16 %v5891, %v5883
  %v6404 = vpack.c.b16 %v5892, %v5884
  %v6405 = vpack.c.b16 %v5893, %v5885
  %v6406 = vpack.c.b16 %v5894, %v5886
  %v6407 = vpack.c.b16 %v5895, %v5887
  %v6408 = vpack.c.b16 %v5896, %v5888
  %v6409 = vpack.c.b16 %v5897, %v5889
  %v6410 = vpack.c.b16 %v5906, %v5898
  %v6411 = vpack.c.b16 %v5907, %v5899
  %v6412 = vpack.c.b16 %v5908, %v5900
  %v6413 = vpack.c.b16 %v5909, %v5901
  %v6414 = vpack.c.b16 %v5910, %v5902
  %v6415 = vpack.c.b16 %v5911, %v5903
  %v6416 = vpack.c.b16 %v5912, %v5904
  %v6417 = vpack.c.b16 %v5913, %v5905
  %v6418 = vpack.c.b16 %v5922, %v5914
  %v6419 = vpack.c.b16 %v5923, %v5915
  %v6420 = vpack.c.b16 %v5924, %v5916
  %v6421 = vpack.c.b16 %v5925, %v5917
  %v6422 = vpack.c.b16 %v5926, %v5918
  %v6423 = vpack.c.b16 %v5927, %v5919
  %v6424 = vpack.c.b16 %v5928, %v5920
  %v6425 = vpack.c.b16 %v5929, %v5921
  %v6426 = vpack.c.b16 %v5938, %v5930
  %v6427 = vpack.c.b16 %v5939, %v5931
  %v6428 = vpack.c.b16 %v5940, %v5932
  %v6429 = vpack.c.b16 %v5941, %v5933
  %v6430 = vpack.c.b16 %v5942, %v5934
  %v6431 = vpack.c.b16 %v5943, %v5935
  %v6432 = vpack.c.b16 %v5944, %v5936
  %v6433 = vpack.c.b16 %v5945, %v5937
  %v6434 = vpack.c.b16 %v5954, %v5946
  %v6435 = vpack.c.b16 %v5955, %v5947
  %v6436 = vpack.c.b16 %v5956, %v5948
  %v6437 = vpack.c.b16 %v5957, %v5949
  %v6438 = vpack.c.b16 %v5958, %v5950
  %v6439 = vpack.c.b16 %v5959, %v5951
  %v6440 = vpack.c.b16 %v5960, %v5952
  %v6441 = vpack.c.b16 %v5961, %v5953
  %v6442 = vpack.c.b16 %v5970, %v5962
  %v6443 = vpack.c.b16 %v5971, %v5963
  %v6444 = vpack.c.b16 %v5972, %v5964
  %v6445 = vpack.c.b16 %v5973, %v5965
  %v6446 = vpack.c.b16 %v5974, %v5966
  %v6447 = vpack.c.b16 %v5975, %v5967
  %v6448 = vpack.c.b16 %v5976, %v5968
  %v6449 = vpack.c.b16 %v5977, %v5969
  %v6450 = vpack.c.b16 %v5986, %v5978
  %v6451 = vpack.c.b16 %v5987, %v5979
  %v6452 = vpack.c.b16 %v5988, %v5980
  %v6453 = vpack.c.b16 %v5989, %v5981
  %v6454 = vpack.c.b16 %v5990, %v5982
  %v6455 = vpack.c.b16 %v5991, %v5983
  %v6456 = vpack.c.b16 %v5992, %v5984
  %v6457 = vpack.c.b16 %v5993, %v5985
  %v6458 = vpack.c.b16 %v6002, %v5994
  %v6459 = vpack.c.b16 %v6003, %v5995
  %v6460 = vpack.c.b16 %v6004, %v5996
  %v6461 = vpack.c.b16 %v6005, %v5997
  %v6462 = vpack.c.b16 %v6006, %v5998
  %v6463 = vpack.c.b16 %v6007, %v5999
  %v6464 = vpack.c.b16 %v6008, %v6000
  %v6465 = vpack.c.b16 %v6009, %v6001
  %vm6922 = vcmask 130048
  %v6924 = vsel %vm6922, %v4161, 0
  %v6927 = vsel %vm6922, %v4169, 0
  %v6930 = vsel %vm6922, %v4177, 0
  %v6933 = vsel %vm6922, %v4185, 0
  %6935 = vmatprep.subr.bf16.mxu0 %v6067
  %6936 = vmatpush1.bf16.msra.mxu0 %v6066
  %6937 = vmatprep.subr.bf16.mxu0 %v6059
  %6938 = vmatpush1.bf16.msra.mxu0 %v6058
  %6939 = vmatprep.subr.bf16.mxu0 %v6051
  %6940 = vmatpush1.bf16.msra.mxu0 %v6050
  %6941 = vmatprep.subr.bf16.mxu0 %v6043
  %6942 = vmatpush1.bf16.msra.mxu0 %v6042
  %6943 = vmatprep.subr.bf16.mxu0 %v6035
  %6944 = vmatpush1.bf16.msra.mxu0 %v6034
  %6945 = vmatprep.subr.bf16.mxu0 %v6027
  %6946 = vmatpush1.bf16.msra.mxu0 %v6026
  %6947 = vmatprep.subr.bf16.mxu0 %v6019
  %6948 = vmatpush1.bf16.msra.mxu0 %v6018
  %6949 = vmatprep.subr.bf16.mxu0 %v6011
  %6950 = vmatpush1.bf16.msra.mxu0 %v6010
  %6951 = vmatprep.subr.bf16.mxu0 %v6131
  %6952 = vmatpush2.bf16.msra.mxu0 %v6130
  %6953 = vmatprep.subr.bf16.mxu0 %v6123
  %6954 = vmatpush2.bf16.msra.mxu0 %v6122
  %6955 = vmatprep.subr.bf16.mxu0 %v6115
  %6956 = vmatpush2.bf16.msra.mxu0 %v6114
  %6957 = vmatprep.subr.bf16.mxu0 %v6107
  %6958 = vmatpush2.bf16.msra.mxu0 %v6106
  %6959 = vmatprep.subr.bf16.mxu0 %v6099
  %6960 = vmatpush2.bf16.msra.mxu0 %v6098
  %6961 = vmatprep.subr.bf16.mxu0 %v6091
  %6962 = vmatpush2.bf16.msra.mxu0 %v6090
  %6963 = vmatprep.subr.bf16.mxu0 %v6083
  %6964 = vmatpush2.bf16.msra.mxu0 %v6082
  %6965 = vmatprep.subr.bf16.mxu0 %v6075
  %6966 = vmatpush2.bf16.msra.mxu0 %v6074
  %6967 = vmatprep.mubr.bf16.mxu0 %v4155
  %6968 = vmatmul.mubr.bf16.gmra.mxu0 %v4154
  %v6969 = vpop.f32.mrf.mxu0
  %v6970 = vadd.f32 0.0, %v6969
  %v6971 = vpop.f32.mrf.mxu0
  %v6972 = vadd.f32 0.0, %v6971
  %v6973 = vpop.f32.mrf.mxu0
  %v6974 = vadd.f32 0.0, %v6973
  %v6975 = vpop.f32.mrf.mxu0
  %v6976 = vadd.f32 0.0, %v6975
  %6977 = vmatprep.mubr.bf16.mxu0 %v4163
  %6978 = vmatmul.mubr.bf16.gmra.mxu0 %v4162
  %v6979 = vpop.f32.mrf.mxu0
  %v6980 = vadd.f32 0.0, %v6979
  %v6981 = vpop.f32.mrf.mxu0
  %v6982 = vadd.f32 0.0, %v6981
  %v6983 = vpop.f32.mrf.mxu0
  %v6984 = vadd.f32 0.0, %v6983
  %v6985 = vpop.f32.mrf.mxu0
  %v6986 = vadd.f32 0.0, %v6985
  %6987 = vmatprep.mubr.bf16.mxu0 %v4171
  %6988 = vmatmul.mubr.bf16.gmra.mxu0 %v4170
  %v6989 = vpop.f32.mrf.mxu0
  %v6990 = vadd.f32 0.0, %v6989
  %v6991 = vpop.f32.mrf.mxu0
  %v6992 = vadd.f32 0.0, %v6991
  %v6993 = vpop.f32.mrf.mxu0
  %v6994 = vadd.f32 0.0, %v6993
  %v6995 = vpop.f32.mrf.mxu0
  %v6996 = vadd.f32 0.0, %v6995
  %6997 = vmatprep.mubr.bf16.mxu0 %v4179
  %6998 = vmatmul.mubr.bf16.gmra.mxu0 %v4178
  %v6999 = vpop.f32.mrf.mxu0
  %v7000 = vadd.f32 0.0, %v6999
  %v7001 = vpop.f32.mrf.mxu0
  %v7002 = vadd.f32 0.0, %v7001
  %v7003 = vpop.f32.mrf.mxu0
  %v7004 = vpop.f32.mrf.mxu0
  %7005 = vdwg.mxu0
  %7006 = vmatprep.subr.bf16.mxu0 %v6195
  %7007 = vmatpush1.bf16.msra.mxu0 %v6194
  %7008 = vmatprep.subr.bf16.mxu0 %v6187
  %7009 = vmatpush1.bf16.msra.mxu0 %v6186
  %7010 = vmatprep.subr.bf16.mxu0 %v6179
  %7011 = vmatpush1.bf16.msra.mxu0 %v6178
  %7012 = vmatprep.subr.bf16.mxu0 %v6171
  %7013 = vmatpush1.bf16.msra.mxu0 %v6170
  %7014 = vmatprep.subr.bf16.mxu0 %v6163
  %7015 = vmatpush1.bf16.msra.mxu0 %v6162
  %7016 = vmatprep.subr.bf16.mxu0 %v6155
  %7017 = vmatpush1.bf16.msra.mxu0 %v6154
  %7018 = vmatprep.subr.bf16.mxu0 %v6147
  %7019 = vmatpush1.bf16.msra.mxu0 %v6146
  %7020 = vmatprep.subr.bf16.mxu0 %v6139
  %7021 = vmatpush1.bf16.msra.mxu0 %v6138
  %7022 = vmatprep.subr.bf16.mxu0 %v6259
  %7023 = vmatpush2.bf16.msra.mxu0 %v6258
  %7024 = vmatprep.subr.bf16.mxu0 %v6251
  %7025 = vmatpush2.bf16.msra.mxu0 %v6250
  %7026 = vmatprep.subr.bf16.mxu0 %v6243
  %7027 = vmatpush2.bf16.msra.mxu0 %v6242
  %7028 = vmatprep.subr.bf16.mxu0 %v6235
  %7029 = vmatpush2.bf16.msra.mxu0 %v6234
  %7030 = vmatprep.subr.bf16.mxu0 %v6227
  %7031 = vmatpush2.bf16.msra.mxu0 %v6226
  %7032 = vmatprep.subr.bf16.mxu0 %v6219
  %7033 = vmatpush2.bf16.msra.mxu0 %v6218
  %7034 = vmatprep.subr.bf16.mxu0 %v6211
  %7035 = vmatpush2.bf16.msra.mxu0 %v6210
  %7036 = vmatprep.subr.bf16.mxu0 %v6203
  %7037 = vmatpush2.bf16.msra.mxu0 %v6202
  %7038 = vmatprep.mubr.bf16.mxu0 %v4157
  %7039 = vmatmul.mubr.bf16.gmra.mxu0 %v4156
  %v7040 = vpop.f32.mrf.mxu0
  %v7041 = vadd.f32 %v6970, %v7040
  %v7042 = vpop.f32.mrf.mxu0
  %v7043 = vadd.f32 %v6972, %v7042
  %v7044 = vpop.f32.mrf.mxu0
  %v7045 = vadd.f32 %v6974, %v7044
  %v7046 = vpop.f32.mrf.mxu0
  %v7047 = vadd.f32 %v6976, %v7046
  %7048 = vmatprep.mubr.bf16.mxu0 %v4165
  %7049 = vmatmul.mubr.bf16.gmra.mxu0 %v4164
  %v7050 = vpop.f32.mrf.mxu0
  %v7051 = vadd.f32 %v6980, %v7050
  %v7052 = vpop.f32.mrf.mxu0
  %v7053 = vadd.f32 %v6982, %v7052
  %v7054 = vpop.f32.mrf.mxu0
  %v7055 = vadd.f32 %v6984, %v7054
  %v7056 = vpop.f32.mrf.mxu0
  %v7057 = vadd.f32 %v6986, %v7056
  %7058 = vmatprep.mubr.bf16.mxu0 %v4173
  %7059 = vmatmul.mubr.bf16.gmra.mxu0 %v4172
  %v7060 = vpop.f32.mrf.mxu0
  %v7061 = vadd.f32 %v6990, %v7060
  %v7062 = vpop.f32.mrf.mxu0
  %v7063 = vadd.f32 %v6992, %v7062
  %v7064 = vpop.f32.mrf.mxu0
  %v7065 = vadd.f32 %v6994, %v7064
  %v7066 = vpop.f32.mrf.mxu0
  %v7067 = vadd.f32 %v6996, %v7066
  %7068 = vmatprep.mubr.bf16.mxu0 %v4181
  %7069 = vmatmul.mubr.bf16.gmra.mxu0 %v4180
  %v7070 = vpop.f32.mrf.mxu0
  %v7071 = vadd.f32 %v7000, %v7070
  %v7072 = vpop.f32.mrf.mxu0
  %v7073 = vadd.f32 %v7002, %v7072
  %v7074 = vpop.f32.mrf.mxu0
  %v7075 = vpop.f32.mrf.mxu0
  %7076 = vdwg.mxu0
  %7077 = vmatprep.subr.bf16.mxu0 %v6323
  %7078 = vmatpush1.bf16.msra.mxu0 %v6322
  %7079 = vmatprep.subr.bf16.mxu0 %v6315
  %7080 = vmatpush1.bf16.msra.mxu0 %v6314
  %7081 = vmatprep.subr.bf16.mxu0 %v6307
  %7082 = vmatpush1.bf16.msra.mxu0 %v6306
  %7083 = vmatprep.subr.bf16.mxu0 %v6299
  %7084 = vmatpush1.bf16.msra.mxu0 %v6298
  %7085 = vmatprep.subr.bf16.mxu0 %v6291
  %7086 = vmatpush1.bf16.msra.mxu0 %v6290
  %7087 = vmatprep.subr.bf16.mxu0 %v6283
  %7088 = vmatpush1.bf16.msra.mxu0 %v6282
  %7089 = vmatprep.subr.bf16.mxu0 %v6275
  %7090 = vmatpush1.bf16.msra.mxu0 %v6274
  %7091 = vmatprep.subr.bf16.mxu0 %v6267
  %7092 = vmatpush1.bf16.msra.mxu0 %v6266
  %7093 = vmatprep.subr.bf16.mxu0 %v6387
  %7094 = vmatpush2.bf16.msra.mxu0 %v6386
  %7095 = vmatprep.subr.bf16.mxu0 %v6379
  %7096 = vmatpush2.bf16.msra.mxu0 %v6378
  %7097 = vmatprep.subr.bf16.mxu0 %v6371
  %7098 = vmatpush2.bf16.msra.mxu0 %v6370
  %7099 = vmatprep.subr.bf16.mxu0 %v6363
  %7100 = vmatpush2.bf16.msra.mxu0 %v6362
  %7101 = vmatprep.subr.bf16.mxu0 %v6355
  %7102 = vmatpush2.bf16.msra.mxu0 %v6354
  %7103 = vmatprep.subr.bf16.mxu0 %v6347
  %7104 = vmatpush2.bf16.msra.mxu0 %v6346
  %7105 = vmatprep.subr.bf16.mxu0 %v6339
  %7106 = vmatpush2.bf16.msra.mxu0 %v6338
  %7107 = vmatprep.subr.bf16.mxu0 %v6331
  %7108 = vmatpush2.bf16.msra.mxu0 %v6330
  %7109 = vmatprep.mubr.bf16.mxu0 %v4159
  %7110 = vmatmul.mubr.bf16.gmra.mxu0 %v4158
  %v7111 = vpop.f32.mrf.mxu0
  %v7112 = vadd.f32 %v7041, %v7111
  %v7113 = vpop.f32.mrf.mxu0
  %v7114 = vadd.f32 %v7043, %v7113
  %v7115 = vpop.f32.mrf.mxu0
  %v7116 = vadd.f32 %v7045, %v7115
  %v7117 = vpop.f32.mrf.mxu0
  %v7118 = vadd.f32 %v7047, %v7117
  %7119 = vmatprep.mubr.bf16.mxu0 %v4167
  %7120 = vmatmul.mubr.bf16.gmra.mxu0 %v4166
  %v7121 = vpop.f32.mrf.mxu0
  %v7122 = vadd.f32 %v7051, %v7121
  %v7123 = vpop.f32.mrf.mxu0
  %v7124 = vadd.f32 %v7053, %v7123
  %v7125 = vpop.f32.mrf.mxu0
  %v7126 = vadd.f32 %v7055, %v7125
  %v7127 = vpop.f32.mrf.mxu0
  %v7128 = vadd.f32 %v7057, %v7127
  %7129 = vmatprep.mubr.bf16.mxu0 %v4175
  %7130 = vmatmul.mubr.bf16.gmra.mxu0 %v4174
  %v7131 = vpop.f32.mrf.mxu0
  %v7132 = vadd.f32 %v7061, %v7131
  %v7133 = vpop.f32.mrf.mxu0
  %v7134 = vadd.f32 %v7063, %v7133
  %v7135 = vpop.f32.mrf.mxu0
  %v7136 = vadd.f32 %v7065, %v7135
  %v7137 = vpop.f32.mrf.mxu0
  %v7138 = vadd.f32 %v7067, %v7137
  %7139 = vmatprep.mubr.bf16.mxu0 %v4183
  %7140 = vmatmul.mubr.bf16.gmra.mxu0 %v4182
  %v7141 = vpop.f32.mrf.mxu0
  %v7142 = vadd.f32 %v7071, %v7141
  %v7143 = vpop.f32.mrf.mxu0
  %v7144 = vadd.f32 %v7073, %v7143
  %v7145 = vpop.f32.mrf.mxu0
  %v7146 = vpop.f32.mrf.mxu0
  %7147 = vdwg.mxu0
  %7148 = vmatprep.subr.bf16.mxu0 %v6451
  %7149 = vmatpush1.bf16.msra.mxu0 %v6450
  %7150 = vmatprep.subr.bf16.mxu0 %v6443
  %7151 = vmatpush1.bf16.msra.mxu0 %v6442
  %7152 = vmatprep.subr.bf16.mxu0 %v6435
  %7153 = vmatpush1.bf16.msra.mxu0 %v6434
  %7154 = vmatprep.subr.bf16.mxu0 %v6427
  %7155 = vmatpush1.bf16.msra.mxu0 %v6426
  %7156 = vmatprep.subr.bf16.mxu0 %v6419
  %7157 = vmatpush1.bf16.msra.mxu0 %v6418
  %7158 = vmatprep.subr.bf16.mxu0 %v6411
  %7159 = vmatpush1.bf16.msra.mxu0 %v6410
  %7160 = vmatprep.subr.bf16.mxu0 %v6403
  %7161 = vmatpush1.bf16.msra.mxu0 %v6402
  %7162 = vmatprep.subr.bf16.mxu0 %v6395
  %7163 = vmatpush1.bf16.msra.mxu0 %v6394
  %7164 = vmatprep.subr.bf16.mxu0 0
  %7165 = vmatpush2.bf16.msra.mxu0 0
  %7166 = vmatprep.subr.bf16.mxu0 0
  %7167 = vmatpush2.bf16.msra.mxu0 0
  %7168 = vmatprep.subr.bf16.mxu0 0
  %7169 = vmatpush2.bf16.msra.mxu0 0
  %7170 = vmatprep.subr.bf16.mxu0 0
  %7171 = vmatpush2.bf16.msra.mxu0 0
  %7172 = vmatprep.subr.bf16.mxu0 0
  %7173 = vmatpush2.bf16.msra.mxu0 0
  %7174 = vmatprep.subr.bf16.mxu0 0
  %7175 = vmatpush2.bf16.msra.mxu0 0
  %7176 = vmatprep.subr.bf16.mxu0 0
  %7177 = vmatpush2.bf16.msra.mxu0 0
  %7178 = vmatprep.subr.bf16.mxu0 %v6459
  %7179 = vmatpush2.bf16.msra.mxu0 %v6458
  %7180 = vmatprep.mubr.bf16.mxu0 %v6924
  %7181 = vmatmul.mubr.bf16.gmra.mxu0 %v4160
  %v7182 = vpop.f32.mrf.mxu0
  %v7183 = vadd.f32 %v7112, %v7182
  %v7184 = vpop.f32.mrf.mxu0
  %v7185 = vadd.f32 %v7114, %v7184
  %v7186 = vpop.f32.mrf.mxu0
  %v7187 = vadd.f32 %v7116, %v7186
  %v7188 = vpop.f32.mrf.mxu0
  %v7189 = vadd.f32 %v7118, %v7188
  %7190 = vmatprep.mubr.bf16.mxu0 %v6927
  %7191 = vmatmul.mubr.bf16.gmra.mxu0 %v4168
  %v7192 = vpop.f32.mrf.mxu0
  %v7193 = vadd.f32 %v7122, %v7192
  %v7194 = vpop.f32.mrf.mxu0
  %v7195 = vadd.f32 %v7124, %v7194
  %v7196 = vpop.f32.mrf.mxu0
  %v7197 = vadd.f32 %v7126, %v7196
  %v7198 = vpop.f32.mrf.mxu0
  %v7199 = vadd.f32 %v7128, %v7198
  %7200 = vmatprep.mubr.bf16.mxu0 %v6930
  %7201 = vmatmul.mubr.bf16.gmra.mxu0 %v4176
  %v7202 = vpop.f32.mrf.mxu0
  %v7203 = vadd.f32 %v7132, %v7202
  %v7204 = vpop.f32.mrf.mxu0
  %v7205 = vadd.f32 %v7134, %v7204
  %v7206 = vpop.f32.mrf.mxu0
  %v7207 = vadd.f32 %v7136, %v7206
  %v7208 = vpop.f32.mrf.mxu0
  %v7209 = vadd.f32 %v7138, %v7208
  %7210 = vmatprep.mubr.bf16.mxu0 %v6933
  %7211 = vmatmul.mubr.bf16.gmra.mxu0 %v4184
  %v7212 = vpop.f32.mrf.mxu0
  %v7213 = vadd.f32 %v7142, %v7212
  %v7214 = vpop.f32.mrf.mxu0
  %v7215 = vadd.f32 %v7144, %v7214
  %v7216 = vpop.f32.mrf.mxu0
  %v7217 = vpop.f32.mrf.mxu0
  %7218 = vdwg.mxu0
  %7219 = vmatprep.subr.bf16.mxu0 %v6069
  %7220 = vmatpush1.bf16.msra.mxu0 %v6068
  %7221 = vmatprep.subr.bf16.mxu0 %v6061
  %7222 = vmatpush1.bf16.msra.mxu0 %v6060
  %7223 = vmatprep.subr.bf16.mxu0 %v6053
  %7224 = vmatpush1.bf16.msra.mxu0 %v6052
  %7225 = vmatprep.subr.bf16.mxu0 %v6045
  %7226 = vmatpush1.bf16.msra.mxu0 %v6044
  %7227 = vmatprep.subr.bf16.mxu0 %v6037
  %7228 = vmatpush1.bf16.msra.mxu0 %v6036
  %7229 = vmatprep.subr.bf16.mxu0 %v6029
  %7230 = vmatpush1.bf16.msra.mxu0 %v6028
  %7231 = vmatprep.subr.bf16.mxu0 %v6021
  %7232 = vmatpush1.bf16.msra.mxu0 %v6020
  %7233 = vmatprep.subr.bf16.mxu0 %v6013
  %7234 = vmatpush1.bf16.msra.mxu0 %v6012
  %7235 = vmatprep.subr.bf16.mxu0 %v6133
  %7236 = vmatpush2.bf16.msra.mxu0 %v6132
  %7237 = vmatprep.subr.bf16.mxu0 %v6125
  %7238 = vmatpush2.bf16.msra.mxu0 %v6124
  %7239 = vmatprep.subr.bf16.mxu0 %v6117
  %7240 = vmatpush2.bf16.msra.mxu0 %v6116
  %7241 = vmatprep.subr.bf16.mxu0 %v6109
  %7242 = vmatpush2.bf16.msra.mxu0 %v6108
  %7243 = vmatprep.subr.bf16.mxu0 %v6101
  %7244 = vmatpush2.bf16.msra.mxu0 %v6100
  %7245 = vmatprep.subr.bf16.mxu0 %v6093
  %7246 = vmatpush2.bf16.msra.mxu0 %v6092
  %7247 = vmatprep.subr.bf16.mxu0 %v6085
  %7248 = vmatpush2.bf16.msra.mxu0 %v6084
  %7249 = vmatprep.subr.bf16.mxu0 %v6077
  %7250 = vmatpush2.bf16.msra.mxu0 %v6076
  %7251 = vmatprep.mubr.bf16.mxu0 %v4155
  %7252 = vmatmul.mubr.bf16.gmra.mxu0 %v4154
  %v7253 = vpop.f32.mrf.mxu0
  %v7254 = vadd.f32 0.0, %v7253
  %v7255 = vpop.f32.mrf.mxu0
  %v7256 = vadd.f32 0.0, %v7255
  %v7257 = vpop.f32.mrf.mxu0
  %v7258 = vadd.f32 0.0, %v7257
  %v7259 = vpop.f32.mrf.mxu0
  %v7260 = vadd.f32 0.0, %v7259
  %7261 = vmatprep.mubr.bf16.mxu0 %v4163
  %7262 = vmatmul.mubr.bf16.gmra.mxu0 %v4162
  %v7263 = vpop.f32.mrf.mxu0
  %v7264 = vadd.f32 0.0, %v7263
  %v7265 = vpop.f32.mrf.mxu0
  %v7266 = vadd.f32 0.0, %v7265
  %v7267 = vpop.f32.mrf.mxu0
  %v7268 = vadd.f32 0.0, %v7267
  %v7269 = vpop.f32.mrf.mxu0
  %v7270 = vadd.f32 0.0, %v7269
  %7271 = vmatprep.mubr.bf16.mxu0 %v4171
  %7272 = vmatmul.mubr.bf16.gmra.mxu0 %v4170
  %v7273 = vpop.f32.mrf.mxu0
  %v7274 = vadd.f32 0.0, %v7273
  %v7275 = vpop.f32.mrf.mxu0
  %v7276 = vadd.f32 0.0, %v7275
  %v7277 = vpop.f32.mrf.mxu0
  %v7278 = vadd.f32 0.0, %v7277
  %v7279 = vpop.f32.mrf.mxu0
  %v7280 = vadd.f32 0.0, %v7279
  %7281 = vmatprep.mubr.bf16.mxu0 %v4179
  %7282 = vmatmul.mubr.bf16.gmra.mxu0 %v4178
  %v7283 = vpop.f32.mrf.mxu0
  %v7284 = vadd.f32 0.0, %v7283
  %v7285 = vpop.f32.mrf.mxu0
  %v7286 = vadd.f32 0.0, %v7285
  %v7287 = vpop.f32.mrf.mxu0
  %v7288 = vpop.f32.mrf.mxu0
  %7289 = vdwg.mxu0
  %7290 = vmatprep.subr.bf16.mxu0 %v6197
  %7291 = vmatpush1.bf16.msra.mxu0 %v6196
  %7292 = vmatprep.subr.bf16.mxu0 %v6189
  %7293 = vmatpush1.bf16.msra.mxu0 %v6188
  %7294 = vmatprep.subr.bf16.mxu0 %v6181
  %7295 = vmatpush1.bf16.msra.mxu0 %v6180
  %7296 = vmatprep.subr.bf16.mxu0 %v6173
  %7297 = vmatpush1.bf16.msra.mxu0 %v6172
  %7298 = vmatprep.subr.bf16.mxu0 %v6165
  %7299 = vmatpush1.bf16.msra.mxu0 %v6164
  %7300 = vmatprep.subr.bf16.mxu0 %v6157
  %7301 = vmatpush1.bf16.msra.mxu0 %v6156
  %7302 = vmatprep.subr.bf16.mxu0 %v6149
  %7303 = vmatpush1.bf16.msra.mxu0 %v6148
  %7304 = vmatprep.subr.bf16.mxu0 %v6141
  %7305 = vmatpush1.bf16.msra.mxu0 %v6140
  %7306 = vmatprep.subr.bf16.mxu0 %v6261
  %7307 = vmatpush2.bf16.msra.mxu0 %v6260
  %7308 = vmatprep.subr.bf16.mxu0 %v6253
  %7309 = vmatpush2.bf16.msra.mxu0 %v6252
  %7310 = vmatprep.subr.bf16.mxu0 %v6245
  %7311 = vmatpush2.bf16.msra.mxu0 %v6244
  %7312 = vmatprep.subr.bf16.mxu0 %v6237
  %7313 = vmatpush2.bf16.msra.mxu0 %v6236
  %7314 = vmatprep.subr.bf16.mxu0 %v6229
  %7315 = vmatpush2.bf16.msra.mxu0 %v6228
  %7316 = vmatprep.subr.bf16.mxu0 %v6221
  %7317 = vmatpush2.bf16.msra.mxu0 %v6220
  %7318 = vmatprep.subr.bf16.mxu0 %v6213
  %7319 = vmatpush2.bf16.msra.mxu0 %v6212
  %7320 = vmatprep.subr.bf16.mxu0 %v6205
  %7321 = vmatpush2.bf16.msra.mxu0 %v6204
  %7322 = vmatprep.mubr.bf16.mxu0 %v4157
  %7323 = vmatmul.mubr.bf16.gmra.mxu0 %v4156
  %v7324 = vpop.f32.mrf.mxu0
  %v7325 = vadd.f32 %v7254, %v7324
  %v7326 = vpop.f32.mrf.mxu0
  %v7327 = vadd.f32 %v7256, %v7326
  %v7328 = vpop.f32.mrf.mxu0
  %v7329 = vadd.f32 %v7258, %v7328
  %v7330 = vpop.f32.mrf.mxu0
  %v7331 = vadd.f32 %v7260, %v7330
  %7332 = vmatprep.mubr.bf16.mxu0 %v4165
  %7333 = vmatmul.mubr.bf16.gmra.mxu0 %v4164
  %v7334 = vpop.f32.mrf.mxu0
  %v7335 = vadd.f32 %v7264, %v7334
  %v7336 = vpop.f32.mrf.mxu0
  %v7337 = vadd.f32 %v7266, %v7336
  %v7338 = vpop.f32.mrf.mxu0
  %v7339 = vadd.f32 %v7268, %v7338
  %v7340 = vpop.f32.mrf.mxu0
  %v7341 = vadd.f32 %v7270, %v7340
  %7342 = vmatprep.mubr.bf16.mxu0 %v4173
  %7343 = vmatmul.mubr.bf16.gmra.mxu0 %v4172
  %v7344 = vpop.f32.mrf.mxu0
  %v7345 = vadd.f32 %v7274, %v7344
  %v7346 = vpop.f32.mrf.mxu0
  %v7347 = vadd.f32 %v7276, %v7346
  %v7348 = vpop.f32.mrf.mxu0
  %v7349 = vadd.f32 %v7278, %v7348
  %v7350 = vpop.f32.mrf.mxu0
  %v7351 = vadd.f32 %v7280, %v7350
  %7352 = vmatprep.mubr.bf16.mxu0 %v4181
  %7353 = vmatmul.mubr.bf16.gmra.mxu0 %v4180
  %v7354 = vpop.f32.mrf.mxu0
  %v7355 = vadd.f32 %v7284, %v7354
  %v7356 = vpop.f32.mrf.mxu0
  %v7357 = vadd.f32 %v7286, %v7356
  %v7358 = vpop.f32.mrf.mxu0
  %v7359 = vpop.f32.mrf.mxu0
  %7360 = vdwg.mxu0
  %7361 = vmatprep.subr.bf16.mxu0 %v6325
  %7362 = vmatpush1.bf16.msra.mxu0 %v6324
  %7363 = vmatprep.subr.bf16.mxu0 %v6317
  %7364 = vmatpush1.bf16.msra.mxu0 %v6316
  %7365 = vmatprep.subr.bf16.mxu0 %v6309
  %7366 = vmatpush1.bf16.msra.mxu0 %v6308
  %7367 = vmatprep.subr.bf16.mxu0 %v6301
  %7368 = vmatpush1.bf16.msra.mxu0 %v6300
  %7369 = vmatprep.subr.bf16.mxu0 %v6293
  %7370 = vmatpush1.bf16.msra.mxu0 %v6292
  %7371 = vmatprep.subr.bf16.mxu0 %v6285
  %7372 = vmatpush1.bf16.msra.mxu0 %v6284
  %7373 = vmatprep.subr.bf16.mxu0 %v6277
  %7374 = vmatpush1.bf16.msra.mxu0 %v6276
  %7375 = vmatprep.subr.bf16.mxu0 %v6269
  %7376 = vmatpush1.bf16.msra.mxu0 %v6268
  %7377 = vmatprep.subr.bf16.mxu0 %v6389
  %7378 = vmatpush2.bf16.msra.mxu0 %v6388
  %7379 = vmatprep.subr.bf16.mxu0 %v6381
  %7380 = vmatpush2.bf16.msra.mxu0 %v6380
  %7381 = vmatprep.subr.bf16.mxu0 %v6373
  %7382 = vmatpush2.bf16.msra.mxu0 %v6372
  %7383 = vmatprep.subr.bf16.mxu0 %v6365
  %7384 = vmatpush2.bf16.msra.mxu0 %v6364
  %7385 = vmatprep.subr.bf16.mxu0 %v6357
  %7386 = vmatpush2.bf16.msra.mxu0 %v6356
  %7387 = vmatprep.subr.bf16.mxu0 %v6349
  %7388 = vmatpush2.bf16.msra.mxu0 %v6348
  %7389 = vmatprep.subr.bf16.mxu0 %v6341
  %7390 = vmatpush2.bf16.msra.mxu0 %v6340
  %7391 = vmatprep.subr.bf16.mxu0 %v6333
  %7392 = vmatpush2.bf16.msra.mxu0 %v6332
  %7393 = vmatprep.mubr.bf16.mxu0 %v4159
  %7394 = vmatmul.mubr.bf16.gmra.mxu0 %v4158
  %v7395 = vpop.f32.mrf.mxu0
  %v7396 = vadd.f32 %v7325, %v7395
  %v7397 = vpop.f32.mrf.mxu0
  %v7398 = vadd.f32 %v7327, %v7397
  %v7399 = vpop.f32.mrf.mxu0
  %v7400 = vadd.f32 %v7329, %v7399
  %v7401 = vpop.f32.mrf.mxu0
  %v7402 = vadd.f32 %v7331, %v7401
  %7403 = vmatprep.mubr.bf16.mxu0 %v4167
  %7404 = vmatmul.mubr.bf16.gmra.mxu0 %v4166
  %v7405 = vpop.f32.mrf.mxu0
  %v7406 = vadd.f32 %v7335, %v7405
  %v7407 = vpop.f32.mrf.mxu0
  %v7408 = vadd.f32 %v7337, %v7407
  %v7409 = vpop.f32.mrf.mxu0
  %v7410 = vadd.f32 %v7339, %v7409
  %v7411 = vpop.f32.mrf.mxu0
  %v7412 = vadd.f32 %v7341, %v7411
  %7413 = vmatprep.mubr.bf16.mxu0 %v4175
  %7414 = vmatmul.mubr.bf16.gmra.mxu0 %v4174
  %v7415 = vpop.f32.mrf.mxu0
  %v7416 = vadd.f32 %v7345, %v7415
  %v7417 = vpop.f32.mrf.mxu0
  %v7418 = vadd.f32 %v7347, %v7417
  %v7419 = vpop.f32.mrf.mxu0
  %v7420 = vadd.f32 %v7349, %v7419
  %v7421 = vpop.f32.mrf.mxu0
  %v7422 = vadd.f32 %v7351, %v7421
  %7423 = vmatprep.mubr.bf16.mxu0 %v4183
  %7424 = vmatmul.mubr.bf16.gmra.mxu0 %v4182
  %v7425 = vpop.f32.mrf.mxu0
  %v7426 = vadd.f32 %v7355, %v7425
  %v7427 = vpop.f32.mrf.mxu0
  %v7428 = vadd.f32 %v7357, %v7427
  %v7429 = vpop.f32.mrf.mxu0
  %v7430 = vpop.f32.mrf.mxu0
  %7431 = vdwg.mxu0
  %7432 = vmatprep.subr.bf16.mxu0 %v6453
  %7433 = vmatpush1.bf16.msra.mxu0 %v6452
  %7434 = vmatprep.subr.bf16.mxu0 %v6445
  %7435 = vmatpush1.bf16.msra.mxu0 %v6444
  %7436 = vmatprep.subr.bf16.mxu0 %v6437
  %7437 = vmatpush1.bf16.msra.mxu0 %v6436
  %7438 = vmatprep.subr.bf16.mxu0 %v6429
  %7439 = vmatpush1.bf16.msra.mxu0 %v6428
  %7440 = vmatprep.subr.bf16.mxu0 %v6421
  %7441 = vmatpush1.bf16.msra.mxu0 %v6420
  %7442 = vmatprep.subr.bf16.mxu0 %v6413
  %7443 = vmatpush1.bf16.msra.mxu0 %v6412
  %7444 = vmatprep.subr.bf16.mxu0 %v6405
  %7445 = vmatpush1.bf16.msra.mxu0 %v6404
  %7446 = vmatprep.subr.bf16.mxu0 %v6397
  %7447 = vmatpush1.bf16.msra.mxu0 %v6396
  %7448 = vmatprep.subr.bf16.mxu0 0
  %7449 = vmatpush2.bf16.msra.mxu0 0
  %7450 = vmatprep.subr.bf16.mxu0 0
  %7451 = vmatpush2.bf16.msra.mxu0 0
  %7452 = vmatprep.subr.bf16.mxu0 0
  %7453 = vmatpush2.bf16.msra.mxu0 0
  %7454 = vmatprep.subr.bf16.mxu0 0
  %7455 = vmatpush2.bf16.msra.mxu0 0
  %7456 = vmatprep.subr.bf16.mxu0 0
  %7457 = vmatpush2.bf16.msra.mxu0 0
  %7458 = vmatprep.subr.bf16.mxu0 0
  %7459 = vmatpush2.bf16.msra.mxu0 0
  %7460 = vmatprep.subr.bf16.mxu0 0
  %7461 = vmatpush2.bf16.msra.mxu0 0
  %7462 = vmatprep.subr.bf16.mxu0 %v6461
  %7463 = vmatpush2.bf16.msra.mxu0 %v6460
  %7464 = vmatprep.mubr.bf16.mxu0 %v6924
  %7465 = vmatmul.mubr.bf16.gmra.mxu0 %v4160
  %v7466 = vpop.f32.mrf.mxu0
  %v7467 = vadd.f32 %v7396, %v7466
  %v7468 = vpop.f32.mrf.mxu0
  %v7469 = vadd.f32 %v7398, %v7468
  %v7470 = vpop.f32.mrf.mxu0
  %v7471 = vadd.f32 %v7400, %v7470
  %v7472 = vpop.f32.mrf.mxu0
  %v7473 = vadd.f32 %v7402, %v7472
  %7474 = vmatprep.mubr.bf16.mxu0 %v6927
  %7475 = vmatmul.mubr.bf16.gmra.mxu0 %v4168
  %v7476 = vpop.f32.mrf.mxu0
  %v7477 = vadd.f32 %v7406, %v7476
  %v7478 = vpop.f32.mrf.mxu0
  %v7479 = vadd.f32 %v7408, %v7478
  %v7480 = vpop.f32.mrf.mxu0
  %v7481 = vadd.f32 %v7410, %v7480
  %v7482 = vpop.f32.mrf.mxu0
  %v7483 = vadd.f32 %v7412, %v7482
  %7484 = vmatprep.mubr.bf16.mxu0 %v6930
  %7485 = vmatmul.mubr.bf16.gmra.mxu0 %v4176
  %v7486 = vpop.f32.mrf.mxu0
  %v7487 = vadd.f32 %v7416, %v7486
  %v7488 = vpop.f32.mrf.mxu0
  %v7489 = vadd.f32 %v7418, %v7488
  %v7490 = vpop.f32.mrf.mxu0
  %v7491 = vadd.f32 %v7420, %v7490
  %v7492 = vpop.f32.mrf.mxu0
  %v7493 = vadd.f32 %v7422, %v7492
  %7494 = vmatprep.mubr.bf16.mxu0 %v6933
  %7495 = vmatmul.mubr.bf16.gmra.mxu0 %v4184
  %v7496 = vpop.f32.mrf.mxu0
  %v7497 = vadd.f32 %v7426, %v7496
  %v7498 = vpop.f32.mrf.mxu0
  %v7499 = vadd.f32 %v7428, %v7498
  %v7500 = vpop.f32.mrf.mxu0
  %v7501 = vpop.f32.mrf.mxu0
  %7502 = vdwg.mxu0
  %7503 = vmatprep.subr.bf16.mxu0 %v6071
  %7504 = vmatpush1.bf16.msra.mxu0 %v6070
  %7505 = vmatprep.subr.bf16.mxu0 %v6063
  %7506 = vmatpush1.bf16.msra.mxu0 %v6062
  %7507 = vmatprep.subr.bf16.mxu0 %v6055
  %7508 = vmatpush1.bf16.msra.mxu0 %v6054
  %7509 = vmatprep.subr.bf16.mxu0 %v6047
  %7510 = vmatpush1.bf16.msra.mxu0 %v6046
  %7511 = vmatprep.subr.bf16.mxu0 %v6039
  %7512 = vmatpush1.bf16.msra.mxu0 %v6038
  %7513 = vmatprep.subr.bf16.mxu0 %v6031
  %7514 = vmatpush1.bf16.msra.mxu0 %v6030
  %7515 = vmatprep.subr.bf16.mxu0 %v6023
  %7516 = vmatpush1.bf16.msra.mxu0 %v6022
  %7517 = vmatprep.subr.bf16.mxu0 %v6015
  %7518 = vmatpush1.bf16.msra.mxu0 %v6014
  %7519 = vmatprep.subr.bf16.mxu0 %v6135
  %7520 = vmatpush2.bf16.msra.mxu0 %v6134
  %7521 = vmatprep.subr.bf16.mxu0 %v6127
  %7522 = vmatpush2.bf16.msra.mxu0 %v6126
  %7523 = vmatprep.subr.bf16.mxu0 %v6119
  %7524 = vmatpush2.bf16.msra.mxu0 %v6118
  %7525 = vmatprep.subr.bf16.mxu0 %v6111
  %7526 = vmatpush2.bf16.msra.mxu0 %v6110
  %7527 = vmatprep.subr.bf16.mxu0 %v6103
  %7528 = vmatpush2.bf16.msra.mxu0 %v6102
  %7529 = vmatprep.subr.bf16.mxu0 %v6095
  %7530 = vmatpush2.bf16.msra.mxu0 %v6094
  %7531 = vmatprep.subr.bf16.mxu0 %v6087
  %7532 = vmatpush2.bf16.msra.mxu0 %v6086
  %7533 = vmatprep.subr.bf16.mxu0 %v6079
  %7534 = vmatpush2.bf16.msra.mxu0 %v6078
  %7535 = vmatprep.mubr.bf16.mxu0 %v4155
  %7536 = vmatmul.mubr.bf16.gmra.mxu0 %v4154
  %v7537 = vpop.f32.mrf.mxu0
  %v7538 = vadd.f32 0.0, %v7537
  %v7539 = vpop.f32.mrf.mxu0
  %v7540 = vadd.f32 0.0, %v7539
  %v7541 = vpop.f32.mrf.mxu0
  %v7542 = vadd.f32 0.0, %v7541
  %v7543 = vpop.f32.mrf.mxu0
  %v7544 = vadd.f32 0.0, %v7543
  %7545 = vmatprep.mubr.bf16.mxu0 %v4163
  %7546 = vmatmul.mubr.bf16.gmra.mxu0 %v4162
  %v7547 = vpop.f32.mrf.mxu0
  %v7548 = vadd.f32 0.0, %v7547
  %v7549 = vpop.f32.mrf.mxu0
  %v7550 = vadd.f32 0.0, %v7549
  %v7551 = vpop.f32.mrf.mxu0
  %v7552 = vadd.f32 0.0, %v7551
  %v7553 = vpop.f32.mrf.mxu0
  %v7554 = vadd.f32 0.0, %v7553
  %7555 = vmatprep.mubr.bf16.mxu0 %v4171
  %7556 = vmatmul.mubr.bf16.gmra.mxu0 %v4170
  %v7557 = vpop.f32.mrf.mxu0
  %v7558 = vadd.f32 0.0, %v7557
  %v7559 = vpop.f32.mrf.mxu0
  %v7560 = vadd.f32 0.0, %v7559
  %v7561 = vpop.f32.mrf.mxu0
  %v7562 = vadd.f32 0.0, %v7561
  %v7563 = vpop.f32.mrf.mxu0
  %v7564 = vadd.f32 0.0, %v7563
  %7565 = vmatprep.mubr.bf16.mxu0 %v4179
  %7566 = vmatmul.mubr.bf16.gmra.mxu0 %v4178
  %v7567 = vpop.f32.mrf.mxu0
  %v7568 = vadd.f32 0.0, %v7567
  %v7569 = vpop.f32.mrf.mxu0
  %v7570 = vadd.f32 0.0, %v7569
  %v7571 = vpop.f32.mrf.mxu0
  %v7572 = vpop.f32.mrf.mxu0
  %7573 = vdwg.mxu0
  %7574 = vmatprep.subr.bf16.mxu0 %v6199
  %7575 = vmatpush1.bf16.msra.mxu0 %v6198
  %7576 = vmatprep.subr.bf16.mxu0 %v6191
  %7577 = vmatpush1.bf16.msra.mxu0 %v6190
  %7578 = vmatprep.subr.bf16.mxu0 %v6183
  %7579 = vmatpush1.bf16.msra.mxu0 %v6182
  %7580 = vmatprep.subr.bf16.mxu0 %v6175
  %7581 = vmatpush1.bf16.msra.mxu0 %v6174
  %7582 = vmatprep.subr.bf16.mxu0 %v6167
  %7583 = vmatpush1.bf16.msra.mxu0 %v6166
  %7584 = vmatprep.subr.bf16.mxu0 %v6159
  %7585 = vmatpush1.bf16.msra.mxu0 %v6158
  %7586 = vmatprep.subr.bf16.mxu0 %v6151
  %7587 = vmatpush1.bf16.msra.mxu0 %v6150
  %7588 = vmatprep.subr.bf16.mxu0 %v6143
  %7589 = vmatpush1.bf16.msra.mxu0 %v6142
  %7590 = vmatprep.subr.bf16.mxu0 %v6263
  %7591 = vmatpush2.bf16.msra.mxu0 %v6262
  %7592 = vmatprep.subr.bf16.mxu0 %v6255
  %7593 = vmatpush2.bf16.msra.mxu0 %v6254
  %7594 = vmatprep.subr.bf16.mxu0 %v6247
  %7595 = vmatpush2.bf16.msra.mxu0 %v6246
  %7596 = vmatprep.subr.bf16.mxu0 %v6239
  %7597 = vmatpush2.bf16.msra.mxu0 %v6238
  %7598 = vmatprep.subr.bf16.mxu0 %v6231
  %7599 = vmatpush2.bf16.msra.mxu0 %v6230
  %7600 = vmatprep.subr.bf16.mxu0 %v6223
  %7601 = vmatpush2.bf16.msra.mxu0 %v6222
  %7602 = vmatprep.subr.bf16.mxu0 %v6215
  %7603 = vmatpush2.bf16.msra.mxu0 %v6214
  %7604 = vmatprep.subr.bf16.mxu0 %v6207
  %7605 = vmatpush2.bf16.msra.mxu0 %v6206
  %7606 = vmatprep.mubr.bf16.mxu0 %v4157
  %7607 = vmatmul.mubr.bf16.gmra.mxu0 %v4156
  %v7608 = vpop.f32.mrf.mxu0
  %v7609 = vadd.f32 %v7538, %v7608
  %v7610 = vpop.f32.mrf.mxu0
  %v7611 = vadd.f32 %v7540, %v7610
  %v7612 = vpop.f32.mrf.mxu0
  %v7613 = vadd.f32 %v7542, %v7612
  %v7614 = vpop.f32.mrf.mxu0
  %v7615 = vadd.f32 %v7544, %v7614
  %7616 = vmatprep.mubr.bf16.mxu0 %v4165
  %7617 = vmatmul.mubr.bf16.gmra.mxu0 %v4164
  %v7618 = vpop.f32.mrf.mxu0
  %v7619 = vadd.f32 %v7548, %v7618
  %v7620 = vpop.f32.mrf.mxu0
  %v7621 = vadd.f32 %v7550, %v7620
  %v7622 = vpop.f32.mrf.mxu0
  %v7623 = vadd.f32 %v7552, %v7622
  %v7624 = vpop.f32.mrf.mxu0
  %v7625 = vadd.f32 %v7554, %v7624
  %7626 = vmatprep.mubr.bf16.mxu0 %v4173
  %7627 = vmatmul.mubr.bf16.gmra.mxu0 %v4172
  %v7628 = vpop.f32.mrf.mxu0
  %v7629 = vadd.f32 %v7558, %v7628
  %v7630 = vpop.f32.mrf.mxu0
  %v7631 = vadd.f32 %v7560, %v7630
  %v7632 = vpop.f32.mrf.mxu0
  %v7633 = vadd.f32 %v7562, %v7632
  %v7634 = vpop.f32.mrf.mxu0
  %v7635 = vadd.f32 %v7564, %v7634
  %7636 = vmatprep.mubr.bf16.mxu0 %v4181
  %7637 = vmatmul.mubr.bf16.gmra.mxu0 %v4180
  %v7638 = vpop.f32.mrf.mxu0
  %v7639 = vadd.f32 %v7568, %v7638
  %v7640 = vpop.f32.mrf.mxu0
  %v7641 = vadd.f32 %v7570, %v7640
  %v7642 = vpop.f32.mrf.mxu0
  %v7643 = vpop.f32.mrf.mxu0
  %7644 = vdwg.mxu0
  %7645 = vmatprep.subr.bf16.mxu0 %v6327
  %7646 = vmatpush1.bf16.msra.mxu0 %v6326
  %7647 = vmatprep.subr.bf16.mxu0 %v6319
  %7648 = vmatpush1.bf16.msra.mxu0 %v6318
  %7649 = vmatprep.subr.bf16.mxu0 %v6311
  %7650 = vmatpush1.bf16.msra.mxu0 %v6310
  %7651 = vmatprep.subr.bf16.mxu0 %v6303
  %7652 = vmatpush1.bf16.msra.mxu0 %v6302
  %7653 = vmatprep.subr.bf16.mxu0 %v6295
  %7654 = vmatpush1.bf16.msra.mxu0 %v6294
  %7655 = vmatprep.subr.bf16.mxu0 %v6287
  %7656 = vmatpush1.bf16.msra.mxu0 %v6286
  %7657 = vmatprep.subr.bf16.mxu0 %v6279
  %7658 = vmatpush1.bf16.msra.mxu0 %v6278
  %7659 = vmatprep.subr.bf16.mxu0 %v6271
  %7660 = vmatpush1.bf16.msra.mxu0 %v6270
  %7661 = vmatprep.subr.bf16.mxu0 %v6391
  %7662 = vmatpush2.bf16.msra.mxu0 %v6390
  %7663 = vmatprep.subr.bf16.mxu0 %v6383
  %7664 = vmatpush2.bf16.msra.mxu0 %v6382
  %7665 = vmatprep.subr.bf16.mxu0 %v6375
  %7666 = vmatpush2.bf16.msra.mxu0 %v6374
  %7667 = vmatprep.subr.bf16.mxu0 %v6367
  %7668 = vmatpush2.bf16.msra.mxu0 %v6366
  %7669 = vmatprep.subr.bf16.mxu0 %v6359
  %7670 = vmatpush2.bf16.msra.mxu0 %v6358
  %7671 = vmatprep.subr.bf16.mxu0 %v6351
  %7672 = vmatpush2.bf16.msra.mxu0 %v6350
  %7673 = vmatprep.subr.bf16.mxu0 %v6343
  %7674 = vmatpush2.bf16.msra.mxu0 %v6342
  %7675 = vmatprep.subr.bf16.mxu0 %v6335
  %7676 = vmatpush2.bf16.msra.mxu0 %v6334
  %7677 = vmatprep.mubr.bf16.mxu0 %v4159
  %7678 = vmatmul.mubr.bf16.gmra.mxu0 %v4158
  %v7679 = vpop.f32.mrf.mxu0
  %v7680 = vadd.f32 %v7609, %v7679
  %v7681 = vpop.f32.mrf.mxu0
  %v7682 = vadd.f32 %v7611, %v7681
  %v7683 = vpop.f32.mrf.mxu0
  %v7684 = vadd.f32 %v7613, %v7683
  %v7685 = vpop.f32.mrf.mxu0
  %v7686 = vadd.f32 %v7615, %v7685
  %7687 = vmatprep.mubr.bf16.mxu0 %v4167
  %7688 = vmatmul.mubr.bf16.gmra.mxu0 %v4166
  %v7689 = vpop.f32.mrf.mxu0
  %v7690 = vadd.f32 %v7619, %v7689
  %v7691 = vpop.f32.mrf.mxu0
  %v7692 = vadd.f32 %v7621, %v7691
  %v7693 = vpop.f32.mrf.mxu0
  %v7694 = vadd.f32 %v7623, %v7693
  %v7695 = vpop.f32.mrf.mxu0
  %v7696 = vadd.f32 %v7625, %v7695
  %7697 = vmatprep.mubr.bf16.mxu0 %v4175
  %7698 = vmatmul.mubr.bf16.gmra.mxu0 %v4174
  %v7699 = vpop.f32.mrf.mxu0
  %v7700 = vadd.f32 %v7629, %v7699
  %v7701 = vpop.f32.mrf.mxu0
  %v7702 = vadd.f32 %v7631, %v7701
  %v7703 = vpop.f32.mrf.mxu0
  %v7704 = vadd.f32 %v7633, %v7703
  %v7705 = vpop.f32.mrf.mxu0
  %v7706 = vadd.f32 %v7635, %v7705
  %7707 = vmatprep.mubr.bf16.mxu0 %v4183
  %7708 = vmatmul.mubr.bf16.gmra.mxu0 %v4182
  %v7709 = vpop.f32.mrf.mxu0
  %v7710 = vadd.f32 %v7639, %v7709
  %v7711 = vpop.f32.mrf.mxu0
  %v7712 = vadd.f32 %v7641, %v7711
  %v7713 = vpop.f32.mrf.mxu0
  %v7714 = vpop.f32.mrf.mxu0
  %7715 = vdwg.mxu0
  %7716 = vmatprep.subr.bf16.mxu0 %v6455
  %7717 = vmatpush1.bf16.msra.mxu0 %v6454
  %7718 = vmatprep.subr.bf16.mxu0 %v6447
  %7719 = vmatpush1.bf16.msra.mxu0 %v6446
  %7720 = vmatprep.subr.bf16.mxu0 %v6439
  %7721 = vmatpush1.bf16.msra.mxu0 %v6438
  %7722 = vmatprep.subr.bf16.mxu0 %v6431
  %7723 = vmatpush1.bf16.msra.mxu0 %v6430
  %7724 = vmatprep.subr.bf16.mxu0 %v6423
  %7725 = vmatpush1.bf16.msra.mxu0 %v6422
  %7726 = vmatprep.subr.bf16.mxu0 %v6415
  %7727 = vmatpush1.bf16.msra.mxu0 %v6414
  %7728 = vmatprep.subr.bf16.mxu0 %v6407
  %7729 = vmatpush1.bf16.msra.mxu0 %v6406
  %7730 = vmatprep.subr.bf16.mxu0 %v6399
  %7731 = vmatpush1.bf16.msra.mxu0 %v6398
  %7732 = vmatprep.subr.bf16.mxu0 0
  %7733 = vmatpush2.bf16.msra.mxu0 0
  %7734 = vmatprep.subr.bf16.mxu0 0
  %7735 = vmatpush2.bf16.msra.mxu0 0
  %7736 = vmatprep.subr.bf16.mxu0 0
  %7737 = vmatpush2.bf16.msra.mxu0 0
  %7738 = vmatprep.subr.bf16.mxu0 0
  %7739 = vmatpush2.bf16.msra.mxu0 0
  %7740 = vmatprep.subr.bf16.mxu0 0
  %7741 = vmatpush2.bf16.msra.mxu0 0
  %7742 = vmatprep.subr.bf16.mxu0 0
  %7743 = vmatpush2.bf16.msra.mxu0 0
  %7744 = vmatprep.subr.bf16.mxu0 0
  %7745 = vmatpush2.bf16.msra.mxu0 0
  %7746 = vmatprep.subr.bf16.mxu0 %v6463
  %7747 = vmatpush2.bf16.msra.mxu0 %v6462
  %7748 = vmatprep.mubr.bf16.mxu0 %v6924
  %7749 = vmatmul.mubr.bf16.gmra.mxu0 %v4160
  %v7750 = vpop.f32.mrf.mxu0
  %v7751 = vadd.f32 %v7680, %v7750
  %v7752 = vpop.f32.mrf.mxu0
  %v7753 = vadd.f32 %v7682, %v7752
  %v7754 = vpop.f32.mrf.mxu0
  %v7755 = vadd.f32 %v7684, %v7754
  %v7756 = vpop.f32.mrf.mxu0
  %v7757 = vadd.f32 %v7686, %v7756
  %7758 = vmatprep.mubr.bf16.mxu0 %v6927
  %7759 = vmatmul.mubr.bf16.gmra.mxu0 %v4168
  %v7760 = vpop.f32.mrf.mxu0
  %v7761 = vadd.f32 %v7690, %v7760
  %v7762 = vpop.f32.mrf.mxu0
  %v7763 = vadd.f32 %v7692, %v7762
  %v7764 = vpop.f32.mrf.mxu0
  %v7765 = vadd.f32 %v7694, %v7764
  %v7766 = vpop.f32.mrf.mxu0
  %v7767 = vadd.f32 %v7696, %v7766
  %7768 = vmatprep.mubr.bf16.mxu0 %v6930
  %7769 = vmatmul.mubr.bf16.gmra.mxu0 %v4176
  %v7770 = vpop.f32.mrf.mxu0
  %v7771 = vadd.f32 %v7700, %v7770
  %v7772 = vpop.f32.mrf.mxu0
  %v7773 = vadd.f32 %v7702, %v7772
  %v7774 = vpop.f32.mrf.mxu0
  %v7775 = vadd.f32 %v7704, %v7774
  %v7776 = vpop.f32.mrf.mxu0
  %v7777 = vadd.f32 %v7706, %v7776
  %7778 = vmatprep.mubr.bf16.mxu0 %v6933
  %7779 = vmatmul.mubr.bf16.gmra.mxu0 %v4184
  %v7780 = vpop.f32.mrf.mxu0
  %v7781 = vadd.f32 %v7710, %v7780
  %v7782 = vpop.f32.mrf.mxu0
  %v7783 = vadd.f32 %v7712, %v7782
  %v7784 = vpop.f32.mrf.mxu0
  %v7785 = vpop.f32.mrf.mxu0
  %7786 = vdwg.mxu0
  %7787 = vmatprep.subr.bf16.mxu0 %v6073
  %7788 = vmatpush1.bf16.msra.mxu0 %v6072
  %7789 = vmatprep.subr.bf16.mxu0 %v6065
  %7790 = vmatpush1.bf16.msra.mxu0 %v6064
  %7791 = vmatprep.subr.bf16.mxu0 %v6057
  %7792 = vmatpush1.bf16.msra.mxu0 %v6056
  %7793 = vmatprep.subr.bf16.mxu0 %v6049
  %7794 = vmatpush1.bf16.msra.mxu0 %v6048
  %7795 = vmatprep.subr.bf16.mxu0 %v6041
  %7796 = vmatpush1.bf16.msra.mxu0 %v6040
  %7797 = vmatprep.subr.bf16.mxu0 %v6033
  %7798 = vmatpush1.bf16.msra.mxu0 %v6032
  %7799 = vmatprep.subr.bf16.mxu0 %v6025
  %7800 = vmatpush1.bf16.msra.mxu0 %v6024
  %7801 = vmatprep.subr.bf16.mxu0 %v6017
  %7802 = vmatpush1.bf16.msra.mxu0 %v6016
  %7803 = vmatprep.subr.bf16.mxu0 %v6137
  %7804 = vmatpush2.bf16.msra.mxu0 %v6136
  %7805 = vmatprep.subr.bf16.mxu0 %v6129
  %7806 = vmatpush2.bf16.msra.mxu0 %v6128
  %7807 = vmatprep.subr.bf16.mxu0 %v6121
  %7808 = vmatpush2.bf16.msra.mxu0 %v6120
  %7809 = vmatprep.subr.bf16.mxu0 %v6113
  %7810 = vmatpush2.bf16.msra.mxu0 %v6112
  %7811 = vmatprep.subr.bf16.mxu0 %v6105
  %7812 = vmatpush2.bf16.msra.mxu0 %v6104
  %7813 = vmatprep.subr.bf16.mxu0 %v6097
  %7814 = vmatpush2.bf16.msra.mxu0 %v6096
  %7815 = vmatprep.subr.bf16.mxu0 %v6089
  %7816 = vmatpush2.bf16.msra.mxu0 %v6088
  %7817 = vmatprep.subr.bf16.mxu0 %v6081
  %7818 = vmatpush2.bf16.msra.mxu0 %v6080
  %7819 = vmatprep.mubr.bf16.mxu0 %v4155
  %7820 = vmatmul.mubr.bf16.gmra.mxu0 %v4154
  %v7821 = vpop.f32.mrf.mxu0
  %v7822 = vadd.f32 0.0, %v7821
  %v7823 = vpop.f32.mrf.mxu0
  %v7824 = vadd.f32 0.0, %v7823
  %v7825 = vpop.f32.mrf.mxu0
  %v7826 = vadd.f32 0.0, %v7825
  %v7827 = vpop.f32.mrf.mxu0
  %v7828 = vadd.f32 0.0, %v7827
  %7829 = vmatprep.mubr.bf16.mxu0 %v4163
  %7830 = vmatmul.mubr.bf16.gmra.mxu0 %v4162
  %v7831 = vpop.f32.mrf.mxu0
  %v7832 = vadd.f32 0.0, %v7831
  %v7833 = vpop.f32.mrf.mxu0
  %v7834 = vadd.f32 0.0, %v7833
  %v7835 = vpop.f32.mrf.mxu0
  %v7836 = vadd.f32 0.0, %v7835
  %v7837 = vpop.f32.mrf.mxu0
  %v7838 = vadd.f32 0.0, %v7837
  %7839 = vmatprep.mubr.bf16.mxu0 %v4171
  %7840 = vmatmul.mubr.bf16.gmra.mxu0 %v4170
  %v7841 = vpop.f32.mrf.mxu0
  %v7842 = vadd.f32 0.0, %v7841
  %v7843 = vpop.f32.mrf.mxu0
  %v7844 = vadd.f32 0.0, %v7843
  %v7845 = vpop.f32.mrf.mxu0
  %v7846 = vadd.f32 0.0, %v7845
  %v7847 = vpop.f32.mrf.mxu0
  %v7848 = vadd.f32 0.0, %v7847
  %7849 = vmatprep.mubr.bf16.mxu0 %v4179
  %7850 = vmatmul.mubr.bf16.gmra.mxu0 %v4178
  %v7851 = vpop.f32.mrf.mxu0
  %v7852 = vadd.f32 0.0, %v7851
  %v7853 = vpop.f32.mrf.mxu0
  %v7854 = vadd.f32 0.0, %v7853
  %v7855 = vpop.f32.mrf.mxu0
  %v7856 = vpop.f32.mrf.mxu0
  %7857 = vdwg.mxu0
  %7858 = vmatprep.subr.bf16.mxu0 %v6201
  %7859 = vmatpush1.bf16.msra.mxu0 %v6200
  %7860 = vmatprep.subr.bf16.mxu0 %v6193
  %7861 = vmatpush1.bf16.msra.mxu0 %v6192
  %7862 = vmatprep.subr.bf16.mxu0 %v6185
  %7863 = vmatpush1.bf16.msra.mxu0 %v6184
  %7864 = vmatprep.subr.bf16.mxu0 %v6177
  %7865 = vmatpush1.bf16.msra.mxu0 %v6176
  %7866 = vmatprep.subr.bf16.mxu0 %v6169
  %7867 = vmatpush1.bf16.msra.mxu0 %v6168
  %7868 = vmatprep.subr.bf16.mxu0 %v6161
  %7869 = vmatpush1.bf16.msra.mxu0 %v6160
  %7870 = vmatprep.subr.bf16.mxu0 %v6153
  %7871 = vmatpush1.bf16.msra.mxu0 %v6152
  %7872 = vmatprep.subr.bf16.mxu0 %v6145
  %7873 = vmatpush1.bf16.msra.mxu0 %v6144
  %7874 = vmatprep.subr.bf16.mxu0 %v6265
  %7875 = vmatpush2.bf16.msra.mxu0 %v6264
  %7876 = vmatprep.subr.bf16.mxu0 %v6257
  %7877 = vmatpush2.bf16.msra.mxu0 %v6256
  %7878 = vmatprep.subr.bf16.mxu0 %v6249
  %7879 = vmatpush2.bf16.msra.mxu0 %v6248
  %7880 = vmatprep.subr.bf16.mxu0 %v6241
  %7881 = vmatpush2.bf16.msra.mxu0 %v6240
  %7882 = vmatprep.subr.bf16.mxu0 %v6233
  %7883 = vmatpush2.bf16.msra.mxu0 %v6232
  %7884 = vmatprep.subr.bf16.mxu0 %v6225
  %7885 = vmatpush2.bf16.msra.mxu0 %v6224
  %7886 = vmatprep.subr.bf16.mxu0 %v6217
  %7887 = vmatpush2.bf16.msra.mxu0 %v6216
  %7888 = vmatprep.subr.bf16.mxu0 %v6209
  %7889 = vmatpush2.bf16.msra.mxu0 %v6208
  %7890 = vmatprep.mubr.bf16.mxu0 %v4157
  %7891 = vmatmul.mubr.bf16.gmra.mxu0 %v4156
  %v7892 = vpop.f32.mrf.mxu0
  %v7893 = vadd.f32 %v7822, %v7892
  %v7894 = vpop.f32.mrf.mxu0
  %v7895 = vadd.f32 %v7824, %v7894
  %v7896 = vpop.f32.mrf.mxu0
  %v7897 = vadd.f32 %v7826, %v7896
  %v7898 = vpop.f32.mrf.mxu0
  %v7899 = vadd.f32 %v7828, %v7898
  %7900 = vmatprep.mubr.bf16.mxu0 %v4165
  %7901 = vmatmul.mubr.bf16.gmra.mxu0 %v4164
  %v7902 = vpop.f32.mrf.mxu0
  %v7903 = vadd.f32 %v7832, %v7902
  %v7904 = vpop.f32.mrf.mxu0
  %v7905 = vadd.f32 %v7834, %v7904
  %v7906 = vpop.f32.mrf.mxu0
  %v7907 = vadd.f32 %v7836, %v7906
  %v7908 = vpop.f32.mrf.mxu0
  %v7909 = vadd.f32 %v7838, %v7908
  %7910 = vmatprep.mubr.bf16.mxu0 %v4173
  %7911 = vmatmul.mubr.bf16.gmra.mxu0 %v4172
  %v7912 = vpop.f32.mrf.mxu0
  %v7913 = vadd.f32 %v7842, %v7912
  %v7914 = vpop.f32.mrf.mxu0
  %v7915 = vadd.f32 %v7844, %v7914
  %v7916 = vpop.f32.mrf.mxu0
  %v7917 = vadd.f32 %v7846, %v7916
  %v7918 = vpop.f32.mrf.mxu0
  %v7919 = vadd.f32 %v7848, %v7918
  %7920 = vmatprep.mubr.bf16.mxu0 %v4181
  %7921 = vmatmul.mubr.bf16.gmra.mxu0 %v4180
  %v7922 = vpop.f32.mrf.mxu0
  %v7923 = vadd.f32 %v7852, %v7922
  %v7924 = vpop.f32.mrf.mxu0
  %v7925 = vadd.f32 %v7854, %v7924
  %v7926 = vpop.f32.mrf.mxu0
  %v7927 = vpop.f32.mrf.mxu0
  %7928 = vdwg.mxu0
  %7929 = vmatprep.subr.bf16.mxu0 %v6329
  %7930 = vmatpush1.bf16.msra.mxu0 %v6328
  %7931 = vmatprep.subr.bf16.mxu0 %v6321
  %7932 = vmatpush1.bf16.msra.mxu0 %v6320
  %7933 = vmatprep.subr.bf16.mxu0 %v6313
  %7934 = vmatpush1.bf16.msra.mxu0 %v6312
  %7935 = vmatprep.subr.bf16.mxu0 %v6305
  %7936 = vmatpush1.bf16.msra.mxu0 %v6304
  %7937 = vmatprep.subr.bf16.mxu0 %v6297
  %7938 = vmatpush1.bf16.msra.mxu0 %v6296
  %7939 = vmatprep.subr.bf16.mxu0 %v6289
  %7940 = vmatpush1.bf16.msra.mxu0 %v6288
  %7941 = vmatprep.subr.bf16.mxu0 %v6281
  %7942 = vmatpush1.bf16.msra.mxu0 %v6280
  %7943 = vmatprep.subr.bf16.mxu0 %v6273
  %7944 = vmatpush1.bf16.msra.mxu0 %v6272
  %7945 = vmatprep.subr.bf16.mxu0 %v6393
  %7946 = vmatpush2.bf16.msra.mxu0 %v6392
  %7947 = vmatprep.subr.bf16.mxu0 %v6385
  %7948 = vmatpush2.bf16.msra.mxu0 %v6384
  %7949 = vmatprep.subr.bf16.mxu0 %v6377
  %7950 = vmatpush2.bf16.msra.mxu0 %v6376
  %7951 = vmatprep.subr.bf16.mxu0 %v6369
  %7952 = vmatpush2.bf16.msra.mxu0 %v6368
  %7953 = vmatprep.subr.bf16.mxu0 %v6361
  %7954 = vmatpush2.bf16.msra.mxu0 %v6360
  %7955 = vmatprep.subr.bf16.mxu0 %v6353
  %7956 = vmatpush2.bf16.msra.mxu0 %v6352
  %7957 = vmatprep.subr.bf16.mxu0 %v6345
  %7958 = vmatpush2.bf16.msra.mxu0 %v6344
  %7959 = vmatprep.subr.bf16.mxu0 %v6337
  %7960 = vmatpush2.bf16.msra.mxu0 %v6336
  %7961 = vmatprep.mubr.bf16.mxu0 %v4159
  %7962 = vmatmul.mubr.bf16.gmra.mxu0 %v4158
  %v7963 = vpop.f32.mrf.mxu0
  %v7964 = vadd.f32 %v7893, %v7963
  %v7965 = vpop.f32.mrf.mxu0
  %v7966 = vadd.f32 %v7895, %v7965
  %v7967 = vpop.f32.mrf.mxu0
  %v7968 = vadd.f32 %v7897, %v7967
  %v7969 = vpop.f32.mrf.mxu0
  %v7970 = vadd.f32 %v7899, %v7969
  %7971 = vmatprep.mubr.bf16.mxu0 %v4167
  %7972 = vmatmul.mubr.bf16.gmra.mxu0 %v4166
  %v7973 = vpop.f32.mrf.mxu0
  %v7974 = vadd.f32 %v7903, %v7973
  %v7975 = vpop.f32.mrf.mxu0
  %v7976 = vadd.f32 %v7905, %v7975
  %v7977 = vpop.f32.mrf.mxu0
  %v7978 = vadd.f32 %v7907, %v7977
  %v7979 = vpop.f32.mrf.mxu0
  %v7980 = vadd.f32 %v7909, %v7979
  %7981 = vmatprep.mubr.bf16.mxu0 %v4175
  %7982 = vmatmul.mubr.bf16.gmra.mxu0 %v4174
  %v7983 = vpop.f32.mrf.mxu0
  %v7984 = vadd.f32 %v7913, %v7983
  %v7985 = vpop.f32.mrf.mxu0
  %v7986 = vadd.f32 %v7915, %v7985
  %v7987 = vpop.f32.mrf.mxu0
  %v7988 = vadd.f32 %v7917, %v7987
  %v7989 = vpop.f32.mrf.mxu0
  %v7990 = vadd.f32 %v7919, %v7989
  %7991 = vmatprep.mubr.bf16.mxu0 %v4183
  %7992 = vmatmul.mubr.bf16.gmra.mxu0 %v4182
  %v7993 = vpop.f32.mrf.mxu0
  %v7994 = vadd.f32 %v7923, %v7993
  %v7995 = vpop.f32.mrf.mxu0
  %v7996 = vadd.f32 %v7925, %v7995
  %v7997 = vpop.f32.mrf.mxu0
  %v7998 = vpop.f32.mrf.mxu0
  %7999 = vdwg.mxu0
  %8000 = vmatprep.subr.bf16.mxu0 %v6457
  %8001 = vmatpush1.bf16.msra.mxu0 %v6456
  %8002 = vmatprep.subr.bf16.mxu0 %v6449
  %8003 = vmatpush1.bf16.msra.mxu0 %v6448
  %8004 = vmatprep.subr.bf16.mxu0 %v6441
  %8005 = vmatpush1.bf16.msra.mxu0 %v6440
  %8006 = vmatprep.subr.bf16.mxu0 %v6433
  %8007 = vmatpush1.bf16.msra.mxu0 %v6432
  %8008 = vmatprep.subr.bf16.mxu0 %v6425
  %8009 = vmatpush1.bf16.msra.mxu0 %v6424
  %8010 = vmatprep.subr.bf16.mxu0 %v6417
  %8011 = vmatpush1.bf16.msra.mxu0 %v6416
  %8012 = vmatprep.subr.bf16.mxu0 %v6409
  %8013 = vmatpush1.bf16.msra.mxu0 %v6408
  %8014 = vmatprep.subr.bf16.mxu0 %v6401
  %8015 = vmatpush1.bf16.msra.mxu0 %v6400
  %8016 = vmatprep.subr.bf16.mxu0 0
  %8017 = vmatpush2.bf16.msra.mxu0 0
  %8018 = vmatprep.subr.bf16.mxu0 0
  %8019 = vmatpush2.bf16.msra.mxu0 0
  %8020 = vmatprep.subr.bf16.mxu0 0
  %8021 = vmatpush2.bf16.msra.mxu0 0
  %8022 = vmatprep.subr.bf16.mxu0 0
  %8023 = vmatpush2.bf16.msra.mxu0 0
  %8024 = vmatprep.subr.bf16.mxu0 0
  %8025 = vmatpush2.bf16.msra.mxu0 0
  %8026 = vmatprep.subr.bf16.mxu0 0
  %8027 = vmatpush2.bf16.msra.mxu0 0
  %8028 = vmatprep.subr.bf16.mxu0 0
  %8029 = vmatpush2.bf16.msra.mxu0 0
  %8030 = vmatprep.subr.bf16.mxu0 %v6465
  %8031 = vmatpush2.bf16.msra.mxu0 %v6464
  %8032 = vmatprep.mubr.bf16.mxu0 %v6924
  %8033 = vmatmul.mubr.bf16.gmra.mxu0 %v4160
  %v8034 = vpop.f32.mrf.mxu0
  %v8035 = vadd.f32 %v7964, %v8034
  %v8036 = vpop.f32.mrf.mxu0
  %v8037 = vadd.f32 %v7966, %v8036
  %v8038 = vpop.f32.mrf.mxu0
  %v8039 = vadd.f32 %v7968, %v8038
  %v8040 = vpop.f32.mrf.mxu0
  %v8041 = vadd.f32 %v7970, %v8040
  %8042 = vmatprep.mubr.bf16.mxu0 %v6927
  %8043 = vmatmul.mubr.bf16.gmra.mxu0 %v4168
  %v8044 = vpop.f32.mrf.mxu0
  %v8045 = vadd.f32 %v7974, %v8044
  %v8046 = vpop.f32.mrf.mxu0
  %v8047 = vadd.f32 %v7976, %v8046
  %v8048 = vpop.f32.mrf.mxu0
  %v8049 = vadd.f32 %v7978, %v8048
  %v8050 = vpop.f32.mrf.mxu0
  %v8051 = vadd.f32 %v7980, %v8050
  %8052 = vmatprep.mubr.bf16.mxu0 %v6930
  %8053 = vmatmul.mubr.bf16.gmra.mxu0 %v4176
  %v8054 = vpop.f32.mrf.mxu0
  %v8055 = vadd.f32 %v7984, %v8054
  %v8056 = vpop.f32.mrf.mxu0
  %v8057 = vadd.f32 %v7986, %v8056
  %v8058 = vpop.f32.mrf.mxu0
  %v8059 = vadd.f32 %v7988, %v8058
  %v8060 = vpop.f32.mrf.mxu0
  %v8061 = vadd.f32 %v7990, %v8060
  %8062 = vmatprep.mubr.bf16.mxu0 %v6933
  %8063 = vmatmul.mubr.bf16.gmra.mxu0 %v4184
  %v8064 = vpop.f32.mrf.mxu0
  %v8065 = vadd.f32 %v7994, %v8064
  %v8066 = vpop.f32.mrf.mxu0
  %v8067 = vadd.f32 %v7996, %v8066
  %v8068 = vpop.f32.mrf.mxu0
  %v8069 = vpop.f32.mrf.mxu0
  %8070 = vdwg.mxu0
  %8071 = vst [vmem:[%s5] sm:$0xff] %v7183
  %8072 = vst [vmem:[%s5 + $0x8] sm:$0xff] %v7185
  %8073 = vst [vmem:[%s5 + $0x10] sm:$0xff] %v7467
  %8074 = vst [vmem:[%s5 + $0x18] sm:$0xff] %v7469
  %8075 = vst [vmem:[%s5 + $0x20] sm:$0xff] %v7751
  %8076 = vst [vmem:[%s5 + $0x28] sm:$0xff] %v7753
  %8077 = vst [vmem:[%s5 + $0x30] sm:$0xff] %v8035
  %8078 = vst.msk [vmem:[%s5 + $0x38] sm:$0xff] %vm6922, %v8037
  %8079 = vst [vmem:[%s5 + $0x40] sm:$0xff] %v7187
  %8080 = vst [vmem:[%s5 + $0x48] sm:$0xff] %v7189
  %8081 = vst [vmem:[%s5 + $0x50] sm:$0xff] %v7471
  %8082 = vst [vmem:[%s5 + $0x58] sm:$0xff] %v7473
  %8083 = vst [vmem:[%s5 + $0x60] sm:$0xff] %v7755
  %8084 = vst [vmem:[%s5 + $0x68] sm:$0xff] %v7757
  %8085 = vst [vmem:[%s5 + $0x70] sm:$0xff] %v8039
  %8086 = vst.msk [vmem:[%s5 + $0x78] sm:$0xff] %vm6922, %v8041
  %8087 = vst [vmem:[%s5 + $0x80] sm:$0xff] %v7193
  %8088 = vst [vmem:[%s5 + $0x88] sm:$0xff] %v7195
  %8089 = vst [vmem:[%s5 + $0x90] sm:$0xff] %v7477
  %8090 = vst [vmem:[%s5 + $0x98] sm:$0xff] %v7479
  %8091 = vst [vmem:[%s5 + $0xa0] sm:$0xff] %v7761
  %8092 = vst [vmem:[%s5 + $0xa8] sm:$0xff] %v7763
  %8093 = vst [vmem:[%s5 + $0xb0] sm:$0xff] %v8045
  %8094 = vst.msk [vmem:[%s5 + $0xb8] sm:$0xff] %vm6922, %v8047
  %8095 = vst [vmem:[%s5 + $0xc0] sm:$0xff] %v7197
  %8096 = vst [vmem:[%s5 + $0xc8] sm:$0xff] %v7199
  %8097 = vst [vmem:[%s5 + $0xd0] sm:$0xff] %v7481
  %8098 = vst [vmem:[%s5 + $0xd8] sm:$0xff] %v7483
  %8099 = vst [vmem:[%s5 + $0xe0] sm:$0xff] %v7765
  %8100 = vst [vmem:[%s5 + $0xe8] sm:$0xff] %v7767
  %8101 = vst [vmem:[%s5 + $0xf0] sm:$0xff] %v8049
  %8102 = vst.msk [vmem:[%s5 + $0xf8] sm:$0xff] %vm6922, %v8051
  %8103 = vst [vmem:[%s5 + $0x100] sm:$0xff] %v7203
  %8104 = vst [vmem:[%s5 + $0x108] sm:$0xff] %v7205
  %8105 = vst [vmem:[%s5 + $0x110] sm:$0xff] %v7487
  %8106 = vst [vmem:[%s5 + $0x118] sm:$0xff] %v7489
  %8107 = vst [vmem:[%s5 + $0x120] sm:$0xff] %v7771
  %8108 = vst [vmem:[%s5 + $0x128] sm:$0xff] %v7773
  %8109 = vst [vmem:[%s5 + $0x130] sm:$0xff] %v8055
  %8110 = vst.msk [vmem:[%s5 + $0x138] sm:$0xff] %vm6922, %v8057
  %8111 = vst [vmem:[%s5 + $0x140] sm:$0xff] %v7207
  %8112 = vst [vmem:[%s5 + $0x148] sm:$0xff] %v7209
  %8113 = vst [vmem:[%s5 + $0x150] sm:$0xff] %v7491
  %8114 = vst [vmem:[%s5 + $0x158] sm:$0xff] %v7493
  %8115 = vst [vmem:[%s5 + $0x160] sm:$0xff] %v7775
  %8116 = vst [vmem:[%s5 + $0x168] sm:$0xff] %v7777
  %8117 = vst [vmem:[%s5 + $0x170] sm:$0xff] %v8059
  %8118 = vst.msk [vmem:[%s5 + $0x178] sm:$0xff] %vm6922, %v8061
  %8119 = vst [vmem:[%s5 + $0x180] sm:$0x1] %v7213
  %8120 = vst [vmem:[%s5 + $0x188] sm:$0x1] %v7215
  %8121 = vst [vmem:[%s5 + $0x190] sm:$0x1] %v7497
  %8122 = vst [vmem:[%s5 + $0x198] sm:$0x1] %v7499
  %8123 = vst [vmem:[%s5 + $0x1a0] sm:$0x1] %v7781
  %8124 = vst [vmem:[%s5 + $0x1a8] sm:$0x1] %v7783
  %8125 = vst [vmem:[%s5 + $0x1b0] sm:$0x1] %v8065
  %vm8126 = vcmask 122880
  %8127 = vst.msk [vmem:[%s5 + $0x1b8] sm:$0x1] %vm8126, %v8067
  // Predicated region
  $region22: #{forward.1} parent=0 // pred_check
    _
  $region23: #{forward.1} parent=0 // pred_check_branch
    %8129 = sbr.rel (0) target = $region25
  $region24: #{forward.1} parent=0 // pred_region
    _
  $region25: #{forward.1} parent=0 // pred_fallthru
    _
  // Predicated region
  $region26: #{forward.1} parent=0 // pred_check
    _
  $region27: #{forward.1} parent=0 // pred_check_branch
    %8131 = sbr.rel (0) target = $region29
  $region28: #{forward.1} parent=0 // pred_region
    _
  $region29: #{forward.1} parent=0 // pred_fallthru
    _

</llo_original>
